<compile_context>
chip_gen: v5e
topology: v5e:2x2
jax: 0.10.0
libtpu: 0.0.40
codegen_flags: <defaults>
</compile_context>

<pallas_src>
import functools

import jax
import jax.numpy as jnp
from jax.experimental import pallas as pl
from jax.experimental.pallas import tpu as pltpu

LANES = 128   # padded channel width -> lane-dense activations everywhere
LPAD = 8      # left spatial pad so interior stores start on a sublane multiple


# ---------------------------------------------------------------------------
# Fused kernel: one grid step == one sample, everything stays in VMEM
# ---------------------------------------------------------------------------

def _embedder_kernel(x_ref, kemb_ref, w1_ref, b1_ref, w2_ref, b2_ref,
                     w3_ref, b3_ref, w4_ref, b4_ref,
                     o_ref, pa_ref, pb_ref, *, H, W):
    """Fused Embedder forward for one sample.

    x_ref   : (1, H+2, PW, 128) bf16  NHWC input, channel-padded + halo-padded
    kemb_ref: (1, 1, 128)       f32   fc_key(key) for this sample (zero padded)
    w*_ref  : (9, 128, 128)     bf16  per-tap conv weights (taps row-major dy,dx)
    b*_ref  : (1, 128)          f32   conv biases (zero padded)
    o_ref   : (1, H*W, 128)     f32   lane-dense padded output (sliced in wrapper)
    pa/pb   : (H+2, PW, 128)    bf16  halo-padded activation scratch (ping-pong)
    """
    HW = H * W
    C = LANES
    PW = LPAD + W + 2

    def conv(p, w_ref, b_ref):
        # 3x3 "SAME" conv as 9 accumulated MXU matmuls (bf16 operands, f32 acc).
        acc = jnp.zeros((HW, C), jnp.float32)
        for dy in range(3):
            for dx in range(3):
                c0 = LPAD - 1 + dx
                tap = p[dy:dy + H, c0:c0 + W, :]              # (H, W, C) bf16
                acc = acc + jnp.dot(tap.reshape(HW, C), w_ref[dy * 3 + dx],
                                    preferred_element_type=jnp.float32)
        return acc + b_ref[...]                               # (HW, C) f32

    def store_interior(ref, y):
        ref[pl.ds(1, H), pl.ds(LPAD, W), :] = y.reshape(H, W, C).astype(ref.dtype)

    # Zero only the halo strips that the tap loop actually reads; the interior is
    # always overwritten before being read.  Done EVERY grid step: scratch persists
    # across steps and is per-TensorCore under ("parallel",) megacore sharding.
    zrow = jnp.zeros((1, PW, C), jnp.bfloat16)
    zcol = jnp.zeros((H + 2, 2, C), jnp.bfloat16)
    for ref in (pa_ref, pb_ref):
        ref[pl.ds(0, 1), pl.ds(0, PW), :] = zrow              # top halo row
        ref[pl.ds(H + 1, 1), pl.ds(0, PW), :] = zrow          # bottom halo row
        ref[pl.ds(0, H + 2), pl.ds(LPAD - 2, 2), :] = zcol    # left halo (pair-aligned)
        ref[pl.ds(0, H + 2), pl.ds(LPAD + W, 2), :] = zcol    # right halo (pair-aligned)

    # ---- encoder conv1 + ReLU (input already halo/channel padded by wrapper) ----
    y = jnp.maximum(conv(x_ref[0], w1_ref, b1_ref), 0.0)
    store_interior(pa_ref, y)

    # ---- encoder conv2 + ReLU, then + key embedding (fc_key hoisted) ----
    y = jnp.maximum(conv(pa_ref[...], w2_ref, b2_ref), 0.0) + kemb_ref[0]
    store_interior(pb_ref, y)

    # ---- decoder conv1 + ReLU ----
    y = jnp.maximum(conv(pb_ref[...], w3_ref, b3_ref), 0.0)
    store_interior(pa_ref, y)

    # ---- decoder conv2 (no ReLU), lane-dense 128-channel padded output ----
    o_ref[0] = conv(pa_ref[...], w4_ref, b4_ref)


# ---------------------------------------------------------------------------
# Wrapper: weight packing / padding, input padding, pallas_call setup
# ---------------------------------------------------------------------------

def _pack_conv(w_hwio):
    """(3,3,Cin,Cout) -> (9, 128, 128) bf16, tap-major, zero padded channels."""
    kh, kw, cin, cout = w_hwio.shape
    w = w_hwio.reshape(kh * kw, cin, cout)
    w = jnp.pad(w, ((0, 0), (0, LANES - cin), (0, LANES - cout)))
    return w.astype(jnp.bfloat16)


def _pad_vec(b):
    b = b.reshape(1, -1).astype(jnp.float32)
    return jnp.pad(b, ((0, 0), (0, LANES - b.shape[-1])))


def embedder_forward(params, latents_nchw, key_vec):
    """Matches Embedder.forward (NCHW in/out) with a single fused Pallas kernel."""
    N, Cin, H, W = latents_nchw.shape
    Cout = params["dec2_w"].shape[-1]
    HW = H * W
    PW = LPAD + W + 2

    # NCHW -> NHWC, halo + channel pad, bf16 (lane-dense input DMA, conv1 reuses
    # the in-kernel tap loop -> no wrapper im2col, no 9x HBM expansion).
    x = jnp.transpose(latents_nchw, (0, 2, 3, 1))
    x = jnp.pad(x, ((0, 0), (1, 1), (LPAD, 2), (0, LANES - Cin)))
    x = x.astype(jnp.bfloat16)                                # (N, H+2, PW, 128)

    # fc_key hoisted: one batched XLA matmul in f32, channel-padded to 128.
    kemb = key_vec.astype(jnp.float32) @ params["fc_w"] + params["fc_b"]
    kemb = jnp.pad(kemb, ((0, 0), (0, LANES - kemb.shape[-1])))
    kemb = kemb.reshape(N, 1, LANES)                          # (N, 1, 128) f32

    w1 = _pack_conv(params["enc1_w"]); b1 = _pad_vec(params["enc1_b"])
    w2 = _pack_conv(params["enc2_w"]); b2 = _pad_vec(params["enc2_b"])
    w3 = _pack_conv(params["dec1_w"]); b3 = _pad_vec(params["dec1_b"])
    w4 = _pack_conv(params["dec2_w"]); b4 = _pad_vec(params["dec2_b"])

    kernel = functools.partial(_embedder_kernel, H=H, W=W)

    def const(shape):
        return pl.BlockSpec(shape, lambda n: (0,) * len(shape))

    out = pl.pallas_call(
        kernel,
        out_shape=jax.ShapeDtypeStruct((N, HW, LANES), jnp.float32),
        grid=(N,),
        in_specs=[
            pl.BlockSpec((1, H + 2, PW, LANES), lambda n: (n, 0, 0, 0)),  # input
            pl.BlockSpec((1, 1, LANES), lambda n: (n, 0, 0)),             # key embed
            const(w1.shape), const(b1.shape),
            const(w2.shape), const(b2.shape),
            const(w3.shape), const(b3.shape),
            const(w4.shape), const(b4.shape),
        ],
        out_specs=pl.BlockSpec((1, HW, LANES), lambda n: (n, 0, 0)),
        scratch_shapes=[
            pltpu.VMEM((H + 2, PW, LANES), jnp.bfloat16),
            pltpu.VMEM((H + 2, PW, LANES), jnp.bfloat16),
        ],
        compiler_params=pltpu.CompilerParams(
            dimension_semantics=("parallel",)),
    )(x, kemb, w1, b1, w2, b2, w3, b3, w4, b4)

    out = out[:, :, :Cout].reshape(N, H, W, Cout)             # drop padded channels
    return jnp.transpose(out, (0, 3, 1, 2))                   # -> NCHW


# ---------------------------------------------------------------------------
# Parameter init (deterministic, PyTorch-default-like uniform fan-in bounds)
# ---------------------------------------------------------------------------

def init_params(rng, latent_dim=4, key_dim=128):
    def conv_init(rng, cin, cout):
        k1, k2 = jax.random.split(rng)
        bound = 1.0 / jnp.sqrt(cin * 9.0)
        w = jax.random.uniform(k1, (3, 3, cin, cout), jnp.float32, -bound, bound)
        b = jax.random.uniform(k2, (cout,), jnp.float32, -bound, bound)
        return w, b

    def linear_init(rng, fin, fout):
        k1, k2 = jax.random.split(rng)
        bound = 1.0 / jnp.sqrt(float(fin))
        w = jax.random.uniform(k1, (fin, fout), jnp.float32, -bound, bound)
        b = jax.random.uniform(k2, (fout,), jnp.float32, -bound, bound)
        return w, b

    r = jax.random.split(rng, 5)
    enc1_w, enc1_b = conv_init(r[0], latent_dim, 32)
    enc2_w, enc2_b = conv_init(r[1], 32, 32)
    fc_w, fc_b = linear_init(r[2], key_dim, 32)
    dec1_w, dec1_b = conv_init(r[3], 32, 32)
    dec2_w, dec2_b = conv_init(r[4], 32, latent_dim)
    return dict(enc1_w=enc1_w, enc1_b=enc1_b, enc2_w=enc2_w, enc2_b=enc2_b,
                fc_w=fc_w, fc_b=fc_b, dec1_w=dec1_w, dec1_b=dec1_b,
                dec2_w=dec2_w, dec2_b=dec2_b)


# ---------------------------------------------------------------------------
# Pure-JAX reference (f32) for the correctness check
# ---------------------------------------------------------------------------

def _ref_conv(x_nhwc, w_hwio, b, relu):
    y = jax.lax.conv_general_dilated(
        x_nhwc, w_hwio, (1, 1), "SAME",
        dimension_numbers=("NHWC", "HWIO", "NHWC"))
    y = y + b
    return jnp.maximum(y, 0.0) if relu else y


def reference_forward(params, latents_nchw, key_vec):
    x = jnp.transpose(latents_nchw, (0, 2, 3, 1))
    x = _ref_conv(x, params["enc1_w"], params["enc1_b"], True)
    x = _ref_conv(x, params["enc2_w"], params["enc2_b"], True)
    k = key_vec @ params["fc_w"] + params["fc_b"]
    x = x + k[:, None, None, :]
    x = _ref_conv(x, params["dec1_w"], params["dec1_b"], True)
    x = _ref_conv(x, params["dec2_w"], params["dec2_b"], False)
    return jnp.transpose(x, (0, 3, 1, 2))


# ---------------------------------------------------------------------------

if __name__ == "__main__":
    LATENT_DIM, KEY_DIM = 4, 128
    N, H, W = 2, 16, 16

    root = jax.random.PRNGKey(0)
    k_params, k_lat, k_key = jax.random.split(root, 3)

    params = init_params(k_params, LATENT_DIM, KEY_DIM)
    latents = jax.random.normal(k_lat, (N, LATENT_DIM, H, W), jnp.float32)  # NCHW
    wm_key = jax.random.normal(k_key, (N, KEY_DIM), jnp.float32)

    out = embedder_forward(params, latents, wm_key)
    out = jax.block_until_ready(out)

    assert out.shape == (N, LATENT_DIM, H, W), out.shape

    ref = jax.block_until_ready(reference_forward(params, latents, wm_key))
    # bf16 MXU operands with f32 accumulation -> slightly looser tolerance vs f32 ref
    assert jnp.allclose(out, ref, atol=2e-2, rtol=2e-2), (
        float(jnp.max(jnp.abs(out - ref))))

    print("KERNEL_OK")
</pallas_src>

<mosaic_0001>
module attributes {stable_mosaic.version = 11 : i64} {
  func.func @_embedder_kernel(%arg0: i32, %arg1: memref<1x18x26x128xbf16, #tpu.memory_space<vmem>>, %arg2: memref<1x1x128xf32, #tpu.memory_space<vmem>>, %arg3: memref<9x128x128xbf16, #tpu.memory_space<vmem>>, %arg4: memref<1x128xf32, #tpu.memory_space<vmem>>, %arg5: memref<9x128x128xbf16, #tpu.memory_space<vmem>>, %arg6: memref<1x128xf32, #tpu.memory_space<vmem>>, %arg7: memref<9x128x128xbf16, #tpu.memory_space<vmem>>, %arg8: memref<1x128xf32, #tpu.memory_space<vmem>>, %arg9: memref<9x128x128xbf16, #tpu.memory_space<vmem>>, %arg10: memref<1x128xf32, #tpu.memory_space<vmem>>, %arg11: memref<1x256x128xf32, #tpu.memory_space<vmem>>, %arg12: memref<18x26x128xbf16, #tpu.memory_space<vmem>>, %arg13: memref<18x26x128xbf16, #tpu.memory_space<vmem>>) attributes {dimension_semantics = [#tpu.dimension_semantics<parallel>], iteration_bounds = array<i64: 2>, scalar_prefetch = 0 : i64, scratch_operands = 2 : i64, tpu.core_type = #tpu.core_type<tc>, window_params = [{transform_indices = @transform_0, window_bounds = array<i64: 1, 18, 26, 128>}, {transform_indices = @transform_1, window_bounds = array<i64: 1, 1, 128>}, {pipeline_mode = #tpu.pipeline_mode<synchronous>, transform_indices = @transform_2, window_bounds = array<i64: 9, 128, 128>}, {pipeline_mode = #tpu.pipeline_mode<synchronous>, transform_indices = @transform_3, window_bounds = array<i64: 1, 128>}, {pipeline_mode = #tpu.pipeline_mode<synchronous>, transform_indices = @transform_4, window_bounds = array<i64: 9, 128, 128>}, {pipeline_mode = #tpu.pipeline_mode<synchronous>, transform_indices = @transform_5, window_bounds = array<i64: 1, 128>}, {pipeline_mode = #tpu.pipeline_mode<synchronous>, transform_indices = @transform_6, window_bounds = array<i64: 9, 128, 128>}, {pipeline_mode = #tpu.pipeline_mode<synchronous>, transform_indices = @transform_7, window_bounds = array<i64: 1, 128>}, {pipeline_mode = #tpu.pipeline_mode<synchronous>, transform_indices = @transform_8, window_bounds = array<i64: 9, 128, 128>}, {pipeline_mode = #tpu.pipeline_mode<synchronous>, transform_indices = @transform_9, window_bounds = array<i64: 1, 128>}, {transform_indices = @transform_10, window_bounds = array<i64: 1, 256, 128>}]} {
    %cst = arith.constant 0.000000e+00 : bf16
    %0 = vector.broadcast %cst : bf16 to vector<1x26x128xbf16>
    %cst_0 = arith.constant 0.000000e+00 : bf16
    %1 = vector.broadcast %cst_0 : bf16 to vector<18x2x128xbf16>
    %c0 = arith.constant 0 : index
    %c0_1 = arith.constant 0 : index
    %c0_2 = arith.constant 0 : index
    %2 = vector.load %arg12[%c0, %c0_1, %c0_2] : memref<18x26x128xbf16, #tpu.memory_space<vmem>>, vector<1x26x128xbf16>
    tpu.vector_store %arg12[%c0, %c0_1, %c0_2], %0 {strides = array<i32>} : memref<18x26x128xbf16, #tpu.memory_space<vmem>>, vector<1x26x128xbf16>,
    %c17 = arith.constant 17 : index
    %c0_3 = arith.constant 0 : index
    %c0_4 = arith.constant 0 : index
    %3 = vector.load %arg12[%c17, %c0_3, %c0_4] : memref<18x26x128xbf16, #tpu.memory_space<vmem>>, vector<1x26x128xbf16>
    tpu.vector_store %arg12[%c17, %c0_3, %c0_4], %0 {strides = array<i32>} : memref<18x26x128xbf16, #tpu.memory_space<vmem>>, vector<1x26x128xbf16>,
    %c0_5 = arith.constant 0 : index
    %c6 = arith.constant 6 : index
    %c0_6 = arith.constant 0 : index
    %4 = vector.load %arg12[%c0_5, %c6, %c0_6] : memref<18x26x128xbf16, #tpu.memory_space<vmem>>, vector<18x2x128xbf16>
    tpu.vector_store %arg12[%c0_5, %c6, %c0_6], %1 {strides = array<i32>} : memref<18x26x128xbf16, #tpu.memory_space<vmem>>, vector<18x2x128xbf16>,
    %c0_7 = arith.constant 0 : index
    %c24 = arith.constant 24 : index
    %c0_8 = arith.constant 0 : index
    %5 = vector.load %arg12[%c0_7, %c24, %c0_8] : memref<18x26x128xbf16, #tpu.memory_space<vmem>>, vector<18x2x128xbf16>
    tpu.vector_store %arg12[%c0_7, %c24, %c0_8], %1 {strides = array<i32>} : memref<18x26x128xbf16, #tpu.memory_space<vmem>>, vector<18x2x128xbf16>,
    %c0_9 = arith.constant 0 : index
    %c0_10 = arith.constant 0 : index
    %c0_11 = arith.constant 0 : index
    %6 = vector.load %arg13[%c0_9, %c0_10, %c0_11] : memref<18x26x128xbf16, #tpu.memory_space<vmem>>, vector<1x26x128xbf16>
    tpu.vector_store %arg13[%c0_9, %c0_10, %c0_11], %0 {strides = array<i32>} : memref<18x26x128xbf16, #tpu.memory_space<vmem>>, vector<1x26x128xbf16>,
    %c17_12 = arith.constant 17 : index
    %c0_13 = arith.constant 0 : index
    %c0_14 = arith.constant 0 : index
    %7 = vector.load %arg13[%c17_12, %c0_13, %c0_14] : memref<18x26x128xbf16, #tpu.memory_space<vmem>>, vector<1x26x128xbf16>
    tpu.vector_store %arg13[%c17_12, %c0_13, %c0_14], %0 {strides = array<i32>} : memref<18x26x128xbf16, #tpu.memory_space<vmem>>, vector<1x26x128xbf16>,
    %c0_15 = arith.constant 0 : index
    %c6_16 = arith.constant 6 : index
    %c0_17 = arith.constant 0 : index
    %8 = vector.load %arg13[%c0_15, %c6_16, %c0_17] : memref<18x26x128xbf16, #tpu.memory_space<vmem>>, vector<18x2x128xbf16>
    tpu.vector_store %arg13[%c0_15, %c6_16, %c0_17], %1 {strides = array<i32>} : memref<18x26x128xbf16, #tpu.memory_space<vmem>>, vector<18x2x128xbf16>,
    %c0_18 = arith.constant 0 : index
    %c24_19 = arith.constant 24 : index
    %c0_20 = arith.constant 0 : index
    %9 = vector.load %arg13[%c0_18, %c24_19, %c0_20] : memref<18x26x128xbf16, #tpu.memory_space<vmem>>, vector<18x2x128xbf16>
    tpu.vector_store %arg13[%c0_18, %c24_19, %c0_20], %1 {strides = array<i32>} : memref<18x26x128xbf16, #tpu.memory_space<vmem>>, vector<18x2x128xbf16>,
    %c0_21 = arith.constant 0 : index
    %c0_22 = arith.constant 0 : index
    %c0_23 = arith.constant 0 : index
    %c0_24 = arith.constant 0 : index
    %10 = vector.load %arg1[%c0_21, %c0_22, %c0_23, %c0_24] : memref<1x18x26x128xbf16, #tpu.memory_space<vmem>>, vector<1x18x26x128xbf16>
    %11 = vector.shape_cast %10 : vector<1x18x26x128xbf16> to vector<18x26x128xbf16>
    %cst_25 = arith.constant 0.000000e+00 : f32
    %12 = vector.broadcast %cst_25 : f32 to vector<256x128xf32>
    %13 = vector.extract_strided_slice %11 {offsets = [0, 7, 0], sizes = [16, 16, 128], strides = [1, 1, 1]} : vector<18x26x128xbf16> to vector<16x16x128xbf16>
    %14 = vector.shape_cast %13 : vector<16x16x128xbf16> to vector<256x128xbf16>
    %c0_26 = arith.constant 0 : index
    %c0_27 = arith.constant 0 : index
    %c0_28 = arith.constant 0 : index
    %15 = vector.load %arg3[%c0_26, %c0_27, %c0_28] : memref<9x128x128xbf16, #tpu.memory_space<vmem>>, vector<1x128x128xbf16>
    %16 = vector.shape_cast %15 : vector<1x128x128xbf16> to vector<128x128xbf16>
    %cst_29 = arith.constant dense<0.000000e+00> : vector<256x128xf32>
    %17 = tpu.matmul %14, %16, %cst_29 {dimension_numbers = #tpu.dot_dimension_numbers<[1], [0], [0], [1], [0, 0, 1, 1], [], []>} : vector<256x128xbf16>, vector<128x128xbf16>, vector<256x128xf32> -> vector<256x128xf32>
    %18 = arith.addf %12, %17 : vector<256x128xf32>
    %19 = vector.extract_strided_slice %11 {offsets = [0, 8, 0], sizes = [16, 16, 128], strides = [1, 1, 1]} : vector<18x26x128xbf16> to vector<16x16x128xbf16>
    %20 = vector.shape_cast %19 : vector<16x16x128xbf16> to vector<256x128xbf16>
    %c1 = arith.constant 1 : index
    %c0_30 = arith.constant 0 : index
    %c0_31 = arith.constant 0 : index
    %21 = vector.load %arg3[%c1, %c0_30, %c0_31] : memref<9x128x128xbf16, #tpu.memory_space<vmem>>, vector<1x128x128xbf16>
    %22 = vector.shape_cast %21 : vector<1x128x128xbf16> to vector<128x128xbf16>
    %cst_32 = arith.constant dense<0.000000e+00> : vector<256x128xf32>
    %23 = tpu.matmul %20, %22, %cst_32 {dimension_numbers = #tpu.dot_dimension_numbers<[1], [0], [0], [1], [0, 0, 1, 1], [], []>} : vector<256x128xbf16>, vector<128x128xbf16>, vector<256x128xf32> -> vector<256x128xf32>
    %24 = arith.addf %18, %23 : vector<256x128xf32>
    %25 = vector.extract_strided_slice %11 {offsets = [0, 9, 0], sizes = [16, 16, 128], strides = [1, 1, 1]} : vector<18x26x128xbf16> to vector<16x16x128xbf16>
    %26 = vector.shape_cast %25 : vector<16x16x128xbf16> to vector<256x128xbf16>
    %c2 = arith.constant 2 : index
    %c0_33 = arith.constant 0 : index
    %c0_34 = arith.constant 0 : index
    %27 = vector.load %arg3[%c2, %c0_33, %c0_34] : memref<9x128x128xbf16, #tpu.memory_space<vmem>>, vector<1x128x128xbf16>
    %28 = vector.shape_cast %27 : vector<1x128x128xbf16> to vector<128x128xbf16>
    %cst_35 = arith.constant dense<0.000000e+00> : vector<256x128xf32>
    %29 = tpu.matmul %26, %28, %cst_35 {dimension_numbers = #tpu.dot_dimension_numbers<[1], [0], [0], [1], [0, 0, 1, 1], [], []>} : vector<256x128xbf16>, vector<128x128xbf16>, vector<256x128xf32> -> vector<256x128xf32>
    %30 = arith.addf %24, %29 : vector<256x128xf32>
    %31 = vector.extract_strided_slice %11 {offsets = [1, 7, 0], sizes = [16, 16, 128], strides = [1, 1, 1]} : vector<18x26x128xbf16> to vector<16x16x128xbf16>
    %32 = vector.shape_cast %31 : vector<16x16x128xbf16> to vector<256x128xbf16>
    %c3 = arith.constant 3 : index
    %c0_36 = arith.constant 0 : index
    %c0_37 = arith.constant 0 : index
    %33 = vector.load %arg3[%c3, %c0_36, %c0_37] : memref<9x128x128xbf16, #tpu.memory_space<vmem>>, vector<1x128x128xbf16>
    %34 = vector.shape_cast %33 : vector<1x128x128xbf16> to vector<128x128xbf16>
    %cst_38 = arith.constant dense<0.000000e+00> : vector<256x128xf32>
    %35 = tpu.matmul %32, %34, %cst_38 {dimension_numbers = #tpu.dot_dimension_numbers<[1], [0], [0], [1], [0, 0, 1, 1], [], []>} : vector<256x128xbf16>, vector<128x128xbf16>, vector<256x128xf32> -> vector<256x128xf32>
    %36 = arith.addf %30, %35 : vector<256x128xf32>
    %37 = vector.extract_strided_slice %11 {offsets = [1, 8, 0], sizes = [16, 16, 128], strides = [1, 1, 1]} : vector<18x26x128xbf16> to vector<16x16x128xbf16>
    %38 = vector.shape_cast %37 : vector<16x16x128xbf16> to vector<256x128xbf16>
    %c4 = arith.constant 4 : index
    %c0_39 = arith.constant 0 : index
    %c0_40 = arith.constant 0 : index
    %39 = vector.load %arg3[%c4, %c0_39, %c0_40] : memref<9x128x128xbf16, #tpu.memory_space<vmem>>, vector<1x128x128xbf16>
    %40 = vector.shape_cast %39 : vector<1x128x128xbf16> to vector<128x128xbf16>
    %cst_41 = arith.constant dense<0.000000e+00> : vector<256x128xf32>
    %41 = tpu.matmul %38, %40, %cst_41 {dimension_numbers = #tpu.dot_dimension_numbers<[1], [0], [0], [1], [0, 0, 1, 1], [], []>} : vector<256x128xbf16>, vector<128x128xbf16>, vector<256x128xf32> -> vector<256x128xf32>
    %42 = arith.addf %36, %41 : vector<256x128xf32>
    %43 = vector.extract_strided_slice %11 {offsets = [1, 9, 0], sizes = [16, 16, 128], strides = [1, 1, 1]} : vector<18x26x128xbf16> to vector<16x16x128xbf16>
    %44 = vector.shape_cast %43 : vector<16x16x128xbf16> to vector<256x128xbf16>
    %c5 = arith.constant 5 : index
    %c0_42 = arith.constant 0 : index
    %c0_43 = arith.constant 0 : index
    %45 = vector.load %arg3[%c5, %c0_42, %c0_43] : memref<9x128x128xbf16, #tpu.memory_space<vmem>>, vector<1x128x128xbf16>
    %46 = vector.shape_cast %45 : vector<1x128x128xbf16> to vector<128x128xbf16>
    %cst_44 = arith.constant dense<0.000000e+00> : vector<256x128xf32>
    %47 = tpu.matmul %44, %46, %cst_44 {dimension_numbers = #tpu.dot_dimension_numbers<[1], [0], [0], [1], [0, 0, 1, 1], [], []>} : vector<256x128xbf16>, vector<128x128xbf16>, vector<256x128xf32> -> vector<256x128xf32>
    %48 = arith.addf %42, %47 : vector<256x128xf32>
    %49 = vector.extract_strided_slice %11 {offsets = [2, 7, 0], sizes = [16, 16, 128], strides = [1, 1, 1]} : vector<18x26x128xbf16> to vector<16x16x128xbf16>
    %50 = vector.shape_cast %49 : vector<16x16x128xbf16> to vector<256x128xbf16>
    %c6_45 = arith.constant 6 : index
    %c0_46 = arith.constant 0 : index
    %c0_47 = arith.constant 0 : index
    %51 = vector.load %arg3[%c6_45, %c0_46, %c0_47] : memref<9x128x128xbf16, #tpu.memory_space<vmem>>, vector<1x128x128xbf16>
    %52 = vector.shape_cast %51 : vector<1x128x128xbf16> to vector<128x128xbf16>
    %cst_48 = arith.constant dense<0.000000e+00> : vector<256x128xf32>
    %53 = tpu.matmul %50, %52, %cst_48 {dimension_numbers = #tpu.dot_dimension_numbers<[1], [0], [0], [1], [0, 0, 1, 1], [], []>} : vector<256x128xbf16>, vector<128x128xbf16>, vector<256x128xf32> -> vector<256x128xf32>
    %54 = arith.addf %48, %53 : vector<256x128xf32>
    %55 = vector.extract_strided_slice %11 {offsets = [2, 8, 0], sizes = [16, 16, 128], strides = [1, 1, 1]} : vector<18x26x128xbf16> to vector<16x16x128xbf16>
    %56 = vector.shape_cast %55 : vector<16x16x128xbf16> to vector<256x128xbf16>
    %c7 = arith.constant 7 : index
    %c0_49 = arith.constant 0 : index
    %c0_50 = arith.constant 0 : index
    %57 = vector.load %arg3[%c7, %c0_49, %c0_50] : memref<9x128x128xbf16, #tpu.memory_space<vmem>>, vector<1x128x128xbf16>
    %58 = vector.shape_cast %57 : vector<1x128x128xbf16> to vector<128x128xbf16>
    %cst_51 = arith.constant dense<0.000000e+00> : vector<256x128xf32>
    %59 = tpu.matmul %56, %58, %cst_51 {dimension_numbers = #tpu.dot_dimension_numbers<[1], [0], [0], [1], [0, 0, 1, 1], [], []>} : vector<256x128xbf16>, vector<128x128xbf16>, vector<256x128xf32> -> vector<256x128xf32>
    %60 = arith.addf %54, %59 : vector<256x128xf32>
    %61 = vector.extract_strided_slice %11 {offsets = [2, 9, 0], sizes = [16, 16, 128], strides = [1, 1, 1]} : vector<18x26x128xbf16> to vector<16x16x128xbf16>
    %62 = vector.shape_cast %61 : vector<16x16x128xbf16> to vector<256x128xbf16>
    %c8 = arith.constant 8 : index
    %c0_52 = arith.constant 0 : index
    %c0_53 = arith.constant 0 : index
    %63 = vector.load %arg3[%c8, %c0_52, %c0_53] : memref<9x128x128xbf16, #tpu.memory_space<vmem>>, vector<1x128x128xbf16>
    %64 = vector.shape_cast %63 : vector<1x128x128xbf16> to vector<128x128xbf16>
    %cst_54 = arith.constant dense<0.000000e+00> : vector<256x128xf32>
    %65 = tpu.matmul %62, %64, %cst_54 {dimension_numbers = #tpu.dot_dimension_numbers<[1], [0], [0], [1], [0, 0, 1, 1], [], []>} : vector<256x128xbf16>, vector<128x128xbf16>, vector<256x128xf32> -> vector<256x128xf32>
    %66 = arith.addf %60, %65 : vector<256x128xf32>
    %c0_55 = arith.constant 0 : index
    %c0_56 = arith.constant 0 : index
    %67 = vector.load %arg4[%c0_55, %c0_56] : memref<1x128xf32, #tpu.memory_space<vmem>>, vector<1x128xf32>
    %68 = vector.broadcast %67 : vector<1x128xf32> to vector<256x128xf32>
    %69 = arith.addf %66, %68 : vector<256x128xf32>
    %cst_57 = arith.constant 0.000000e+00 : f32
    %70 = vector.broadcast %cst_57 : f32 to vector<256x128xf32>
    %71 = arith.maximumf %69, %70 : vector<256x128xf32>
    %72 = vector.shape_cast %71 : vector<256x128xf32> to vector<16x16x128xf32>
    %73 = arith.truncf %72 : vector<16x16x128xf32> to vector<16x16x128xbf16>
    %c1_58 = arith.constant 1 : index
    %c8_59 = arith.constant 8 : index
    %c0_60 = arith.constant 0 : index
    %74 = vector.load %arg12[%c1_58, %c8_59, %c0_60] : memref<18x26x128xbf16, #tpu.memory_space<vmem>>, vector<16x16x128xbf16>
    tpu.vector_store %arg12[%c1_58, %c8_59, %c0_60], %73 {strides = array<i32>} : memref<18x26x128xbf16, #tpu.memory_space<vmem>>, vector<16x16x128xbf16>,
    %c0_61 = arith.constant 0 : index
    %c0_62 = arith.constant 0 : index
    %c0_63 = arith.constant 0 : index
    %75 = vector.load %arg12[%c0_61, %c0_62, %c0_63] : memref<18x26x128xbf16, #tpu.memory_space<vmem>>, vector<18x26x128xbf16>
    %cst_64 = arith.constant 0.000000e+00 : f32
    %76 = vector.broadcast %cst_64 : f32 to vector<256x128xf32>
    %77 = vector.extract_strided_slice %75 {offsets = [0, 7, 0], sizes = [16, 16, 128], strides = [1, 1, 1]} : vector<18x26x128xbf16> to vector<16x16x128xbf16>
    %78 = vector.shape_cast %77 : vector<16x16x128xbf16> to vector<256x128xbf16>
    %c0_65 = arith.constant 0 : index
    %c0_66 = arith.constant 0 : index
    %c0_67 = arith.constant 0 : index
    %79 = vector.load %arg5[%c0_65, %c0_66, %c0_67] : memref<9x128x128xbf16, #tpu.memory_space<vmem>>, vector<1x128x128xbf16>
    %80 = vector.shape_cast %79 : vector<1x128x128xbf16> to vector<128x128xbf16>
    %cst_68 = arith.constant dense<0.000000e+00> : vector<256x128xf32>
    %81 = tpu.matmul %78, %80, %cst_68 {dimension_numbers = #tpu.dot_dimension_numbers<[1], [0], [0], [1], [0, 0, 1, 1], [], []>} : vector<256x128xbf16>, vector<128x128xbf16>, vector<256x128xf32> -> vector<256x128xf32>
    %82 = arith.addf %76, %81 : vector<256x128xf32>
    %83 = vector.extract_strided_slice %75 {offsets = [0, 8, 0], sizes = [16, 16, 128], strides = [1, 1, 1]} : vector<18x26x128xbf16> to vector<16x16x128xbf16>
    %84 = vector.shape_cast %83 : vector<16x16x128xbf16> to vector<256x128xbf16>
    %c1_69 = arith.constant 1 : index
    %c0_70 = arith.constant 0 : index
    %c0_71 = arith.constant 0 : index
    %85 = vector.load %arg5[%c1_69, %c0_70, %c0_71] : memref<9x128x128xbf16, #tpu.memory_space<vmem>>, vector<1x128x128xbf16>
    %86 = vector.shape_cast %85 : vector<1x128x128xbf16> to vector<128x128xbf16>
    %cst_72 = arith.constant dense<0.000000e+00> : vector<256x128xf32>
    %87 = tpu.matmul %84, %86, %cst_72 {dimension_numbers = #tpu.dot_dimension_numbers<[1], [0], [0], [1], [0, 0, 1, 1], [], []>} : vector<256x128xbf16>, vector<128x128xbf16>, vector<256x128xf32> -> vector<256x128xf32>
    %88 = arith.addf %82, %87 : vector<256x128xf32>
    %89 = vector.extract_strided_slice %75 {offsets = [0, 9, 0], sizes = [16, 16, 128], strides = [1, 1, 1]} : vector<18x26x128xbf16> to vector<16x16x128xbf16>
    %90 = vector.shape_cast %89 : vector<16x16x128xbf16> to vector<256x128xbf16>
    %c2_73 = arith.constant 2 : index
    %c0_74 = arith.constant 0 : index
    %c0_75 = arith.constant 0 : index
    %91 = vector.load %arg5[%c2_73, %c0_74, %c0_75] : memref<9x128x128xbf16, #tpu.memory_space<vmem>>, vector<1x128x128xbf16>
    %92 = vector.shape_cast %91 : vector<1x128x128xbf16> to vector<128x128xbf16>
    %cst_76 = arith.constant dense<0.000000e+00> : vector<256x128xf32>
    %93 = tpu.matmul %90, %92, %cst_76 {dimension_numbers = #tpu.dot_dimension_numbers<[1], [0], [0], [1], [0, 0, 1, 1], [], []>} : vector<256x128xbf16>, vector<128x128xbf16>, vector<256x128xf32> -> vector<256x128xf32>
    %94 = arith.addf %88, %93 : vector<256x128xf32>
    %95 = vector.extract_strided_slice %75 {offsets = [1, 7, 0], sizes = [16, 16, 128], strides = [1, 1, 1]} : vector<18x26x128xbf16> to vector<16x16x128xbf16>
    %96 = vector.shape_cast %95 : vector<16x16x128xbf16> to vector<256x128xbf16>
    %c3_77 = arith.constant 3 : index
    %c0_78 = arith.constant 0 : index
    %c0_79 = arith.constant 0 : index
    %97 = vector.load %arg5[%c3_77, %c0_78, %c0_79] : memref<9x128x128xbf16, #tpu.memory_space<vmem>>, vector<1x128x128xbf16>
    %98 = vector.shape_cast %97 : vector<1x128x128xbf16> to vector<128x128xbf16>
    %cst_80 = arith.constant dense<0.000000e+00> : vector<256x128xf32>
    %99 = tpu.matmul %96, %98, %cst_80 {dimension_numbers = #tpu.dot_dimension_numbers<[1], [0], [0], [1], [0, 0, 1, 1], [], []>} : vector<256x128xbf16>, vector<128x128xbf16>, vector<256x128xf32> -> vector<256x128xf32>
    %100 = arith.addf %94, %99 : vector<256x128xf32>
    %101 = vector.extract_strided_slice %75 {offsets = [1, 8, 0], sizes = [16, 16, 128], strides = [1, 1, 1]} : vector<18x26x128xbf16> to vector<16x16x128xbf16>
    %102 = vector.shape_cast %101 : vector<16x16x128xbf16> to vector<256x128xbf16>
    %c4_81 = arith.constant 4 : index
    %c0_82 = arith.constant 0 : index
    %c0_83 = arith.constant 0 : index
    %103 = vector.load %arg5[%c4_81, %c0_82, %c0_83] : memref<9x128x128xbf16, #tpu.memory_space<vmem>>, vector<1x128x128xbf16>
    %104 = vector.shape_cast %103 : vector<1x128x128xbf16> to vector<128x128xbf16>
    %cst_84 = arith.constant dense<0.000000e+00> : vector<256x128xf32>
    %105 = tpu.matmul %102, %104, %cst_84 {dimension_numbers = #tpu.dot_dimension_numbers<[1], [0], [0], [1], [0, 0, 1, 1], [], []>} : vector<256x128xbf16>, vector<128x128xbf16>, vector<256x128xf32> -> vector<256x128xf32>
    %106 = arith.addf %100, %105 : vector<256x128xf32>
    %107 = vector.extract_strided_slice %75 {offsets = [1, 9, 0], sizes = [16, 16, 128], strides = [1, 1, 1]} : vector<18x26x128xbf16> to vector<16x16x128xbf16>
    %108 = vector.shape_cast %107 : vector<16x16x128xbf16> to vector<256x128xbf16>
    %c5_85 = arith.constant 5 : index
    %c0_86 = arith.constant 0 : index
    %c0_87 = arith.constant 0 : index
    %109 = vector.load %arg5[%c5_85, %c0_86, %c0_87] : memref<9x128x128xbf16, #tpu.memory_space<vmem>>, vector<1x128x128xbf16>
    %110 = vector.shape_cast %109 : vector<1x128x128xbf16> to vector<128x128xbf16>
    %cst_88 = arith.constant dense<0.000000e+00> : vector<256x128xf32>
    %111 = tpu.matmul %108, %110, %cst_88 {dimension_numbers = #tpu.dot_dimension_numbers<[1], [0], [0], [1], [0, 0, 1, 1], [], []>} : vector<256x128xbf16>, vector<128x128xbf16>, vector<256x128xf32> -> vector<256x128xf32>
    %112 = arith.addf %106, %111 : vector<256x128xf32>
    %113 = vector.extract_strided_slice %75 {offsets = [2, 7, 0], sizes = [16, 16, 128], strides = [1, 1, 1]} : vector<18x26x128xbf16> to vector<16x16x128xbf16>
    %114 = vector.shape_cast %113 : vector<16x16x128xbf16> to vector<256x128xbf16>
    %c6_89 = arith.constant 6 : index
    %c0_90 = arith.constant 0 : index
    %c0_91 = arith.constant 0 : index
    %115 = vector.load %arg5[%c6_89, %c0_90, %c0_91] : memref<9x128x128xbf16, #tpu.memory_space<vmem>>, vector<1x128x128xbf16>
    %116 = vector.shape_cast %115 : vector<1x128x128xbf16> to vector<128x128xbf16>
    %cst_92 = arith.constant dense<0.000000e+00> : vector<256x128xf32>
    %117 = tpu.matmul %114, %116, %cst_92 {dimension_numbers = #tpu.dot_dimension_numbers<[1], [0], [0], [1], [0, 0, 1, 1], [], []>} : vector<256x128xbf16>, vector<128x128xbf16>, vector<256x128xf32> -> vector<256x128xf32>
    %118 = arith.addf %112, %117 : vector<256x128xf32>
    %119 = vector.extract_strided_slice %75 {offsets = [2, 8, 0], sizes = [16, 16, 128], strides = [1, 1, 1]} : vector<18x26x128xbf16> to vector<16x16x128xbf16>
    %120 = vector.shape_cast %119 : vector<16x16x128xbf16> to vector<256x128xbf16>
    %c7_93 = arith.constant 7 : index
    %c0_94 = arith.constant 0 : index
    %c0_95 = arith.constant 0 : index
    %121 = vector.load %arg5[%c7_93, %c0_94, %c0_95] : memref<9x128x128xbf16, #tpu.memory_space<vmem>>, vector<1x128x128xbf16>
    %122 = vector.shape_cast %121 : vector<1x128x128xbf16> to vector<128x128xbf16>
    %cst_96 = arith.constant dense<0.000000e+00> : vector<256x128xf32>
    %123 = tpu.matmul %120, %122, %cst_96 {dimension_numbers = #tpu.dot_dimension_numbers<[1], [0], [0], [1], [0, 0, 1, 1], [], []>} : vector<256x128xbf16>, vector<128x128xbf16>, vector<256x128xf32> -> vector<256x128xf32>
    %124 = arith.addf %118, %123 : vector<256x128xf32>
    %125 = vector.extract_strided_slice %75 {offsets = [2, 9, 0], sizes = [16, 16, 128], strides = [1, 1, 1]} : vector<18x26x128xbf16> to vector<16x16x128xbf16>
    %126 = vector.shape_cast %125 : vector<16x16x128xbf16> to vector<256x128xbf16>
    %c8_97 = arith.constant 8 : index
    %c0_98 = arith.constant 0 : index
    %c0_99 = arith.constant 0 : index
    %127 = vector.load %arg5[%c8_97, %c0_98, %c0_99] : memref<9x128x128xbf16, #tpu.memory_space<vmem>>, vector<1x128x128xbf16>
    %128 = vector.shape_cast %127 : vector<1x128x128xbf16> to vector<128x128xbf16>
    %cst_100 = arith.constant dense<0.000000e+00> : vector<256x128xf32>
    %129 = tpu.matmul %126, %128, %cst_100 {dimension_numbers = #tpu.dot_dimension_numbers<[1], [0], [0], [1], [0, 0, 1, 1], [], []>} : vector<256x128xbf16>, vector<128x128xbf16>, vector<256x128xf32> -> vector<256x128xf32>
    %130 = arith.addf %124, %129 : vector<256x128xf32>
    %c0_101 = arith.constant 0 : index
    %c0_102 = arith.constant 0 : index
    %131 = vector.load %arg6[%c0_101, %c0_102] : memref<1x128xf32, #tpu.memory_space<vmem>>, vector<1x128xf32>
    %132 = vector.broadcast %131 : vector<1x128xf32> to vector<256x128xf32>
    %133 = arith.addf %130, %132 : vector<256x128xf32>
    %cst_103 = arith.constant 0.000000e+00 : f32
    %134 = vector.broadcast %cst_103 : f32 to vector<256x128xf32>
    %135 = arith.maximumf %133, %134 : vector<256x128xf32>
    %c0_104 = arith.constant 0 : index
    %c0_105 = arith.constant 0 : index
    %c0_106 = arith.constant 0 : index
    %136 = vector.load %arg2[%c0_104, %c0_105, %c0_106] : memref<1x1x128xf32, #tpu.memory_space<vmem>>, vector<1x1x128xf32>
    %137 = vector.shape_cast %136 : vector<1x1x128xf32> to vector<1x128xf32>
    %138 = vector.broadcast %137 : vector<1x128xf32> to vector<256x128xf32>
    %139 = arith.addf %135, %138 : vector<256x128xf32>
    %140 = vector.shape_cast %139 : vector<256x128xf32> to vector<16x16x128xf32>
    %141 = arith.truncf %140 : vector<16x16x128xf32> to vector<16x16x128xbf16>
    %c1_107 = arith.constant 1 : index
    %c8_108 = arith.constant 8 : index
    %c0_109 = arith.constant 0 : index
    %142 = vector.load %arg13[%c1_107, %c8_108, %c0_109] : memref<18x26x128xbf16, #tpu.memory_space<vmem>>, vector<16x16x128xbf16>
    tpu.vector_store %arg13[%c1_107, %c8_108, %c0_109], %141 {strides = array<i32>} : memref<18x26x128xbf16, #tpu.memory_space<vmem>>, vector<16x16x128xbf16>,
    %c0_110 = arith.constant 0 : index
    %c0_111 = arith.constant 0 : index
    %c0_112 = arith.constant 0 : index
    %143 = vector.load %arg13[%c0_110, %c0_111, %c0_112] : memref<18x26x128xbf16, #tpu.memory_space<vmem>>, vector<18x26x128xbf16>
    %cst_113 = arith.constant 0.000000e+00 : f32
    %144 = vector.broadcast %cst_113 : f32 to vector<256x128xf32>
    %145 = vector.extract_strided_slice %143 {offsets = [0, 7, 0], sizes = [16, 16, 128], strides = [1, 1, 1]} : vector<18x26x128xbf16> to vector<16x16x128xbf16>
    %146 = vector.shape_cast %145 : vector<16x16x128xbf16> to vector<256x128xbf16>
    %c0_114 = arith.constant 0 : index
    %c0_115 = arith.constant 0 : index
    %c0_116 = arith.constant 0 : index
    %147 = vector.load %arg7[%c0_114, %c0_115, %c0_116] : memref<9x128x128xbf16, #tpu.memory_space<vmem>>, vector<1x128x128xbf16>
    %148 = vector.shape_cast %147 : vector<1x128x128xbf16> to vector<128x128xbf16>
    %cst_117 = arith.constant dense<0.000000e+00> : vector<256x128xf32>
    %149 = tpu.matmul %146, %148, %cst_117 {dimension_numbers = #tpu.dot_dimension_numbers<[1], [0], [0], [1], [0, 0, 1, 1], [], []>} : vector<256x128xbf16>, vector<128x128xbf16>, vector<256x128xf32> -> vector<256x128xf32>
    %150 = arith.addf %144, %149 : vector<256x128xf32>
    %151 = vector.extract_strided_slice %143 {offsets = [0, 8, 0], sizes = [16, 16, 128], strides = [1, 1, 1]} : vector<18x26x128xbf16> to vector<16x16x128xbf16>
    %152 = vector.shape_cast %151 : vector<16x16x128xbf16> to vector<256x128xbf16>
    %c1_118 = arith.constant 1 : index
    %c0_119 = arith.constant 0 : index
    %c0_120 = arith.constant 0 : index
    %153 = vector.load %arg7[%c1_118, %c0_119, %c0_120] : memref<9x128x128xbf16, #tpu.memory_space<vmem>>, vector<1x128x128xbf16>
    %154 = vector.shape_cast %153 : vector<1x128x128xbf16> to vector<128x128xbf16>
    %cst_121 = arith.constant dense<0.000000e+00> : vector<256x128xf32>
    %155 = tpu.matmul %152, %154, %cst_121 {dimension_numbers = #tpu.dot_dimension_numbers<[1], [0], [0], [1], [0, 0, 1, 1], [], []>} : vector<256x128xbf16>, vector<128x128xbf16>, vector<256x128xf32> -> vector<256x128xf32>
    %156 = arith.addf %150, %155 : vector<256x128xf32>
    %157 = vector.extract_strided_slice %143 {offsets = [0, 9, 0], sizes = [16, 16, 128], strides = [1, 1, 1]} : vector<18x26x128xbf16> to vector<16x16x128xbf16>
    %158 = vector.shape_cast %157 : vector<16x16x128xbf16> to vector<256x128xbf16>
    %c2_122 = arith.constant 2 : index
    %c0_123 = arith.constant 0 : index
    %c0_124 = arith.constant 0 : index
    %159 = vector.load %arg7[%c2_122, %c0_123, %c0_124] : memref<9x128x128xbf16, #tpu.memory_space<vmem>>, vector<1x128x128xbf16>
    %160 = vector.shape_cast %159 : vector<1x128x128xbf16> to vector<128x128xbf16>
    %cst_125 = arith.constant dense<0.000000e+00> : vector<256x128xf32>
    %161 = tpu.matmul %158, %160, %cst_125 {dimension_numbers = #tpu.dot_dimension_numbers<[1], [0], [0], [1], [0, 0, 1, 1], [], []>} : vector<256x128xbf16>, vector<128x128xbf16>, vector<256x128xf32> -> vector<256x128xf32>
    %162 = arith.addf %156, %161 : vector<256x128xf32>
    %163 = vector.extract_strided_slice %143 {offsets = [1, 7, 0], sizes = [16, 16, 128], strides = [1, 1, 1]} : vector<18x26x128xbf16> to vector<16x16x128xbf16>
    %164 = vector.shape_cast %163 : vector<16x16x128xbf16> to vector<256x128xbf16>
    %c3_126 = arith.constant 3 : index
    %c0_127 = arith.constant 0 : index
    %c0_128 = arith.constant 0 : index
    %165 = vector.load %arg7[%c3_126, %c0_127, %c0_128] : memref<9x128x128xbf16, #tpu.memory_space<vmem>>, vector<1x128x128xbf16>
    %166 = vector.shape_cast %165 : vector<1x128x128xbf16> to vector<128x128xbf16>
    %cst_129 = arith.constant dense<0.000000e+00> : vector<256x128xf32>
    %167 = tpu.matmul %164, %166, %cst_129 {dimension_numbers = #tpu.dot_dimension_numbers<[1], [0], [0], [1], [0, 0, 1, 1], [], []>} : vector<256x128xbf16>, vector<128x128xbf16>, vector<256x128xf32> -> vector<256x128xf32>
    %168 = arith.addf %162, %167 : vector<256x128xf32>
    %169 = vector.extract_strided_slice %143 {offsets = [1, 8, 0], sizes = [16, 16, 128], strides = [1, 1, 1]} : vector<18x26x128xbf16> to vector<16x16x128xbf16>
    %170 = vector.shape_cast %169 : vector<16x16x128xbf16> to vector<256x128xbf16>
    %c4_130 = arith.constant 4 : index
    %c0_131 = arith.constant 0 : index
    %c0_132 = arith.constant 0 : index
    %171 = vector.load %arg7[%c4_130, %c0_131, %c0_132] : memref<9x128x128xbf16, #tpu.memory_space<vmem>>, vector<1x128x128xbf16>
    %172 = vector.shape_cast %171 : vector<1x128x128xbf16> to vector<128x128xbf16>
    %cst_133 = arith.constant dense<0.000000e+00> : vector<256x128xf32>
    %173 = tpu.matmul %170, %172, %cst_133 {dimension_numbers = #tpu.dot_dimension_numbers<[1], [0], [0], [1], [0, 0, 1, 1], [], []>} : vector<256x128xbf16>, vector<128x128xbf16>, vector<256x128xf32> -> vector<256x128xf32>
    %174 = arith.addf %168, %173 : vector<256x128xf32>
    %175 = vector.extract_strided_slice %143 {offsets = [1, 9, 0], sizes = [16, 16, 128], strides = [1, 1, 1]} : vector<18x26x128xbf16> to vector<16x16x128xbf16>
    %176 = vector.shape_cast %175 : vector<16x16x128xbf16> to vector<256x128xbf16>
    %c5_134 = arith.constant 5 : index
    %c0_135 = arith.constant 0 : index
    %c0_136 = arith.constant 0 : index
    %177 = vector.load %arg7[%c5_134, %c0_135, %c0_136] : memref<9x128x128xbf16, #tpu.memory_space<vmem>>, vector<1x128x128xbf16>
    %178 = vector.shape_cast %177 : vector<1x128x128xbf16> to vector<128x128xbf16>
    %cst_137 = arith.constant dense<0.000000e+00> : vector<256x128xf32>
    %179 = tpu.matmul %176, %178, %cst_137 {dimension_numbers = #tpu.dot_dimension_numbers<[1], [0], [0], [1], [0, 0, 1, 1], [], []>} : vector<256x128xbf16>, vector<128x128xbf16>, vector<256x128xf32> -> vector<256x128xf32>
    %180 = arith.addf %174, %179 : vector<256x128xf32>
    %181 = vector.extract_strided_slice %143 {offsets = [2, 7, 0], sizes = [16, 16, 128], strides = [1, 1, 1]} : vector<18x26x128xbf16> to vector<16x16x128xbf16>
    %182 = vector.shape_cast %181 : vector<16x16x128xbf16> to vector<256x128xbf16>
    %c6_138 = arith.constant 6 : index
    %c0_139 = arith.constant 0 : index
    %c0_140 = arith.constant 0 : index
    %183 = vector.load %arg7[%c6_138, %c0_139, %c0_140] : memref<9x128x128xbf16, #tpu.memory_space<vmem>>, vector<1x128x128xbf16>
    %184 = vector.shape_cast %183 : vector<1x128x128xbf16> to vector<128x128xbf16>
    %cst_141 = arith.constant dense<0.000000e+00> : vector<256x128xf32>
    %185 = tpu.matmul %182, %184, %cst_141 {dimension_numbers = #tpu.dot_dimension_numbers<[1], [0], [0], [1], [0, 0, 1, 1], [], []>} : vector<256x128xbf16>, vector<128x128xbf16>, vector<256x128xf32> -> vector<256x128xf32>
    %186 = arith.addf %180, %185 : vector<256x128xf32>
    %187 = vector.extract_strided_slice %143 {offsets = [2, 8, 0], sizes = [16, 16, 128], strides = [1, 1, 1]} : vector<18x26x128xbf16> to vector<16x16x128xbf16>
    %188 = vector.shape_cast %187 : vector<16x16x128xbf16> to vector<256x128xbf16>
    %c7_142 = arith.constant 7 : index
    %c0_143 = arith.constant 0 : index
    %c0_144 = arith.constant 0 : index
    %189 = vector.load %arg7[%c7_142, %c0_143, %c0_144] : memref<9x128x128xbf16, #tpu.memory_space<vmem>>, vector<1x128x128xbf16>
    %190 = vector.shape_cast %189 : vector<1x128x128xbf16> to vector<128x128xbf16>
    %cst_145 = arith.constant dense<0.000000e+00> : vector<256x128xf32>
    %191 = tpu.matmul %188, %190, %cst_145 {dimension_numbers = #tpu.dot_dimension_numbers<[1], [0], [0], [1], [0, 0, 1, 1], [], []>} : vector<256x128xbf16>, vector<128x128xbf16>, vector<256x128xf32> -> vector<256x128xf32>
    %192 = arith.addf %186, %191 : vector<256x128xf32>
    %193 = vector.extract_strided_slice %143 {offsets = [2, 9, 0], sizes = [16, 16, 128], strides = [1, 1, 1]} : vector<18x26x128xbf16> to vector<16x16x128xbf16>
    %194 = vector.shape_cast %193 : vector<16x16x128xbf16> to vector<256x128xbf16>
    %c8_146 = arith.constant 8 : index
    %c0_147 = arith.constant 0 : index
    %c0_148 = arith.constant 0 : index
    %195 = vector.load %arg7[%c8_146, %c0_147, %c0_148] : memref<9x128x128xbf16, #tpu.memory_space<vmem>>, vector<1x128x128xbf16>
    %196 = vector.shape_cast %195 : vector<1x128x128xbf16> to vector<128x128xbf16>
    %cst_149 = arith.constant dense<0.000000e+00> : vector<256x128xf32>
    %197 = tpu.matmul %194, %196, %cst_149 {dimension_numbers = #tpu.dot_dimension_numbers<[1], [0], [0], [1], [0, 0, 1, 1], [], []>} : vector<256x128xbf16>, vector<128x128xbf16>, vector<256x128xf32> -> vector<256x128xf32>
    %198 = arith.addf %192, %197 : vector<256x128xf32>
    %c0_150 = arith.constant 0 : index
    %c0_151 = arith.constant 0 : index
    %199 = vector.load %arg8[%c0_150, %c0_151] : memref<1x128xf32, #tpu.memory_space<vmem>>, vector<1x128xf32>
    %200 = vector.broadcast %199 : vector<1x128xf32> to vector<256x128xf32>
    %201 = arith.addf %198, %200 : vector<256x128xf32>
    %cst_152 = arith.constant 0.000000e+00 : f32
    %202 = vector.broadcast %cst_152 : f32 to vector<256x128xf32>
    %203 = arith.maximumf %201, %202 : vector<256x128xf32>
    %204 = vector.shape_cast %203 : vector<256x128xf32> to vector<16x16x128xf32>
    %205 = arith.truncf %204 : vector<16x16x128xf32> to vector<16x16x128xbf16>
    %c1_153 = arith.constant 1 : index
    %c8_154 = arith.constant 8 : index
    %c0_155 = arith.constant 0 : index
    %206 = vector.load %arg12[%c1_153, %c8_154, %c0_155] : memref<18x26x128xbf16, #tpu.memory_space<vmem>>, vector<16x16x128xbf16>
    tpu.vector_store %arg12[%c1_153, %c8_154, %c0_155], %205 {strides = array<i32>} : memref<18x26x128xbf16, #tpu.memory_space<vmem>>, vector<16x16x128xbf16>,
    %c0_156 = arith.constant 0 : index
    %c0_157 = arith.constant 0 : index
    %c0_158 = arith.constant 0 : index
    %207 = vector.load %arg12[%c0_156, %c0_157, %c0_158] : memref<18x26x128xbf16, #tpu.memory_space<vmem>>, vector<18x26x128xbf16>
    %cst_159 = arith.constant 0.000000e+00 : f32
    %208 = vector.broadcast %cst_159 : f32 to vector<256x128xf32>
    %209 = vector.extract_strided_slice %207 {offsets = [0, 7, 0], sizes = [16, 16, 128], strides = [1, 1, 1]} : vector<18x26x128xbf16> to vector<16x16x128xbf16>
    %210 = vector.shape_cast %209 : vector<16x16x128xbf16> to vector<256x128xbf16>
    %c0_160 = arith.constant 0 : index
    %c0_161 = arith.constant 0 : index
    %c0_162 = arith.constant 0 : index
    %211 = vector.load %arg9[%c0_160, %c0_161, %c0_162] : memref<9x128x128xbf16, #tpu.memory_space<vmem>>, vector<1x128x128xbf16>
    %212 = vector.shape_cast %211 : vector<1x128x128xbf16> to vector<128x128xbf16>
    %cst_163 = arith.constant dense<0.000000e+00> : vector<256x128xf32>
    %213 = tpu.matmul %210, %212, %cst_163 {dimension_numbers = #tpu.dot_dimension_numbers<[1], [0], [0], [1], [0, 0, 1, 1], [], []>} : vector<256x128xbf16>, vector<128x128xbf16>, vector<256x128xf32> -> vector<256x128xf32>
    %214 = arith.addf %208, %213 : vector<256x128xf32>
    %215 = vector.extract_strided_slice %207 {offsets = [0, 8, 0], sizes = [16, 16, 128], strides = [1, 1, 1]} : vector<18x26x128xbf16> to vector<16x16x128xbf16>
    %216 = vector.shape_cast %215 : vector<16x16x128xbf16> to vector<256x128xbf16>
    %c1_164 = arith.constant 1 : index
    %c0_165 = arith.constant 0 : index
    %c0_166 = arith.constant 0 : index
    %217 = vector.load %arg9[%c1_164, %c0_165, %c0_166] : memref<9x128x128xbf16, #tpu.memory_space<vmem>>, vector<1x128x128xbf16>
    %218 = vector.shape_cast %217 : vector<1x128x128xbf16> to vector<128x128xbf16>
    %cst_167 = arith.constant dense<0.000000e+00> : vector<256x128xf32>
    %219 = tpu.matmul %216, %218, %cst_167 {dimension_numbers = #tpu.dot_dimension_numbers<[1], [0], [0], [1], [0, 0, 1, 1], [], []>} : vector<256x128xbf16>, vector<128x128xbf16>, vector<256x128xf32> -> vector<256x128xf32>
    %220 = arith.addf %214, %219 : vector<256x128xf32>
    %221 = vector.extract_strided_slice %207 {offsets = [0, 9, 0], sizes = [16, 16, 128], strides = [1, 1, 1]} : vector<18x26x128xbf16> to vector<16x16x128xbf16>
    %222 = vector.shape_cast %221 : vector<16x16x128xbf16> to vector<256x128xbf16>
    %c2_168 = arith.constant 2 : index
    %c0_169 = arith.constant 0 : index
    %c0_170 = arith.constant 0 : index
    %223 = vector.load %arg9[%c2_168, %c0_169, %c0_170] : memref<9x128x128xbf16, #tpu.memory_space<vmem>>, vector<1x128x128xbf16>
    %224 = vector.shape_cast %223 : vector<1x128x128xbf16> to vector<128x128xbf16>
    %cst_171 = arith.constant dense<0.000000e+00> : vector<256x128xf32>
    %225 = tpu.matmul %222, %224, %cst_171 {dimension_numbers = #tpu.dot_dimension_numbers<[1], [0], [0], [1], [0, 0, 1, 1], [], []>} : vector<256x128xbf16>, vector<128x128xbf16>, vector<256x128xf32> -> vector<256x128xf32>
    %226 = arith.addf %220, %225 : vector<256x128xf32>
    %227 = vector.extract_strided_slice %207 {offsets = [1, 7, 0], sizes = [16, 16, 128], strides = [1, 1, 1]} : vector<18x26x128xbf16> to vector<16x16x128xbf16>
    %228 = vector.shape_cast %227 : vector<16x16x128xbf16> to vector<256x128xbf16>
    %c3_172 = arith.constant 3 : index
    %c0_173 = arith.constant 0 : index
    %c0_174 = arith.constant 0 : index
    %229 = vector.load %arg9[%c3_172, %c0_173, %c0_174] : memref<9x128x128xbf16, #tpu.memory_space<vmem>>, vector<1x128x128xbf16>
    %230 = vector.shape_cast %229 : vector<1x128x128xbf16> to vector<128x128xbf16>
    %cst_175 = arith.constant dense<0.000000e+00> : vector<256x128xf32>
    %231 = tpu.matmul %228, %230, %cst_175 {dimension_numbers = #tpu.dot_dimension_numbers<[1], [0], [0], [1], [0, 0, 1, 1], [], []>} : vector<256x128xbf16>, vector<128x128xbf16>, vector<256x128xf32> -> vector<256x128xf32>
    %232 = arith.addf %226, %231 : vector<256x128xf32>
    %233 = vector.extract_strided_slice %207 {offsets = [1, 8, 0], sizes = [16, 16, 128], strides = [1, 1, 1]} : vector<18x26x128xbf16> to vector<16x16x128xbf16>
    %234 = vector.shape_cast %233 : vector<16x16x128xbf16> to vector<256x128xbf16>
    %c4_176 = arith.constant 4 : index
    %c0_177 = arith.constant 0 : index
    %c0_178 = arith.constant 0 : index
    %235 = vector.load %arg9[%c4_176, %c0_177, %c0_178] : memref<9x128x128xbf16, #tpu.memory_space<vmem>>, vector<1x128x128xbf16>
    %236 = vector.shape_cast %235 : vector<1x128x128xbf16> to vector<128x128xbf16>
    %cst_179 = arith.constant dense<0.000000e+00> : vector<256x128xf32>
    %237 = tpu.matmul %234, %236, %cst_179 {dimension_numbers = #tpu.dot_dimension_numbers<[1], [0], [0], [1], [0, 0, 1, 1], [], []>} : vector<256x128xbf16>, vector<128x128xbf16>, vector<256x128xf32> -> vector<256x128xf32>
    %238 = arith.addf %232, %237 : vector<256x128xf32>
    %239 = vector.extract_strided_slice %207 {offsets = [1, 9, 0], sizes = [16, 16, 128], strides = [1, 1, 1]} : vector<18x26x128xbf16> to vector<16x16x128xbf16>
    %240 = vector.shape_cast %239 : vector<16x16x128xbf16> to vector<256x128xbf16>
    %c5_180 = arith.constant 5 : index
    %c0_181 = arith.constant 0 : index
    %c0_182 = arith.constant 0 : index
    %241 = vector.load %arg9[%c5_180, %c0_181, %c0_182] : memref<9x128x128xbf16, #tpu.memory_space<vmem>>, vector<1x128x128xbf16>
    %242 = vector.shape_cast %241 : vector<1x128x128xbf16> to vector<128x128xbf16>
    %cst_183 = arith.constant dense<0.000000e+00> : vector<256x128xf32>
    %243 = tpu.matmul %240, %242, %cst_183 {dimension_numbers = #tpu.dot_dimension_numbers<[1], [0], [0], [1], [0, 0, 1, 1], [], []>} : vector<256x128xbf16>, vector<128x128xbf16>, vector<256x128xf32> -> vector<256x128xf32>
    %244 = arith.addf %238, %243 : vector<256x128xf32>
    %245 = vector.extract_strided_slice %207 {offsets = [2, 7, 0], sizes = [16, 16, 128], strides = [1, 1, 1]} : vector<18x26x128xbf16> to vector<16x16x128xbf16>
    %246 = vector.shape_cast %245 : vector<16x16x128xbf16> to vector<256x128xbf16>
    %c6_184 = arith.constant 6 : index
    %c0_185 = arith.constant 0 : index
    %c0_186 = arith.constant 0 : index
    %247 = vector.load %arg9[%c6_184, %c0_185, %c0_186] : memref<9x128x128xbf16, #tpu.memory_space<vmem>>, vector<1x128x128xbf16>
    %248 = vector.shape_cast %247 : vector<1x128x128xbf16> to vector<128x128xbf16>
    %cst_187 = arith.constant dense<0.000000e+00> : vector<256x128xf32>
    %249 = tpu.matmul %246, %248, %cst_187 {dimension_numbers = #tpu.dot_dimension_numbers<[1], [0], [0], [1], [0, 0, 1, 1], [], []>} : vector<256x128xbf16>, vector<128x128xbf16>, vector<256x128xf32> -> vector<256x128xf32>
    %250 = arith.addf %244, %249 : vector<256x128xf32>
    %251 = vector.extract_strided_slice %207 {offsets = [2, 8, 0], sizes = [16, 16, 128], strides = [1, 1, 1]} : vector<18x26x128xbf16> to vector<16x16x128xbf16>
    %252 = vector.shape_cast %251 : vector<16x16x128xbf16> to vector<256x128xbf16>
    %c7_188 = arith.constant 7 : index
    %c0_189 = arith.constant 0 : index
    %c0_190 = arith.constant 0 : index
    %253 = vector.load %arg9[%c7_188, %c0_189, %c0_190] : memref<9x128x128xbf16, #tpu.memory_space<vmem>>, vector<1x128x128xbf16>
    %254 = vector.shape_cast %253 : vector<1x128x128xbf16> to vector<128x128xbf16>
    %cst_191 = arith.constant dense<0.000000e+00> : vector<256x128xf32>
    %255 = tpu.matmul %252, %254, %cst_191 {dimension_numbers = #tpu.dot_dimension_numbers<[1], [0], [0], [1], [0, 0, 1, 1], [], []>} : vector<256x128xbf16>, vector<128x128xbf16>, vector<256x128xf32> -> vector<256x128xf32>
    %256 = arith.addf %250, %255 : vector<256x128xf32>
    %257 = vector.extract_strided_slice %207 {offsets = [2, 9, 0], sizes = [16, 16, 128], strides = [1, 1, 1]} : vector<18x26x128xbf16> to vector<16x16x128xbf16>
    %258 = vector.shape_cast %257 : vector<16x16x128xbf16> to vector<256x128xbf16>
    %c8_192 = arith.constant 8 : index
    %c0_193 = arith.constant 0 : index
    %c0_194 = arith.constant 0 : index
    %259 = vector.load %arg9[%c8_192, %c0_193, %c0_194] : memref<9x128x128xbf16, #tpu.memory_space<vmem>>, vector<1x128x128xbf16>
    %260 = vector.shape_cast %259 : vector<1x128x128xbf16> to vector<128x128xbf16>
    %cst_195 = arith.constant dense<0.000000e+00> : vector<256x128xf32>
    %261 = tpu.matmul %258, %260, %cst_195 {dimension_numbers = #tpu.dot_dimension_numbers<[1], [0], [0], [1], [0, 0, 1, 1], [], []>} : vector<256x128xbf16>, vector<128x128xbf16>, vector<256x128xf32> -> vector<256x128xf32>
    %262 = arith.addf %256, %261 : vector<256x128xf32>
    %c0_196 = arith.constant 0 : index
    %c0_197 = arith.constant 0 : index
    %263 = vector.load %arg10[%c0_196, %c0_197] : memref<1x128xf32, #tpu.memory_space<vmem>>, vector<1x128xf32>
    %264 = vector.broadcast %263 : vector<1x128xf32> to vector<256x128xf32>
    %265 = arith.addf %262, %264 : vector<256x128xf32>
    %c0_198 = arith.constant 0 : index
    %c0_199 = arith.constant 0 : index
    %c0_200 = arith.constant 0 : index
    %266 = vector.load %arg11[%c0_198, %c0_199, %c0_200] : memref<1x256x128xf32, #tpu.memory_space<vmem>>, vector<1x256x128xf32>
    %267 = vector.shape_cast %266 : vector<1x256x128xf32> to vector<256x128xf32>
    %268 = vector.shape_cast %265 : vector<256x128xf32> to vector<1x256x128xf32>
    tpu.vector_store %arg11[%c0_198, %c0_199, %c0_200], %268 {strides = array<i32>} : memref<1x256x128xf32, #tpu.memory_space<vmem>>, vector<1x256x128xf32>,
    return
  }
  func.func @transform_0(%arg0: i32) -> (i32, i32, i32, i32) {
    %c0_i32 = arith.constant 0 : i32
    %c0_i32_0 = arith.constant 0 : i32
    %c0_i32_1 = arith.constant 0 : i32
    %c0_i32_2 = arith.constant 0 : i32
    return %arg0, %c0_i32, %c0_i32_0, %c0_i32_1 : i32, i32, i32, i32
  }
  func.func @transform_1(%arg0: i32) -> (i32, i32, i32) {
    %c0_i32 = arith.constant 0 : i32
    %c0_i32_0 = arith.constant 0 : i32
    %c0_i32_1 = arith.constant 0 : i32
    return %arg0, %c0_i32, %c0_i32_0 : i32, i32, i32
  }
  func.func @transform_2(%arg0: i32) -> (i32, i32, i32) {
    %c0_i32 = arith.constant 0 : i32
    %c0_i32_0 = arith.constant 0 : i32
    %c0_i32_1 = arith.constant 0 : i32
    %c0_i32_2 = arith.constant 0 : i32
    return %c0_i32, %c0_i32_0, %c0_i32_1 : i32, i32, i32
  }
  func.func @transform_3(%arg0: i32) -> (i32, i32) {
    %c0_i32 = arith.constant 0 : i32
    %c0_i32_0 = arith.constant 0 : i32
    %c0_i32_1 = arith.constant 0 : i32
    return %c0_i32, %c0_i32_0 : i32, i32
  }
  func.func @transform_4(%arg0: i32) -> (i32, i32, i32) {
    %c0_i32 = arith.constant 0 : i32
    %c0_i32_0 = arith.constant 0 : i32
    %c0_i32_1 = arith.constant 0 : i32
    %c0_i32_2 = arith.constant 0 : i32
    return %c0_i32, %c0_i32_0, %c0_i32_1 : i32, i32, i32
  }
  func.func @transform_5(%arg0: i32) -> (i32, i32) {
    %c0_i32 = arith.constant 0 : i32
    %c0_i32_0 = arith.constant 0 : i32
    %c0_i32_1 = arith.constant 0 : i32
    return %c0_i32, %c0_i32_0 : i32, i32
  }
  func.func @transform_6(%arg0: i32) -> (i32, i32, i32) {
    %c0_i32 = arith.constant 0 : i32
    %c0_i32_0 = arith.constant 0 : i32
    %c0_i32_1 = arith.constant 0 : i32
    %c0_i32_2 = arith.constant 0 : i32
    return %c0_i32, %c0_i32_0, %c0_i32_1 : i32, i32, i32
  }
  func.func @transform_7(%arg0: i32) -> (i32, i32) {
    %c0_i32 = arith.constant 0 : i32
    %c0_i32_0 = arith.constant 0 : i32
    %c0_i32_1 = arith.constant 0 : i32
    return %c0_i32, %c0_i32_0 : i32, i32
  }
  func.func @transform_8(%arg0: i32) -> (i32, i32, i32) {
    %c0_i32 = arith.constant 0 : i32
    %c0_i32_0 = arith.constant 0 : i32
    %c0_i32_1 = arith.constant 0 : i32
    %c0_i32_2 = arith.constant 0 : i32
    return %c0_i32, %c0_i32_0, %c0_i32_1 : i32, i32, i32
  }
  func.func @transform_9(%arg0: i32) -> (i32, i32) {
    %c0_i32 = arith.constant 0 : i32
    %c0_i32_0 = arith.constant 0 : i32
    %c0_i32_1 = arith.constant 0 : i32
    return %c0_i32, %c0_i32_0 : i32, i32
  }
  func.func @transform_10(%arg0: i32) -> (i32, i32, i32) {
    %c0_i32 = arith.constant 0 : i32
    %c0_i32_0 = arith.constant 0 : i32
    %c0_i32_1 = arith.constant 0 : i32
    return %arg0, %c0_i32, %c0_i32_0 : i32, i32, i32
  }
}

</mosaic_0001>

<llo_original>
// kernel: tpu_custom_call.1
$region0: #{tpu_custom_call.1}
  #allocation0 [shape = 'u32[]', space=smem, size = 0x4, offset = 0x4, fixed_abs, tag = 'smem constant byte address 0x4 - core index']
  #allocation1 [shape = 'u32[72,128]{1,0:T(1,128)}', space=vmem, size = 0x9000, scoped, tag = 'internal scratch']
  #allocation2 [shape = 'bf16[18,26,128]{2,1,0:T(8,128)(2,1)}', space=vmem, size = 0x24000, scoped, tag = 'scratch operand']
  #allocation3 [shape = 'bf16[18,26,128]{2,1,0:T(8,128)(2,1)}', space=vmem, size = 0x24000, scoped, tag = 'scratch operand']
  %s0 = inlined_call_operand.vmem [shape: bf16[2,18,26,128], index: 0, kind: input, shape index: {}]
  %s1 = inlined_call_operand.vmem [shape: f32[2,1,128], index: 1, kind: input, shape index: {}]
  %s2 = inlined_call_operand.vmem [shape: bf16[9,128,128], index: 2, kind: input, shape index: {}]
  %s3 = inlined_call_operand.vmem [shape: f32[1,128], index: 3, kind: input, shape index: {}]
  %s4 = inlined_call_operand.hbm [shape: bf16[9,128,128], index: 4, kind: input, shape index: {}]
  %s5 = inlined_call_operand.vmem [shape: f32[1,128], index: 5, kind: input, shape index: {}]
  %s6 = inlined_call_operand.hbm [shape: bf16[9,128,128], index: 6, kind: input, shape index: {}]
  %s7 = inlined_call_operand.vmem [shape: f32[1,128], index: 7, kind: input, shape index: {}]
  %s8 = inlined_call_operand.hbm [shape: bf16[9,128,128], index: 8, kind: input, shape index: {}]
  %s9 = inlined_call_operand.vmem [shape: f32[1,128], index: 9, kind: input, shape index: {}]
  %s10 = inlined_call_operand.hbm [shape: f32[2,256,128], index: 10, kind: output, shape index: {}]
  %s11 = sld [smem:[#allocation0]]
  $region85: #{tpu_custom_call.1} parent=0
    _
  %s13 = ssub.s32 1, %s11
  %s14 = scalar_select 0, %s13, %s11
  $region1: #{tpu_custom_call.1} parent=0
    #allocation4 [shape = 'u8[294912]{0}', space=vmem, size = 0x48000, scoped, tag = 'input window, operand 4, single buffered']
    #allocation5 [shape = 's32[2]{0}', space=sflag, size = 0x8, scoped, tag = 'scoped memory for tpu_custom_call.1']
    #allocation6 [shape = 's32[2]{0}', space=sflag, size = 0x8, scoped, tag = 'scoped memory for tpu_custom_call.1']
    #allocation7 [shape = 'u8[294912]{0}', space=vmem, size = 0x48000, scoped, tag = 'input window, operand 6, single buffered']
    #allocation8 [shape = 's32[1]{0}', space=sflag, size = 0x4, scoped, tag = 'scoped memory for tpu_custom_call.1']
    #allocation9 [shape = 'u8[294912]{0}', space=vmem, size = 0x48000, scoped, tag = 'input window, operand 8, single buffered']
    #allocation10 [shape = 'u8[262144]{0}', space=vmem, size = 0x40000, scoped, tag = 'output window, operand 0']
    %15 = vsyncpa [#allocation5], 0
    %16 = vsyncpa [#allocation8], 0
    %17 = vsyncpa [#allocation6], 0
    %s18 = scalar_lea.sflag [#allocation6], 1
    %19 = vsyncpa %s18, 0
    loop: start=0, step=1, limit=4
    $region2: #{tpu_custom_call.1} parent=1 // loop_pre_header
      _
    $region3: #{tpu_custom_call.1} parent=1 // loop_header
      %s21 = sphi 0, %s25
      %p22 = scmp.ge.s32.totalorder %s21, 4
      %s31 = sphi 0, %s33
      %s34 = sphi 0, %s31
      %s35 = sphi 0, %s34
      %s51 = sphi 0, %s35
      %s57 = sphi 0, %s59
      %s60 = sphi 0, %s57
      %s61 = sphi 0, %s60
      %s77 = sphi 0, %s61
      %s81 = sphi 0, %s81
      %s83 = sphi 0, %s81
      %s84 = sphi 0, %s83
      %s98 = sphi 0, %s84
      %s102 = sphi 0, %s102
      %s104 = sphi 0, %s102
      %s105 = sphi 0, %s104
      %s119 = sphi 0, %s105
      %s123 = sphi 0, %s123
      %s125 = sphi 0, %s123
      %s126 = sphi 0, %s125
      %s140 = sphi 0, %s126
      %s144 = sphi 0, %s144
      %s146 = sphi 0, %s144
      %s147 = sphi 0, %s146
      %s161 = sphi 0, %s147
      %s165 = sphi 0, %s165
      %s167 = sphi 0, %s165
      %s168 = sphi 0, %s167
      %s182 = sphi 0, %s168
      %s186 = sphi 0, %s186
      %s188 = sphi 0, %s186
      %s189 = sphi 0, %s188
      %s203 = sphi 0, %s189
      %s207 = sphi 0, %s207
      %s209 = sphi 0, %s207
      %s210 = sphi 0, %s209
      %s224 = sphi 0, %s210
      %s228 = sphi 0, %s228
      %s230 = sphi 0, %s228
      %s231 = sphi 0, %s230
      %s245 = sphi 0, %s231
      %s251 = sphi 0, %s253
      %s254 = sphi 0, %s251
      %s255 = sphi 0, %s254
      %s271 = sphi 0, %s255
    $region4: #{tpu_custom_call.1} parent=1 // loop_header_branch
      %24 = sbr.rel (%p22) target = $region8
    $region5: #{tpu_custom_call.1} parent=1 // loop_body
      %s26 = ssub.s32 %s21, 1
      %s27 = ssub.s32 %s21, 2
      %s28 = sadd.s32 %s21, 1
      %s29 = ssub.s32 %s21, %s28
      %p30 = scmp.eq.s32.totalorder %s29, 0
      %s32 = sadd.s32 %s31, 1
      %s33 = scalar_select %p30, %s31, %s32
      %p36 = pneg %p30
      %p37 = scmp.eq.s32.totalorder %s21, 1
      %p38 = por %p36, %p37
      %p39 = scmp.ne.s32.totalorder %s31, %s34
      %p40 = scmp.eq.s32.totalorder %s21, 0
      %p41 = por %p39, %p40
      %p42 = scmp.ne.s32.totalorder %s31, %s34
      %p43 = scmp.eq.s32.totalorder %s26, 1
      %p44 = por %p42, %p43
      %p45 = scmp.ne.s32.totalorder %s34, %s35
      %p46 = scmp.eq.s32.totalorder %s26, 0
      %p47 = por %p45, %p46
      %p48 = scmp.ne.s32.totalorder %s34, %s35
      %p49 = scmp.eq.s32.totalorder %s27, 1
      %p50 = por %p48, %p49
      %p52 = scmp.ne.s32.totalorder %s35, %s51
      %p53 = scmp.eq.s32.totalorder %s27, 0
      %p54 = por %p52, %p53
      %s55 = ssub.s32 %s21, %s28
      %p56 = scmp.eq.s32.totalorder %s55, 0
      %s58 = sadd.s32 %s57, 1
      %s59 = scalar_select %p56, %s57, %s58
      %p62 = pneg %p56
      %p63 = scmp.eq.s32.totalorder %s21, 1
      %p64 = por %p62, %p63
      %p65 = scmp.ne.s32.totalorder %s57, %s60
      %p66 = scmp.eq.s32.totalorder %s21, 0
      %p67 = por %p65, %p66
      %p68 = scmp.ne.s32.totalorder %s57, %s60
      %p69 = scmp.eq.s32.totalorder %s26, 1
      %p70 = por %p68, %p69
      %p71 = scmp.ne.s32.totalorder %s60, %s61
      %p72 = scmp.eq.s32.totalorder %s26, 0
      %p73 = por %p71, %p72
      %p74 = scmp.ne.s32.totalorder %s60, %s61
      %p75 = scmp.eq.s32.totalorder %s27, 1
      %p76 = por %p74, %p75
      %p78 = scmp.ne.s32.totalorder %s61, %s77
      %p79 = scmp.eq.s32.totalorder %s27, 0
      %p80 = por %p78, %p79
      %s82 = sadd.s32 %s81, 1
      %p85 = scmp.eq.s32.totalorder %s21, 1
      %p86 = scmp.ne.s32.totalorder %s81, %s83
      %p87 = scmp.eq.s32.totalorder %s21, 0
      %p88 = por %p86, %p87
      %p89 = scmp.ne.s32.totalorder %s81, %s83
      %p90 = scmp.eq.s32.totalorder %s26, 1
      %p91 = por %p89, %p90
      %p92 = scmp.ne.s32.totalorder %s83, %s84
      %p93 = scmp.eq.s32.totalorder %s26, 0
      %p94 = por %p92, %p93
      %p95 = scmp.ne.s32.totalorder %s83, %s84
      %p96 = scmp.eq.s32.totalorder %s27, 1
      %p97 = por %p95, %p96
      %p99 = scmp.ne.s32.totalorder %s84, %s98
      %p100 = scmp.eq.s32.totalorder %s27, 0
      %p101 = por %p99, %p100
      %s103 = sadd.s32 %s102, 1
      %p106 = scmp.eq.s32.totalorder %s21, 1
      %p107 = scmp.ne.s32.totalorder %s102, %s104
      %p108 = scmp.eq.s32.totalorder %s21, 0
      %p109 = por %p107, %p108
      %p110 = scmp.ne.s32.totalorder %s102, %s104
      %p111 = scmp.eq.s32.totalorder %s26, 1
      %p112 = por %p110, %p111
      %p113 = scmp.ne.s32.totalorder %s104, %s105
      %p114 = scmp.eq.s32.totalorder %s26, 0
      %p115 = por %p113, %p114
      %p116 = scmp.ne.s32.totalorder %s104, %s105
      %p117 = scmp.eq.s32.totalorder %s27, 1
      %p118 = por %p116, %p117
      %p120 = scmp.ne.s32.totalorder %s105, %s119
      %p121 = scmp.eq.s32.totalorder %s27, 0
      %p122 = por %p120, %p121
      %s124 = sadd.s32 %s123, 1
      %p127 = scmp.eq.s32.totalorder %s21, 1
      %p128 = scmp.ne.s32.totalorder %s123, %s125
      %p129 = scmp.eq.s32.totalorder %s21, 0
      %p130 = por %p128, %p129
      %p131 = scmp.ne.s32.totalorder %s123, %s125
      %p132 = scmp.eq.s32.totalorder %s26, 1
      %p133 = por %p131, %p132
      %p134 = scmp.ne.s32.totalorder %s125, %s126
      %p135 = scmp.eq.s32.totalorder %s26, 0
      %p136 = por %p134, %p135
      %p137 = scmp.ne.s32.totalorder %s125, %s126
      %p138 = scmp.eq.s32.totalorder %s27, 1
      %p139 = por %p137, %p138
      %p141 = scmp.ne.s32.totalorder %s126, %s140
      %p142 = scmp.eq.s32.totalorder %s27, 0
      %p143 = por %p141, %p142
      %s145 = sadd.s32 %s144, 1
      %p148 = scmp.eq.s32.totalorder %s21, 1
      %p149 = scmp.ne.s32.totalorder %s144, %s146
      %p150 = scmp.eq.s32.totalorder %s21, 0
      %p151 = por %p149, %p150
      %p152 = scmp.ne.s32.totalorder %s144, %s146
      %p153 = scmp.eq.s32.totalorder %s26, 1
      %p154 = por %p152, %p153
      %p155 = scmp.ne.s32.totalorder %s146, %s147
      %p156 = scmp.eq.s32.totalorder %s26, 0
      %p157 = por %p155, %p156
      %p158 = scmp.ne.s32.totalorder %s146, %s147
      %p159 = scmp.eq.s32.totalorder %s27, 1
      %p160 = por %p158, %p159
      %p162 = scmp.ne.s32.totalorder %s147, %s161
      %p163 = scmp.eq.s32.totalorder %s27, 0
      %p164 = por %p162, %p163
      %s166 = sadd.s32 %s165, 1
      %p169 = scmp.eq.s32.totalorder %s21, 1
      %p170 = scmp.ne.s32.totalorder %s165, %s167
      %p171 = scmp.eq.s32.totalorder %s21, 0
      %p172 = por %p170, %p171
      %p173 = scmp.ne.s32.totalorder %s165, %s167
      %p174 = scmp.eq.s32.totalorder %s26, 1
      %p175 = por %p173, %p174
      %p176 = scmp.ne.s32.totalorder %s167, %s168
      %p177 = scmp.eq.s32.totalorder %s26, 0
      %p178 = por %p176, %p177
      %p179 = scmp.ne.s32.totalorder %s167, %s168
      %p180 = scmp.eq.s32.totalorder %s27, 1
      %p181 = por %p179, %p180
      %p183 = scmp.ne.s32.totalorder %s168, %s182
      %p184 = scmp.eq.s32.totalorder %s27, 0
      %p185 = por %p183, %p184
      %s187 = sadd.s32 %s186, 1
      %p190 = scmp.eq.s32.totalorder %s21, 1
      %p191 = scmp.ne.s32.totalorder %s186, %s188
      %p192 = scmp.eq.s32.totalorder %s21, 0
      %p193 = por %p191, %p192
      %p194 = scmp.ne.s32.totalorder %s186, %s188
      %p195 = scmp.eq.s32.totalorder %s26, 1
      %p196 = por %p194, %p195
      %p197 = scmp.ne.s32.totalorder %s188, %s189
      %p198 = scmp.eq.s32.totalorder %s26, 0
      %p199 = por %p197, %p198
      %p200 = scmp.ne.s32.totalorder %s188, %s189
      %p201 = scmp.eq.s32.totalorder %s27, 1
      %p202 = por %p200, %p201
      %p204 = scmp.ne.s32.totalorder %s189, %s203
      %p205 = scmp.eq.s32.totalorder %s27, 0
      %p206 = por %p204, %p205
      %s208 = sadd.s32 %s207, 1
      %p211 = scmp.eq.s32.totalorder %s21, 1
      %p212 = scmp.ne.s32.totalorder %s207, %s209
      %p213 = scmp.eq.s32.totalorder %s21, 0
      %p214 = por %p212, %p213
      %p215 = scmp.ne.s32.totalorder %s207, %s209
      %p216 = scmp.eq.s32.totalorder %s26, 1
      %p217 = por %p215, %p216
      %p218 = scmp.ne.s32.totalorder %s209, %s210
      %p219 = scmp.eq.s32.totalorder %s26, 0
      %p220 = por %p218, %p219
      %p221 = scmp.ne.s32.totalorder %s209, %s210
      %p222 = scmp.eq.s32.totalorder %s27, 1
      %p223 = por %p221, %p222
      %p225 = scmp.ne.s32.totalorder %s210, %s224
      %p226 = scmp.eq.s32.totalorder %s27, 0
      %p227 = por %p225, %p226
      %s229 = sadd.s32 %s228, 1
      %p232 = scmp.eq.s32.totalorder %s21, 1
      %p233 = scmp.ne.s32.totalorder %s228, %s230
      %p234 = scmp.eq.s32.totalorder %s21, 0
      %p235 = por %p233, %p234
      %p236 = scmp.ne.s32.totalorder %s228, %s230
      %p237 = scmp.eq.s32.totalorder %s26, 1
      %p238 = por %p236, %p237
      %p239 = scmp.ne.s32.totalorder %s230, %s231
      %p240 = scmp.eq.s32.totalorder %s26, 0
      %p241 = por %p239, %p240
      %p242 = scmp.ne.s32.totalorder %s230, %s231
      %p243 = scmp.eq.s32.totalorder %s27, 1
      %p244 = por %p242, %p243
      %p246 = scmp.ne.s32.totalorder %s231, %s245
      %p247 = scmp.eq.s32.totalorder %s27, 0
      %p248 = por %p246, %p247
      %s249 = ssub.s32 %s21, %s28
      %p250 = scmp.eq.s32.totalorder %s249, 0
      %s252 = sadd.s32 %s251, 1
      %s253 = scalar_select %p250, %s251, %s252
      %p256 = pneg %p250
      %p257 = scmp.eq.s32.totalorder %s21, 1
      %p258 = por %p256, %p257
      %p259 = scmp.ne.s32.totalorder %s251, %s254
      %p260 = scmp.eq.s32.totalorder %s21, 0
      %p261 = por %p259, %p260
      %p262 = scmp.ne.s32.totalorder %s251, %s254
      %p263 = scmp.eq.s32.totalorder %s26, 1
      %p264 = por %p262, %p263
      %p265 = scmp.ne.s32.totalorder %s254, %s255
      %p266 = scmp.eq.s32.totalorder %s26, 0
      %p267 = por %p265, %p266
      %p268 = scmp.ne.s32.totalorder %s254, %s255
      %p269 = scmp.eq.s32.totalorder %s27, 1
      %p270 = por %p268, %p269
      %p272 = scmp.ne.s32.totalorder %s255, %s271
      %p273 = scmp.eq.s32.totalorder %s27, 0
      %p274 = por %p272, %p273
      %p275 = scmp.le.s32.totalorder 1, %s21
      %p276 = scmp.lt.s32.totalorder %s21, 3
      %p277 = pnand %p275, %p276
      %p278 = pneg %p277
      // Predicated region
      $region9: #{tpu_custom_call.1} parent=5 // pred_check
        _
      $region10: #{tpu_custom_call.1} parent=5 // pred_check_branch
        %280 = sbr.rel (%p277) target = $region12
      $region11: #{tpu_custom_call.1} parent=5 // pred_region
        %s281 = ssub.s32 %s21, 1
        // Predicated region
        $region13: #{tpu_custom_call.1} parent=11 // pred_check
          %p282 = pneg %p94
        $region14: #{tpu_custom_call.1} parent=11 // pred_check_branch
          %284 = sbr.rel (%p282) target = $region16
        $region15: #{tpu_custom_call.1} parent=11 // pred_region
          _
        $region16: #{tpu_custom_call.1} parent=11 // pred_fallthru
          _
        // Predicated region
        $region17: #{tpu_custom_call.1} parent=11 // pred_check
          %p285 = pneg %p115
        $region18: #{tpu_custom_call.1} parent=11 // pred_check_branch
          %287 = sbr.rel (%p285) target = $region20
        $region19: #{tpu_custom_call.1} parent=11 // pred_region
          _
        $region20: #{tpu_custom_call.1} parent=11 // pred_fallthru
          _
        // Predicated region
        $region21: #{tpu_custom_call.1} parent=11 // pred_check
          %p288 = pneg %p136
        $region22: #{tpu_custom_call.1} parent=11 // pred_check_branch
          %290 = sbr.rel (%p288) target = $region24
        $region23: #{tpu_custom_call.1} parent=11 // pred_region
          %292 = vsyncadd [#allocation5], 0
          %s293 = sshll.u32 %s4, 4
          %s294 = int_to_ptr.hbm [resolvable:$true] %s293
          %s295 = sshll.u32 [#allocation4], 4
          %s296 = int_to_ptr.vmem [resolvable:$true] %s295
          %301 = dma.hbm_to_vmem [thread:$0]  %s294, 9216, %s296, [#allocation5], 64, 64, 4
        $region24: #{tpu_custom_call.1} parent=11 // pred_fallthru
          _
        // Predicated region
        $region25: #{tpu_custom_call.1} parent=11 // pred_check
          %p302 = pneg %p157
        $region26: #{tpu_custom_call.1} parent=11 // pred_check_branch
          %304 = sbr.rel (%p302) target = $region28
        $region27: #{tpu_custom_call.1} parent=11 // pred_region
          _
        $region28: #{tpu_custom_call.1} parent=11 // pred_fallthru
          _
        // Predicated region
        $region29: #{tpu_custom_call.1} parent=11 // pred_check
          %p305 = pneg %p178
        $region30: #{tpu_custom_call.1} parent=11 // pred_check_branch
          %307 = sbr.rel (%p305) target = $region32
        $region31: #{tpu_custom_call.1} parent=11 // pred_region
          %309 = vsyncadd [#allocation8], 0
          %s310 = sshll.u32 %s6, 4
          %s311 = int_to_ptr.hbm [resolvable:$true] %s310
          %s312 = sshll.u32 [#allocation7], 4
          %s313 = int_to_ptr.vmem [resolvable:$true] %s312
          %318 = dma.hbm_to_vmem [thread:$0]  %s311, 9216, %s313, [#allocation8], 64, 64, 4
        $region32: #{tpu_custom_call.1} parent=11 // pred_fallthru
          _
        // Predicated region
        $region33: #{tpu_custom_call.1} parent=11 // pred_check
          %p319 = pneg %p199
        $region34: #{tpu_custom_call.1} parent=11 // pred_check_branch
          %321 = sbr.rel (%p319) target = $region36
        $region35: #{tpu_custom_call.1} parent=11 // pred_region
          _
        $region36: #{tpu_custom_call.1} parent=11 // pred_fallthru
          _
        // Predicated region
        $region37: #{tpu_custom_call.1} parent=11 // pred_check
          %p322 = pneg %p220
        $region38: #{tpu_custom_call.1} parent=11 // pred_check_branch
          %324 = sbr.rel (%p322) target = $region40
        $region39: #{tpu_custom_call.1} parent=11 // pred_region
          %326 = vsyncadd [#allocation8], 0
          %s327 = sshll.u32 %s8, 4
          %s328 = int_to_ptr.hbm [resolvable:$true] %s327
          %s329 = sshll.u32 [#allocation9], 4
          %s330 = int_to_ptr.vmem [resolvable:$true] %s329
          %335 = dma.hbm_to_vmem [thread:$0]  %s328, 9216, %s330, [#allocation8], 64, 64, 4
        $region40: #{tpu_custom_call.1} parent=11 // pred_fallthru
          _
        // Predicated region
        $region41: #{tpu_custom_call.1} parent=11 // pred_check
          %p336 = pneg %p241
        $region42: #{tpu_custom_call.1} parent=11 // pred_check_branch
          %338 = sbr.rel (%p336) target = $region44
        $region43: #{tpu_custom_call.1} parent=11 // pred_region
          _
        $region44: #{tpu_custom_call.1} parent=11 // pred_fallthru
          _
      $region12: #{tpu_custom_call.1} parent=5 // pred_fallthru
        _
      %p339 = scmp.lt.s32.totalorder %s21, 2
      // Predicated region
      $region45: #{tpu_custom_call.1} parent=5 // pred_check
        %p340 = pneg %p339
      $region46: #{tpu_custom_call.1} parent=5 // pred_check_branch
        %342 = sbr.rel (%p340) target = $region48
      $region47: #{tpu_custom_call.1} parent=5 // pred_region
        // Predicated region
        $region49: #{tpu_custom_call.1} parent=47 // pred_check
          %p343 = pneg %p41
        $region50: #{tpu_custom_call.1} parent=47 // pred_check_branch
          %345 = sbr.rel (%p343) target = $region52
        $region51: #{tpu_custom_call.1} parent=47 // pred_region
          %p346 = scmp.lt.s32.totalorder %s21, 1
          %s347 = scalar_select %p346, %s21, 1
          %s348 = smul.addr %s347, 72
          %s349 = smul.addr %s348, 4
          %s350 = scalar_lea.vmem %s0, %s349
        $region52: #{tpu_custom_call.1} parent=47 // pred_fallthru
          _
        // Predicated region
        $region53: #{tpu_custom_call.1} parent=47 // pred_check
          %p351 = pneg %p67
        $region54: #{tpu_custom_call.1} parent=47 // pred_check_branch
          %353 = sbr.rel (%p351) target = $region56
        $region55: #{tpu_custom_call.1} parent=47 // pred_region
          %p354 = scmp.lt.s32.totalorder %s21, 1
          %s355 = scalar_select %p354, %s21, 1
          %s356 = scalar_lea.vmem %s1, %s355
        $region56: #{tpu_custom_call.1} parent=47 // pred_fallthru
          _
      $region48: #{tpu_custom_call.1} parent=5 // pred_fallthru
        _
      %p357 = scmp.le.s32.totalorder 1, %s21
      %p358 = scmp.lt.s32.totalorder %s21, 3
      %p359 = pnand %p357, %p358
      %p360 = pneg %p359
      // Predicated region
      $region57: #{tpu_custom_call.1} parent=5 // pred_check
        _
      $region58: #{tpu_custom_call.1} parent=5 // pred_check_branch
        %362 = sbr.rel (%p359) target = $region60
      $region59: #{tpu_custom_call.1} parent=5 // pred_region
        %s363 = ssub.s32 %s21, 1
        // Predicated region
        $region61: #{tpu_custom_call.1} parent=59 // pred_check
          %p364 = pneg %p136
        $region62: #{tpu_custom_call.1} parent=59 // pred_check_branch
          %366 = sbr.rel (%p364) target = $region64
        $region63: #{tpu_custom_call.1} parent=59 // pred_region
          %368 = dma.done [#allocation5], 9216
        $region64: #{tpu_custom_call.1} parent=59 // pred_fallthru
          _
        // Predicated region
        $region65: #{tpu_custom_call.1} parent=59 // pred_check
          %p369 = pneg %p178
        $region66: #{tpu_custom_call.1} parent=59 // pred_check_branch
          %371 = sbr.rel (%p369) target = $region68
        $region67: #{tpu_custom_call.1} parent=59 // pred_region
          %373 = dma.done [#allocation8], 9216
        $region68: #{tpu_custom_call.1} parent=59 // pred_fallthru
          _
        // Predicated region
        $region69: #{tpu_custom_call.1} parent=59 // pred_check
          %p374 = pneg %p220
        $region70: #{tpu_custom_call.1} parent=59 // pred_check_branch
          %376 = sbr.rel (%p374) target = $region72
        $region71: #{tpu_custom_call.1} parent=59 // pred_region
          %378 = dma.done [#allocation8], 9216
        $region72: #{tpu_custom_call.1} parent=59 // pred_fallthru
          _
        %p379 = scmp.lt.s32.totalorder %s26, 1
        %s380 = scalar_select %p379, %s26, 1
        %s381 = smul.addr %s380, 72
        %s382 = smul.addr %s381, 4
        %s383 = scalar_lea.vmem %s0, %s382
        %p384 = pneg %p47
        %p385 = pneg %p44
        %p386 = scmp.lt.s32.totalorder %s26, 1
        %s387 = scalar_select %p386, %s26, 1
        %s388 = scalar_lea.vmem %s1, %s387
        %p389 = pneg %p73
        %p390 = pneg %p70
        %p391 = pneg %p94
        %p392 = pneg %p91
        %p393 = pneg %p115
        %p394 = pneg %p112
        %p395 = pneg %p136
        %p396 = pneg %p133
        %p397 = pneg %p157
        %p398 = pneg %p154
        %p399 = pneg %p178
        %p400 = pneg %p175
        %p401 = pneg %p199
        %p402 = pneg %p196
        %p403 = pneg %p220
        %p404 = pneg %p217
        %p405 = pneg %p241
        %p406 = pneg %p238
        %p407 = pneg %p267
        %p408 = pneg %p264
        %s409 = sand.u32 %s254, 1
        %s410 = scalar_lea.sflag [#allocation6], %s409
        %s411 = sand.u32 %s254, 1
        %s412 = smul.addr %s411, 256
        %s413 = scalar_lea.vmem [#allocation10], %s412
        %p414 = scmp.lt.s32.totalorder %s26, 1
        %s415 = scalar_select %p414, %s26, 1
        %s416 = smul.addr %s415, 72
        %s417 = smul.addr %s416, 4
        %s418 = scalar_lea.vmem %s0, %s417
        %p419 = scmp.lt.s32.totalorder %s26, 1
        %s420 = scalar_select %p419, %s26, 1
        %s421 = scalar_lea.vmem %s1, %s420
        %423 = vst [vmem:[#allocation2] sm:$0xf] 0
        %424 = vst [vmem:[#allocation2 + $0x4] sm:$0xf] 0
        %425 = vst [vmem:[#allocation2 + $0x8] sm:$0xf] 0
        %426 = vst [vmem:[#allocation2 + $0xc] sm:$0x1] 0
        %s427 = scalar_lea.vmem [#allocation2], 272
        %428 = vst [vmem:[%s427] sm:$0xf] 0
        %429 = vst [vmem:[%s427 + $0x4] sm:$0xf] 0
        %430 = vst [vmem:[%s427 + $0x8] sm:$0xf] 0
        %431 = vst [vmem:[%s427 + $0xc] sm:$0x1] 0
        %432 = vst [vmem:[#allocation2] sm:$0x8] 0
        %433 = vst [vmem:[#allocation2 + $0x10] sm:$0x8] 0
        %434 = vst [vmem:[#allocation2 + $0x20] sm:$0x8] 0
        %435 = vst [vmem:[#allocation2 + $0x30] sm:$0x8] 0
        %436 = vst [vmem:[#allocation2 + $0x40] sm:$0x8] 0
        %437 = vst [vmem:[#allocation2 + $0x50] sm:$0x8] 0
        %438 = vst [vmem:[#allocation2 + $0x60] sm:$0x8] 0
        %439 = vst [vmem:[#allocation2 + $0x70] sm:$0x8] 0
        %440 = vst [vmem:[#allocation2 + $0x80] sm:$0x8] 0
        %441 = vst [vmem:[#allocation2 + $0x90] sm:$0x8] 0
        %442 = vst [vmem:[#allocation2 + $0xa0] sm:$0x8] 0
        %443 = vst [vmem:[#allocation2 + $0xb0] sm:$0x8] 0
        %444 = vst [vmem:[#allocation2 + $0xc0] sm:$0x8] 0
        %445 = vst [vmem:[#allocation2 + $0xd0] sm:$0x8] 0
        %446 = vst [vmem:[#allocation2 + $0xe0] sm:$0x8] 0
        %447 = vst [vmem:[#allocation2 + $0xf0] sm:$0x8] 0
        %448 = vst [vmem:[#allocation2 + $0x100] sm:$0x8] 0
        %449 = vst [vmem:[#allocation2 + $0x110] sm:$0x8] 0
        %450 = vst [vmem:[#allocation2 + $0xc] sm:$0x1] 0
        %451 = vst [vmem:[#allocation2 + $0x1c] sm:$0x1] 0
        %452 = vst [vmem:[#allocation2 + $0x2c] sm:$0x1] 0
        %453 = vst [vmem:[#allocation2 + $0x3c] sm:$0x1] 0
        %454 = vst [vmem:[#allocation2 + $0x4c] sm:$0x1] 0
        %455 = vst [vmem:[#allocation2 + $0x5c] sm:$0x1] 0
        %456 = vst [vmem:[#allocation2 + $0x6c] sm:$0x1] 0
        %457 = vst [vmem:[#allocation2 + $0x7c] sm:$0x1] 0
        %458 = vst [vmem:[#allocation2 + $0x8c] sm:$0x1] 0
        %459 = vst [vmem:[#allocation2 + $0x9c] sm:$0x1] 0
        %460 = vst [vmem:[#allocation2 + $0xac] sm:$0x1] 0
        %461 = vst [vmem:[#allocation2 + $0xbc] sm:$0x1] 0
        %462 = vst [vmem:[#allocation2 + $0xcc] sm:$0x1] 0
        %463 = vst [vmem:[#allocation2 + $0xdc] sm:$0x1] 0
        %464 = vst [vmem:[#allocation2 + $0xec] sm:$0x1] 0
        %465 = vst [vmem:[#allocation2 + $0xfc] sm:$0x1] 0
        %466 = vst [vmem:[#allocation2 + $0x10c] sm:$0x1] 0
        %467 = vst [vmem:[#allocation2 + $0x11c] sm:$0x1] 0
        %468 = vst [vmem:[#allocation3] sm:$0xf] 0
        %469 = vst [vmem:[#allocation3 + $0x4] sm:$0xf] 0
        %470 = vst [vmem:[#allocation3 + $0x8] sm:$0xf] 0
        %471 = vst [vmem:[#allocation3 + $0xc] sm:$0x1] 0
        %s472 = scalar_lea.vmem [#allocation3], 272
        %473 = vst [vmem:[%s472] sm:$0xf] 0
        %474 = vst [vmem:[%s472 + $0x4] sm:$0xf] 0
        %475 = vst [vmem:[%s472 + $0x8] sm:$0xf] 0
        %476 = vst [vmem:[%s472 + $0xc] sm:$0x1] 0
        %477 = vst [vmem:[#allocation3] sm:$0x8] 0
        %478 = vst [vmem:[#allocation3 + $0x10] sm:$0x8] 0
        %479 = vst [vmem:[#allocation3 + $0x20] sm:$0x8] 0
        %480 = vst [vmem:[#allocation3 + $0x30] sm:$0x8] 0
        %481 = vst [vmem:[#allocation3 + $0x40] sm:$0x8] 0
        %482 = vst [vmem:[#allocation3 + $0x50] sm:$0x8] 0
        %483 = vst [vmem:[#allocation3 + $0x60] sm:$0x8] 0
        %484 = vst [vmem:[#allocation3 + $0x70] sm:$0x8] 0
        %485 = vst [vmem:[#allocation3 + $0x80] sm:$0x8] 0
        %486 = vst [vmem:[#allocation3 + $0x90] sm:$0x8] 0
        %487 = vst [vmem:[#allocation3 + $0xa0] sm:$0x8] 0
        %488 = vst [vmem:[#allocation3 + $0xb0] sm:$0x8] 0
        %489 = vst [vmem:[#allocation3 + $0xc0] sm:$0x8] 0
        %490 = vst [vmem:[#allocation3 + $0xd0] sm:$0x8] 0
        %491 = vst [vmem:[#allocation3 + $0xe0] sm:$0x8] 0
        %492 = vst [vmem:[#allocation3 + $0xf0] sm:$0x8] 0
        %493 = vst [vmem:[#allocation3 + $0x100] sm:$0x8] 0
        %494 = vst [vmem:[#allocation3 + $0x110] sm:$0x8] 0
        %495 = vst [vmem:[#allocation3 + $0xc] sm:$0x1] 0
        %496 = vst [vmem:[#allocation3 + $0x1c] sm:$0x1] 0
        %497 = vst [vmem:[#allocation3 + $0x2c] sm:$0x1] 0
        %498 = vst [vmem:[#allocation3 + $0x3c] sm:$0x1] 0
        %499 = vst [vmem:[#allocation3 + $0x4c] sm:$0x1] 0
        %500 = vst [vmem:[#allocation3 + $0x5c] sm:$0x1] 0
        %501 = vst [vmem:[#allocation3 + $0x6c] sm:$0x1] 0
        %502 = vst [vmem:[#allocation3 + $0x7c] sm:$0x1] 0
        %503 = vst [vmem:[#allocation3 + $0x8c] sm:$0x1] 0
        %504 = vst [vmem:[#allocation3 + $0x9c] sm:$0x1] 0
        %505 = vst [vmem:[#allocation3 + $0xac] sm:$0x1] 0
        %506 = vst [vmem:[#allocation3 + $0xbc] sm:$0x1] 0
        %507 = vst [vmem:[#allocation3 + $0xcc] sm:$0x1] 0
        %508 = vst [vmem:[#allocation3 + $0xdc] sm:$0x1] 0
        %509 = vst [vmem:[#allocation3 + $0xec] sm:$0x1] 0
        %510 = vst [vmem:[#allocation3 + $0xfc] sm:$0x1] 0
        %511 = vst [vmem:[#allocation3 + $0x10c] sm:$0x1] 0
        %512 = vst [vmem:[#allocation3 + $0x11c] sm:$0x1] 0
        %v513 = vld [vmem:[%s418] sm:$0xf]
        %v514 = vld [vmem:[%s418 + $0x4] sm:$0xf]
        %v515 = vld [vmem:[%s418 + $0x8] sm:$0xf]
        %v516 = vld [vmem:[%s418 + $0xc] sm:$0x1]
        %v517 = vld [vmem:[%s418 + $0x10] sm:$0xf]
        %v518 = vld [vmem:[%s418 + $0x14] sm:$0xf]
        %v519 = vld [vmem:[%s418 + $0x18] sm:$0xf]
        %v520 = vld [vmem:[%s418 + $0x1c] sm:$0x1]
        %v521 = vld [vmem:[%s418 + $0x20] sm:$0xf]
        %v522 = vld [vmem:[%s418 + $0x24] sm:$0xf]
        %v523 = vld [vmem:[%s418 + $0x28] sm:$0xf]
        %v524 = vld [vmem:[%s418 + $0x2c] sm:$0x1]
        %v525 = vld [vmem:[%s418 + $0x30] sm:$0xf]
        %v526 = vld [vmem:[%s418 + $0x34] sm:$0xf]
        %v527 = vld [vmem:[%s418 + $0x38] sm:$0xf]
        %v528 = vld [vmem:[%s418 + $0x3c] sm:$0x1]
        %v529 = vld [vmem:[%s418 + $0x40] sm:$0xf]
        %v530 = vld [vmem:[%s418 + $0x44] sm:$0xf]
        %v531 = vld [vmem:[%s418 + $0x48] sm:$0xf]
        %v532 = vld [vmem:[%s418 + $0x4c] sm:$0x1]
        %v533 = vld [vmem:[%s418 + $0x50] sm:$0xf]
        %v534 = vld [vmem:[%s418 + $0x54] sm:$0xf]
        %v535 = vld [vmem:[%s418 + $0x58] sm:$0xf]
        %v536 = vld [vmem:[%s418 + $0x5c] sm:$0x1]
        %v537 = vld [vmem:[%s418 + $0x60] sm:$0xf]
        %v538 = vld [vmem:[%s418 + $0x64] sm:$0xf]
        %v539 = vld [vmem:[%s418 + $0x68] sm:$0xf]
        %v540 = vld [vmem:[%s418 + $0x6c] sm:$0x1]
        %v541 = vld [vmem:[%s418 + $0x70] sm:$0xf]
        %v542 = vld [vmem:[%s418 + $0x74] sm:$0xf]
        %v543 = vld [vmem:[%s418 + $0x78] sm:$0xf]
        %v544 = vld [vmem:[%s418 + $0x7c] sm:$0x1]
        %v545 = vld [vmem:[%s418 + $0x80] sm:$0xf]
        %v546 = vld [vmem:[%s418 + $0x84] sm:$0xf]
        %v547 = vld [vmem:[%s418 + $0x88] sm:$0xf]
        %v548 = vld [vmem:[%s418 + $0x8c] sm:$0x1]
        %v549 = vld [vmem:[%s418 + $0x90] sm:$0xf]
        %v550 = vld [vmem:[%s418 + $0x94] sm:$0xf]
        %v551 = vld [vmem:[%s418 + $0x98] sm:$0xf]
        %v552 = vld [vmem:[%s418 + $0x9c] sm:$0x1]
        %v553 = vld [vmem:[%s418 + $0xa0] sm:$0xf]
        %v554 = vld [vmem:[%s418 + $0xa4] sm:$0xf]
        %v555 = vld [vmem:[%s418 + $0xa8] sm:$0xf]
        %v556 = vld [vmem:[%s418 + $0xac] sm:$0x1]
        %v557 = vld [vmem:[%s418 + $0xb0] sm:$0xf]
        %v558 = vld [vmem:[%s418 + $0xb4] sm:$0xf]
        %v559 = vld [vmem:[%s418 + $0xb8] sm:$0xf]
        %v560 = vld [vmem:[%s418 + $0xbc] sm:$0x1]
        %v561 = vld [vmem:[%s418 + $0xc0] sm:$0xf]
        %v562 = vld [vmem:[%s418 + $0xc4] sm:$0xf]
        %v563 = vld [vmem:[%s418 + $0xc8] sm:$0xf]
        %v564 = vld [vmem:[%s418 + $0xcc] sm:$0x1]
        %v565 = vld [vmem:[%s418 + $0xd0] sm:$0xf]
        %v566 = vld [vmem:[%s418 + $0xd4] sm:$0xf]
        %v567 = vld [vmem:[%s418 + $0xd8] sm:$0xf]
        %v568 = vld [vmem:[%s418 + $0xdc] sm:$0x1]
        %v569 = vld [vmem:[%s418 + $0xe0] sm:$0xf]
        %v570 = vld [vmem:[%s418 + $0xe4] sm:$0xf]
        %v571 = vld [vmem:[%s418 + $0xe8] sm:$0xf]
        %v572 = vld [vmem:[%s418 + $0xec] sm:$0x1]
        %v573 = vld [vmem:[%s418 + $0xf0] sm:$0xf]
        %v574 = vld [vmem:[%s418 + $0xf4] sm:$0xf]
        %v575 = vld [vmem:[%s418 + $0xf8] sm:$0xf]
        %v576 = vld [vmem:[%s418 + $0xfc] sm:$0x1]
        %v577 = vld [vmem:[%s418 + $0x100] sm:$0xf]
        %v578 = vld [vmem:[%s418 + $0x104] sm:$0xf]
        %v579 = vld [vmem:[%s418 + $0x108] sm:$0xf]
        %v580 = vld [vmem:[%s418 + $0x10c] sm:$0x1]
        %v581 = vld [vmem:[%s418 + $0x110] sm:$0xf]
        %v582 = vld [vmem:[%s418 + $0x114] sm:$0xf]
        %v583 = vld [vmem:[%s418 + $0x118] sm:$0xf]
        %v584 = vld [vmem:[%s418 + $0x11c] sm:$0x1]
        %vm585 = vsmask.f32 256
        %vm586 = vsmask.f32 4368
        %vm587 = vmor %vm585, %vm586
        %v589 = vshrl.u32 %v513, 16
        %v591 = vrot.slane %v589, 7
        %v592 = vrot.slane %v591, 4
        %v594 = vshrl.u32 %v514, 16
        %v596 = vrot.slane %v594, 7
        %v597 = vshll.u32 %v514, 16
        %v599 = vor.u32 %v596, %v597
        %v600 = vsel %vm587, %v592, %v599
        %v601 = vrot.slane %v596, 4
        %v603 = vshrl.u32 %v515, 16
        %v605 = vrot.slane %v603, 7
        %v606 = vshll.u32 %v515, 16
        %v608 = vor.u32 %v605, %v606
        %v609 = vsel %vm587, %v601, %v608
        %v611 = vshrl.u32 %v517, 16
        %v613 = vrot.slane %v611, 7
        %v614 = vrot.slane %v613, 4
        %v616 = vshrl.u32 %v518, 16
        %v618 = vrot.slane %v616, 7
        %v619 = vshll.u32 %v518, 16
        %v621 = vor.u32 %v618, %v619
        %v622 = vsel %vm587, %v614, %v621
        %v623 = vrot.slane %v618, 4
        %v625 = vshrl.u32 %v519, 16
        %v627 = vrot.slane %v625, 7
        %v628 = vshll.u32 %v519, 16
        %v630 = vor.u32 %v627, %v628
        %v631 = vsel %vm587, %v623, %v630
        %v633 = vshrl.u32 %v521, 16
        %v635 = vrot.slane %v633, 7
        %v636 = vrot.slane %v635, 4
        %v638 = vshrl.u32 %v522, 16
        %v640 = vrot.slane %v638, 7
        %v641 = vshll.u32 %v522, 16
        %v643 = vor.u32 %v640, %v641
        %v644 = vsel %vm587, %v636, %v643
        %v645 = vrot.slane %v640, 4
        %v647 = vshrl.u32 %v523, 16
        %v649 = vrot.slane %v647, 7
        %v650 = vshll.u32 %v523, 16
        %v652 = vor.u32 %v649, %v650
        %v653 = vsel %vm587, %v645, %v652
        %v655 = vshrl.u32 %v525, 16
        %v657 = vrot.slane %v655, 7
        %v658 = vrot.slane %v657, 4
        %v660 = vshrl.u32 %v526, 16
        %v662 = vrot.slane %v660, 7
        %v663 = vshll.u32 %v526, 16
        %v665 = vor.u32 %v662, %v663
        %v666 = vsel %vm587, %v658, %v665
        %v667 = vrot.slane %v662, 4
        %v669 = vshrl.u32 %v527, 16
        %v671 = vrot.slane %v669, 7
        %v672 = vshll.u32 %v527, 16
        %v674 = vor.u32 %v671, %v672
        %v675 = vsel %vm587, %v667, %v674
        %v677 = vshrl.u32 %v529, 16
        %v679 = vrot.slane %v677, 7
        %v680 = vrot.slane %v679, 4
        %v682 = vshrl.u32 %v530, 16
        %v684 = vrot.slane %v682, 7
        %v685 = vshll.u32 %v530, 16
        %v687 = vor.u32 %v684, %v685
        %v688 = vsel %vm587, %v680, %v687
        %v689 = vrot.slane %v684, 4
        %v691 = vshrl.u32 %v531, 16
        %v693 = vrot.slane %v691, 7
        %v694 = vshll.u32 %v531, 16
        %v696 = vor.u32 %v693, %v694
        %v697 = vsel %vm587, %v689, %v696
        %v699 = vshrl.u32 %v533, 16
        %v701 = vrot.slane %v699, 7
        %v702 = vrot.slane %v701, 4
        %v704 = vshrl.u32 %v534, 16
        %v706 = vrot.slane %v704, 7
        %v707 = vshll.u32 %v534, 16
        %v709 = vor.u32 %v706, %v707
        %v710 = vsel %vm587, %v702, %v709
        %v711 = vrot.slane %v706, 4
        %v713 = vshrl.u32 %v535, 16
        %v715 = vrot.slane %v713, 7
        %v716 = vshll.u32 %v535, 16
        %v718 = vor.u32 %v715, %v716
        %v719 = vsel %vm587, %v711, %v718
        %v721 = vshrl.u32 %v537, 16
        %v723 = vrot.slane %v721, 7
        %v724 = vrot.slane %v723, 4
        %v726 = vshrl.u32 %v538, 16
        %v728 = vrot.slane %v726, 7
        %v729 = vshll.u32 %v538, 16
        %v731 = vor.u32 %v728, %v729
        %v732 = vsel %vm587, %v724, %v731
        %v733 = vrot.slane %v728, 4
        %v735 = vshrl.u32 %v539, 16
        %v737 = vrot.slane %v735, 7
        %v738 = vshll.u32 %v539, 16
        %v740 = vor.u32 %v737, %v738
        %v741 = vsel %vm587, %v733, %v740
        %v743 = vshrl.u32 %v541, 16
        %v745 = vrot.slane %v743, 7
        %v746 = vrot.slane %v745, 4
        %v748 = vshrl.u32 %v542, 16
        %v750 = vrot.slane %v748, 7
        %v751 = vshll.u32 %v542, 16
        %v753 = vor.u32 %v750, %v751
        %v754 = vsel %vm587, %v746, %v753
        %v755 = vrot.slane %v750, 4
        %v757 = vshrl.u32 %v543, 16
        %v759 = vrot.slane %v757, 7
        %v760 = vshll.u32 %v543, 16
        %v762 = vor.u32 %v759, %v760
        %v763 = vsel %vm587, %v755, %v762
        %v765 = vshrl.u32 %v545, 16
        %v767 = vrot.slane %v765, 7
        %v768 = vrot.slane %v767, 4
        %v770 = vshrl.u32 %v546, 16
        %v772 = vrot.slane %v770, 7
        %v773 = vshll.u32 %v546, 16
        %v775 = vor.u32 %v772, %v773
        %v776 = vsel %vm587, %v768, %v775
        %v777 = vrot.slane %v772, 4
        %v779 = vshrl.u32 %v547, 16
        %v781 = vrot.slane %v779, 7
        %v782 = vshll.u32 %v547, 16
        %v784 = vor.u32 %v781, %v782
        %v785 = vsel %vm587, %v777, %v784
        %v787 = vshrl.u32 %v549, 16
        %v789 = vrot.slane %v787, 7
        %v790 = vrot.slane %v789, 4
        %v792 = vshrl.u32 %v550, 16
        %v794 = vrot.slane %v792, 7
        %v795 = vshll.u32 %v550, 16
        %v797 = vor.u32 %v794, %v795
        %v798 = vsel %vm587, %v790, %v797
        %v799 = vrot.slane %v794, 4
        %v801 = vshrl.u32 %v551, 16
        %v803 = vrot.slane %v801, 7
        %v804 = vshll.u32 %v551, 16
        %v806 = vor.u32 %v803, %v804
        %v807 = vsel %vm587, %v799, %v806
        %v809 = vshrl.u32 %v553, 16
        %v811 = vrot.slane %v809, 7
        %v812 = vrot.slane %v811, 4
        %v814 = vshrl.u32 %v554, 16
        %v816 = vrot.slane %v814, 7
        %v817 = vshll.u32 %v554, 16
        %v819 = vor.u32 %v816, %v817
        %v820 = vsel %vm587, %v812, %v819
        %v821 = vrot.slane %v816, 4
        %v823 = vshrl.u32 %v555, 16
        %v825 = vrot.slane %v823, 7
        %v826 = vshll.u32 %v555, 16
        %v828 = vor.u32 %v825, %v826
        %v829 = vsel %vm587, %v821, %v828
        %v831 = vshrl.u32 %v557, 16
        %v833 = vrot.slane %v831, 7
        %v834 = vrot.slane %v833, 4
        %v836 = vshrl.u32 %v558, 16
        %v838 = vrot.slane %v836, 7
        %v839 = vshll.u32 %v558, 16
        %v841 = vor.u32 %v838, %v839
        %v842 = vsel %vm587, %v834, %v841
        %v843 = vrot.slane %v838, 4
        %v845 = vshrl.u32 %v559, 16
        %v847 = vrot.slane %v845, 7
        %v848 = vshll.u32 %v559, 16
        %v850 = vor.u32 %v847, %v848
        %v851 = vsel %vm587, %v843, %v850
        %v853 = vshrl.u32 %v561, 16
        %v855 = vrot.slane %v853, 7
        %v856 = vrot.slane %v855, 4
        %v858 = vshrl.u32 %v562, 16
        %v860 = vrot.slane %v858, 7
        %v861 = vshll.u32 %v562, 16
        %v863 = vor.u32 %v860, %v861
        %v864 = vsel %vm587, %v856, %v863
        %v865 = vrot.slane %v860, 4
        %v867 = vshrl.u32 %v563, 16
        %v869 = vrot.slane %v867, 7
        %v870 = vshll.u32 %v563, 16
        %v872 = vor.u32 %v869, %v870
        %v873 = vsel %vm587, %v865, %v872
        %v875 = vshrl.u32 %v565, 16
        %v877 = vrot.slane %v875, 7
        %v878 = vrot.slane %v877, 4
        %v880 = vshrl.u32 %v566, 16
        %v882 = vrot.slane %v880, 7
        %v883 = vshll.u32 %v566, 16
        %v885 = vor.u32 %v882, %v883
        %v886 = vsel %vm587, %v878, %v885
        %v887 = vrot.slane %v882, 4
        %v889 = vshrl.u32 %v567, 16
        %v891 = vrot.slane %v889, 7
        %v892 = vshll.u32 %v567, 16
        %v894 = vor.u32 %v891, %v892
        %v895 = vsel %vm587, %v887, %v894
        %v897 = vshrl.u32 %v569, 16
        %v899 = vrot.slane %v897, 7
        %v900 = vrot.slane %v899, 4
        %v902 = vshrl.u32 %v570, 16
        %v904 = vrot.slane %v902, 7
        %v905 = vshll.u32 %v570, 16
        %v907 = vor.u32 %v904, %v905
        %v908 = vsel %vm587, %v900, %v907
        %v909 = vrot.slane %v904, 4
        %v911 = vshrl.u32 %v571, 16
        %v913 = vrot.slane %v911, 7
        %v914 = vshll.u32 %v571, 16
        %v916 = vor.u32 %v913, %v914
        %v917 = vsel %vm587, %v909, %v916
        %v919 = vshrl.u32 %v573, 16
        %v921 = vrot.slane %v919, 7
        %v922 = vrot.slane %v921, 4
        %v924 = vshrl.u32 %v574, 16
        %v926 = vrot.slane %v924, 7
        %v927 = vshll.u32 %v574, 16
        %v929 = vor.u32 %v926, %v927
        %v930 = vsel %vm587, %v922, %v929
        %v931 = vrot.slane %v926, 4
        %v933 = vshrl.u32 %v575, 16
        %v935 = vrot.slane %v933, 7
        %v936 = vshll.u32 %v575, 16
        %v938 = vor.u32 %v935, %v936
        %v939 = vsel %vm587, %v931, %v938
        %v940 = vld [vmem:[%s2] sm:$0xf]
        %v941 = vld [vmem:[%s2 + $0x4] sm:$0xf]
        %v942 = vld [vmem:[%s2 + $0x8] sm:$0xf]
        %v943 = vld [vmem:[%s2 + $0xc] sm:$0xf]
        %v944 = vld [vmem:[%s2 + $0x10] sm:$0xf]
        %v945 = vld [vmem:[%s2 + $0x14] sm:$0xf]
        %v946 = vld [vmem:[%s2 + $0x18] sm:$0xf]
        %v947 = vld [vmem:[%s2 + $0x1c] sm:$0xf]
        %v948 = vld [vmem:[%s2 + $0x20] sm:$0xf]
        %v949 = vld [vmem:[%s2 + $0x24] sm:$0xf]
        %v950 = vld [vmem:[%s2 + $0x28] sm:$0xf]
        %v951 = vld [vmem:[%s2 + $0x2c] sm:$0xf]
        %v952 = vld [vmem:[%s2 + $0x30] sm:$0xf]
        %v953 = vld [vmem:[%s2 + $0x34] sm:$0xf]
        %v954 = vld [vmem:[%s2 + $0x38] sm:$0xf]
        %v955 = vld [vmem:[%s2 + $0x3c] sm:$0xf]
        %s956 = scalar_lea.vmem %s2, 64
        %v957 = vld [vmem:[%s956] sm:$0xf]
        %v958 = vld [vmem:[%s956 + $0x4] sm:$0xf]
        %v959 = vld [vmem:[%s956 + $0x8] sm:$0xf]
        %v960 = vld [vmem:[%s956 + $0xc] sm:$0xf]
        %v961 = vld [vmem:[%s956 + $0x10] sm:$0xf]
        %v962 = vld [vmem:[%s956 + $0x14] sm:$0xf]
        %v963 = vld [vmem:[%s956 + $0x18] sm:$0xf]
        %v964 = vld [vmem:[%s956 + $0x1c] sm:$0xf]
        %v965 = vld [vmem:[%s956 + $0x20] sm:$0xf]
        %v966 = vld [vmem:[%s956 + $0x24] sm:$0xf]
        %v967 = vld [vmem:[%s956 + $0x28] sm:$0xf]
        %v968 = vld [vmem:[%s956 + $0x2c] sm:$0xf]
        %v969 = vld [vmem:[%s956 + $0x30] sm:$0xf]
        %v970 = vld [vmem:[%s956 + $0x34] sm:$0xf]
        %v971 = vld [vmem:[%s956 + $0x38] sm:$0xf]
        %v972 = vld [vmem:[%s956 + $0x3c] sm:$0xf]
        %v1005 = vunpack.c.l.b16 %v514
        %v1006 = vunpack.c.l.b16 %v515
        %v1007 = vunpack.c.l.b16 %v518
        %v1008 = vunpack.c.l.b16 %v519
        %v1009 = vunpack.c.l.b16 %v522
        %v1010 = vunpack.c.l.b16 %v523
        %v1011 = vunpack.c.l.b16 %v526
        %v1012 = vunpack.c.l.b16 %v527
        %v1013 = vunpack.c.l.b16 %v530
        %v1014 = vunpack.c.l.b16 %v531
        %v1015 = vunpack.c.l.b16 %v534
        %v1016 = vunpack.c.l.b16 %v535
        %v1017 = vunpack.c.l.b16 %v538
        %v1018 = vunpack.c.l.b16 %v539
        %v1019 = vunpack.c.l.b16 %v542
        %v1020 = vunpack.c.l.b16 %v543
        %v1021 = vunpack.c.l.b16 %v546
        %v1022 = vunpack.c.l.b16 %v547
        %v1023 = vunpack.c.l.b16 %v550
        %v1024 = vunpack.c.l.b16 %v551
        %v1025 = vunpack.c.l.b16 %v554
        %v1026 = vunpack.c.l.b16 %v555
        %v1027 = vunpack.c.l.b16 %v558
        %v1028 = vunpack.c.l.b16 %v559
        %v1029 = vunpack.c.l.b16 %v562
        %v1030 = vunpack.c.l.b16 %v563
        %v1031 = vunpack.c.l.b16 %v566
        %v1032 = vunpack.c.l.b16 %v567
        %v1033 = vunpack.c.l.b16 %v570
        %v1034 = vunpack.c.l.b16 %v571
        %v1035 = vunpack.c.l.b16 %v574
        %v1036 = vunpack.c.l.b16 %v575
        %v1037 = vpack.c.b16 %v1006, %v1005
        %v1038 = vpack.c.b16 %v1008, %v1007
        %v1039 = vpack.c.b16 %v1010, %v1009
        %v1040 = vpack.c.b16 %v1012, %v1011
        %v1041 = vpack.c.b16 %v1014, %v1013
        %v1042 = vpack.c.b16 %v1016, %v1015
        %v1043 = vpack.c.b16 %v1018, %v1017
        %v1044 = vpack.c.b16 %v1020, %v1019
        %v1045 = vpack.c.b16 %v1022, %v1021
        %v1046 = vpack.c.b16 %v1024, %v1023
        %v1047 = vpack.c.b16 %v1026, %v1025
        %v1048 = vpack.c.b16 %v1028, %v1027
        %v1049 = vpack.c.b16 %v1030, %v1029
        %v1050 = vpack.c.b16 %v1032, %v1031
        %v1051 = vpack.c.b16 %v1034, %v1033
        %v1052 = vpack.c.b16 %v1036, %v1035
        %v1085 = vunpack.c.l.b16 %v957
        %v1086 = vunpack.c.l.b16 %v958
        %v1087 = vunpack.c.l.b16 %v959
        %v1088 = vunpack.c.l.b16 %v960
        %v1089 = vunpack.c.l.b16 %v961
        %v1090 = vunpack.c.l.b16 %v962
        %v1091 = vunpack.c.l.b16 %v963
        %v1092 = vunpack.c.l.b16 %v964
        %v1093 = vunpack.c.l.b16 %v965
        %v1094 = vunpack.c.l.b16 %v966
        %v1095 = vunpack.c.l.b16 %v967
        %v1096 = vunpack.c.l.b16 %v968
        %v1097 = vunpack.c.l.b16 %v969
        %v1098 = vunpack.c.l.b16 %v970
        %v1099 = vunpack.c.l.b16 %v971
        %v1100 = vunpack.c.l.b16 %v972
        %v1101 = vpack.c.b16 %v1086, %v1085
        %v1102 = vpack.c.b16 %v1088, %v1087
        %v1103 = vpack.c.b16 %v1090, %v1089
        %v1104 = vpack.c.b16 %v1092, %v1091
        %v1105 = vpack.c.b16 %v1094, %v1093
        %v1106 = vpack.c.b16 %v1096, %v1095
        %v1107 = vpack.c.b16 %v1098, %v1097
        %v1108 = vpack.c.b16 %v1100, %v1099
        %1117 = vmatpush.bf16.msra.mxu0 %v1108
        %1118 = vmatpush.bf16.msra.mxu0 %v1107
        %1119 = vmatpush.bf16.msra.mxu0 %v1106
        %1120 = vmatpush.bf16.msra.mxu0 %v1105
        %1121 = vmatpush.bf16.msra.mxu0 %v1104
        %1122 = vmatpush.bf16.msra.mxu0 %v1103
        %1123 = vmatpush.bf16.msra.mxu0 %v1102
        %1124 = vmatpush.bf16.msra.mxu0 %v1101
        %1125 = vmatmul.bf16.gmra.mxu0 %v1037
        %v1126 = vpop.f32.mrf.mxu0
        %v1127 = vadd.f32 0.0, %v1126
        %v1128 = vpop.f32.mrf.mxu0
        %v1129 = vadd.f32 0.0, %v1128
        %1130 = vmatmul.bf16.gmra.mxu0 %v1038
        %v1131 = vpop.f32.mrf.mxu0
        %v1132 = vadd.f32 0.0, %v1131
        %v1133 = vpop.f32.mrf.mxu0
        %v1134 = vadd.f32 0.0, %v1133
        %1135 = vmatmul.bf16.gmra.mxu0 %v1039
        %v1136 = vpop.f32.mrf.mxu0
        %v1137 = vadd.f32 0.0, %v1136
        %v1138 = vpop.f32.mrf.mxu0
        %v1139 = vadd.f32 0.0, %v1138
        %1140 = vmatmul.bf16.gmra.mxu0 %v1040
        %v1141 = vpop.f32.mrf.mxu0
        %v1142 = vadd.f32 0.0, %v1141
        %v1143 = vpop.f32.mrf.mxu0
        %v1144 = vadd.f32 0.0, %v1143
        %1145 = vmatmul.bf16.gmra.mxu0 %v1041
        %v1146 = vpop.f32.mrf.mxu0
        %v1147 = vadd.f32 0.0, %v1146
        %v1148 = vpop.f32.mrf.mxu0
        %v1149 = vadd.f32 0.0, %v1148
        %1150 = vmatmul.bf16.gmra.mxu0 %v1042
        %v1151 = vpop.f32.mrf.mxu0
        %v1152 = vadd.f32 0.0, %v1151
        %v1153 = vpop.f32.mrf.mxu0
        %v1154 = vadd.f32 0.0, %v1153
        %1155 = vmatmul.bf16.gmra.mxu0 %v1043
        %v1156 = vpop.f32.mrf.mxu0
        %v1157 = vadd.f32 0.0, %v1156
        %v1158 = vpop.f32.mrf.mxu0
        %v1159 = vadd.f32 0.0, %v1158
        %1160 = vmatmul.bf16.gmra.mxu0 %v1044
        %v1161 = vpop.f32.mrf.mxu0
        %v1162 = vadd.f32 0.0, %v1161
        %v1163 = vpop.f32.mrf.mxu0
        %v1164 = vadd.f32 0.0, %v1163
        %1165 = vmatmul.bf16.gmra.mxu0 %v1045
        %v1166 = vpop.f32.mrf.mxu0
        %v1167 = vadd.f32 0.0, %v1166
        %v1168 = vpop.f32.mrf.mxu0
        %v1169 = vadd.f32 0.0, %v1168
        %1170 = vmatmul.bf16.gmra.mxu0 %v1046
        %v1171 = vpop.f32.mrf.mxu0
        %v1172 = vadd.f32 0.0, %v1171
        %v1173 = vpop.f32.mrf.mxu0
        %v1174 = vadd.f32 0.0, %v1173
        %1175 = vmatmul.bf16.gmra.mxu0 %v1047
        %v1176 = vpop.f32.mrf.mxu0
        %v1177 = vadd.f32 0.0, %v1176
        %v1178 = vpop.f32.mrf.mxu0
        %v1179 = vadd.f32 0.0, %v1178
        %1180 = vmatmul.bf16.gmra.mxu0 %v1048
        %v1181 = vpop.f32.mrf.mxu0
        %v1182 = vadd.f32 0.0, %v1181
        %v1183 = vpop.f32.mrf.mxu0
        %v1184 = vadd.f32 0.0, %v1183
        %1185 = vmatmul.bf16.gmra.mxu0 %v1049
        %v1186 = vpop.f32.mrf.mxu0
        %v1187 = vadd.f32 0.0, %v1186
        %v1188 = vpop.f32.mrf.mxu0
        %v1189 = vadd.f32 0.0, %v1188
        %1190 = vmatmul.bf16.gmra.mxu0 %v1050
        %v1191 = vpop.f32.mrf.mxu0
        %v1192 = vadd.f32 0.0, %v1191
        %v1193 = vpop.f32.mrf.mxu0
        %v1194 = vadd.f32 0.0, %v1193
        %1195 = vmatmul.bf16.gmra.mxu0 %v1051
        %v1196 = vpop.f32.mrf.mxu0
        %v1197 = vadd.f32 0.0, %v1196
        %v1198 = vpop.f32.mrf.mxu0
        %v1199 = vadd.f32 0.0, %v1198
        %1200 = vmatmul.bf16.gmra.mxu0 %v1052
        %v1201 = vpop.f32.mrf.mxu0
        %v1202 = vadd.f32 0.0, %v1201
        %v1203 = vpop.f32.mrf.mxu0
        %v1204 = vadd.f32 0.0, %v1203
        %1205 = vdwg.mxu0
        %v1206 = vunpack.c.l.b16 %v600
        %v1207 = vunpack.c.l.b16 %v609
        %v1208 = vunpack.c.l.b16 %v622
        %v1209 = vunpack.c.l.b16 %v631
        %v1210 = vunpack.c.l.b16 %v644
        %v1211 = vunpack.c.l.b16 %v653
        %v1212 = vunpack.c.l.b16 %v666
        %v1213 = vunpack.c.l.b16 %v675
        %v1214 = vunpack.c.l.b16 %v688
        %v1215 = vunpack.c.l.b16 %v697
        %v1216 = vunpack.c.l.b16 %v710
        %v1217 = vunpack.c.l.b16 %v719
        %v1218 = vunpack.c.l.b16 %v732
        %v1219 = vunpack.c.l.b16 %v741
        %v1220 = vunpack.c.l.b16 %v754
        %v1221 = vunpack.c.l.b16 %v763
        %v1222 = vunpack.c.l.b16 %v776
        %v1223 = vunpack.c.l.b16 %v785
        %v1224 = vunpack.c.l.b16 %v798
        %v1225 = vunpack.c.l.b16 %v807
        %v1226 = vunpack.c.l.b16 %v820
        %v1227 = vunpack.c.l.b16 %v829
        %v1228 = vunpack.c.l.b16 %v842
        %v1229 = vunpack.c.l.b16 %v851
        %v1230 = vunpack.c.l.b16 %v864
        %v1231 = vunpack.c.l.b16 %v873
        %v1232 = vunpack.c.l.b16 %v886
        %v1233 = vunpack.c.l.b16 %v895
        %v1234 = vunpack.c.l.b16 %v908
        %v1235 = vunpack.c.l.b16 %v917
        %v1236 = vunpack.c.l.b16 %v930
        %v1237 = vunpack.c.l.b16 %v939
        %v1238 = vpack.c.b16 %v1207, %v1206
        %v1239 = vpack.c.b16 %v1209, %v1208
        %v1240 = vpack.c.b16 %v1211, %v1210
        %v1241 = vpack.c.b16 %v1213, %v1212
        %v1242 = vpack.c.b16 %v1215, %v1214
        %v1243 = vpack.c.b16 %v1217, %v1216
        %v1244 = vpack.c.b16 %v1219, %v1218
        %v1245 = vpack.c.b16 %v1221, %v1220
        %v1246 = vpack.c.b16 %v1223, %v1222
        %v1247 = vpack.c.b16 %v1225, %v1224
        %v1248 = vpack.c.b16 %v1227, %v1226
        %v1249 = vpack.c.b16 %v1229, %v1228
        %v1250 = vpack.c.b16 %v1231, %v1230
        %v1251 = vpack.c.b16 %v1233, %v1232
        %v1252 = vpack.c.b16 %v1235, %v1234
        %v1253 = vpack.c.b16 %v1237, %v1236
        %v1286 = vunpack.c.l.b16 %v940
        %v1287 = vunpack.c.l.b16 %v941
        %v1288 = vunpack.c.l.b16 %v942
        %v1289 = vunpack.c.l.b16 %v943
        %v1290 = vunpack.c.l.b16 %v944
        %v1291 = vunpack.c.l.b16 %v945
        %v1292 = vunpack.c.l.b16 %v946
        %v1293 = vunpack.c.l.b16 %v947
        %v1294 = vunpack.c.l.b16 %v948
        %v1295 = vunpack.c.l.b16 %v949
        %v1296 = vunpack.c.l.b16 %v950
        %v1297 = vunpack.c.l.b16 %v951
        %v1298 = vunpack.c.l.b16 %v952
        %v1299 = vunpack.c.l.b16 %v953
        %v1300 = vunpack.c.l.b16 %v954
        %v1301 = vunpack.c.l.b16 %v955
        %v1302 = vpack.c.b16 %v1287, %v1286
        %v1303 = vpack.c.b16 %v1289, %v1288
        %v1304 = vpack.c.b16 %v1291, %v1290
        %v1305 = vpack.c.b16 %v1293, %v1292
        %v1306 = vpack.c.b16 %v1295, %v1294
        %v1307 = vpack.c.b16 %v1297, %v1296
        %v1308 = vpack.c.b16 %v1299, %v1298
        %v1309 = vpack.c.b16 %v1301, %v1300
        %1318 = vmatpush.bf16.msra.mxu0 %v1309
        %1319 = vmatpush.bf16.msra.mxu0 %v1308
        %1320 = vmatpush.bf16.msra.mxu0 %v1307
        %1321 = vmatpush.bf16.msra.mxu0 %v1306
        %1322 = vmatpush.bf16.msra.mxu0 %v1305
        %1323 = vmatpush.bf16.msra.mxu0 %v1304
        %1324 = vmatpush.bf16.msra.mxu0 %v1303
        %1325 = vmatpush.bf16.msra.mxu0 %v1302
        %1326 = vmatmul.bf16.gmra.mxu0 %v1238
        %v1327 = vpop.f32.mrf.mxu0
        %v1328 = vadd.f32 %v1127, %v1327
        %v1329 = vpop.f32.mrf.mxu0
        %v1330 = vadd.f32 %v1129, %v1329
        %1331 = vmatmul.bf16.gmra.mxu0 %v1239
        %v1332 = vpop.f32.mrf.mxu0
        %v1333 = vadd.f32 %v1132, %v1332
        %v1334 = vpop.f32.mrf.mxu0
        %v1335 = vadd.f32 %v1134, %v1334
        %1336 = vmatmul.bf16.gmra.mxu0 %v1240
        %v1337 = vpop.f32.mrf.mxu0
        %v1338 = vadd.f32 %v1137, %v1337
        %v1339 = vpop.f32.mrf.mxu0
        %v1340 = vadd.f32 %v1139, %v1339
        %1341 = vmatmul.bf16.gmra.mxu0 %v1241
        %v1342 = vpop.f32.mrf.mxu0
        %v1343 = vadd.f32 %v1142, %v1342
        %v1344 = vpop.f32.mrf.mxu0
        %v1345 = vadd.f32 %v1144, %v1344
        %1346 = vmatmul.bf16.gmra.mxu0 %v1242
        %v1347 = vpop.f32.mrf.mxu0
        %v1348 = vadd.f32 %v1147, %v1347
        %v1349 = vpop.f32.mrf.mxu0
        %v1350 = vadd.f32 %v1149, %v1349
        %1351 = vmatmul.bf16.gmra.mxu0 %v1243
        %v1352 = vpop.f32.mrf.mxu0
        %v1353 = vadd.f32 %v1152, %v1352
        %v1354 = vpop.f32.mrf.mxu0
        %v1355 = vadd.f32 %v1154, %v1354
        %1356 = vmatmul.bf16.gmra.mxu0 %v1244
        %v1357 = vpop.f32.mrf.mxu0
        %v1358 = vadd.f32 %v1157, %v1357
        %v1359 = vpop.f32.mrf.mxu0
        %v1360 = vadd.f32 %v1159, %v1359
        %1361 = vmatmul.bf16.gmra.mxu0 %v1245
        %v1362 = vpop.f32.mrf.mxu0
        %v1363 = vadd.f32 %v1162, %v1362
        %v1364 = vpop.f32.mrf.mxu0
        %v1365 = vadd.f32 %v1164, %v1364
        %1366 = vmatmul.bf16.gmra.mxu0 %v1246
        %v1367 = vpop.f32.mrf.mxu0
        %v1368 = vadd.f32 %v1167, %v1367
        %v1369 = vpop.f32.mrf.mxu0
        %v1370 = vadd.f32 %v1169, %v1369
        %1371 = vmatmul.bf16.gmra.mxu0 %v1247
        %v1372 = vpop.f32.mrf.mxu0
        %v1373 = vadd.f32 %v1172, %v1372
        %v1374 = vpop.f32.mrf.mxu0
        %v1375 = vadd.f32 %v1174, %v1374
        %1376 = vmatmul.bf16.gmra.mxu0 %v1248
        %v1377 = vpop.f32.mrf.mxu0
        %v1378 = vadd.f32 %v1177, %v1377
        %v1379 = vpop.f32.mrf.mxu0
        %v1380 = vadd.f32 %v1179, %v1379
        %1381 = vmatmul.bf16.gmra.mxu0 %v1249
        %v1382 = vpop.f32.mrf.mxu0
        %v1383 = vadd.f32 %v1182, %v1382
        %v1384 = vpop.f32.mrf.mxu0
        %v1385 = vadd.f32 %v1184, %v1384
        %1386 = vmatmul.bf16.gmra.mxu0 %v1250
        %v1387 = vpop.f32.mrf.mxu0
        %v1388 = vadd.f32 %v1187, %v1387
        %v1389 = vpop.f32.mrf.mxu0
        %v1390 = vadd.f32 %v1189, %v1389
        %1391 = vmatmul.bf16.gmra.mxu0 %v1251
        %v1392 = vpop.f32.mrf.mxu0
        %v1393 = vadd.f32 %v1192, %v1392
        %v1394 = vpop.f32.mrf.mxu0
        %v1395 = vadd.f32 %v1194, %v1394
        %1396 = vmatmul.bf16.gmra.mxu0 %v1252
        %v1397 = vpop.f32.mrf.mxu0
        %v1398 = vadd.f32 %v1197, %v1397
        %v1399 = vpop.f32.mrf.mxu0
        %v1400 = vadd.f32 %v1199, %v1399
        %1401 = vmatmul.bf16.gmra.mxu0 %v1253
        %v1402 = vpop.f32.mrf.mxu0
        %v1403 = vadd.f32 %v1202, %v1402
        %v1404 = vpop.f32.mrf.mxu0
        %v1405 = vadd.f32 %v1204, %v1404
        %1406 = vdwg.mxu0
        %vm1407 = vsmask.f32 3328
        %vm1408 = vsmask.f32 7440
        %vm1409 = vmor %vm1407, %vm1408
        %v1410 = vrot.slane %v594, 4
        %v1411 = vrot.slane %v597, 5
        %v1412 = vor.u32 %v1410, %v1411
        %v1413 = vrot.slane %v1412, 4
        %v1414 = vrot.slane %v606, 5
        %v1415 = vsel %vm1409, %v1413, %v1414
        %v1416 = vrot.slane %v603, 4
        %v1417 = vor.u32 %v1416, %v1414
        %v1418 = vrot.slane %v1417, 4
        %v1420 = vshll.u32 %v516, 16
        %v1422 = vrot.slane %v1420, 5
        %v1423 = vsel %vm1409, %v1418, %v1422
        %v1424 = vrot.slane %v616, 4
        %v1425 = vrot.slane %v619, 5
        %v1426 = vor.u32 %v1424, %v1425
        %v1427 = vrot.slane %v1426, 4
        %v1428 = vrot.slane %v628, 5
        %v1429 = vsel %vm1409, %v1427, %v1428
        %v1430 = vrot.slane %v625, 4
        %v1431 = vor.u32 %v1430, %v1428
        %v1432 = vrot.slane %v1431, 4
        %v1434 = vshll.u32 %v520, 16
        %v1436 = vrot.slane %v1434, 5
        %v1437 = vsel %vm1409, %v1432, %v1436
        %v1438 = vrot.slane %v638, 4
        %v1439 = vrot.slane %v641, 5
        %v1440 = vor.u32 %v1438, %v1439
        %v1441 = vrot.slane %v1440, 4
        %v1442 = vrot.slane %v650, 5
        %v1443 = vsel %vm1409, %v1441, %v1442
        %v1444 = vrot.slane %v647, 4
        %v1445 = vor.u32 %v1444, %v1442
        %v1446 = vrot.slane %v1445, 4
        %v1448 = vshll.u32 %v524, 16
        %v1450 = vrot.slane %v1448, 5
        %v1451 = vsel %vm1409, %v1446, %v1450
        %v1452 = vrot.slane %v660, 4
        %v1453 = vrot.slane %v663, 5
        %v1454 = vor.u32 %v1452, %v1453
        %v1455 = vrot.slane %v1454, 4
        %v1456 = vrot.slane %v672, 5
        %v1457 = vsel %vm1409, %v1455, %v1456
        %v1458 = vrot.slane %v669, 4
        %v1459 = vor.u32 %v1458, %v1456
        %v1460 = vrot.slane %v1459, 4
        %v1462 = vshll.u32 %v528, 16
        %v1464 = vrot.slane %v1462, 5
        %v1465 = vsel %vm1409, %v1460, %v1464
        %v1466 = vrot.slane %v682, 4
        %v1467 = vrot.slane %v685, 5
        %v1468 = vor.u32 %v1466, %v1467
        %v1469 = vrot.slane %v1468, 4
        %v1470 = vrot.slane %v694, 5
        %v1471 = vsel %vm1409, %v1469, %v1470
        %v1472 = vrot.slane %v691, 4
        %v1473 = vor.u32 %v1472, %v1470
        %v1474 = vrot.slane %v1473, 4
        %v1476 = vshll.u32 %v532, 16
        %v1478 = vrot.slane %v1476, 5
        %v1479 = vsel %vm1409, %v1474, %v1478
        %v1480 = vrot.slane %v704, 4
        %v1481 = vrot.slane %v707, 5
        %v1482 = vor.u32 %v1480, %v1481
        %v1483 = vrot.slane %v1482, 4
        %v1484 = vrot.slane %v716, 5
        %v1485 = vsel %vm1409, %v1483, %v1484
        %v1486 = vrot.slane %v713, 4
        %v1487 = vor.u32 %v1486, %v1484
        %v1488 = vrot.slane %v1487, 4
        %v1490 = vshll.u32 %v536, 16
        %v1492 = vrot.slane %v1490, 5
        %v1493 = vsel %vm1409, %v1488, %v1492
        %v1494 = vrot.slane %v726, 4
        %v1495 = vrot.slane %v729, 5
        %v1496 = vor.u32 %v1494, %v1495
        %v1497 = vrot.slane %v1496, 4
        %v1498 = vrot.slane %v738, 5
        %v1499 = vsel %vm1409, %v1497, %v1498
        %v1500 = vrot.slane %v735, 4
        %v1501 = vor.u32 %v1500, %v1498
        %v1502 = vrot.slane %v1501, 4
        %v1504 = vshll.u32 %v540, 16
        %v1506 = vrot.slane %v1504, 5
        %v1507 = vsel %vm1409, %v1502, %v1506
        %v1508 = vrot.slane %v748, 4
        %v1509 = vrot.slane %v751, 5
        %v1510 = vor.u32 %v1508, %v1509
        %v1511 = vrot.slane %v1510, 4
        %v1512 = vrot.slane %v760, 5
        %v1513 = vsel %vm1409, %v1511, %v1512
        %v1514 = vrot.slane %v757, 4
        %v1515 = vor.u32 %v1514, %v1512
        %v1516 = vrot.slane %v1515, 4
        %v1518 = vshll.u32 %v544, 16
        %v1520 = vrot.slane %v1518, 5
        %v1521 = vsel %vm1409, %v1516, %v1520
        %v1522 = vrot.slane %v770, 4
        %v1523 = vrot.slane %v773, 5
        %v1524 = vor.u32 %v1522, %v1523
        %v1525 = vrot.slane %v1524, 4
        %v1526 = vrot.slane %v782, 5
        %v1527 = vsel %vm1409, %v1525, %v1526
        %v1528 = vrot.slane %v779, 4
        %v1529 = vor.u32 %v1528, %v1526
        %v1530 = vrot.slane %v1529, 4
        %v1532 = vshll.u32 %v548, 16
        %v1534 = vrot.slane %v1532, 5
        %v1535 = vsel %vm1409, %v1530, %v1534
        %v1536 = vrot.slane %v792, 4
        %v1537 = vrot.slane %v795, 5
        %v1538 = vor.u32 %v1536, %v1537
        %v1539 = vrot.slane %v1538, 4
        %v1540 = vrot.slane %v804, 5
        %v1541 = vsel %vm1409, %v1539, %v1540
        %v1542 = vrot.slane %v801, 4
        %v1543 = vor.u32 %v1542, %v1540
        %v1544 = vrot.slane %v1543, 4
        %v1546 = vshll.u32 %v552, 16
        %v1548 = vrot.slane %v1546, 5
        %v1549 = vsel %vm1409, %v1544, %v1548
        %v1550 = vrot.slane %v814, 4
        %v1551 = vrot.slane %v817, 5
        %v1552 = vor.u32 %v1550, %v1551
        %v1553 = vrot.slane %v1552, 4
        %v1554 = vrot.slane %v826, 5
        %v1555 = vsel %vm1409, %v1553, %v1554
        %v1556 = vrot.slane %v823, 4
        %v1557 = vor.u32 %v1556, %v1554
        %v1558 = vrot.slane %v1557, 4
        %v1560 = vshll.u32 %v556, 16
        %v1562 = vrot.slane %v1560, 5
        %v1563 = vsel %vm1409, %v1558, %v1562
        %v1564 = vrot.slane %v836, 4
        %v1565 = vrot.slane %v839, 5
        %v1566 = vor.u32 %v1564, %v1565
        %v1567 = vrot.slane %v1566, 4
        %v1568 = vrot.slane %v848, 5
        %v1569 = vsel %vm1409, %v1567, %v1568
        %v1570 = vrot.slane %v845, 4
        %v1571 = vor.u32 %v1570, %v1568
        %v1572 = vrot.slane %v1571, 4
        %v1574 = vshll.u32 %v560, 16
        %v1576 = vrot.slane %v1574, 5
        %v1577 = vsel %vm1409, %v1572, %v1576
        %v1578 = vrot.slane %v858, 4
        %v1579 = vrot.slane %v861, 5
        %v1580 = vor.u32 %v1578, %v1579
        %v1581 = vrot.slane %v1580, 4
        %v1582 = vrot.slane %v870, 5
        %v1583 = vsel %vm1409, %v1581, %v1582
        %v1584 = vrot.slane %v867, 4
        %v1585 = vor.u32 %v1584, %v1582
        %v1586 = vrot.slane %v1585, 4
        %v1588 = vshll.u32 %v564, 16
        %v1590 = vrot.slane %v1588, 5
        %v1591 = vsel %vm1409, %v1586, %v1590
        %v1592 = vrot.slane %v880, 4
        %v1593 = vrot.slane %v883, 5
        %v1594 = vor.u32 %v1592, %v1593
        %v1595 = vrot.slane %v1594, 4
        %v1596 = vrot.slane %v892, 5
        %v1597 = vsel %vm1409, %v1595, %v1596
        %v1598 = vrot.slane %v889, 4
        %v1599 = vor.u32 %v1598, %v1596
        %v1600 = vrot.slane %v1599, 4
        %v1602 = vshll.u32 %v568, 16
        %v1604 = vrot.slane %v1602, 5
        %v1605 = vsel %vm1409, %v1600, %v1604
        %v1606 = vrot.slane %v902, 4
        %v1607 = vrot.slane %v905, 5
        %v1608 = vor.u32 %v1606, %v1607
        %v1609 = vrot.slane %v1608, 4
        %v1610 = vrot.slane %v914, 5
        %v1611 = vsel %vm1409, %v1609, %v1610
        %v1612 = vrot.slane %v911, 4
        %v1613 = vor.u32 %v1612, %v1610
        %v1614 = vrot.slane %v1613, 4
        %v1616 = vshll.u32 %v572, 16
        %v1618 = vrot.slane %v1616, 5
        %v1619 = vsel %vm1409, %v1614, %v1618
        %v1620 = vrot.slane %v924, 4
        %v1621 = vrot.slane %v927, 5
        %v1622 = vor.u32 %v1620, %v1621
        %v1623 = vrot.slane %v1622, 4
        %v1624 = vrot.slane %v936, 5
        %v1625 = vsel %vm1409, %v1623, %v1624
        %v1626 = vrot.slane %v933, 4
        %v1627 = vor.u32 %v1626, %v1624
        %v1628 = vrot.slane %v1627, 4
        %v1630 = vshll.u32 %v576, 16
        %v1632 = vrot.slane %v1630, 5
        %v1633 = vsel %vm1409, %v1628, %v1632
        %s1634 = scalar_lea.vmem %s2, 128
        %v1635 = vld [vmem:[%s1634] sm:$0xf]
        %v1636 = vld [vmem:[%s1634 + $0x4] sm:$0xf]
        %v1637 = vld [vmem:[%s1634 + $0x8] sm:$0xf]
        %v1638 = vld [vmem:[%s1634 + $0xc] sm:$0xf]
        %v1639 = vld [vmem:[%s1634 + $0x10] sm:$0xf]
        %v1640 = vld [vmem:[%s1634 + $0x14] sm:$0xf]
        %v1641 = vld [vmem:[%s1634 + $0x18] sm:$0xf]
        %v1642 = vld [vmem:[%s1634 + $0x1c] sm:$0xf]
        %v1643 = vld [vmem:[%s1634 + $0x20] sm:$0xf]
        %v1644 = vld [vmem:[%s1634 + $0x24] sm:$0xf]
        %v1645 = vld [vmem:[%s1634 + $0x28] sm:$0xf]
        %v1646 = vld [vmem:[%s1634 + $0x2c] sm:$0xf]
        %v1647 = vld [vmem:[%s1634 + $0x30] sm:$0xf]
        %v1648 = vld [vmem:[%s1634 + $0x34] sm:$0xf]
        %v1649 = vld [vmem:[%s1634 + $0x38] sm:$0xf]
        %v1650 = vld [vmem:[%s1634 + $0x3c] sm:$0xf]
        %v1651 = vunpack.c.l.b16 %v1415
        %v1652 = vunpack.c.l.b16 %v1423
        %v1653 = vunpack.c.l.b16 %v1429
        %v1654 = vunpack.c.l.b16 %v1437
        %v1655 = vunpack.c.l.b16 %v1443
        %v1656 = vunpack.c.l.b16 %v1451
        %v1657 = vunpack.c.l.b16 %v1457
        %v1658 = vunpack.c.l.b16 %v1465
        %v1659 = vunpack.c.l.b16 %v1471
        %v1660 = vunpack.c.l.b16 %v1479
        %v1661 = vunpack.c.l.b16 %v1485
        %v1662 = vunpack.c.l.b16 %v1493
        %v1663 = vunpack.c.l.b16 %v1499
        %v1664 = vunpack.c.l.b16 %v1507
        %v1665 = vunpack.c.l.b16 %v1513
        %v1666 = vunpack.c.l.b16 %v1521
        %v1667 = vunpack.c.l.b16 %v1527
        %v1668 = vunpack.c.l.b16 %v1535
        %v1669 = vunpack.c.l.b16 %v1541
        %v1670 = vunpack.c.l.b16 %v1549
        %v1671 = vunpack.c.l.b16 %v1555
        %v1672 = vunpack.c.l.b16 %v1563
        %v1673 = vunpack.c.l.b16 %v1569
        %v1674 = vunpack.c.l.b16 %v1577
        %v1675 = vunpack.c.l.b16 %v1583
        %v1676 = vunpack.c.l.b16 %v1591
        %v1677 = vunpack.c.l.b16 %v1597
        %v1678 = vunpack.c.l.b16 %v1605
        %v1679 = vunpack.c.l.b16 %v1611
        %v1680 = vunpack.c.l.b16 %v1619
        %v1681 = vunpack.c.l.b16 %v1625
        %v1682 = vunpack.c.l.b16 %v1633
        %v1683 = vpack.c.b16 %v1652, %v1651
        %v1684 = vpack.c.b16 %v1654, %v1653
        %v1685 = vpack.c.b16 %v1656, %v1655
        %v1686 = vpack.c.b16 %v1658, %v1657
        %v1687 = vpack.c.b16 %v1660, %v1659
        %v1688 = vpack.c.b16 %v1662, %v1661
        %v1689 = vpack.c.b16 %v1664, %v1663
        %v1690 = vpack.c.b16 %v1666, %v1665
        %v1691 = vpack.c.b16 %v1668, %v1667
        %v1692 = vpack.c.b16 %v1670, %v1669
        %v1693 = vpack.c.b16 %v1672, %v1671
        %v1694 = vpack.c.b16 %v1674, %v1673
        %v1695 = vpack.c.b16 %v1676, %v1675
        %v1696 = vpack.c.b16 %v1678, %v1677
        %v1697 = vpack.c.b16 %v1680, %v1679
        %v1698 = vpack.c.b16 %v1682, %v1681
        %v1731 = vunpack.c.l.b16 %v1635
        %v1732 = vunpack.c.l.b16 %v1636
        %v1733 = vunpack.c.l.b16 %v1637
        %v1734 = vunpack.c.l.b16 %v1638
        %v1735 = vunpack.c.l.b16 %v1639
        %v1736 = vunpack.c.l.b16 %v1640
        %v1737 = vunpack.c.l.b16 %v1641
        %v1738 = vunpack.c.l.b16 %v1642
        %v1739 = vunpack.c.l.b16 %v1643
        %v1740 = vunpack.c.l.b16 %v1644
        %v1741 = vunpack.c.l.b16 %v1645
        %v1742 = vunpack.c.l.b16 %v1646
        %v1743 = vunpack.c.l.b16 %v1647
        %v1744 = vunpack.c.l.b16 %v1648
        %v1745 = vunpack.c.l.b16 %v1649
        %v1746 = vunpack.c.l.b16 %v1650
        %v1747 = vpack.c.b16 %v1732, %v1731
        %v1748 = vpack.c.b16 %v1734, %v1733
        %v1749 = vpack.c.b16 %v1736, %v1735
        %v1750 = vpack.c.b16 %v1738, %v1737
        %v1751 = vpack.c.b16 %v1740, %v1739
        %v1752 = vpack.c.b16 %v1742, %v1741
        %v1753 = vpack.c.b16 %v1744, %v1743
        %v1754 = vpack.c.b16 %v1746, %v1745
        %1763 = vmatpush.bf16.msra.mxu0 %v1754
        %1764 = vmatpush.bf16.msra.mxu0 %v1753
        %1765 = vmatpush.bf16.msra.mxu0 %v1752
        %1766 = vmatpush.bf16.msra.mxu0 %v1751
        %1767 = vmatpush.bf16.msra.mxu0 %v1750
        %1768 = vmatpush.bf16.msra.mxu0 %v1749
        %1769 = vmatpush.bf16.msra.mxu0 %v1748
        %1770 = vmatpush.bf16.msra.mxu0 %v1747
        %1771 = vmatmul.bf16.gmra.mxu0 %v1683
        %v1772 = vpop.f32.mrf.mxu0
        %v1773 = vadd.f32 0.0, %v1772
        %v1774 = vpop.f32.mrf.mxu0
        %v1775 = vadd.f32 0.0, %v1774
        %1776 = vmatmul.bf16.gmra.mxu0 %v1684
        %v1777 = vpop.f32.mrf.mxu0
        %v1778 = vadd.f32 0.0, %v1777
        %v1779 = vpop.f32.mrf.mxu0
        %v1780 = vadd.f32 0.0, %v1779
        %1781 = vmatmul.bf16.gmra.mxu0 %v1685
        %v1782 = vpop.f32.mrf.mxu0
        %v1783 = vadd.f32 0.0, %v1782
        %v1784 = vpop.f32.mrf.mxu0
        %v1785 = vadd.f32 0.0, %v1784
        %1786 = vmatmul.bf16.gmra.mxu0 %v1686
        %v1787 = vpop.f32.mrf.mxu0
        %v1788 = vadd.f32 0.0, %v1787
        %v1789 = vpop.f32.mrf.mxu0
        %v1790 = vadd.f32 0.0, %v1789
        %1791 = vmatmul.bf16.gmra.mxu0 %v1687
        %v1792 = vpop.f32.mrf.mxu0
        %v1793 = vadd.f32 0.0, %v1792
        %v1794 = vpop.f32.mrf.mxu0
        %v1795 = vadd.f32 0.0, %v1794
        %1796 = vmatmul.bf16.gmra.mxu0 %v1688
        %v1797 = vpop.f32.mrf.mxu0
        %v1798 = vadd.f32 0.0, %v1797
        %v1799 = vpop.f32.mrf.mxu0
        %v1800 = vadd.f32 0.0, %v1799
        %1801 = vmatmul.bf16.gmra.mxu0 %v1689
        %v1802 = vpop.f32.mrf.mxu0
        %v1803 = vadd.f32 0.0, %v1802
        %v1804 = vpop.f32.mrf.mxu0
        %v1805 = vadd.f32 0.0, %v1804
        %1806 = vmatmul.bf16.gmra.mxu0 %v1690
        %v1807 = vpop.f32.mrf.mxu0
        %v1808 = vadd.f32 0.0, %v1807
        %v1809 = vpop.f32.mrf.mxu0
        %v1810 = vadd.f32 0.0, %v1809
        %1811 = vmatmul.bf16.gmra.mxu0 %v1691
        %v1812 = vpop.f32.mrf.mxu0
        %v1813 = vadd.f32 0.0, %v1812
        %v1814 = vpop.f32.mrf.mxu0
        %v1815 = vadd.f32 0.0, %v1814
        %1816 = vmatmul.bf16.gmra.mxu0 %v1692
        %v1817 = vpop.f32.mrf.mxu0
        %v1818 = vadd.f32 0.0, %v1817
        %v1819 = vpop.f32.mrf.mxu0
        %v1820 = vadd.f32 0.0, %v1819
        %1821 = vmatmul.bf16.gmra.mxu0 %v1693
        %v1822 = vpop.f32.mrf.mxu0
        %v1823 = vadd.f32 0.0, %v1822
        %v1824 = vpop.f32.mrf.mxu0
        %v1825 = vadd.f32 0.0, %v1824
        %1826 = vmatmul.bf16.gmra.mxu0 %v1694
        %v1827 = vpop.f32.mrf.mxu0
        %v1828 = vadd.f32 0.0, %v1827
        %v1829 = vpop.f32.mrf.mxu0
        %v1830 = vadd.f32 0.0, %v1829
        %1831 = vmatmul.bf16.gmra.mxu0 %v1695
        %v1832 = vpop.f32.mrf.mxu0
        %v1833 = vadd.f32 0.0, %v1832
        %v1834 = vpop.f32.mrf.mxu0
        %v1835 = vadd.f32 0.0, %v1834
        %1836 = vmatmul.bf16.gmra.mxu0 %v1696
        %v1837 = vpop.f32.mrf.mxu0
        %v1838 = vadd.f32 0.0, %v1837
        %v1839 = vpop.f32.mrf.mxu0
        %v1840 = vadd.f32 0.0, %v1839
        %1841 = vmatmul.bf16.gmra.mxu0 %v1697
        %v1842 = vpop.f32.mrf.mxu0
        %v1843 = vadd.f32 0.0, %v1842
        %v1844 = vpop.f32.mrf.mxu0
        %v1845 = vadd.f32 0.0, %v1844
        %1846 = vmatmul.bf16.gmra.mxu0 %v1698
        %v1847 = vpop.f32.mrf.mxu0
        %v1848 = vadd.f32 0.0, %v1847
        %v1849 = vpop.f32.mrf.mxu0
        %v1850 = vadd.f32 0.0, %v1849
        %1851 = vdwg.mxu0
        %v1852 = vadd.f32 %v1328, %v1773
        %v1853 = vadd.f32 %v1330, %v1775
        %v1854 = vadd.f32 %v1333, %v1778
        %v1855 = vadd.f32 %v1335, %v1780
        %v1856 = vadd.f32 %v1338, %v1783
        %v1857 = vadd.f32 %v1340, %v1785
        %v1858 = vadd.f32 %v1343, %v1788
        %v1859 = vadd.f32 %v1345, %v1790
        %v1860 = vadd.f32 %v1348, %v1793
        %v1861 = vadd.f32 %v1350, %v1795
        %v1862 = vadd.f32 %v1353, %v1798
        %v1863 = vadd.f32 %v1355, %v1800
        %v1864 = vadd.f32 %v1358, %v1803
        %v1865 = vadd.f32 %v1360, %v1805
        %v1866 = vadd.f32 %v1363, %v1808
        %v1867 = vadd.f32 %v1365, %v1810
        %v1868 = vadd.f32 %v1368, %v1813
        %v1869 = vadd.f32 %v1370, %v1815
        %v1870 = vadd.f32 %v1373, %v1818
        %v1871 = vadd.f32 %v1375, %v1820
        %v1872 = vadd.f32 %v1378, %v1823
        %v1873 = vadd.f32 %v1380, %v1825
        %v1874 = vadd.f32 %v1383, %v1828
        %v1875 = vadd.f32 %v1385, %v1830
        %v1876 = vadd.f32 %v1388, %v1833
        %v1877 = vadd.f32 %v1390, %v1835
        %v1878 = vadd.f32 %v1393, %v1838
        %v1879 = vadd.f32 %v1395, %v1840
        %v1880 = vadd.f32 %v1398, %v1843
        %v1881 = vadd.f32 %v1400, %v1845
        %v1882 = vadd.f32 %v1403, %v1848
        %v1883 = vadd.f32 %v1405, %v1850
        %v1885 = vshrl.u32 %v577, 16
        %v1887 = vrot.slane %v1885, 7
        %v1888 = vrot.slane %v1887, 4
        %v1890 = vshrl.u32 %v578, 16
        %v1892 = vrot.slane %v1890, 7
        %v1893 = vshll.u32 %v578, 16
        %v1895 = vor.u32 %v1892, %v1893
        %v1896 = vsel %vm587, %v1888, %v1895
        %v1897 = vrot.slane %v1892, 4
        %v1899 = vshrl.u32 %v579, 16
        %v1901 = vrot.slane %v1899, 7
        %v1902 = vshll.u32 %v579, 16
        %v1904 = vor.u32 %v1901, %v1902
        %v1905 = vsel %vm587, %v1897, %v1904
        %s1906 = scalar_lea.vmem %s2, 192
        %v1907 = vld [vmem:[%s1906] sm:$0xf]
        %v1908 = vld [vmem:[%s1906 + $0x4] sm:$0xf]
        %v1909 = vld [vmem:[%s1906 + $0x8] sm:$0xf]
        %v1910 = vld [vmem:[%s1906 + $0xc] sm:$0xf]
        %v1911 = vld [vmem:[%s1906 + $0x10] sm:$0xf]
        %v1912 = vld [vmem:[%s1906 + $0x14] sm:$0xf]
        %v1913 = vld [vmem:[%s1906 + $0x18] sm:$0xf]
        %v1914 = vld [vmem:[%s1906 + $0x1c] sm:$0xf]
        %v1915 = vld [vmem:[%s1906 + $0x20] sm:$0xf]
        %v1916 = vld [vmem:[%s1906 + $0x24] sm:$0xf]
        %v1917 = vld [vmem:[%s1906 + $0x28] sm:$0xf]
        %v1918 = vld [vmem:[%s1906 + $0x2c] sm:$0xf]
        %v1919 = vld [vmem:[%s1906 + $0x30] sm:$0xf]
        %v1920 = vld [vmem:[%s1906 + $0x34] sm:$0xf]
        %v1921 = vld [vmem:[%s1906 + $0x38] sm:$0xf]
        %v1922 = vld [vmem:[%s1906 + $0x3c] sm:$0xf]
        %v1923 = vunpack.c.l.b16 %v1896
        %v1924 = vunpack.c.l.b16 %v1905
        %v1925 = vpack.c.b16 %v1924, %v1923
        %v1943 = vunpack.c.l.b16 %v1907
        %v1944 = vunpack.c.l.b16 %v1908
        %v1945 = vunpack.c.l.b16 %v1909
        %v1946 = vunpack.c.l.b16 %v1910
        %v1947 = vunpack.c.l.b16 %v1911
        %v1948 = vunpack.c.l.b16 %v1912
        %v1949 = vunpack.c.l.b16 %v1913
        %v1950 = vunpack.c.l.b16 %v1914
        %v1951 = vunpack.c.l.b16 %v1915
        %v1952 = vunpack.c.l.b16 %v1916
        %v1953 = vunpack.c.l.b16 %v1917
        %v1954 = vunpack.c.l.b16 %v1918
        %v1955 = vunpack.c.l.b16 %v1919
        %v1956 = vunpack.c.l.b16 %v1920
        %v1957 = vunpack.c.l.b16 %v1921
        %v1958 = vunpack.c.l.b16 %v1922
        %v1959 = vpack.c.b16 %v1944, %v1943
        %v1960 = vpack.c.b16 %v1946, %v1945
        %v1961 = vpack.c.b16 %v1948, %v1947
        %v1962 = vpack.c.b16 %v1950, %v1949
        %v1963 = vpack.c.b16 %v1952, %v1951
        %v1964 = vpack.c.b16 %v1954, %v1953
        %v1965 = vpack.c.b16 %v1956, %v1955
        %v1966 = vpack.c.b16 %v1958, %v1957
        %1975 = vmatpush.bf16.msra.mxu0 %v1966
        %1976 = vmatpush.bf16.msra.mxu0 %v1965
        %1977 = vmatpush.bf16.msra.mxu0 %v1964
        %1978 = vmatpush.bf16.msra.mxu0 %v1963
        %1979 = vmatpush.bf16.msra.mxu0 %v1962
        %1980 = vmatpush.bf16.msra.mxu0 %v1961
        %1981 = vmatpush.bf16.msra.mxu0 %v1960
        %1982 = vmatpush.bf16.msra.mxu0 %v1959
        %1983 = vmatmul.bf16.gmra.mxu0 %v1239
        %v1984 = vpop.f32.mrf.mxu0
        %v1985 = vadd.f32 0.0, %v1984
        %v1986 = vpop.f32.mrf.mxu0
        %v1987 = vadd.f32 0.0, %v1986
        %1988 = vmatmul.bf16.gmra.mxu0 %v1240
        %v1989 = vpop.f32.mrf.mxu0
        %v1990 = vadd.f32 0.0, %v1989
        %v1991 = vpop.f32.mrf.mxu0
        %v1992 = vadd.f32 0.0, %v1991
        %1993 = vmatmul.bf16.gmra.mxu0 %v1241
        %v1994 = vpop.f32.mrf.mxu0
        %v1995 = vadd.f32 0.0, %v1994
        %v1996 = vpop.f32.mrf.mxu0
        %v1997 = vadd.f32 0.0, %v1996
        %1998 = vmatmul.bf16.gmra.mxu0 %v1242
        %v1999 = vpop.f32.mrf.mxu0
        %v2000 = vadd.f32 0.0, %v1999
        %v2001 = vpop.f32.mrf.mxu0
        %v2002 = vadd.f32 0.0, %v2001
        %2003 = vmatmul.bf16.gmra.mxu0 %v1243
        %v2004 = vpop.f32.mrf.mxu0
        %v2005 = vadd.f32 0.0, %v2004
        %v2006 = vpop.f32.mrf.mxu0
        %v2007 = vadd.f32 0.0, %v2006
        %2008 = vmatmul.bf16.gmra.mxu0 %v1244
        %v2009 = vpop.f32.mrf.mxu0
        %v2010 = vadd.f32 0.0, %v2009
        %v2011 = vpop.f32.mrf.mxu0
        %v2012 = vadd.f32 0.0, %v2011
        %2013 = vmatmul.bf16.gmra.mxu0 %v1245
        %v2014 = vpop.f32.mrf.mxu0
        %v2015 = vadd.f32 0.0, %v2014
        %v2016 = vpop.f32.mrf.mxu0
        %v2017 = vadd.f32 0.0, %v2016
        %2018 = vmatmul.bf16.gmra.mxu0 %v1246
        %v2019 = vpop.f32.mrf.mxu0
        %v2020 = vadd.f32 0.0, %v2019
        %v2021 = vpop.f32.mrf.mxu0
        %v2022 = vadd.f32 0.0, %v2021
        %2023 = vmatmul.bf16.gmra.mxu0 %v1247
        %v2024 = vpop.f32.mrf.mxu0
        %v2025 = vadd.f32 0.0, %v2024
        %v2026 = vpop.f32.mrf.mxu0
        %v2027 = vadd.f32 0.0, %v2026
        %2028 = vmatmul.bf16.gmra.mxu0 %v1248
        %v2029 = vpop.f32.mrf.mxu0
        %v2030 = vadd.f32 0.0, %v2029
        %v2031 = vpop.f32.mrf.mxu0
        %v2032 = vadd.f32 0.0, %v2031
        %2033 = vmatmul.bf16.gmra.mxu0 %v1249
        %v2034 = vpop.f32.mrf.mxu0
        %v2035 = vadd.f32 0.0, %v2034
        %v2036 = vpop.f32.mrf.mxu0
        %v2037 = vadd.f32 0.0, %v2036
        %2038 = vmatmul.bf16.gmra.mxu0 %v1250
        %v2039 = vpop.f32.mrf.mxu0
        %v2040 = vadd.f32 0.0, %v2039
        %v2041 = vpop.f32.mrf.mxu0
        %v2042 = vadd.f32 0.0, %v2041
        %2043 = vmatmul.bf16.gmra.mxu0 %v1251
        %v2044 = vpop.f32.mrf.mxu0
        %v2045 = vadd.f32 0.0, %v2044
        %v2046 = vpop.f32.mrf.mxu0
        %v2047 = vadd.f32 0.0, %v2046
        %2048 = vmatmul.bf16.gmra.mxu0 %v1252
        %v2049 = vpop.f32.mrf.mxu0
        %v2050 = vadd.f32 0.0, %v2049
        %v2051 = vpop.f32.mrf.mxu0
        %v2052 = vadd.f32 0.0, %v2051
        %2053 = vmatmul.bf16.gmra.mxu0 %v1253
        %v2054 = vpop.f32.mrf.mxu0
        %v2055 = vadd.f32 0.0, %v2054
        %v2056 = vpop.f32.mrf.mxu0
        %v2057 = vadd.f32 0.0, %v2056
        %2058 = vmatmul.bf16.gmra.mxu0 %v1925
        %v2059 = vpop.f32.mrf.mxu0
        %v2060 = vadd.f32 0.0, %v2059
        %v2061 = vpop.f32.mrf.mxu0
        %v2062 = vadd.f32 0.0, %v2061
        %2063 = vdwg.mxu0
        %v2064 = vadd.f32 %v1852, %v1985
        %v2065 = vadd.f32 %v1853, %v1987
        %v2066 = vadd.f32 %v1854, %v1990
        %v2067 = vadd.f32 %v1855, %v1992
        %v2068 = vadd.f32 %v1856, %v1995
        %v2069 = vadd.f32 %v1857, %v1997
        %v2070 = vadd.f32 %v1858, %v2000
        %v2071 = vadd.f32 %v1859, %v2002
        %v2072 = vadd.f32 %v1860, %v2005
        %v2073 = vadd.f32 %v1861, %v2007
        %v2074 = vadd.f32 %v1862, %v2010
        %v2075 = vadd.f32 %v1863, %v2012
        %v2076 = vadd.f32 %v1864, %v2015
        %v2077 = vadd.f32 %v1865, %v2017
        %v2078 = vadd.f32 %v1866, %v2020
        %v2079 = vadd.f32 %v1867, %v2022
        %v2080 = vadd.f32 %v1868, %v2025
        %v2081 = vadd.f32 %v1869, %v2027
        %v2082 = vadd.f32 %v1870, %v2030
        %v2083 = vadd.f32 %v1871, %v2032
        %v2084 = vadd.f32 %v1872, %v2035
        %v2085 = vadd.f32 %v1873, %v2037
        %v2086 = vadd.f32 %v1874, %v2040
        %v2087 = vadd.f32 %v1875, %v2042
        %v2088 = vadd.f32 %v1876, %v2045
        %v2089 = vadd.f32 %v1877, %v2047
        %v2090 = vadd.f32 %v1878, %v2050
        %v2091 = vadd.f32 %v1879, %v2052
        %v2092 = vadd.f32 %v1880, %v2055
        %v2093 = vadd.f32 %v1881, %v2057
        %v2094 = vadd.f32 %v1882, %v2060
        %v2095 = vadd.f32 %v1883, %v2062
        %s2096 = scalar_lea.vmem %s2, 256
        %v2097 = vld [vmem:[%s2096] sm:$0xf]
        %v2098 = vld [vmem:[%s2096 + $0x4] sm:$0xf]
        %v2099 = vld [vmem:[%s2096 + $0x8] sm:$0xf]
        %v2100 = vld [vmem:[%s2096 + $0xc] sm:$0xf]
        %v2101 = vld [vmem:[%s2096 + $0x10] sm:$0xf]
        %v2102 = vld [vmem:[%s2096 + $0x14] sm:$0xf]
        %v2103 = vld [vmem:[%s2096 + $0x18] sm:$0xf]
        %v2104 = vld [vmem:[%s2096 + $0x1c] sm:$0xf]
        %v2105 = vld [vmem:[%s2096 + $0x20] sm:$0xf]
        %v2106 = vld [vmem:[%s2096 + $0x24] sm:$0xf]
        %v2107 = vld [vmem:[%s2096 + $0x28] sm:$0xf]
        %v2108 = vld [vmem:[%s2096 + $0x2c] sm:$0xf]
        %v2109 = vld [vmem:[%s2096 + $0x30] sm:$0xf]
        %v2110 = vld [vmem:[%s2096 + $0x34] sm:$0xf]
        %v2111 = vld [vmem:[%s2096 + $0x38] sm:$0xf]
        %v2112 = vld [vmem:[%s2096 + $0x3c] sm:$0xf]
        %v2115 = vunpack.c.l.b16 %v578
        %v2116 = vunpack.c.l.b16 %v579
        %v2117 = vpack.c.b16 %v2116, %v2115
        %v2135 = vunpack.c.l.b16 %v2097
        %v2136 = vunpack.c.l.b16 %v2098
        %v2137 = vunpack.c.l.b16 %v2099
        %v2138 = vunpack.c.l.b16 %v2100
        %v2139 = vunpack.c.l.b16 %v2101
        %v2140 = vunpack.c.l.b16 %v2102
        %v2141 = vunpack.c.l.b16 %v2103
        %v2142 = vunpack.c.l.b16 %v2104
        %v2143 = vunpack.c.l.b16 %v2105
        %v2144 = vunpack.c.l.b16 %v2106
        %v2145 = vunpack.c.l.b16 %v2107
        %v2146 = vunpack.c.l.b16 %v2108
        %v2147 = vunpack.c.l.b16 %v2109
        %v2148 = vunpack.c.l.b16 %v2110
        %v2149 = vunpack.c.l.b16 %v2111
        %v2150 = vunpack.c.l.b16 %v2112
        %v2151 = vpack.c.b16 %v2136, %v2135
        %v2152 = vpack.c.b16 %v2138, %v2137
        %v2153 = vpack.c.b16 %v2140, %v2139
        %v2154 = vpack.c.b16 %v2142, %v2141
        %v2155 = vpack.c.b16 %v2144, %v2143
        %v2156 = vpack.c.b16 %v2146, %v2145
        %v2157 = vpack.c.b16 %v2148, %v2147
        %v2158 = vpack.c.b16 %v2150, %v2149
        %2167 = vmatpush.bf16.msra.mxu0 %v2158
        %2168 = vmatpush.bf16.msra.mxu0 %v2157
        %2169 = vmatpush.bf16.msra.mxu0 %v2156
        %2170 = vmatpush.bf16.msra.mxu0 %v2155
        %2171 = vmatpush.bf16.msra.mxu0 %v2154
        %2172 = vmatpush.bf16.msra.mxu0 %v2153
        %2173 = vmatpush.bf16.msra.mxu0 %v2152
        %2174 = vmatpush.bf16.msra.mxu0 %v2151
        %2175 = vmatmul.bf16.gmra.mxu0 %v1038
        %v2176 = vpop.f32.mrf.mxu0
        %v2177 = vadd.f32 0.0, %v2176
        %v2178 = vpop.f32.mrf.mxu0
        %v2179 = vadd.f32 0.0, %v2178
        %2180 = vmatmul.bf16.gmra.mxu0 %v1039
        %v2181 = vpop.f32.mrf.mxu0
        %v2182 = vadd.f32 0.0, %v2181
        %v2183 = vpop.f32.mrf.mxu0
        %v2184 = vadd.f32 0.0, %v2183
        %2185 = vmatmul.bf16.gmra.mxu0 %v1040
        %v2186 = vpop.f32.mrf.mxu0
        %v2187 = vadd.f32 0.0, %v2186
        %v2188 = vpop.f32.mrf.mxu0
        %v2189 = vadd.f32 0.0, %v2188
        %2190 = vmatmul.bf16.gmra.mxu0 %v1041
        %v2191 = vpop.f32.mrf.mxu0
        %v2192 = vadd.f32 0.0, %v2191
        %v2193 = vpop.f32.mrf.mxu0
        %v2194 = vadd.f32 0.0, %v2193
        %2195 = vmatmul.bf16.gmra.mxu0 %v1042
        %v2196 = vpop.f32.mrf.mxu0
        %v2197 = vadd.f32 0.0, %v2196
        %v2198 = vpop.f32.mrf.mxu0
        %v2199 = vadd.f32 0.0, %v2198
        %2200 = vmatmul.bf16.gmra.mxu0 %v1043
        %v2201 = vpop.f32.mrf.mxu0
        %v2202 = vadd.f32 0.0, %v2201
        %v2203 = vpop.f32.mrf.mxu0
        %v2204 = vadd.f32 0.0, %v2203
        %2205 = vmatmul.bf16.gmra.mxu0 %v1044
        %v2206 = vpop.f32.mrf.mxu0
        %v2207 = vadd.f32 0.0, %v2206
        %v2208 = vpop.f32.mrf.mxu0
        %v2209 = vadd.f32 0.0, %v2208
        %2210 = vmatmul.bf16.gmra.mxu0 %v1045
        %v2211 = vpop.f32.mrf.mxu0
        %v2212 = vadd.f32 0.0, %v2211
        %v2213 = vpop.f32.mrf.mxu0
        %v2214 = vadd.f32 0.0, %v2213
        %2215 = vmatmul.bf16.gmra.mxu0 %v1046
        %v2216 = vpop.f32.mrf.mxu0
        %v2217 = vadd.f32 0.0, %v2216
        %v2218 = vpop.f32.mrf.mxu0
        %v2219 = vadd.f32 0.0, %v2218
        %2220 = vmatmul.bf16.gmra.mxu0 %v1047
        %v2221 = vpop.f32.mrf.mxu0
        %v2222 = vadd.f32 0.0, %v2221
        %v2223 = vpop.f32.mrf.mxu0
        %v2224 = vadd.f32 0.0, %v2223
        %2225 = vmatmul.bf16.gmra.mxu0 %v1048
        %v2226 = vpop.f32.mrf.mxu0
        %v2227 = vadd.f32 0.0, %v2226
        %v2228 = vpop.f32.mrf.mxu0
        %v2229 = vadd.f32 0.0, %v2228
        %2230 = vmatmul.bf16.gmra.mxu0 %v1049
        %v2231 = vpop.f32.mrf.mxu0
        %v2232 = vadd.f32 0.0, %v2231
        %v2233 = vpop.f32.mrf.mxu0
        %v2234 = vadd.f32 0.0, %v2233
        %2235 = vmatmul.bf16.gmra.mxu0 %v1050
        %v2236 = vpop.f32.mrf.mxu0
        %v2237 = vadd.f32 0.0, %v2236
        %v2238 = vpop.f32.mrf.mxu0
        %v2239 = vadd.f32 0.0, %v2238
        %2240 = vmatmul.bf16.gmra.mxu0 %v1051
        %v2241 = vpop.f32.mrf.mxu0
        %v2242 = vadd.f32 0.0, %v2241
        %v2243 = vpop.f32.mrf.mxu0
        %v2244 = vadd.f32 0.0, %v2243
        %2245 = vmatmul.bf16.gmra.mxu0 %v1052
        %v2246 = vpop.f32.mrf.mxu0
        %v2247 = vadd.f32 0.0, %v2246
        %v2248 = vpop.f32.mrf.mxu0
        %v2249 = vadd.f32 0.0, %v2248
        %2250 = vmatmul.bf16.gmra.mxu0 %v2117
        %v2251 = vpop.f32.mrf.mxu0
        %v2252 = vadd.f32 0.0, %v2251
        %v2253 = vpop.f32.mrf.mxu0
        %v2254 = vadd.f32 0.0, %v2253
        %2255 = vdwg.mxu0
        %v2256 = vadd.f32 %v2064, %v2177
        %v2257 = vadd.f32 %v2065, %v2179
        %v2258 = vadd.f32 %v2066, %v2182
        %v2259 = vadd.f32 %v2067, %v2184
        %v2260 = vadd.f32 %v2068, %v2187
        %v2261 = vadd.f32 %v2069, %v2189
        %v2262 = vadd.f32 %v2070, %v2192
        %v2263 = vadd.f32 %v2071, %v2194
        %v2264 = vadd.f32 %v2072, %v2197
        %v2265 = vadd.f32 %v2073, %v2199
        %v2266 = vadd.f32 %v2074, %v2202
        %v2267 = vadd.f32 %v2075, %v2204
        %v2268 = vadd.f32 %v2076, %v2207
        %v2269 = vadd.f32 %v2077, %v2209
        %v2270 = vadd.f32 %v2078, %v2212
        %v2271 = vadd.f32 %v2079, %v2214
        %v2272 = vadd.f32 %v2080, %v2217
        %v2273 = vadd.f32 %v2081, %v2219
        %v2274 = vadd.f32 %v2082, %v2222
        %v2275 = vadd.f32 %v2083, %v2224
        %v2276 = vadd.f32 %v2084, %v2227
        %v2277 = vadd.f32 %v2085, %v2229
        %v2278 = vadd.f32 %v2086, %v2232
        %v2279 = vadd.f32 %v2087, %v2234
        %v2280 = vadd.f32 %v2088, %v2237
        %v2281 = vadd.f32 %v2089, %v2239
        %v2282 = vadd.f32 %v2090, %v2242
        %v2283 = vadd.f32 %v2091, %v2244
        %v2284 = vadd.f32 %v2092, %v2247
        %v2285 = vadd.f32 %v2093, %v2249
        %v2286 = vadd.f32 %v2094, %v2252
        %v2287 = vadd.f32 %v2095, %v2254
        %v2288 = vrot.slane %v1890, 4
        %v2289 = vrot.slane %v1893, 5
        %v2290 = vor.u32 %v2288, %v2289
        %v2291 = vrot.slane %v2290, 4
        %v2292 = vrot.slane %v1902, 5
        %v2293 = vsel %vm1409, %v2291, %v2292
        %v2294 = vrot.slane %v1899, 4
        %v2295 = vor.u32 %v2294, %v2292
        %v2296 = vrot.slane %v2295, 4
        %v2298 = vshll.u32 %v580, 16
        %v2300 = vrot.slane %v2298, 5
        %v2301 = vsel %vm1409, %v2296, %v2300
        %s2302 = scalar_lea.vmem %s2, 320
        %v2303 = vld [vmem:[%s2302] sm:$0xf]
        %v2304 = vld [vmem:[%s2302 + $0x4] sm:$0xf]
        %v2305 = vld [vmem:[%s2302 + $0x8] sm:$0xf]
        %v2306 = vld [vmem:[%s2302 + $0xc] sm:$0xf]
        %v2307 = vld [vmem:[%s2302 + $0x10] sm:$0xf]
        %v2308 = vld [vmem:[%s2302 + $0x14] sm:$0xf]
        %v2309 = vld [vmem:[%s2302 + $0x18] sm:$0xf]
        %v2310 = vld [vmem:[%s2302 + $0x1c] sm:$0xf]
        %v2311 = vld [vmem:[%s2302 + $0x20] sm:$0xf]
        %v2312 = vld [vmem:[%s2302 + $0x24] sm:$0xf]
        %v2313 = vld [vmem:[%s2302 + $0x28] sm:$0xf]
        %v2314 = vld [vmem:[%s2302 + $0x2c] sm:$0xf]
        %v2315 = vld [vmem:[%s2302 + $0x30] sm:$0xf]
        %v2316 = vld [vmem:[%s2302 + $0x34] sm:$0xf]
        %v2317 = vld [vmem:[%s2302 + $0x38] sm:$0xf]
        %v2318 = vld [vmem:[%s2302 + $0x3c] sm:$0xf]
        %v2319 = vunpack.c.l.b16 %v2293
        %v2320 = vunpack.c.l.b16 %v2301
        %v2321 = vpack.c.b16 %v2320, %v2319
        %v2339 = vunpack.c.l.b16 %v2303
        %v2340 = vunpack.c.l.b16 %v2304
        %v2341 = vunpack.c.l.b16 %v2305
        %v2342 = vunpack.c.l.b16 %v2306
        %v2343 = vunpack.c.l.b16 %v2307
        %v2344 = vunpack.c.l.b16 %v2308
        %v2345 = vunpack.c.l.b16 %v2309
        %v2346 = vunpack.c.l.b16 %v2310
        %v2347 = vunpack.c.l.b16 %v2311
        %v2348 = vunpack.c.l.b16 %v2312
        %v2349 = vunpack.c.l.b16 %v2313
        %v2350 = vunpack.c.l.b16 %v2314
        %v2351 = vunpack.c.l.b16 %v2315
        %v2352 = vunpack.c.l.b16 %v2316
        %v2353 = vunpack.c.l.b16 %v2317
        %v2354 = vunpack.c.l.b16 %v2318
        %v2355 = vpack.c.b16 %v2340, %v2339
        %v2356 = vpack.c.b16 %v2342, %v2341
        %v2357 = vpack.c.b16 %v2344, %v2343
        %v2358 = vpack.c.b16 %v2346, %v2345
        %v2359 = vpack.c.b16 %v2348, %v2347
        %v2360 = vpack.c.b16 %v2350, %v2349
        %v2361 = vpack.c.b16 %v2352, %v2351
        %v2362 = vpack.c.b16 %v2354, %v2353
        %2371 = vmatpush.bf16.msra.mxu0 %v2362
        %2372 = vmatpush.bf16.msra.mxu0 %v2361
        %2373 = vmatpush.bf16.msra.mxu0 %v2360
        %2374 = vmatpush.bf16.msra.mxu0 %v2359
        %2375 = vmatpush.bf16.msra.mxu0 %v2358
        %2376 = vmatpush.bf16.msra.mxu0 %v2357
        %2377 = vmatpush.bf16.msra.mxu0 %v2356
        %2378 = vmatpush.bf16.msra.mxu0 %v2355
        %2379 = vmatmul.bf16.gmra.mxu0 %v1684
        %v2380 = vpop.f32.mrf.mxu0
        %v2381 = vadd.f32 0.0, %v2380
        %v2382 = vpop.f32.mrf.mxu0
        %v2383 = vadd.f32 0.0, %v2382
        %2384 = vmatmul.bf16.gmra.mxu0 %v1685
        %v2385 = vpop.f32.mrf.mxu0
        %v2386 = vadd.f32 0.0, %v2385
        %v2387 = vpop.f32.mrf.mxu0
        %v2388 = vadd.f32 0.0, %v2387
        %2389 = vmatmul.bf16.gmra.mxu0 %v1686
        %v2390 = vpop.f32.mrf.mxu0
        %v2391 = vadd.f32 0.0, %v2390
        %v2392 = vpop.f32.mrf.mxu0
        %v2393 = vadd.f32 0.0, %v2392
        %2394 = vmatmul.bf16.gmra.mxu0 %v1687
        %v2395 = vpop.f32.mrf.mxu0
        %v2396 = vadd.f32 0.0, %v2395
        %v2397 = vpop.f32.mrf.mxu0
        %v2398 = vadd.f32 0.0, %v2397
        %2399 = vmatmul.bf16.gmra.mxu0 %v1688
        %v2400 = vpop.f32.mrf.mxu0
        %v2401 = vadd.f32 0.0, %v2400
        %v2402 = vpop.f32.mrf.mxu0
        %v2403 = vadd.f32 0.0, %v2402
        %2404 = vmatmul.bf16.gmra.mxu0 %v1689
        %v2405 = vpop.f32.mrf.mxu0
        %v2406 = vadd.f32 0.0, %v2405
        %v2407 = vpop.f32.mrf.mxu0
        %v2408 = vadd.f32 0.0, %v2407
        %2409 = vmatmul.bf16.gmra.mxu0 %v1690
        %v2410 = vpop.f32.mrf.mxu0
        %v2411 = vadd.f32 0.0, %v2410
        %v2412 = vpop.f32.mrf.mxu0
        %v2413 = vadd.f32 0.0, %v2412
        %2414 = vmatmul.bf16.gmra.mxu0 %v1691
        %v2415 = vpop.f32.mrf.mxu0
        %v2416 = vadd.f32 0.0, %v2415
        %v2417 = vpop.f32.mrf.mxu0
        %v2418 = vadd.f32 0.0, %v2417
        %2419 = vmatmul.bf16.gmra.mxu0 %v1692
        %v2420 = vpop.f32.mrf.mxu0
        %v2421 = vadd.f32 0.0, %v2420
        %v2422 = vpop.f32.mrf.mxu0
        %v2423 = vadd.f32 0.0, %v2422
        %2424 = vmatmul.bf16.gmra.mxu0 %v1693
        %v2425 = vpop.f32.mrf.mxu0
        %v2426 = vadd.f32 0.0, %v2425
        %v2427 = vpop.f32.mrf.mxu0
        %v2428 = vadd.f32 0.0, %v2427
        %2429 = vmatmul.bf16.gmra.mxu0 %v1694
        %v2430 = vpop.f32.mrf.mxu0
        %v2431 = vadd.f32 0.0, %v2430
        %v2432 = vpop.f32.mrf.mxu0
        %v2433 = vadd.f32 0.0, %v2432
        %2434 = vmatmul.bf16.gmra.mxu0 %v1695
        %v2435 = vpop.f32.mrf.mxu0
        %v2436 = vadd.f32 0.0, %v2435
        %v2437 = vpop.f32.mrf.mxu0
        %v2438 = vadd.f32 0.0, %v2437
        %2439 = vmatmul.bf16.gmra.mxu0 %v1696
        %v2440 = vpop.f32.mrf.mxu0
        %v2441 = vadd.f32 0.0, %v2440
        %v2442 = vpop.f32.mrf.mxu0
        %v2443 = vadd.f32 0.0, %v2442
        %2444 = vmatmul.bf16.gmra.mxu0 %v1697
        %v2445 = vpop.f32.mrf.mxu0
        %v2446 = vadd.f32 0.0, %v2445
        %v2447 = vpop.f32.mrf.mxu0
        %v2448 = vadd.f32 0.0, %v2447
        %2449 = vmatmul.bf16.gmra.mxu0 %v1698
        %v2450 = vpop.f32.mrf.mxu0
        %v2451 = vadd.f32 0.0, %v2450
        %v2452 = vpop.f32.mrf.mxu0
        %v2453 = vadd.f32 0.0, %v2452
        %2454 = vmatmul.bf16.gmra.mxu0 %v2321
        %v2455 = vpop.f32.mrf.mxu0
        %v2456 = vadd.f32 0.0, %v2455
        %v2457 = vpop.f32.mrf.mxu0
        %v2458 = vadd.f32 0.0, %v2457
        %2459 = vdwg.mxu0
        %v2460 = vadd.f32 %v2256, %v2381
        %v2461 = vadd.f32 %v2257, %v2383
        %v2462 = vadd.f32 %v2258, %v2386
        %v2463 = vadd.f32 %v2259, %v2388
        %v2464 = vadd.f32 %v2260, %v2391
        %v2465 = vadd.f32 %v2261, %v2393
        %v2466 = vadd.f32 %v2262, %v2396
        %v2467 = vadd.f32 %v2263, %v2398
        %v2468 = vadd.f32 %v2264, %v2401
        %v2469 = vadd.f32 %v2265, %v2403
        %v2470 = vadd.f32 %v2266, %v2406
        %v2471 = vadd.f32 %v2267, %v2408
        %v2472 = vadd.f32 %v2268, %v2411
        %v2473 = vadd.f32 %v2269, %v2413
        %v2474 = vadd.f32 %v2270, %v2416
        %v2475 = vadd.f32 %v2271, %v2418
        %v2476 = vadd.f32 %v2272, %v2421
        %v2477 = vadd.f32 %v2273, %v2423
        %v2478 = vadd.f32 %v2274, %v2426
        %v2479 = vadd.f32 %v2275, %v2428
        %v2480 = vadd.f32 %v2276, %v2431
        %v2481 = vadd.f32 %v2277, %v2433
        %v2482 = vadd.f32 %v2278, %v2436
        %v2483 = vadd.f32 %v2279, %v2438
        %v2484 = vadd.f32 %v2280, %v2441
        %v2485 = vadd.f32 %v2281, %v2443
        %v2486 = vadd.f32 %v2282, %v2446
        %v2487 = vadd.f32 %v2283, %v2448
        %v2488 = vadd.f32 %v2284, %v2451
        %v2489 = vadd.f32 %v2285, %v2453
        %v2490 = vadd.f32 %v2286, %v2456
        %v2491 = vadd.f32 %v2287, %v2458
        %v2493 = vshrl.u32 %v581, 16
        %v2495 = vrot.slane %v2493, 7
        %v2496 = vrot.slane %v2495, 4
        %v2498 = vshrl.u32 %v582, 16
        %v2500 = vrot.slane %v2498, 7
        %v2501 = vshll.u32 %v582, 16
        %v2503 = vor.u32 %v2500, %v2501
        %v2504 = vsel %vm587, %v2496, %v2503
        %v2505 = vrot.slane %v2500, 4
        %v2507 = vshrl.u32 %v583, 16
        %v2509 = vrot.slane %v2507, 7
        %v2510 = vshll.u32 %v583, 16
        %v2512 = vor.u32 %v2509, %v2510
        %v2513 = vsel %vm587, %v2505, %v2512
        %s2514 = scalar_lea.vmem %s2, 384
        %v2515 = vld [vmem:[%s2514] sm:$0xf]
        %v2516 = vld [vmem:[%s2514 + $0x4] sm:$0xf]
        %v2517 = vld [vmem:[%s2514 + $0x8] sm:$0xf]
        %v2518 = vld [vmem:[%s2514 + $0xc] sm:$0xf]
        %v2519 = vld [vmem:[%s2514 + $0x10] sm:$0xf]
        %v2520 = vld [vmem:[%s2514 + $0x14] sm:$0xf]
        %v2521 = vld [vmem:[%s2514 + $0x18] sm:$0xf]
        %v2522 = vld [vmem:[%s2514 + $0x1c] sm:$0xf]
        %v2523 = vld [vmem:[%s2514 + $0x20] sm:$0xf]
        %v2524 = vld [vmem:[%s2514 + $0x24] sm:$0xf]
        %v2525 = vld [vmem:[%s2514 + $0x28] sm:$0xf]
        %v2526 = vld [vmem:[%s2514 + $0x2c] sm:$0xf]
        %v2527 = vld [vmem:[%s2514 + $0x30] sm:$0xf]
        %v2528 = vld [vmem:[%s2514 + $0x34] sm:$0xf]
        %v2529 = vld [vmem:[%s2514 + $0x38] sm:$0xf]
        %v2530 = vld [vmem:[%s2514 + $0x3c] sm:$0xf]
        %v2531 = vunpack.c.l.b16 %v2504
        %v2532 = vunpack.c.l.b16 %v2513
        %v2533 = vpack.c.b16 %v2532, %v2531
        %v2551 = vunpack.c.l.b16 %v2515
        %v2552 = vunpack.c.l.b16 %v2516
        %v2553 = vunpack.c.l.b16 %v2517
        %v2554 = vunpack.c.l.b16 %v2518
        %v2555 = vunpack.c.l.b16 %v2519
        %v2556 = vunpack.c.l.b16 %v2520
        %v2557 = vunpack.c.l.b16 %v2521
        %v2558 = vunpack.c.l.b16 %v2522
        %v2559 = vunpack.c.l.b16 %v2523
        %v2560 = vunpack.c.l.b16 %v2524
        %v2561 = vunpack.c.l.b16 %v2525
        %v2562 = vunpack.c.l.b16 %v2526
        %v2563 = vunpack.c.l.b16 %v2527
        %v2564 = vunpack.c.l.b16 %v2528
        %v2565 = vunpack.c.l.b16 %v2529
        %v2566 = vunpack.c.l.b16 %v2530
        %v2567 = vpack.c.b16 %v2552, %v2551
        %v2568 = vpack.c.b16 %v2554, %v2553
        %v2569 = vpack.c.b16 %v2556, %v2555
        %v2570 = vpack.c.b16 %v2558, %v2557
        %v2571 = vpack.c.b16 %v2560, %v2559
        %v2572 = vpack.c.b16 %v2562, %v2561
        %v2573 = vpack.c.b16 %v2564, %v2563
        %v2574 = vpack.c.b16 %v2566, %v2565
        %2583 = vmatpush.bf16.msra.mxu0 %v2574
        %2584 = vmatpush.bf16.msra.mxu0 %v2573
        %2585 = vmatpush.bf16.msra.mxu0 %v2572
        %2586 = vmatpush.bf16.msra.mxu0 %v2571
        %2587 = vmatpush.bf16.msra.mxu0 %v2570
        %2588 = vmatpush.bf16.msra.mxu0 %v2569
        %2589 = vmatpush.bf16.msra.mxu0 %v2568
        %2590 = vmatpush.bf16.msra.mxu0 %v2567
        %2591 = vmatmul.bf16.gmra.mxu0 %v1240
        %v2592 = vpop.f32.mrf.mxu0
        %v2593 = vadd.f32 0.0, %v2592
        %v2594 = vpop.f32.mrf.mxu0
        %v2595 = vadd.f32 0.0, %v2594
        %2596 = vmatmul.bf16.gmra.mxu0 %v1241
        %v2597 = vpop.f32.mrf.mxu0
        %v2598 = vadd.f32 0.0, %v2597
        %v2599 = vpop.f32.mrf.mxu0
        %v2600 = vadd.f32 0.0, %v2599
        %2601 = vmatmul.bf16.gmra.mxu0 %v1242
        %v2602 = vpop.f32.mrf.mxu0
        %v2603 = vadd.f32 0.0, %v2602
        %v2604 = vpop.f32.mrf.mxu0
        %v2605 = vadd.f32 0.0, %v2604
        %2606 = vmatmul.bf16.gmra.mxu0 %v1243
        %v2607 = vpop.f32.mrf.mxu0
        %v2608 = vadd.f32 0.0, %v2607
        %v2609 = vpop.f32.mrf.mxu0
        %v2610 = vadd.f32 0.0, %v2609
        %2611 = vmatmul.bf16.gmra.mxu0 %v1244
        %v2612 = vpop.f32.mrf.mxu0
        %v2613 = vadd.f32 0.0, %v2612
        %v2614 = vpop.f32.mrf.mxu0
        %v2615 = vadd.f32 0.0, %v2614
        %2616 = vmatmul.bf16.gmra.mxu0 %v1245
        %v2617 = vpop.f32.mrf.mxu0
        %v2618 = vadd.f32 0.0, %v2617
        %v2619 = vpop.f32.mrf.mxu0
        %v2620 = vadd.f32 0.0, %v2619
        %2621 = vmatmul.bf16.gmra.mxu0 %v1246
        %v2622 = vpop.f32.mrf.mxu0
        %v2623 = vadd.f32 0.0, %v2622
        %v2624 = vpop.f32.mrf.mxu0
        %v2625 = vadd.f32 0.0, %v2624
        %2626 = vmatmul.bf16.gmra.mxu0 %v1247
        %v2627 = vpop.f32.mrf.mxu0
        %v2628 = vadd.f32 0.0, %v2627
        %v2629 = vpop.f32.mrf.mxu0
        %v2630 = vadd.f32 0.0, %v2629
        %2631 = vmatmul.bf16.gmra.mxu0 %v1248
        %v2632 = vpop.f32.mrf.mxu0
        %v2633 = vadd.f32 0.0, %v2632
        %v2634 = vpop.f32.mrf.mxu0
        %v2635 = vadd.f32 0.0, %v2634
        %2636 = vmatmul.bf16.gmra.mxu0 %v1249
        %v2637 = vpop.f32.mrf.mxu0
        %v2638 = vadd.f32 0.0, %v2637
        %v2639 = vpop.f32.mrf.mxu0
        %v2640 = vadd.f32 0.0, %v2639
        %2641 = vmatmul.bf16.gmra.mxu0 %v1250
        %v2642 = vpop.f32.mrf.mxu0
        %v2643 = vadd.f32 0.0, %v2642
        %v2644 = vpop.f32.mrf.mxu0
        %v2645 = vadd.f32 0.0, %v2644
        %2646 = vmatmul.bf16.gmra.mxu0 %v1251
        %v2647 = vpop.f32.mrf.mxu0
        %v2648 = vadd.f32 0.0, %v2647
        %v2649 = vpop.f32.mrf.mxu0
        %v2650 = vadd.f32 0.0, %v2649
        %2651 = vmatmul.bf16.gmra.mxu0 %v1252
        %v2652 = vpop.f32.mrf.mxu0
        %v2653 = vadd.f32 0.0, %v2652
        %v2654 = vpop.f32.mrf.mxu0
        %v2655 = vadd.f32 0.0, %v2654
        %2656 = vmatmul.bf16.gmra.mxu0 %v1253
        %v2657 = vpop.f32.mrf.mxu0
        %v2658 = vadd.f32 0.0, %v2657
        %v2659 = vpop.f32.mrf.mxu0
        %v2660 = vadd.f32 0.0, %v2659
        %2661 = vmatmul.bf16.gmra.mxu0 %v1925
        %v2662 = vpop.f32.mrf.mxu0
        %v2663 = vadd.f32 0.0, %v2662
        %v2664 = vpop.f32.mrf.mxu0
        %v2665 = vadd.f32 0.0, %v2664
        %2666 = vmatmul.bf16.gmra.mxu0 %v2533
        %v2667 = vpop.f32.mrf.mxu0
        %v2668 = vadd.f32 0.0, %v2667
        %v2669 = vpop.f32.mrf.mxu0
        %v2670 = vadd.f32 0.0, %v2669
        %2671 = vdwg.mxu0
        %v2672 = vadd.f32 %v2460, %v2593
        %v2673 = vadd.f32 %v2461, %v2595
        %v2674 = vadd.f32 %v2462, %v2598
        %v2675 = vadd.f32 %v2463, %v2600
        %v2676 = vadd.f32 %v2464, %v2603
        %v2677 = vadd.f32 %v2465, %v2605
        %v2678 = vadd.f32 %v2466, %v2608
        %v2679 = vadd.f32 %v2467, %v2610
        %v2680 = vadd.f32 %v2468, %v2613
        %v2681 = vadd.f32 %v2469, %v2615
        %v2682 = vadd.f32 %v2470, %v2618
        %v2683 = vadd.f32 %v2471, %v2620
        %v2684 = vadd.f32 %v2472, %v2623
        %v2685 = vadd.f32 %v2473, %v2625
        %v2686 = vadd.f32 %v2474, %v2628
        %v2687 = vadd.f32 %v2475, %v2630
        %v2688 = vadd.f32 %v2476, %v2633
        %v2689 = vadd.f32 %v2477, %v2635
        %v2690 = vadd.f32 %v2478, %v2638
        %v2691 = vadd.f32 %v2479, %v2640
        %v2692 = vadd.f32 %v2480, %v2643
        %v2693 = vadd.f32 %v2481, %v2645
        %v2694 = vadd.f32 %v2482, %v2648
        %v2695 = vadd.f32 %v2483, %v2650
        %v2696 = vadd.f32 %v2484, %v2653
        %v2697 = vadd.f32 %v2485, %v2655
        %v2698 = vadd.f32 %v2486, %v2658
        %v2699 = vadd.f32 %v2487, %v2660
        %v2700 = vadd.f32 %v2488, %v2663
        %v2701 = vadd.f32 %v2489, %v2665
        %v2702 = vadd.f32 %v2490, %v2668
        %v2703 = vadd.f32 %v2491, %v2670
        %s2704 = scalar_lea.vmem %s2, 448
        %v2705 = vld [vmem:[%s2704] sm:$0xf]
        %v2706 = vld [vmem:[%s2704 + $0x4] sm:$0xf]
        %v2707 = vld [vmem:[%s2704 + $0x8] sm:$0xf]
        %v2708 = vld [vmem:[%s2704 + $0xc] sm:$0xf]
        %v2709 = vld [vmem:[%s2704 + $0x10] sm:$0xf]
        %v2710 = vld [vmem:[%s2704 + $0x14] sm:$0xf]
        %v2711 = vld [vmem:[%s2704 + $0x18] sm:$0xf]
        %v2712 = vld [vmem:[%s2704 + $0x1c] sm:$0xf]
        %v2713 = vld [vmem:[%s2704 + $0x20] sm:$0xf]
        %v2714 = vld [vmem:[%s2704 + $0x24] sm:$0xf]
        %v2715 = vld [vmem:[%s2704 + $0x28] sm:$0xf]
        %v2716 = vld [vmem:[%s2704 + $0x2c] sm:$0xf]
        %v2717 = vld [vmem:[%s2704 + $0x30] sm:$0xf]
        %v2718 = vld [vmem:[%s2704 + $0x34] sm:$0xf]
        %v2719 = vld [vmem:[%s2704 + $0x38] sm:$0xf]
        %v2720 = vld [vmem:[%s2704 + $0x3c] sm:$0xf]
        %v2723 = vunpack.c.l.b16 %v582
        %v2724 = vunpack.c.l.b16 %v583
        %v2725 = vpack.c.b16 %v2724, %v2723
        %v2743 = vunpack.c.l.b16 %v2705
        %v2744 = vunpack.c.l.b16 %v2706
        %v2745 = vunpack.c.l.b16 %v2707
        %v2746 = vunpack.c.l.b16 %v2708
        %v2747 = vunpack.c.l.b16 %v2709
        %v2748 = vunpack.c.l.b16 %v2710
        %v2749 = vunpack.c.l.b16 %v2711
        %v2750 = vunpack.c.l.b16 %v2712
        %v2751 = vunpack.c.l.b16 %v2713
        %v2752 = vunpack.c.l.b16 %v2714
        %v2753 = vunpack.c.l.b16 %v2715
        %v2754 = vunpack.c.l.b16 %v2716
        %v2755 = vunpack.c.l.b16 %v2717
        %v2756 = vunpack.c.l.b16 %v2718
        %v2757 = vunpack.c.l.b16 %v2719
        %v2758 = vunpack.c.l.b16 %v2720
        %v2759 = vpack.c.b16 %v2744, %v2743
        %v2760 = vpack.c.b16 %v2746, %v2745
        %v2761 = vpack.c.b16 %v2748, %v2747
        %v2762 = vpack.c.b16 %v2750, %v2749
        %v2763 = vpack.c.b16 %v2752, %v2751
        %v2764 = vpack.c.b16 %v2754, %v2753
        %v2765 = vpack.c.b16 %v2756, %v2755
        %v2766 = vpack.c.b16 %v2758, %v2757
        %2775 = vmatpush.bf16.msra.mxu0 %v2766
        %2776 = vmatpush.bf16.msra.mxu0 %v2765
        %2777 = vmatpush.bf16.msra.mxu0 %v2764
        %2778 = vmatpush.bf16.msra.mxu0 %v2763
        %2779 = vmatpush.bf16.msra.mxu0 %v2762
        %2780 = vmatpush.bf16.msra.mxu0 %v2761
        %2781 = vmatpush.bf16.msra.mxu0 %v2760
        %2782 = vmatpush.bf16.msra.mxu0 %v2759
        %2783 = vmatmul.bf16.gmra.mxu0 %v1039
        %v2784 = vpop.f32.mrf.mxu0
        %v2785 = vadd.f32 0.0, %v2784
        %v2786 = vpop.f32.mrf.mxu0
        %v2787 = vadd.f32 0.0, %v2786
        %2788 = vmatmul.bf16.gmra.mxu0 %v1040
        %v2789 = vpop.f32.mrf.mxu0
        %v2790 = vadd.f32 0.0, %v2789
        %v2791 = vpop.f32.mrf.mxu0
        %v2792 = vadd.f32 0.0, %v2791
        %2793 = vmatmul.bf16.gmra.mxu0 %v1041
        %v2794 = vpop.f32.mrf.mxu0
        %v2795 = vadd.f32 0.0, %v2794
        %v2796 = vpop.f32.mrf.mxu0
        %v2797 = vadd.f32 0.0, %v2796
        %2798 = vmatmul.bf16.gmra.mxu0 %v1042
        %v2799 = vpop.f32.mrf.mxu0
        %v2800 = vadd.f32 0.0, %v2799
        %v2801 = vpop.f32.mrf.mxu0
        %v2802 = vadd.f32 0.0, %v2801
        %2803 = vmatmul.bf16.gmra.mxu0 %v1043
        %v2804 = vpop.f32.mrf.mxu0
        %v2805 = vadd.f32 0.0, %v2804
        %v2806 = vpop.f32.mrf.mxu0
        %v2807 = vadd.f32 0.0, %v2806
        %2808 = vmatmul.bf16.gmra.mxu0 %v1044
        %v2809 = vpop.f32.mrf.mxu0
        %v2810 = vadd.f32 0.0, %v2809
        %v2811 = vpop.f32.mrf.mxu0
        %v2812 = vadd.f32 0.0, %v2811
        %2813 = vmatmul.bf16.gmra.mxu0 %v1045
        %v2814 = vpop.f32.mrf.mxu0
        %v2815 = vadd.f32 0.0, %v2814
        %v2816 = vpop.f32.mrf.mxu0
        %v2817 = vadd.f32 0.0, %v2816
        %2818 = vmatmul.bf16.gmra.mxu0 %v1046
        %v2819 = vpop.f32.mrf.mxu0
        %v2820 = vadd.f32 0.0, %v2819
        %v2821 = vpop.f32.mrf.mxu0
        %v2822 = vadd.f32 0.0, %v2821
        %2823 = vmatmul.bf16.gmra.mxu0 %v1047
        %v2824 = vpop.f32.mrf.mxu0
        %v2825 = vadd.f32 0.0, %v2824
        %v2826 = vpop.f32.mrf.mxu0
        %v2827 = vadd.f32 0.0, %v2826
        %2828 = vmatmul.bf16.gmra.mxu0 %v1048
        %v2829 = vpop.f32.mrf.mxu0
        %v2830 = vadd.f32 0.0, %v2829
        %v2831 = vpop.f32.mrf.mxu0
        %v2832 = vadd.f32 0.0, %v2831
        %2833 = vmatmul.bf16.gmra.mxu0 %v1049
        %v2834 = vpop.f32.mrf.mxu0
        %v2835 = vadd.f32 0.0, %v2834
        %v2836 = vpop.f32.mrf.mxu0
        %v2837 = vadd.f32 0.0, %v2836
        %2838 = vmatmul.bf16.gmra.mxu0 %v1050
        %v2839 = vpop.f32.mrf.mxu0
        %v2840 = vadd.f32 0.0, %v2839
        %v2841 = vpop.f32.mrf.mxu0
        %v2842 = vadd.f32 0.0, %v2841
        %2843 = vmatmul.bf16.gmra.mxu0 %v1051
        %v2844 = vpop.f32.mrf.mxu0
        %v2845 = vadd.f32 0.0, %v2844
        %v2846 = vpop.f32.mrf.mxu0
        %v2847 = vadd.f32 0.0, %v2846
        %2848 = vmatmul.bf16.gmra.mxu0 %v1052
        %v2849 = vpop.f32.mrf.mxu0
        %v2850 = vadd.f32 0.0, %v2849
        %v2851 = vpop.f32.mrf.mxu0
        %v2852 = vadd.f32 0.0, %v2851
        %2853 = vmatmul.bf16.gmra.mxu0 %v2117
        %v2854 = vpop.f32.mrf.mxu0
        %v2855 = vadd.f32 0.0, %v2854
        %v2856 = vpop.f32.mrf.mxu0
        %v2857 = vadd.f32 0.0, %v2856
        %2858 = vmatmul.bf16.gmra.mxu0 %v2725
        %v2859 = vpop.f32.mrf.mxu0
        %v2860 = vadd.f32 0.0, %v2859
        %v2861 = vpop.f32.mrf.mxu0
        %v2862 = vadd.f32 0.0, %v2861
        %2863 = vdwg.mxu0
        %v2864 = vadd.f32 %v2672, %v2785
        %v2865 = vadd.f32 %v2673, %v2787
        %v2866 = vadd.f32 %v2674, %v2790
        %v2867 = vadd.f32 %v2675, %v2792
        %v2868 = vadd.f32 %v2676, %v2795
        %v2869 = vadd.f32 %v2677, %v2797
        %v2870 = vadd.f32 %v2678, %v2800
        %v2871 = vadd.f32 %v2679, %v2802
        %v2872 = vadd.f32 %v2680, %v2805
        %v2873 = vadd.f32 %v2681, %v2807
        %v2874 = vadd.f32 %v2682, %v2810
        %v2875 = vadd.f32 %v2683, %v2812
        %v2876 = vadd.f32 %v2684, %v2815
        %v2877 = vadd.f32 %v2685, %v2817
        %v2878 = vadd.f32 %v2686, %v2820
        %v2879 = vadd.f32 %v2687, %v2822
        %v2880 = vadd.f32 %v2688, %v2825
        %v2881 = vadd.f32 %v2689, %v2827
        %v2882 = vadd.f32 %v2690, %v2830
        %v2883 = vadd.f32 %v2691, %v2832
        %v2884 = vadd.f32 %v2692, %v2835
        %v2885 = vadd.f32 %v2693, %v2837
        %v2886 = vadd.f32 %v2694, %v2840
        %v2887 = vadd.f32 %v2695, %v2842
        %v2888 = vadd.f32 %v2696, %v2845
        %v2889 = vadd.f32 %v2697, %v2847
        %v2890 = vadd.f32 %v2698, %v2850
        %v2891 = vadd.f32 %v2699, %v2852
        %v2892 = vadd.f32 %v2700, %v2855
        %v2893 = vadd.f32 %v2701, %v2857
        %v2894 = vadd.f32 %v2702, %v2860
        %v2895 = vadd.f32 %v2703, %v2862
        %v2896 = vrot.slane %v2498, 4
        %v2897 = vrot.slane %v2501, 5
        %v2898 = vor.u32 %v2896, %v2897
        %v2899 = vrot.slane %v2898, 4
        %v2900 = vrot.slane %v2510, 5
        %v2901 = vsel %vm1409, %v2899, %v2900
        %v2902 = vrot.slane %v2507, 4
        %v2903 = vor.u32 %v2902, %v2900
        %v2904 = vrot.slane %v2903, 4
        %v2906 = vshll.u32 %v584, 16
        %v2908 = vrot.slane %v2906, 5
        %v2909 = vsel %vm1409, %v2904, %v2908
        %s2910 = scalar_lea.vmem %s2, 512
        %v2911 = vld [vmem:[%s2910] sm:$0xf]
        %v2912 = vld [vmem:[%s2910 + $0x4] sm:$0xf]
        %v2913 = vld [vmem:[%s2910 + $0x8] sm:$0xf]
        %v2914 = vld [vmem:[%s2910 + $0xc] sm:$0xf]
        %v2915 = vld [vmem:[%s2910 + $0x10] sm:$0xf]
        %v2916 = vld [vmem:[%s2910 + $0x14] sm:$0xf]
        %v2917 = vld [vmem:[%s2910 + $0x18] sm:$0xf]
        %v2918 = vld [vmem:[%s2910 + $0x1c] sm:$0xf]
        %v2919 = vld [vmem:[%s2910 + $0x20] sm:$0xf]
        %v2920 = vld [vmem:[%s2910 + $0x24] sm:$0xf]
        %v2921 = vld [vmem:[%s2910 + $0x28] sm:$0xf]
        %v2922 = vld [vmem:[%s2910 + $0x2c] sm:$0xf]
        %v2923 = vld [vmem:[%s2910 + $0x30] sm:$0xf]
        %v2924 = vld [vmem:[%s2910 + $0x34] sm:$0xf]
        %v2925 = vld [vmem:[%s2910 + $0x38] sm:$0xf]
        %v2926 = vld [vmem:[%s2910 + $0x3c] sm:$0xf]
        %v2927 = vunpack.c.l.b16 %v2901
        %v2928 = vunpack.c.l.b16 %v2909
        %v2929 = vpack.c.b16 %v2928, %v2927
        %v2947 = vunpack.c.l.b16 %v2911
        %v2948 = vunpack.c.l.b16 %v2912
        %v2949 = vunpack.c.l.b16 %v2913
        %v2950 = vunpack.c.l.b16 %v2914
        %v2951 = vunpack.c.l.b16 %v2915
        %v2952 = vunpack.c.l.b16 %v2916
        %v2953 = vunpack.c.l.b16 %v2917
        %v2954 = vunpack.c.l.b16 %v2918
        %v2955 = vunpack.c.l.b16 %v2919
        %v2956 = vunpack.c.l.b16 %v2920
        %v2957 = vunpack.c.l.b16 %v2921
        %v2958 = vunpack.c.l.b16 %v2922
        %v2959 = vunpack.c.l.b16 %v2923
        %v2960 = vunpack.c.l.b16 %v2924
        %v2961 = vunpack.c.l.b16 %v2925
        %v2962 = vunpack.c.l.b16 %v2926
        %v2963 = vpack.c.b16 %v2948, %v2947
        %v2964 = vpack.c.b16 %v2950, %v2949
        %v2965 = vpack.c.b16 %v2952, %v2951
        %v2966 = vpack.c.b16 %v2954, %v2953
        %v2967 = vpack.c.b16 %v2956, %v2955
        %v2968 = vpack.c.b16 %v2958, %v2957
        %v2969 = vpack.c.b16 %v2960, %v2959
        %v2970 = vpack.c.b16 %v2962, %v2961
        %2979 = vmatpush.bf16.msra.mxu0 %v2970
        %2980 = vmatpush.bf16.msra.mxu0 %v2969
        %2981 = vmatpush.bf16.msra.mxu0 %v2968
        %2982 = vmatpush.bf16.msra.mxu0 %v2967
        %2983 = vmatpush.bf16.msra.mxu0 %v2966
        %2984 = vmatpush.bf16.msra.mxu0 %v2965
        %2985 = vmatpush.bf16.msra.mxu0 %v2964
        %2986 = vmatpush.bf16.msra.mxu0 %v2963
        %2987 = vmatmul.bf16.gmra.mxu0 %v1685
        %v2988 = vpop.f32.mrf.mxu0
        %v2989 = vadd.f32 0.0, %v2988
        %v2990 = vpop.f32.mrf.mxu0
        %v2991 = vadd.f32 0.0, %v2990
        %2992 = vmatmul.bf16.gmra.mxu0 %v1686
        %v2993 = vpop.f32.mrf.mxu0
        %v2994 = vadd.f32 0.0, %v2993
        %v2995 = vpop.f32.mrf.mxu0
        %v2996 = vadd.f32 0.0, %v2995
        %2997 = vmatmul.bf16.gmra.mxu0 %v1687
        %v2998 = vpop.f32.mrf.mxu0
        %v2999 = vadd.f32 0.0, %v2998
        %v3000 = vpop.f32.mrf.mxu0
        %v3001 = vadd.f32 0.0, %v3000
        %3002 = vmatmul.bf16.gmra.mxu0 %v1688
        %v3003 = vpop.f32.mrf.mxu0
        %v3004 = vadd.f32 0.0, %v3003
        %v3005 = vpop.f32.mrf.mxu0
        %v3006 = vadd.f32 0.0, %v3005
        %3007 = vmatmul.bf16.gmra.mxu0 %v1689
        %v3008 = vpop.f32.mrf.mxu0
        %v3009 = vadd.f32 0.0, %v3008
        %v3010 = vpop.f32.mrf.mxu0
        %v3011 = vadd.f32 0.0, %v3010
        %3012 = vmatmul.bf16.gmra.mxu0 %v1690
        %v3013 = vpop.f32.mrf.mxu0
        %v3014 = vadd.f32 0.0, %v3013
        %v3015 = vpop.f32.mrf.mxu0
        %v3016 = vadd.f32 0.0, %v3015
        %3017 = vmatmul.bf16.gmra.mxu0 %v1691
        %v3018 = vpop.f32.mrf.mxu0
        %v3019 = vadd.f32 0.0, %v3018
        %v3020 = vpop.f32.mrf.mxu0
        %v3021 = vadd.f32 0.0, %v3020
        %3022 = vmatmul.bf16.gmra.mxu0 %v1692
        %v3023 = vpop.f32.mrf.mxu0
        %v3024 = vadd.f32 0.0, %v3023
        %v3025 = vpop.f32.mrf.mxu0
        %v3026 = vadd.f32 0.0, %v3025
        %3027 = vmatmul.bf16.gmra.mxu0 %v1693
        %v3028 = vpop.f32.mrf.mxu0
        %v3029 = vadd.f32 0.0, %v3028
        %v3030 = vpop.f32.mrf.mxu0
        %v3031 = vadd.f32 0.0, %v3030
        %3032 = vmatmul.bf16.gmra.mxu0 %v1694
        %v3033 = vpop.f32.mrf.mxu0
        %v3034 = vadd.f32 0.0, %v3033
        %v3035 = vpop.f32.mrf.mxu0
        %v3036 = vadd.f32 0.0, %v3035
        %3037 = vmatmul.bf16.gmra.mxu0 %v1695
        %v3038 = vpop.f32.mrf.mxu0
        %v3039 = vadd.f32 0.0, %v3038
        %v3040 = vpop.f32.mrf.mxu0
        %v3041 = vadd.f32 0.0, %v3040
        %3042 = vmatmul.bf16.gmra.mxu0 %v1696
        %v3043 = vpop.f32.mrf.mxu0
        %v3044 = vadd.f32 0.0, %v3043
        %v3045 = vpop.f32.mrf.mxu0
        %v3046 = vadd.f32 0.0, %v3045
        %3047 = vmatmul.bf16.gmra.mxu0 %v1697
        %v3048 = vpop.f32.mrf.mxu0
        %v3049 = vadd.f32 0.0, %v3048
        %v3050 = vpop.f32.mrf.mxu0
        %v3051 = vadd.f32 0.0, %v3050
        %3052 = vmatmul.bf16.gmra.mxu0 %v1698
        %v3053 = vpop.f32.mrf.mxu0
        %v3054 = vadd.f32 0.0, %v3053
        %v3055 = vpop.f32.mrf.mxu0
        %v3056 = vadd.f32 0.0, %v3055
        %3057 = vmatmul.bf16.gmra.mxu0 %v2321
        %v3058 = vpop.f32.mrf.mxu0
        %v3059 = vadd.f32 0.0, %v3058
        %v3060 = vpop.f32.mrf.mxu0
        %v3061 = vadd.f32 0.0, %v3060
        %3062 = vmatmul.bf16.gmra.mxu0 %v2929
        %v3063 = vpop.f32.mrf.mxu0
        %v3064 = vadd.f32 0.0, %v3063
        %v3065 = vpop.f32.mrf.mxu0
        %v3066 = vadd.f32 0.0, %v3065
        %3067 = vdwg.mxu0
        %v3068 = vadd.f32 %v2864, %v2989
        %v3069 = vadd.f32 %v2865, %v2991
        %v3070 = vadd.f32 %v2866, %v2994
        %v3071 = vadd.f32 %v2867, %v2996
        %v3072 = vadd.f32 %v2868, %v2999
        %v3073 = vadd.f32 %v2869, %v3001
        %v3074 = vadd.f32 %v2870, %v3004
        %v3075 = vadd.f32 %v2871, %v3006
        %v3076 = vadd.f32 %v2872, %v3009
        %v3077 = vadd.f32 %v2873, %v3011
        %v3078 = vadd.f32 %v2874, %v3014
        %v3079 = vadd.f32 %v2875, %v3016
        %v3080 = vadd.f32 %v2876, %v3019
        %v3081 = vadd.f32 %v2877, %v3021
        %v3082 = vadd.f32 %v2878, %v3024
        %v3083 = vadd.f32 %v2879, %v3026
        %v3084 = vadd.f32 %v2880, %v3029
        %v3085 = vadd.f32 %v2881, %v3031
        %v3086 = vadd.f32 %v2882, %v3034
        %v3087 = vadd.f32 %v2883, %v3036
        %v3088 = vadd.f32 %v2884, %v3039
        %v3089 = vadd.f32 %v2885, %v3041
        %v3090 = vadd.f32 %v2886, %v3044
        %v3091 = vadd.f32 %v2887, %v3046
        %v3092 = vadd.f32 %v2888, %v3049
        %v3093 = vadd.f32 %v2889, %v3051
        %v3094 = vadd.f32 %v2890, %v3054
        %v3095 = vadd.f32 %v2891, %v3056
        %v3096 = vadd.f32 %v2892, %v3059
        %v3097 = vadd.f32 %v2893, %v3061
        %v3098 = vadd.f32 %v2894, %v3064
        %v3099 = vadd.f32 %v2895, %v3066
        %v3100 = vld [vmem:[%s3] sm:$0x1]
        %v3102 = vperm.slane %v3100, 0
        %v3104 = vadd.f32 %v3068, %v3102
        %v3105 = vadd.f32 %v3069, %v3102
        %v3106 = vadd.f32 %v3070, %v3102
        %v3107 = vadd.f32 %v3071, %v3102
        %v3108 = vadd.f32 %v3072, %v3102
        %v3109 = vadd.f32 %v3073, %v3102
        %v3110 = vadd.f32 %v3074, %v3102
        %v3111 = vadd.f32 %v3075, %v3102
        %v3112 = vadd.f32 %v3076, %v3102
        %v3113 = vadd.f32 %v3077, %v3102
        %v3114 = vadd.f32 %v3078, %v3102
        %v3115 = vadd.f32 %v3079, %v3102
        %v3116 = vadd.f32 %v3080, %v3102
        %v3117 = vadd.f32 %v3081, %v3102
        %v3118 = vadd.f32 %v3082, %v3102
        %v3119 = vadd.f32 %v3083, %v3102
        %v3120 = vadd.f32 %v3084, %v3102
        %v3121 = vadd.f32 %v3085, %v3102
        %v3122 = vadd.f32 %v3086, %v3102
        %v3123 = vadd.f32 %v3087, %v3102
        %v3124 = vadd.f32 %v3088, %v3102
        %v3125 = vadd.f32 %v3089, %v3102
        %v3126 = vadd.f32 %v3090, %v3102
        %v3127 = vadd.f32 %v3091, %v3102
        %v3128 = vadd.f32 %v3092, %v3102
        %v3129 = vadd.f32 %v3093, %v3102
        %v3130 = vadd.f32 %v3094, %v3102
        %v3131 = vadd.f32 %v3095, %v3102
        %v3132 = vadd.f32 %v3096, %v3102
        %v3133 = vadd.f32 %v3097, %v3102
        %v3134 = vadd.f32 %v3098, %v3102
        %v3135 = vadd.f32 %v3099, %v3102
        %v3136 = vmax.f32 %v3104, 0.0
        %v3137 = vmax.f32 %v3105, 0.0
        %v3138 = vmax.f32 %v3106, 0.0
        %v3139 = vmax.f32 %v3107, 0.0
        %v3140 = vmax.f32 %v3108, 0.0
        %v3141 = vmax.f32 %v3109, 0.0
        %v3142 = vmax.f32 %v3110, 0.0
        %v3143 = vmax.f32 %v3111, 0.0
        %v3144 = vmax.f32 %v3112, 0.0
        %v3145 = vmax.f32 %v3113, 0.0
        %v3146 = vmax.f32 %v3114, 0.0
        %v3147 = vmax.f32 %v3115, 0.0
        %v3148 = vmax.f32 %v3116, 0.0
        %v3149 = vmax.f32 %v3117, 0.0
        %v3150 = vmax.f32 %v3118, 0.0
        %v3151 = vmax.f32 %v3119, 0.0
        %v3152 = vmax.f32 %v3120, 0.0
        %v3153 = vmax.f32 %v3121, 0.0
        %v3154 = vmax.f32 %v3122, 0.0
        %v3155 = vmax.f32 %v3123, 0.0
        %v3156 = vmax.f32 %v3124, 0.0
        %v3157 = vmax.f32 %v3125, 0.0
        %v3158 = vmax.f32 %v3126, 0.0
        %v3159 = vmax.f32 %v3127, 0.0
        %v3160 = vmax.f32 %v3128, 0.0
        %v3161 = vmax.f32 %v3129, 0.0
        %v3162 = vmax.f32 %v3130, 0.0
        %v3163 = vmax.f32 %v3131, 0.0
        %v3164 = vmax.f32 %v3132, 0.0
        %v3165 = vmax.f32 %v3133, 0.0
        %v3166 = vmax.f32 %v3134, 0.0
        %v3167 = vmax.f32 %v3135, 0.0
        %v3168 = vpack.c.bf16 %v3136, %v3136
        %v3169 = vpack.c.bf16 %v3137, %v3137
        %v3170 = vpack.c.bf16 %v3138, %v3138
        %v3171 = vpack.c.bf16 %v3139, %v3139
        %v3172 = vpack.c.bf16 %v3140, %v3140
        %v3173 = vpack.c.bf16 %v3141, %v3141
        %v3174 = vpack.c.bf16 %v3142, %v3142
        %v3175 = vpack.c.bf16 %v3143, %v3143
        %v3176 = vpack.c.bf16 %v3144, %v3144
        %v3177 = vpack.c.bf16 %v3145, %v3145
        %v3178 = vpack.c.bf16 %v3146, %v3146
        %v3179 = vpack.c.bf16 %v3147, %v3147
        %v3180 = vpack.c.bf16 %v3148, %v3148
        %v3181 = vpack.c.bf16 %v3149, %v3149
        %v3182 = vpack.c.bf16 %v3150, %v3150
        %v3183 = vpack.c.bf16 %v3151, %v3151
        %v3184 = vpack.c.bf16 %v3152, %v3152
        %v3185 = vpack.c.bf16 %v3153, %v3153
        %v3186 = vpack.c.bf16 %v3154, %v3154
        %v3187 = vpack.c.bf16 %v3155, %v3155
        %v3188 = vpack.c.bf16 %v3156, %v3156
        %v3189 = vpack.c.bf16 %v3157, %v3157
        %v3190 = vpack.c.bf16 %v3158, %v3158
        %v3191 = vpack.c.bf16 %v3159, %v3159
        %v3192 = vpack.c.bf16 %v3160, %v3160
        %v3193 = vpack.c.bf16 %v3161, %v3161
        %v3194 = vpack.c.bf16 %v3162, %v3162
        %v3195 = vpack.c.bf16 %v3163, %v3163
        %v3196 = vpack.c.bf16 %v3164, %v3164
        %v3197 = vpack.c.bf16 %v3165, %v3165
        %v3198 = vpack.c.bf16 %v3166, %v3166
        %v3199 = vpack.c.bf16 %v3167, %v3167
        %s3200 = scalar_lea.vmem [#allocation2], 16
        %3201 = vst [vmem:[%s3200 + $0x4] sm:$0xf] %v3168
        %3202 = vst [vmem:[%s3200 + $0x8] sm:$0xf] %v3169
        %3203 = vst [vmem:[%s3200 + $0x14] sm:$0xf] %v3170
        %3204 = vst [vmem:[%s3200 + $0x18] sm:$0xf] %v3171
        %3205 = vst [vmem:[%s3200 + $0x24] sm:$0xf] %v3172
        %3206 = vst [vmem:[%s3200 + $0x28] sm:$0xf] %v3173
        %3207 = vst [vmem:[%s3200 + $0x34] sm:$0xf] %v3174
        %3208 = vst [vmem:[%s3200 + $0x38] sm:$0xf] %v3175
        %3209 = vst [vmem:[%s3200 + $0x44] sm:$0xf] %v3176
        %3210 = vst [vmem:[%s3200 + $0x48] sm:$0xf] %v3177
        %3211 = vst [vmem:[%s3200 + $0x54] sm:$0xf] %v3178
        %3212 = vst [vmem:[%s3200 + $0x58] sm:$0xf] %v3179
        %3213 = vst [vmem:[%s3200 + $0x64] sm:$0xf] %v3180
        %3214 = vst [vmem:[%s3200 + $0x68] sm:$0xf] %v3181
        %3215 = vst [vmem:[%s3200 + $0x74] sm:$0xf] %v3182
        %3216 = vst [vmem:[%s3200 + $0x78] sm:$0xf] %v3183
        %3217 = vst [vmem:[%s3200 + $0x84] sm:$0xf] %v3184
        %3218 = vst [vmem:[%s3200 + $0x88] sm:$0xf] %v3185
        %3219 = vst [vmem:[%s3200 + $0x94] sm:$0xf] %v3186
        %3220 = vst [vmem:[%s3200 + $0x98] sm:$0xf] %v3187
        %3221 = vst [vmem:[%s3200 + $0xa4] sm:$0xf] %v3188
        %3222 = vst [vmem:[%s3200 + $0xa8] sm:$0xf] %v3189
        %3223 = vst [vmem:[%s3200 + $0xb4] sm:$0xf] %v3190
        %3224 = vst [vmem:[%s3200 + $0xb8] sm:$0xf] %v3191
        %3225 = vst [vmem:[%s3200 + $0xc4] sm:$0xf] %v3192
        %3226 = vst [vmem:[%s3200 + $0xc8] sm:$0xf] %v3193
        %3227 = vst [vmem:[%s3200 + $0xd4] sm:$0xf] %v3194
        %3228 = vst [vmem:[%s3200 + $0xd8] sm:$0xf] %v3195
        %3229 = vst [vmem:[%s3200 + $0xe4] sm:$0xf] %v3196
        %3230 = vst [vmem:[%s3200 + $0xe8] sm:$0xf] %v3197
        %3231 = vst [vmem:[%s3200 + $0xf4] sm:$0xf] %v3198
        %3232 = vst [vmem:[%s3200 + $0xf8] sm:$0xf] %v3199
        %v3233 = vld [vmem:[#allocation2] sm:$0xf]
        %v3234 = vld [vmem:[#allocation2 + $0x4] sm:$0xf]
        %v3235 = vld [vmem:[#allocation2 + $0x8] sm:$0xf]
        %v3236 = vld [vmem:[#allocation2 + $0xc] sm:$0x1]
        %v3237 = vld [vmem:[#allocation2 + $0x10] sm:$0xf]
        %v3238 = vld [vmem:[#allocation2 + $0x14] sm:$0xf]
        %v3239 = vld [vmem:[#allocation2 + $0x18] sm:$0xf]
        %v3240 = vld [vmem:[#allocation2 + $0x1c] sm:$0x1]
        %v3241 = vld [vmem:[#allocation2 + $0x20] sm:$0xf]
        %v3242 = vld [vmem:[#allocation2 + $0x24] sm:$0xf]
        %v3243 = vld [vmem:[#allocation2 + $0x28] sm:$0xf]
        %v3244 = vld [vmem:[#allocation2 + $0x2c] sm:$0x1]
        %v3245 = vld [vmem:[#allocation2 + $0x30] sm:$0xf]
        %v3246 = vld [vmem:[#allocation2 + $0x34] sm:$0xf]
        %v3247 = vld [vmem:[#allocation2 + $0x38] sm:$0xf]
        %v3248 = vld [vmem:[#allocation2 + $0x3c] sm:$0x1]
        %v3249 = vld [vmem:[#allocation2 + $0x40] sm:$0xf]
        %v3250 = vld [vmem:[#allocation2 + $0x44] sm:$0xf]
        %v3251 = vld [vmem:[#allocation2 + $0x48] sm:$0xf]
        %v3252 = vld [vmem:[#allocation2 + $0x4c] sm:$0x1]
        %v3253 = vld [vmem:[#allocation2 + $0x50] sm:$0xf]
        %v3254 = vld [vmem:[#allocation2 + $0x54] sm:$0xf]
        %v3255 = vld [vmem:[#allocation2 + $0x58] sm:$0xf]
        %v3256 = vld [vmem:[#allocation2 + $0x5c] sm:$0x1]
        %v3257 = vld [vmem:[#allocation2 + $0x60] sm:$0xf]
        %v3258 = vld [vmem:[#allocation2 + $0x64] sm:$0xf]
        %v3259 = vld [vmem:[#allocation2 + $0x68] sm:$0xf]
        %v3260 = vld [vmem:[#allocation2 + $0x6c] sm:$0x1]
        %v3261 = vld [vmem:[#allocation2 + $0x70] sm:$0xf]
        %v3262 = vld [vmem:[#allocation2 + $0x74] sm:$0xf]
        %v3263 = vld [vmem:[#allocation2 + $0x78] sm:$0xf]
        %v3264 = vld [vmem:[#allocation2 + $0x7c] sm:$0x1]
        %v3265 = vld [vmem:[#allocation2 + $0x80] sm:$0xf]
        %v3266 = vld [vmem:[#allocation2 + $0x84] sm:$0xf]
        %v3267 = vld [vmem:[#allocation2 + $0x88] sm:$0xf]
        %v3268 = vld [vmem:[#allocation2 + $0x8c] sm:$0x1]
        %v3269 = vld [vmem:[#allocation2 + $0x90] sm:$0xf]
        %v3270 = vld [vmem:[#allocation2 + $0x94] sm:$0xf]
        %v3271 = vld [vmem:[#allocation2 + $0x98] sm:$0xf]
        %v3272 = vld [vmem:[#allocation2 + $0x9c] sm:$0x1]
        %v3273 = vld [vmem:[#allocation2 + $0xa0] sm:$0xf]
        %v3274 = vld [vmem:[#allocation2 + $0xa4] sm:$0xf]
        %v3275 = vld [vmem:[#allocation2 + $0xa8] sm:$0xf]
        %v3276 = vld [vmem:[#allocation2 + $0xac] sm:$0x1]
        %v3277 = vld [vmem:[#allocation2 + $0xb0] sm:$0xf]
        %v3278 = vld [vmem:[#allocation2 + $0xb4] sm:$0xf]
        %v3279 = vld [vmem:[#allocation2 + $0xb8] sm:$0xf]
        %v3280 = vld [vmem:[#allocation2 + $0xbc] sm:$0x1]
        %v3281 = vld [vmem:[#allocation2 + $0xc0] sm:$0xf]
        %v3282 = vld [vmem:[#allocation2 + $0xc4] sm:$0xf]
        %v3283 = vld [vmem:[#allocation2 + $0xc8] sm:$0xf]
        %v3284 = vld [vmem:[#allocation2 + $0xcc] sm:$0x1]
        %v3285 = vld [vmem:[#allocation2 + $0xd0] sm:$0xf]
        %v3286 = vld [vmem:[#allocation2 + $0xd4] sm:$0xf]
        %v3287 = vld [vmem:[#allocation2 + $0xd8] sm:$0xf]
        %v3288 = vld [vmem:[#allocation2 + $0xdc] sm:$0x1]
        %v3289 = vld [vmem:[#allocation2 + $0xe0] sm:$0xf]
        %v3290 = vld [vmem:[#allocation2 + $0xe4] sm:$0xf]
        %v3291 = vld [vmem:[#allocation2 + $0xe8] sm:$0xf]
        %v3292 = vld [vmem:[#allocation2 + $0xec] sm:$0x1]
        %v3293 = vld [vmem:[#allocation2 + $0xf0] sm:$0xf]
        %v3294 = vld [vmem:[#allocation2 + $0xf4] sm:$0xf]
        %v3295 = vld [vmem:[#allocation2 + $0xf8] sm:$0xf]
        %v3296 = vld [vmem:[#allocation2 + $0xfc] sm:$0x1]
        %v3297 = vld [vmem:[#allocation2 + $0x100] sm:$0xf]
        %v3298 = vld [vmem:[#allocation2 + $0x104] sm:$0xf]
        %v3299 = vld [vmem:[#allocation2 + $0x108] sm:$0xf]
        %v3300 = vld [vmem:[#allocation2 + $0x10c] sm:$0x1]
        %v3301 = vld [vmem:[#allocation2 + $0x110] sm:$0xf]
        %v3302 = vld [vmem:[#allocation2 + $0x114] sm:$0xf]
        %v3303 = vld [vmem:[#allocation2 + $0x118] sm:$0xf]
        %v3304 = vld [vmem:[#allocation2 + $0x11c] sm:$0x1]
        %v3306 = vshrl.u32 %v3233, 16
        %v3308 = vrot.slane %v3306, 7
        %v3309 = vrot.slane %v3308, 4
        %v3311 = vshrl.u32 %v3234, 16
        %v3313 = vrot.slane %v3311, 7
        %v3314 = vshll.u32 %v3234, 16
        %v3316 = vor.u32 %v3313, %v3314
        %v3317 = vsel %vm587, %v3309, %v3316
        %v3318 = vrot.slane %v3313, 4
        %v3320 = vshrl.u32 %v3235, 16
        %v3322 = vrot.slane %v3320, 7
        %v3323 = vshll.u32 %v3235, 16
        %v3325 = vor.u32 %v3322, %v3323
        %v3326 = vsel %vm587, %v3318, %v3325
        %v3328 = vshrl.u32 %v3237, 16
        %v3330 = vrot.slane %v3328, 7
        %v3331 = vrot.slane %v3330, 4
        %v3333 = vshrl.u32 %v3238, 16
        %v3335 = vrot.slane %v3333, 7
        %v3336 = vshll.u32 %v3238, 16
        %v3338 = vor.u32 %v3335, %v3336
        %v3339 = vsel %vm587, %v3331, %v3338
        %v3340 = vrot.slane %v3335, 4
        %v3342 = vshrl.u32 %v3239, 16
        %v3344 = vrot.slane %v3342, 7
        %v3345 = vshll.u32 %v3239, 16
        %v3347 = vor.u32 %v3344, %v3345
        %v3348 = vsel %vm587, %v3340, %v3347
        %v3350 = vshrl.u32 %v3241, 16
        %v3352 = vrot.slane %v3350, 7
        %v3353 = vrot.slane %v3352, 4
        %v3355 = vshrl.u32 %v3242, 16
        %v3357 = vrot.slane %v3355, 7
        %v3358 = vshll.u32 %v3242, 16
        %v3360 = vor.u32 %v3357, %v3358
        %v3361 = vsel %vm587, %v3353, %v3360
        %v3362 = vrot.slane %v3357, 4
        %v3364 = vshrl.u32 %v3243, 16
        %v3366 = vrot.slane %v3364, 7
        %v3367 = vshll.u32 %v3243, 16
        %v3369 = vor.u32 %v3366, %v3367
        %v3370 = vsel %vm587, %v3362, %v3369
        %v3372 = vshrl.u32 %v3245, 16
        %v3374 = vrot.slane %v3372, 7
        %v3375 = vrot.slane %v3374, 4
        %v3377 = vshrl.u32 %v3246, 16
        %v3379 = vrot.slane %v3377, 7
        %v3380 = vshll.u32 %v3246, 16
        %v3382 = vor.u32 %v3379, %v3380
        %v3383 = vsel %vm587, %v3375, %v3382
        %v3384 = vrot.slane %v3379, 4
        %v3386 = vshrl.u32 %v3247, 16
        %v3388 = vrot.slane %v3386, 7
        %v3389 = vshll.u32 %v3247, 16
        %v3391 = vor.u32 %v3388, %v3389
        %v3392 = vsel %vm587, %v3384, %v3391
        %v3394 = vshrl.u32 %v3249, 16
        %v3396 = vrot.slane %v3394, 7
        %v3397 = vrot.slane %v3396, 4
        %v3399 = vshrl.u32 %v3250, 16
        %v3401 = vrot.slane %v3399, 7
        %v3402 = vshll.u32 %v3250, 16
        %v3404 = vor.u32 %v3401, %v3402
        %v3405 = vsel %vm587, %v3397, %v3404
        %v3406 = vrot.slane %v3401, 4
        %v3408 = vshrl.u32 %v3251, 16
        %v3410 = vrot.slane %v3408, 7
        %v3411 = vshll.u32 %v3251, 16
        %v3413 = vor.u32 %v3410, %v3411
        %v3414 = vsel %vm587, %v3406, %v3413
        %v3416 = vshrl.u32 %v3253, 16
        %v3418 = vrot.slane %v3416, 7
        %v3419 = vrot.slane %v3418, 4
        %v3421 = vshrl.u32 %v3254, 16
        %v3423 = vrot.slane %v3421, 7
        %v3424 = vshll.u32 %v3254, 16
        %v3426 = vor.u32 %v3423, %v3424
        %v3427 = vsel %vm587, %v3419, %v3426
        %v3428 = vrot.slane %v3423, 4
        %v3430 = vshrl.u32 %v3255, 16
        %v3432 = vrot.slane %v3430, 7
        %v3433 = vshll.u32 %v3255, 16
        %v3435 = vor.u32 %v3432, %v3433
        %v3436 = vsel %vm587, %v3428, %v3435
        %v3438 = vshrl.u32 %v3257, 16
        %v3440 = vrot.slane %v3438, 7
        %v3441 = vrot.slane %v3440, 4
        %v3443 = vshrl.u32 %v3258, 16
        %v3445 = vrot.slane %v3443, 7
        %v3446 = vshll.u32 %v3258, 16
        %v3448 = vor.u32 %v3445, %v3446
        %v3449 = vsel %vm587, %v3441, %v3448
        %v3450 = vrot.slane %v3445, 4
        %v3452 = vshrl.u32 %v3259, 16
        %v3454 = vrot.slane %v3452, 7
        %v3455 = vshll.u32 %v3259, 16
        %v3457 = vor.u32 %v3454, %v3455
        %v3458 = vsel %vm587, %v3450, %v3457
        %v3460 = vshrl.u32 %v3261, 16
        %v3462 = vrot.slane %v3460, 7
        %v3463 = vrot.slane %v3462, 4
        %v3465 = vshrl.u32 %v3262, 16
        %v3467 = vrot.slane %v3465, 7
        %v3468 = vshll.u32 %v3262, 16
        %v3470 = vor.u32 %v3467, %v3468
        %v3471 = vsel %vm587, %v3463, %v3470
        %v3472 = vrot.slane %v3467, 4
        %v3474 = vshrl.u32 %v3263, 16
        %v3476 = vrot.slane %v3474, 7
        %v3477 = vshll.u32 %v3263, 16
        %v3479 = vor.u32 %v3476, %v3477
        %v3480 = vsel %vm587, %v3472, %v3479
        %v3482 = vshrl.u32 %v3265, 16
        %v3484 = vrot.slane %v3482, 7
        %v3485 = vrot.slane %v3484, 4
        %v3487 = vshrl.u32 %v3266, 16
        %v3489 = vrot.slane %v3487, 7
        %v3490 = vshll.u32 %v3266, 16
        %v3492 = vor.u32 %v3489, %v3490
        %v3493 = vsel %vm587, %v3485, %v3492
        %v3494 = vrot.slane %v3489, 4
        %v3496 = vshrl.u32 %v3267, 16
        %v3498 = vrot.slane %v3496, 7
        %v3499 = vshll.u32 %v3267, 16
        %v3501 = vor.u32 %v3498, %v3499
        %v3502 = vsel %vm587, %v3494, %v3501
        %v3504 = vshrl.u32 %v3269, 16
        %v3506 = vrot.slane %v3504, 7
        %v3507 = vrot.slane %v3506, 4
        %v3509 = vshrl.u32 %v3270, 16
        %v3511 = vrot.slane %v3509, 7
        %v3512 = vshll.u32 %v3270, 16
        %v3514 = vor.u32 %v3511, %v3512
        %v3515 = vsel %vm587, %v3507, %v3514
        %v3516 = vrot.slane %v3511, 4
        %v3518 = vshrl.u32 %v3271, 16
        %v3520 = vrot.slane %v3518, 7
        %v3521 = vshll.u32 %v3271, 16
        %v3523 = vor.u32 %v3520, %v3521
        %v3524 = vsel %vm587, %v3516, %v3523
        %v3526 = vshrl.u32 %v3273, 16
        %v3528 = vrot.slane %v3526, 7
        %v3529 = vrot.slane %v3528, 4
        %v3531 = vshrl.u32 %v3274, 16
        %v3533 = vrot.slane %v3531, 7
        %v3534 = vshll.u32 %v3274, 16
        %v3536 = vor.u32 %v3533, %v3534
        %v3537 = vsel %vm587, %v3529, %v3536
        %v3538 = vrot.slane %v3533, 4
        %v3540 = vshrl.u32 %v3275, 16
        %v3542 = vrot.slane %v3540, 7
        %v3543 = vshll.u32 %v3275, 16
        %v3545 = vor.u32 %v3542, %v3543
        %v3546 = vsel %vm587, %v3538, %v3545
        %v3548 = vshrl.u32 %v3277, 16
        %v3550 = vrot.slane %v3548, 7
        %v3551 = vrot.slane %v3550, 4
        %v3553 = vshrl.u32 %v3278, 16
        %v3555 = vrot.slane %v3553, 7
        %v3556 = vshll.u32 %v3278, 16
        %v3558 = vor.u32 %v3555, %v3556
        %v3559 = vsel %vm587, %v3551, %v3558
        %v3560 = vrot.slane %v3555, 4
        %v3562 = vshrl.u32 %v3279, 16
        %v3564 = vrot.slane %v3562, 7
        %v3565 = vshll.u32 %v3279, 16
        %v3567 = vor.u32 %v3564, %v3565
        %v3568 = vsel %vm587, %v3560, %v3567
        %v3570 = vshrl.u32 %v3281, 16
        %v3572 = vrot.slane %v3570, 7
        %v3573 = vrot.slane %v3572, 4
        %v3575 = vshrl.u32 %v3282, 16
        %v3577 = vrot.slane %v3575, 7
        %v3578 = vshll.u32 %v3282, 16
        %v3580 = vor.u32 %v3577, %v3578
        %v3581 = vsel %vm587, %v3573, %v3580
        %v3582 = vrot.slane %v3577, 4
        %v3584 = vshrl.u32 %v3283, 16
        %v3586 = vrot.slane %v3584, 7
        %v3587 = vshll.u32 %v3283, 16
        %v3589 = vor.u32 %v3586, %v3587
        %v3590 = vsel %vm587, %v3582, %v3589
        %v3592 = vshrl.u32 %v3285, 16
        %v3594 = vrot.slane %v3592, 7
        %v3595 = vrot.slane %v3594, 4
        %v3597 = vshrl.u32 %v3286, 16
        %v3599 = vrot.slane %v3597, 7
        %v3600 = vshll.u32 %v3286, 16
        %v3602 = vor.u32 %v3599, %v3600
        %v3603 = vsel %vm587, %v3595, %v3602
        %v3604 = vrot.slane %v3599, 4
        %v3606 = vshrl.u32 %v3287, 16
        %v3608 = vrot.slane %v3606, 7
        %v3609 = vshll.u32 %v3287, 16
        %v3611 = vor.u32 %v3608, %v3609
        %v3612 = vsel %vm587, %v3604, %v3611
        %v3614 = vshrl.u32 %v3289, 16
        %v3616 = vrot.slane %v3614, 7
        %v3617 = vrot.slane %v3616, 4
        %v3619 = vshrl.u32 %v3290, 16
        %v3621 = vrot.slane %v3619, 7
        %v3622 = vshll.u32 %v3290, 16
        %v3624 = vor.u32 %v3621, %v3622
        %v3625 = vsel %vm587, %v3617, %v3624
        %v3626 = vrot.slane %v3621, 4
        %v3628 = vshrl.u32 %v3291, 16
        %v3630 = vrot.slane %v3628, 7
        %v3631 = vshll.u32 %v3291, 16
        %v3633 = vor.u32 %v3630, %v3631
        %v3634 = vsel %vm587, %v3626, %v3633
        %v3636 = vshrl.u32 %v3293, 16
        %v3638 = vrot.slane %v3636, 7
        %v3639 = vrot.slane %v3638, 4
        %v3641 = vshrl.u32 %v3294, 16
        %v3643 = vrot.slane %v3641, 7
        %v3644 = vshll.u32 %v3294, 16
        %v3646 = vor.u32 %v3643, %v3644
        %v3647 = vsel %vm587, %v3639, %v3646
        %v3648 = vrot.slane %v3643, 4
        %v3650 = vshrl.u32 %v3295, 16
        %v3652 = vrot.slane %v3650, 7
        %v3653 = vshll.u32 %v3295, 16
        %v3655 = vor.u32 %v3652, %v3653
        %v3656 = vsel %vm587, %v3648, %v3655
        %v3657 = vld [vmem:[#allocation4] sm:$0xf]
        %v3658 = vld [vmem:[#allocation4 + $0x4] sm:$0xf]
        %v3659 = vld [vmem:[#allocation4 + $0x8] sm:$0xf]
        %v3660 = vld [vmem:[#allocation4 + $0xc] sm:$0xf]
        %v3661 = vld [vmem:[#allocation4 + $0x10] sm:$0xf]
        %v3662 = vld [vmem:[#allocation4 + $0x14] sm:$0xf]
        %v3663 = vld [vmem:[#allocation4 + $0x18] sm:$0xf]
        %v3664 = vld [vmem:[#allocation4 + $0x1c] sm:$0xf]
        %v3665 = vld [vmem:[#allocation4 + $0x20] sm:$0xf]
        %v3666 = vld [vmem:[#allocation4 + $0x24] sm:$0xf]
        %v3667 = vld [vmem:[#allocation4 + $0x28] sm:$0xf]
        %v3668 = vld [vmem:[#allocation4 + $0x2c] sm:$0xf]
        %v3669 = vld [vmem:[#allocation4 + $0x30] sm:$0xf]
        %v3670 = vld [vmem:[#allocation4 + $0x34] sm:$0xf]
        %v3671 = vld [vmem:[#allocation4 + $0x38] sm:$0xf]
        %v3672 = vld [vmem:[#allocation4 + $0x3c] sm:$0xf]
        %s3673 = scalar_lea.vmem [#allocation4], 64
        %v3674 = vld [vmem:[%s3673] sm:$0xf]
        %v3675 = vld [vmem:[%s3673 + $0x4] sm:$0xf]
        %v3676 = vld [vmem:[%s3673 + $0x8] sm:$0xf]
        %v3677 = vld [vmem:[%s3673 + $0xc] sm:$0xf]
        %v3678 = vld [vmem:[%s3673 + $0x10] sm:$0xf]
        %v3679 = vld [vmem:[%s3673 + $0x14] sm:$0xf]
        %v3680 = vld [vmem:[%s3673 + $0x18] sm:$0xf]
        %v3681 = vld [vmem:[%s3673 + $0x1c] sm:$0xf]
        %v3682 = vld [vmem:[%s3673 + $0x20] sm:$0xf]
        %v3683 = vld [vmem:[%s3673 + $0x24] sm:$0xf]
        %v3684 = vld [vmem:[%s3673 + $0x28] sm:$0xf]
        %v3685 = vld [vmem:[%s3673 + $0x2c] sm:$0xf]
        %v3686 = vld [vmem:[%s3673 + $0x30] sm:$0xf]
        %v3687 = vld [vmem:[%s3673 + $0x34] sm:$0xf]
        %v3688 = vld [vmem:[%s3673 + $0x38] sm:$0xf]
        %v3689 = vld [vmem:[%s3673 + $0x3c] sm:$0xf]
        %v3722 = vunpack.c.l.b16 %v3234
        %v3723 = vunpack.c.l.b16 %v3235
        %v3724 = vunpack.c.l.b16 %v3238
        %v3725 = vunpack.c.l.b16 %v3239
        %v3726 = vunpack.c.l.b16 %v3242
        %v3727 = vunpack.c.l.b16 %v3243
        %v3728 = vunpack.c.l.b16 %v3246
        %v3729 = vunpack.c.l.b16 %v3247
        %v3730 = vunpack.c.l.b16 %v3250
        %v3731 = vunpack.c.l.b16 %v3251
        %v3732 = vunpack.c.l.b16 %v3254
        %v3733 = vunpack.c.l.b16 %v3255
        %v3734 = vunpack.c.l.b16 %v3258
        %v3735 = vunpack.c.l.b16 %v3259
        %v3736 = vunpack.c.l.b16 %v3262
        %v3737 = vunpack.c.l.b16 %v3263
        %v3738 = vunpack.c.l.b16 %v3266
        %v3739 = vunpack.c.l.b16 %v3267
        %v3740 = vunpack.c.l.b16 %v3270
        %v3741 = vunpack.c.l.b16 %v3271
        %v3742 = vunpack.c.l.b16 %v3274
        %v3743 = vunpack.c.l.b16 %v3275
        %v3744 = vunpack.c.l.b16 %v3278
        %v3745 = vunpack.c.l.b16 %v3279
        %v3746 = vunpack.c.l.b16 %v3282
        %v3747 = vunpack.c.l.b16 %v3283
        %v3748 = vunpack.c.l.b16 %v3286
        %v3749 = vunpack.c.l.b16 %v3287
        %v3750 = vunpack.c.l.b16 %v3290
        %v3751 = vunpack.c.l.b16 %v3291
        %v3752 = vunpack.c.l.b16 %v3294
        %v3753 = vunpack.c.l.b16 %v3295
        %v3754 = vpack.c.b16 %v3723, %v3722
        %v3755 = vpack.c.b16 %v3725, %v3724
        %v3756 = vpack.c.b16 %v3727, %v3726
        %v3757 = vpack.c.b16 %v3729, %v3728
        %v3758 = vpack.c.b16 %v3731, %v3730
        %v3759 = vpack.c.b16 %v3733, %v3732
        %v3760 = vpack.c.b16 %v3735, %v3734
        %v3761 = vpack.c.b16 %v3737, %v3736
        %v3762 = vpack.c.b16 %v3739, %v3738
        %v3763 = vpack.c.b16 %v3741, %v3740
        %v3764 = vpack.c.b16 %v3743, %v3742
        %v3765 = vpack.c.b16 %v3745, %v3744
        %v3766 = vpack.c.b16 %v3747, %v3746
        %v3767 = vpack.c.b16 %v3749, %v3748
        %v3768 = vpack.c.b16 %v3751, %v3750
        %v3769 = vpack.c.b16 %v3753, %v3752
        %v3802 = vunpack.c.l.b16 %v3674
        %v3803 = vunpack.c.l.b16 %v3675
        %v3804 = vunpack.c.l.b16 %v3676
        %v3805 = vunpack.c.l.b16 %v3677
        %v3806 = vunpack.c.l.b16 %v3678
        %v3807 = vunpack.c.l.b16 %v3679
        %v3808 = vunpack.c.l.b16 %v3680
        %v3809 = vunpack.c.l.b16 %v3681
        %v3810 = vunpack.c.l.b16 %v3682
        %v3811 = vunpack.c.l.b16 %v3683
        %v3812 = vunpack.c.l.b16 %v3684
        %v3813 = vunpack.c.l.b16 %v3685
        %v3814 = vunpack.c.l.b16 %v3686
        %v3815 = vunpack.c.l.b16 %v3687
        %v3816 = vunpack.c.l.b16 %v3688
        %v3817 = vunpack.c.l.b16 %v3689
        %v3818 = vpack.c.b16 %v3803, %v3802
        %v3819 = vpack.c.b16 %v3805, %v3804
        %v3820 = vpack.c.b16 %v3807, %v3806
        %v3821 = vpack.c.b16 %v3809, %v3808
        %v3822 = vpack.c.b16 %v3811, %v3810
        %v3823 = vpack.c.b16 %v3813, %v3812
        %v3824 = vpack.c.b16 %v3815, %v3814
        %v3825 = vpack.c.b16 %v3817, %v3816
        %3834 = vmatpush.bf16.msra.mxu0 %v3825
        %3835 = vmatpush.bf16.msra.mxu0 %v3824
        %3836 = vmatpush.bf16.msra.mxu0 %v3823
        %3837 = vmatpush.bf16.msra.mxu0 %v3822
        %3838 = vmatpush.bf16.msra.mxu0 %v3821
        %3839 = vmatpush.bf16.msra.mxu0 %v3820
        %3840 = vmatpush.bf16.msra.mxu0 %v3819
        %3841 = vmatpush.bf16.msra.mxu0 %v3818
        %3842 = vmatmul.bf16.gmra.mxu0 %v3754
        %v3843 = vpop.f32.mrf.mxu0
        %v3844 = vadd.f32 0.0, %v3843
        %v3845 = vpop.f32.mrf.mxu0
        %v3846 = vadd.f32 0.0, %v3845
        %3847 = vmatmul.bf16.gmra.mxu0 %v3755
        %v3848 = vpop.f32.mrf.mxu0
        %v3849 = vadd.f32 0.0, %v3848
        %v3850 = vpop.f32.mrf.mxu0
        %v3851 = vadd.f32 0.0, %v3850
        %3852 = vmatmul.bf16.gmra.mxu0 %v3756
        %v3853 = vpop.f32.mrf.mxu0
        %v3854 = vadd.f32 0.0, %v3853
        %v3855 = vpop.f32.mrf.mxu0
        %v3856 = vadd.f32 0.0, %v3855
        %3857 = vmatmul.bf16.gmra.mxu0 %v3757
        %v3858 = vpop.f32.mrf.mxu0
        %v3859 = vadd.f32 0.0, %v3858
        %v3860 = vpop.f32.mrf.mxu0
        %v3861 = vadd.f32 0.0, %v3860
        %3862 = vmatmul.bf16.gmra.mxu0 %v3758
        %v3863 = vpop.f32.mrf.mxu0
        %v3864 = vadd.f32 0.0, %v3863
        %v3865 = vpop.f32.mrf.mxu0
        %v3866 = vadd.f32 0.0, %v3865
        %3867 = vmatmul.bf16.gmra.mxu0 %v3759
        %v3868 = vpop.f32.mrf.mxu0
        %v3869 = vadd.f32 0.0, %v3868
        %v3870 = vpop.f32.mrf.mxu0
        %v3871 = vadd.f32 0.0, %v3870
        %3872 = vmatmul.bf16.gmra.mxu0 %v3760
        %v3873 = vpop.f32.mrf.mxu0
        %v3874 = vadd.f32 0.0, %v3873
        %v3875 = vpop.f32.mrf.mxu0
        %v3876 = vadd.f32 0.0, %v3875
        %3877 = vmatmul.bf16.gmra.mxu0 %v3761
        %v3878 = vpop.f32.mrf.mxu0
        %v3879 = vadd.f32 0.0, %v3878
        %v3880 = vpop.f32.mrf.mxu0
        %v3881 = vadd.f32 0.0, %v3880
        %3882 = vmatmul.bf16.gmra.mxu0 %v3762
        %v3883 = vpop.f32.mrf.mxu0
        %v3884 = vadd.f32 0.0, %v3883
        %v3885 = vpop.f32.mrf.mxu0
        %v3886 = vadd.f32 0.0, %v3885
        %3887 = vmatmul.bf16.gmra.mxu0 %v3763
        %v3888 = vpop.f32.mrf.mxu0
        %v3889 = vadd.f32 0.0, %v3888
        %v3890 = vpop.f32.mrf.mxu0
        %v3891 = vadd.f32 0.0, %v3890
        %3892 = vmatmul.bf16.gmra.mxu0 %v3764
        %v3893 = vpop.f32.mrf.mxu0
        %v3894 = vadd.f32 0.0, %v3893
        %v3895 = vpop.f32.mrf.mxu0
        %v3896 = vadd.f32 0.0, %v3895
        %3897 = vmatmul.bf16.gmra.mxu0 %v3765
        %v3898 = vpop.f32.mrf.mxu0
        %v3899 = vadd.f32 0.0, %v3898
        %v3900 = vpop.f32.mrf.mxu0
        %v3901 = vadd.f32 0.0, %v3900
        %3902 = vmatmul.bf16.gmra.mxu0 %v3766
        %v3903 = vpop.f32.mrf.mxu0
        %v3904 = vadd.f32 0.0, %v3903
        %v3905 = vpop.f32.mrf.mxu0
        %v3906 = vadd.f32 0.0, %v3905
        %3907 = vmatmul.bf16.gmra.mxu0 %v3767
        %v3908 = vpop.f32.mrf.mxu0
        %v3909 = vadd.f32 0.0, %v3908
        %v3910 = vpop.f32.mrf.mxu0
        %v3911 = vadd.f32 0.0, %v3910
        %3912 = vmatmul.bf16.gmra.mxu0 %v3768
        %v3913 = vpop.f32.mrf.mxu0
        %v3914 = vadd.f32 0.0, %v3913
        %v3915 = vpop.f32.mrf.mxu0
        %v3916 = vadd.f32 0.0, %v3915
        %3917 = vmatmul.bf16.gmra.mxu0 %v3769
        %v3918 = vpop.f32.mrf.mxu0
        %v3919 = vadd.f32 0.0, %v3918
        %v3920 = vpop.f32.mrf.mxu0
        %v3921 = vadd.f32 0.0, %v3920
        %3922 = vdwg.mxu0
        %v3923 = vunpack.c.l.b16 %v3317
        %v3924 = vunpack.c.l.b16 %v3326
        %v3925 = vunpack.c.l.b16 %v3339
        %v3926 = vunpack.c.l.b16 %v3348
        %v3927 = vunpack.c.l.b16 %v3361
        %v3928 = vunpack.c.l.b16 %v3370
        %v3929 = vunpack.c.l.b16 %v3383
        %v3930 = vunpack.c.l.b16 %v3392
        %v3931 = vunpack.c.l.b16 %v3405
        %v3932 = vunpack.c.l.b16 %v3414
        %v3933 = vunpack.c.l.b16 %v3427
        %v3934 = vunpack.c.l.b16 %v3436
        %v3935 = vunpack.c.l.b16 %v3449
        %v3936 = vunpack.c.l.b16 %v3458
        %v3937 = vunpack.c.l.b16 %v3471
        %v3938 = vunpack.c.l.b16 %v3480
        %v3939 = vunpack.c.l.b16 %v3493
        %v3940 = vunpack.c.l.b16 %v3502
        %v3941 = vunpack.c.l.b16 %v3515
        %v3942 = vunpack.c.l.b16 %v3524
        %v3943 = vunpack.c.l.b16 %v3537
        %v3944 = vunpack.c.l.b16 %v3546
        %v3945 = vunpack.c.l.b16 %v3559
        %v3946 = vunpack.c.l.b16 %v3568
        %v3947 = vunpack.c.l.b16 %v3581
        %v3948 = vunpack.c.l.b16 %v3590
        %v3949 = vunpack.c.l.b16 %v3603
        %v3950 = vunpack.c.l.b16 %v3612
        %v3951 = vunpack.c.l.b16 %v3625
        %v3952 = vunpack.c.l.b16 %v3634
        %v3953 = vunpack.c.l.b16 %v3647
        %v3954 = vunpack.c.l.b16 %v3656
        %v3955 = vpack.c.b16 %v3924, %v3923
        %v3956 = vpack.c.b16 %v3926, %v3925
        %v3957 = vpack.c.b16 %v3928, %v3927
        %v3958 = vpack.c.b16 %v3930, %v3929
        %v3959 = vpack.c.b16 %v3932, %v3931
        %v3960 = vpack.c.b16 %v3934, %v3933
        %v3961 = vpack.c.b16 %v3936, %v3935
        %v3962 = vpack.c.b16 %v3938, %v3937
        %v3963 = vpack.c.b16 %v3940, %v3939
        %v3964 = vpack.c.b16 %v3942, %v3941
        %v3965 = vpack.c.b16 %v3944, %v3943
        %v3966 = vpack.c.b16 %v3946, %v3945
        %v3967 = vpack.c.b16 %v3948, %v3947
        %v3968 = vpack.c.b16 %v3950, %v3949
        %v3969 = vpack.c.b16 %v3952, %v3951
        %v3970 = vpack.c.b16 %v3954, %v3953
        %v4003 = vunpack.c.l.b16 %v3657
        %v4004 = vunpack.c.l.b16 %v3658
        %v4005 = vunpack.c.l.b16 %v3659
        %v4006 = vunpack.c.l.b16 %v3660
        %v4007 = vunpack.c.l.b16 %v3661
        %v4008 = vunpack.c.l.b16 %v3662
        %v4009 = vunpack.c.l.b16 %v3663
        %v4010 = vunpack.c.l.b16 %v3664
        %v4011 = vunpack.c.l.b16 %v3665
        %v4012 = vunpack.c.l.b16 %v3666
        %v4013 = vunpack.c.l.b16 %v3667
        %v4014 = vunpack.c.l.b16 %v3668
        %v4015 = vunpack.c.l.b16 %v3669
        %v4016 = vunpack.c.l.b16 %v3670
        %v4017 = vunpack.c.l.b16 %v3671
        %v4018 = vunpack.c.l.b16 %v3672
        %v4019 = vpack.c.b16 %v4004, %v4003
        %v4020 = vpack.c.b16 %v4006, %v4005
        %v4021 = vpack.c.b16 %v4008, %v4007
        %v4022 = vpack.c.b16 %v4010, %v4009
        %v4023 = vpack.c.b16 %v4012, %v4011
        %v4024 = vpack.c.b16 %v4014, %v4013
        %v4025 = vpack.c.b16 %v4016, %v4015
        %v4026 = vpack.c.b16 %v4018, %v4017
        %4035 = vmatpush.bf16.msra.mxu0 %v4026
        %4036 = vmatpush.bf16.msra.mxu0 %v4025
        %4037 = vmatpush.bf16.msra.mxu0 %v4024
        %4038 = vmatpush.bf16.msra.mxu0 %v4023
        %4039 = vmatpush.bf16.msra.mxu0 %v4022
        %4040 = vmatpush.bf16.msra.mxu0 %v4021
        %4041 = vmatpush.bf16.msra.mxu0 %v4020
        %4042 = vmatpush.bf16.msra.mxu0 %v4019
        %4043 = vmatmul.bf16.gmra.mxu0 %v3955
        %v4044 = vpop.f32.mrf.mxu0
        %v4045 = vadd.f32 %v3844, %v4044
        %v4046 = vpop.f32.mrf.mxu0
        %v4047 = vadd.f32 %v3846, %v4046
        %4048 = vmatmul.bf16.gmra.mxu0 %v3956
        %v4049 = vpop.f32.mrf.mxu0
        %v4050 = vadd.f32 %v3849, %v4049
        %v4051 = vpop.f32.mrf.mxu0
        %v4052 = vadd.f32 %v3851, %v4051
        %4053 = vmatmul.bf16.gmra.mxu0 %v3957
        %v4054 = vpop.f32.mrf.mxu0
        %v4055 = vadd.f32 %v3854, %v4054
        %v4056 = vpop.f32.mrf.mxu0
        %v4057 = vadd.f32 %v3856, %v4056
        %4058 = vmatmul.bf16.gmra.mxu0 %v3958
        %v4059 = vpop.f32.mrf.mxu0
        %v4060 = vadd.f32 %v3859, %v4059
        %v4061 = vpop.f32.mrf.mxu0
        %v4062 = vadd.f32 %v3861, %v4061
        %4063 = vmatmul.bf16.gmra.mxu0 %v3959
        %v4064 = vpop.f32.mrf.mxu0
        %v4065 = vadd.f32 %v3864, %v4064
        %v4066 = vpop.f32.mrf.mxu0
        %v4067 = vadd.f32 %v3866, %v4066
        %4068 = vmatmul.bf16.gmra.mxu0 %v3960
        %v4069 = vpop.f32.mrf.mxu0
        %v4070 = vadd.f32 %v3869, %v4069
        %v4071 = vpop.f32.mrf.mxu0
        %v4072 = vadd.f32 %v3871, %v4071
        %4073 = vmatmul.bf16.gmra.mxu0 %v3961
        %v4074 = vpop.f32.mrf.mxu0
        %v4075 = vadd.f32 %v3874, %v4074
        %v4076 = vpop.f32.mrf.mxu0
        %v4077 = vadd.f32 %v3876, %v4076
        %4078 = vmatmul.bf16.gmra.mxu0 %v3962
        %v4079 = vpop.f32.mrf.mxu0
        %v4080 = vadd.f32 %v3879, %v4079
        %v4081 = vpop.f32.mrf.mxu0
        %v4082 = vadd.f32 %v3881, %v4081
        %4083 = vmatmul.bf16.gmra.mxu0 %v3963
        %v4084 = vpop.f32.mrf.mxu0
        %v4085 = vadd.f32 %v3884, %v4084
        %v4086 = vpop.f32.mrf.mxu0
        %v4087 = vadd.f32 %v3886, %v4086
        %4088 = vmatmul.bf16.gmra.mxu0 %v3964
        %v4089 = vpop.f32.mrf.mxu0
        %v4090 = vadd.f32 %v3889, %v4089
        %v4091 = vpop.f32.mrf.mxu0
        %v4092 = vadd.f32 %v3891, %v4091
        %4093 = vmatmul.bf16.gmra.mxu0 %v3965
        %v4094 = vpop.f32.mrf.mxu0
        %v4095 = vadd.f32 %v3894, %v4094
        %v4096 = vpop.f32.mrf.mxu0
        %v4097 = vadd.f32 %v3896, %v4096
        %4098 = vmatmul.bf16.gmra.mxu0 %v3966
        %v4099 = vpop.f32.mrf.mxu0
        %v4100 = vadd.f32 %v3899, %v4099
        %v4101 = vpop.f32.mrf.mxu0
        %v4102 = vadd.f32 %v3901, %v4101
        %4103 = vmatmul.bf16.gmra.mxu0 %v3967
        %v4104 = vpop.f32.mrf.mxu0
        %v4105 = vadd.f32 %v3904, %v4104
        %v4106 = vpop.f32.mrf.mxu0
        %v4107 = vadd.f32 %v3906, %v4106
        %4108 = vmatmul.bf16.gmra.mxu0 %v3968
        %v4109 = vpop.f32.mrf.mxu0
        %v4110 = vadd.f32 %v3909, %v4109
        %v4111 = vpop.f32.mrf.mxu0
        %v4112 = vadd.f32 %v3911, %v4111
        %4113 = vmatmul.bf16.gmra.mxu0 %v3969
        %v4114 = vpop.f32.mrf.mxu0
        %v4115 = vadd.f32 %v3914, %v4114
        %v4116 = vpop.f32.mrf.mxu0
        %v4117 = vadd.f32 %v3916, %v4116
        %4118 = vmatmul.bf16.gmra.mxu0 %v3970
        %v4119 = vpop.f32.mrf.mxu0
        %v4120 = vadd.f32 %v3919, %v4119
        %v4121 = vpop.f32.mrf.mxu0
        %v4122 = vadd.f32 %v3921, %v4121
        %4123 = vdwg.mxu0
        %v4124 = vrot.slane %v3311, 4
        %v4125 = vrot.slane %v3314, 5
        %v4126 = vor.u32 %v4124, %v4125
        %v4127 = vrot.slane %v4126, 4
        %v4128 = vrot.slane %v3323, 5
        %v4129 = vsel %vm1409, %v4127, %v4128
        %v4130 = vrot.slane %v3320, 4
        %v4131 = vor.u32 %v4130, %v4128
        %v4132 = vrot.slane %v4131, 4
        %v4134 = vshll.u32 %v3236, 16
        %v4136 = vrot.slane %v4134, 5
        %v4137 = vsel %vm1409, %v4132, %v4136
        %v4138 = vrot.slane %v3333, 4
        %v4139 = vrot.slane %v3336, 5
        %v4140 = vor.u32 %v4138, %v4139
        %v4141 = vrot.slane %v4140, 4
        %v4142 = vrot.slane %v3345, 5
        %v4143 = vsel %vm1409, %v4141, %v4142
        %v4144 = vrot.slane %v3342, 4
        %v4145 = vor.u32 %v4144, %v4142
        %v4146 = vrot.slane %v4145, 4
        %v4148 = vshll.u32 %v3240, 16
        %v4150 = vrot.slane %v4148, 5
        %v4151 = vsel %vm1409, %v4146, %v4150
        %v4152 = vrot.slane %v3355, 4
        %v4153 = vrot.slane %v3358, 5
        %v4154 = vor.u32 %v4152, %v4153
        %v4155 = vrot.slane %v4154, 4
        %v4156 = vrot.slane %v3367, 5
        %v4157 = vsel %vm1409, %v4155, %v4156
        %v4158 = vrot.slane %v3364, 4
        %v4159 = vor.u32 %v4158, %v4156
        %v4160 = vrot.slane %v4159, 4
        %v4162 = vshll.u32 %v3244, 16
        %v4164 = vrot.slane %v4162, 5
        %v4165 = vsel %vm1409, %v4160, %v4164
        %v4166 = vrot.slane %v3377, 4
        %v4167 = vrot.slane %v3380, 5
        %v4168 = vor.u32 %v4166, %v4167
        %v4169 = vrot.slane %v4168, 4
        %v4170 = vrot.slane %v3389, 5
        %v4171 = vsel %vm1409, %v4169, %v4170
        %v4172 = vrot.slane %v3386, 4
        %v4173 = vor.u32 %v4172, %v4170
        %v4174 = vrot.slane %v4173, 4
        %v4176 = vshll.u32 %v3248, 16
        %v4178 = vrot.slane %v4176, 5
        %v4179 = vsel %vm1409, %v4174, %v4178
        %v4180 = vrot.slane %v3399, 4
        %v4181 = vrot.slane %v3402, 5
        %v4182 = vor.u32 %v4180, %v4181
        %v4183 = vrot.slane %v4182, 4
        %v4184 = vrot.slane %v3411, 5
        %v4185 = vsel %vm1409, %v4183, %v4184
        %v4186 = vrot.slane %v3408, 4
        %v4187 = vor.u32 %v4186, %v4184
        %v4188 = vrot.slane %v4187, 4
        %v4190 = vshll.u32 %v3252, 16
        %v4192 = vrot.slane %v4190, 5
        %v4193 = vsel %vm1409, %v4188, %v4192
        %v4194 = vrot.slane %v3421, 4
        %v4195 = vrot.slane %v3424, 5
        %v4196 = vor.u32 %v4194, %v4195
        %v4197 = vrot.slane %v4196, 4
        %v4198 = vrot.slane %v3433, 5
        %v4199 = vsel %vm1409, %v4197, %v4198
        %v4200 = vrot.slane %v3430, 4
        %v4201 = vor.u32 %v4200, %v4198
        %v4202 = vrot.slane %v4201, 4
        %v4204 = vshll.u32 %v3256, 16
        %v4206 = vrot.slane %v4204, 5
        %v4207 = vsel %vm1409, %v4202, %v4206
        %v4208 = vrot.slane %v3443, 4
        %v4209 = vrot.slane %v3446, 5
        %v4210 = vor.u32 %v4208, %v4209
        %v4211 = vrot.slane %v4210, 4
        %v4212 = vrot.slane %v3455, 5
        %v4213 = vsel %vm1409, %v4211, %v4212
        %v4214 = vrot.slane %v3452, 4
        %v4215 = vor.u32 %v4214, %v4212
        %v4216 = vrot.slane %v4215, 4
        %v4218 = vshll.u32 %v3260, 16
        %v4220 = vrot.slane %v4218, 5
        %v4221 = vsel %vm1409, %v4216, %v4220
        %v4222 = vrot.slane %v3465, 4
        %v4223 = vrot.slane %v3468, 5
        %v4224 = vor.u32 %v4222, %v4223
        %v4225 = vrot.slane %v4224, 4
        %v4226 = vrot.slane %v3477, 5
        %v4227 = vsel %vm1409, %v4225, %v4226
        %v4228 = vrot.slane %v3474, 4
        %v4229 = vor.u32 %v4228, %v4226
        %v4230 = vrot.slane %v4229, 4
        %v4232 = vshll.u32 %v3264, 16
        %v4234 = vrot.slane %v4232, 5
        %v4235 = vsel %vm1409, %v4230, %v4234
        %v4236 = vrot.slane %v3487, 4
        %v4237 = vrot.slane %v3490, 5
        %v4238 = vor.u32 %v4236, %v4237
        %v4239 = vrot.slane %v4238, 4
        %v4240 = vrot.slane %v3499, 5
        %v4241 = vsel %vm1409, %v4239, %v4240
        %v4242 = vrot.slane %v3496, 4
        %v4243 = vor.u32 %v4242, %v4240
        %v4244 = vrot.slane %v4243, 4
        %v4246 = vshll.u32 %v3268, 16
        %v4248 = vrot.slane %v4246, 5
        %v4249 = vsel %vm1409, %v4244, %v4248
        %v4250 = vrot.slane %v3509, 4
        %v4251 = vrot.slane %v3512, 5
        %v4252 = vor.u32 %v4250, %v4251
        %v4253 = vrot.slane %v4252, 4
        %v4254 = vrot.slane %v3521, 5
        %v4255 = vsel %vm1409, %v4253, %v4254
        %v4256 = vrot.slane %v3518, 4
        %v4257 = vor.u32 %v4256, %v4254
        %v4258 = vrot.slane %v4257, 4
        %v4260 = vshll.u32 %v3272, 16
        %v4262 = vrot.slane %v4260, 5
        %v4263 = vsel %vm1409, %v4258, %v4262
        %v4264 = vrot.slane %v3531, 4
        %v4265 = vrot.slane %v3534, 5
        %v4266 = vor.u32 %v4264, %v4265
        %v4267 = vrot.slane %v4266, 4
        %v4268 = vrot.slane %v3543, 5
        %v4269 = vsel %vm1409, %v4267, %v4268
        %v4270 = vrot.slane %v3540, 4
        %v4271 = vor.u32 %v4270, %v4268
        %v4272 = vrot.slane %v4271, 4
        %v4274 = vshll.u32 %v3276, 16
        %v4276 = vrot.slane %v4274, 5
        %v4277 = vsel %vm1409, %v4272, %v4276
        %v4278 = vrot.slane %v3553, 4
        %v4279 = vrot.slane %v3556, 5
        %v4280 = vor.u32 %v4278, %v4279
        %v4281 = vrot.slane %v4280, 4
        %v4282 = vrot.slane %v3565, 5
        %v4283 = vsel %vm1409, %v4281, %v4282
        %v4284 = vrot.slane %v3562, 4
        %v4285 = vor.u32 %v4284, %v4282
        %v4286 = vrot.slane %v4285, 4
        %v4288 = vshll.u32 %v3280, 16
        %v4290 = vrot.slane %v4288, 5
        %v4291 = vsel %vm1409, %v4286, %v4290
        %v4292 = vrot.slane %v3575, 4
        %v4293 = vrot.slane %v3578, 5
        %v4294 = vor.u32 %v4292, %v4293
        %v4295 = vrot.slane %v4294, 4
        %v4296 = vrot.slane %v3587, 5
        %v4297 = vsel %vm1409, %v4295, %v4296
        %v4298 = vrot.slane %v3584, 4
        %v4299 = vor.u32 %v4298, %v4296
        %v4300 = vrot.slane %v4299, 4
        %v4302 = vshll.u32 %v3284, 16
        %v4304 = vrot.slane %v4302, 5
        %v4305 = vsel %vm1409, %v4300, %v4304
        %v4306 = vrot.slane %v3597, 4
        %v4307 = vrot.slane %v3600, 5
        %v4308 = vor.u32 %v4306, %v4307
        %v4309 = vrot.slane %v4308, 4
        %v4310 = vrot.slane %v3609, 5
        %v4311 = vsel %vm1409, %v4309, %v4310
        %v4312 = vrot.slane %v3606, 4
        %v4313 = vor.u32 %v4312, %v4310
        %v4314 = vrot.slane %v4313, 4
        %v4316 = vshll.u32 %v3288, 16
        %v4318 = vrot.slane %v4316, 5
        %v4319 = vsel %vm1409, %v4314, %v4318
        %v4320 = vrot.slane %v3619, 4
        %v4321 = vrot.slane %v3622, 5
        %v4322 = vor.u32 %v4320, %v4321
        %v4323 = vrot.slane %v4322, 4
        %v4324 = vrot.slane %v3631, 5
        %v4325 = vsel %vm1409, %v4323, %v4324
        %v4326 = vrot.slane %v3628, 4
        %v4327 = vor.u32 %v4326, %v4324
        %v4328 = vrot.slane %v4327, 4
        %v4330 = vshll.u32 %v3292, 16
        %v4332 = vrot.slane %v4330, 5
        %v4333 = vsel %vm1409, %v4328, %v4332
        %v4334 = vrot.slane %v3641, 4
        %v4335 = vrot.slane %v3644, 5
        %v4336 = vor.u32 %v4334, %v4335
        %v4337 = vrot.slane %v4336, 4
        %v4338 = vrot.slane %v3653, 5
        %v4339 = vsel %vm1409, %v4337, %v4338
        %v4340 = vrot.slane %v3650, 4
        %v4341 = vor.u32 %v4340, %v4338
        %v4342 = vrot.slane %v4341, 4
        %v4344 = vshll.u32 %v3296, 16
        %v4346 = vrot.slane %v4344, 5
        %v4347 = vsel %vm1409, %v4342, %v4346
        %s4348 = scalar_lea.vmem [#allocation4], 128
        %v4349 = vld [vmem:[%s4348] sm:$0xf]
        %v4350 = vld [vmem:[%s4348 + $0x4] sm:$0xf]
        %v4351 = vld [vmem:[%s4348 + $0x8] sm:$0xf]
        %v4352 = vld [vmem:[%s4348 + $0xc] sm:$0xf]
        %v4353 = vld [vmem:[%s4348 + $0x10] sm:$0xf]
        %v4354 = vld [vmem:[%s4348 + $0x14] sm:$0xf]
        %v4355 = vld [vmem:[%s4348 + $0x18] sm:$0xf]
        %v4356 = vld [vmem:[%s4348 + $0x1c] sm:$0xf]
        %v4357 = vld [vmem:[%s4348 + $0x20] sm:$0xf]
        %v4358 = vld [vmem:[%s4348 + $0x24] sm:$0xf]
        %v4359 = vld [vmem:[%s4348 + $0x28] sm:$0xf]
        %v4360 = vld [vmem:[%s4348 + $0x2c] sm:$0xf]
        %v4361 = vld [vmem:[%s4348 + $0x30] sm:$0xf]
        %v4362 = vld [vmem:[%s4348 + $0x34] sm:$0xf]
        %v4363 = vld [vmem:[%s4348 + $0x38] sm:$0xf]
        %v4364 = vld [vmem:[%s4348 + $0x3c] sm:$0xf]
        %v4365 = vunpack.c.l.b16 %v4129
        %v4366 = vunpack.c.l.b16 %v4137
        %v4367 = vunpack.c.l.b16 %v4143
        %v4368 = vunpack.c.l.b16 %v4151
        %v4369 = vunpack.c.l.b16 %v4157
        %v4370 = vunpack.c.l.b16 %v4165
        %v4371 = vunpack.c.l.b16 %v4171
        %v4372 = vunpack.c.l.b16 %v4179
        %v4373 = vunpack.c.l.b16 %v4185
        %v4374 = vunpack.c.l.b16 %v4193
        %v4375 = vunpack.c.l.b16 %v4199
        %v4376 = vunpack.c.l.b16 %v4207
        %v4377 = vunpack.c.l.b16 %v4213
        %v4378 = vunpack.c.l.b16 %v4221
        %v4379 = vunpack.c.l.b16 %v4227
        %v4380 = vunpack.c.l.b16 %v4235
        %v4381 = vunpack.c.l.b16 %v4241
        %v4382 = vunpack.c.l.b16 %v4249
        %v4383 = vunpack.c.l.b16 %v4255
        %v4384 = vunpack.c.l.b16 %v4263
        %v4385 = vunpack.c.l.b16 %v4269
        %v4386 = vunpack.c.l.b16 %v4277
        %v4387 = vunpack.c.l.b16 %v4283
        %v4388 = vunpack.c.l.b16 %v4291
        %v4389 = vunpack.c.l.b16 %v4297
        %v4390 = vunpack.c.l.b16 %v4305
        %v4391 = vunpack.c.l.b16 %v4311
        %v4392 = vunpack.c.l.b16 %v4319
        %v4393 = vunpack.c.l.b16 %v4325
        %v4394 = vunpack.c.l.b16 %v4333
        %v4395 = vunpack.c.l.b16 %v4339
        %v4396 = vunpack.c.l.b16 %v4347
        %v4397 = vpack.c.b16 %v4366, %v4365
        %v4398 = vpack.c.b16 %v4368, %v4367
        %v4399 = vpack.c.b16 %v4370, %v4369
        %v4400 = vpack.c.b16 %v4372, %v4371
        %v4401 = vpack.c.b16 %v4374, %v4373
        %v4402 = vpack.c.b16 %v4376, %v4375
        %v4403 = vpack.c.b16 %v4378, %v4377
        %v4404 = vpack.c.b16 %v4380, %v4379
        %v4405 = vpack.c.b16 %v4382, %v4381
        %v4406 = vpack.c.b16 %v4384, %v4383
        %v4407 = vpack.c.b16 %v4386, %v4385
        %v4408 = vpack.c.b16 %v4388, %v4387
        %v4409 = vpack.c.b16 %v4390, %v4389
        %v4410 = vpack.c.b16 %v4392, %v4391
        %v4411 = vpack.c.b16 %v4394, %v4393
        %v4412 = vpack.c.b16 %v4396, %v4395
        %v4445 = vunpack.c.l.b16 %v4349
        %v4446 = vunpack.c.l.b16 %v4350
        %v4447 = vunpack.c.l.b16 %v4351
        %v4448 = vunpack.c.l.b16 %v4352
        %v4449 = vunpack.c.l.b16 %v4353
        %v4450 = vunpack.c.l.b16 %v4354
        %v4451 = vunpack.c.l.b16 %v4355
        %v4452 = vunpack.c.l.b16 %v4356
        %v4453 = vunpack.c.l.b16 %v4357
        %v4454 = vunpack.c.l.b16 %v4358
        %v4455 = vunpack.c.l.b16 %v4359
        %v4456 = vunpack.c.l.b16 %v4360
        %v4457 = vunpack.c.l.b16 %v4361
        %v4458 = vunpack.c.l.b16 %v4362
        %v4459 = vunpack.c.l.b16 %v4363
        %v4460 = vunpack.c.l.b16 %v4364
        %v4461 = vpack.c.b16 %v4446, %v4445
        %v4462 = vpack.c.b16 %v4448, %v4447
        %v4463 = vpack.c.b16 %v4450, %v4449
        %v4464 = vpack.c.b16 %v4452, %v4451
        %v4465 = vpack.c.b16 %v4454, %v4453
        %v4466 = vpack.c.b16 %v4456, %v4455
        %v4467 = vpack.c.b16 %v4458, %v4457
        %v4468 = vpack.c.b16 %v4460, %v4459
        %4477 = vmatpush.bf16.msra.mxu0 %v4468
        %4478 = vmatpush.bf16.msra.mxu0 %v4467
        %4479 = vmatpush.bf16.msra.mxu0 %v4466
        %4480 = vmatpush.bf16.msra.mxu0 %v4465
        %4481 = vmatpush.bf16.msra.mxu0 %v4464
        %4482 = vmatpush.bf16.msra.mxu0 %v4463
        %4483 = vmatpush.bf16.msra.mxu0 %v4462
        %4484 = vmatpush.bf16.msra.mxu0 %v4461
        %4485 = vmatmul.bf16.gmra.mxu0 %v4397
        %v4486 = vpop.f32.mrf.mxu0
        %v4487 = vadd.f32 0.0, %v4486
        %v4488 = vpop.f32.mrf.mxu0
        %v4489 = vadd.f32 0.0, %v4488
        %4490 = vmatmul.bf16.gmra.mxu0 %v4398
        %v4491 = vpop.f32.mrf.mxu0
        %v4492 = vadd.f32 0.0, %v4491
        %v4493 = vpop.f32.mrf.mxu0
        %v4494 = vadd.f32 0.0, %v4493
        %4495 = vmatmul.bf16.gmra.mxu0 %v4399
        %v4496 = vpop.f32.mrf.mxu0
        %v4497 = vadd.f32 0.0, %v4496
        %v4498 = vpop.f32.mrf.mxu0
        %v4499 = vadd.f32 0.0, %v4498
        %4500 = vmatmul.bf16.gmra.mxu0 %v4400
        %v4501 = vpop.f32.mrf.mxu0
        %v4502 = vadd.f32 0.0, %v4501
        %v4503 = vpop.f32.mrf.mxu0
        %v4504 = vadd.f32 0.0, %v4503
        %4505 = vmatmul.bf16.gmra.mxu0 %v4401
        %v4506 = vpop.f32.mrf.mxu0
        %v4507 = vadd.f32 0.0, %v4506
        %v4508 = vpop.f32.mrf.mxu0
        %v4509 = vadd.f32 0.0, %v4508
        %4510 = vmatmul.bf16.gmra.mxu0 %v4402
        %v4511 = vpop.f32.mrf.mxu0
        %v4512 = vadd.f32 0.0, %v4511
        %v4513 = vpop.f32.mrf.mxu0
        %v4514 = vadd.f32 0.0, %v4513
        %4515 = vmatmul.bf16.gmra.mxu0 %v4403
        %v4516 = vpop.f32.mrf.mxu0
        %v4517 = vadd.f32 0.0, %v4516
        %v4518 = vpop.f32.mrf.mxu0
        %v4519 = vadd.f32 0.0, %v4518
        %4520 = vmatmul.bf16.gmra.mxu0 %v4404
        %v4521 = vpop.f32.mrf.mxu0
        %v4522 = vadd.f32 0.0, %v4521
        %v4523 = vpop.f32.mrf.mxu0
        %v4524 = vadd.f32 0.0, %v4523
        %4525 = vmatmul.bf16.gmra.mxu0 %v4405
        %v4526 = vpop.f32.mrf.mxu0
        %v4527 = vadd.f32 0.0, %v4526
        %v4528 = vpop.f32.mrf.mxu0
        %v4529 = vadd.f32 0.0, %v4528
        %4530 = vmatmul.bf16.gmra.mxu0 %v4406
        %v4531 = vpop.f32.mrf.mxu0
        %v4532 = vadd.f32 0.0, %v4531
        %v4533 = vpop.f32.mrf.mxu0
        %v4534 = vadd.f32 0.0, %v4533
        %4535 = vmatmul.bf16.gmra.mxu0 %v4407
        %v4536 = vpop.f32.mrf.mxu0
        %v4537 = vadd.f32 0.0, %v4536
        %v4538 = vpop.f32.mrf.mxu0
        %v4539 = vadd.f32 0.0, %v4538
        %4540 = vmatmul.bf16.gmra.mxu0 %v4408
        %v4541 = vpop.f32.mrf.mxu0
        %v4542 = vadd.f32 0.0, %v4541
        %v4543 = vpop.f32.mrf.mxu0
        %v4544 = vadd.f32 0.0, %v4543
        %4545 = vmatmul.bf16.gmra.mxu0 %v4409
        %v4546 = vpop.f32.mrf.mxu0
        %v4547 = vadd.f32 0.0, %v4546
        %v4548 = vpop.f32.mrf.mxu0
        %v4549 = vadd.f32 0.0, %v4548
        %4550 = vmatmul.bf16.gmra.mxu0 %v4410
        %v4551 = vpop.f32.mrf.mxu0
        %v4552 = vadd.f32 0.0, %v4551
        %v4553 = vpop.f32.mrf.mxu0
        %v4554 = vadd.f32 0.0, %v4553
        %4555 = vmatmul.bf16.gmra.mxu0 %v4411
        %v4556 = vpop.f32.mrf.mxu0
        %v4557 = vadd.f32 0.0, %v4556
        %v4558 = vpop.f32.mrf.mxu0
        %v4559 = vadd.f32 0.0, %v4558
        %4560 = vmatmul.bf16.gmra.mxu0 %v4412
        %v4561 = vpop.f32.mrf.mxu0
        %v4562 = vadd.f32 0.0, %v4561
        %v4563 = vpop.f32.mrf.mxu0
        %v4564 = vadd.f32 0.0, %v4563
        %4565 = vdwg.mxu0
        %v4566 = vadd.f32 %v4045, %v4487
        %v4567 = vadd.f32 %v4047, %v4489
        %v4568 = vadd.f32 %v4050, %v4492
        %v4569 = vadd.f32 %v4052, %v4494
        %v4570 = vadd.f32 %v4055, %v4497
        %v4571 = vadd.f32 %v4057, %v4499
        %v4572 = vadd.f32 %v4060, %v4502
        %v4573 = vadd.f32 %v4062, %v4504
        %v4574 = vadd.f32 %v4065, %v4507
        %v4575 = vadd.f32 %v4067, %v4509
        %v4576 = vadd.f32 %v4070, %v4512
        %v4577 = vadd.f32 %v4072, %v4514
        %v4578 = vadd.f32 %v4075, %v4517
        %v4579 = vadd.f32 %v4077, %v4519
        %v4580 = vadd.f32 %v4080, %v4522
        %v4581 = vadd.f32 %v4082, %v4524
        %v4582 = vadd.f32 %v4085, %v4527
        %v4583 = vadd.f32 %v4087, %v4529
        %v4584 = vadd.f32 %v4090, %v4532
        %v4585 = vadd.f32 %v4092, %v4534
        %v4586 = vadd.f32 %v4095, %v4537
        %v4587 = vadd.f32 %v4097, %v4539
        %v4588 = vadd.f32 %v4100, %v4542
        %v4589 = vadd.f32 %v4102, %v4544
        %v4590 = vadd.f32 %v4105, %v4547
        %v4591 = vadd.f32 %v4107, %v4549
        %v4592 = vadd.f32 %v4110, %v4552
        %v4593 = vadd.f32 %v4112, %v4554
        %v4594 = vadd.f32 %v4115, %v4557
        %v4595 = vadd.f32 %v4117, %v4559
        %v4596 = vadd.f32 %v4120, %v4562
        %v4597 = vadd.f32 %v4122, %v4564
        %v4599 = vshrl.u32 %v3297, 16
        %v4601 = vrot.slane %v4599, 7
        %v4602 = vrot.slane %v4601, 4
        %v4604 = vshrl.u32 %v3298, 16
        %v4606 = vrot.slane %v4604, 7
        %v4607 = vshll.u32 %v3298, 16
        %v4609 = vor.u32 %v4606, %v4607
        %v4610 = vsel %vm587, %v4602, %v4609
        %v4611 = vrot.slane %v4606, 4
        %v4613 = vshrl.u32 %v3299, 16
        %v4615 = vrot.slane %v4613, 7
        %v4616 = vshll.u32 %v3299, 16
        %v4618 = vor.u32 %v4615, %v4616
        %v4619 = vsel %vm587, %v4611, %v4618
        %s4620 = scalar_lea.vmem [#allocation4], 192
        %v4621 = vld [vmem:[%s4620] sm:$0xf]
        %v4622 = vld [vmem:[%s4620 + $0x4] sm:$0xf]
        %v4623 = vld [vmem:[%s4620 + $0x8] sm:$0xf]
        %v4624 = vld [vmem:[%s4620 + $0xc] sm:$0xf]
        %v4625 = vld [vmem:[%s4620 + $0x10] sm:$0xf]
        %v4626 = vld [vmem:[%s4620 + $0x14] sm:$0xf]
        %v4627 = vld [vmem:[%s4620 + $0x18] sm:$0xf]
        %v4628 = vld [vmem:[%s4620 + $0x1c] sm:$0xf]
        %v4629 = vld [vmem:[%s4620 + $0x20] sm:$0xf]
        %v4630 = vld [vmem:[%s4620 + $0x24] sm:$0xf]
        %v4631 = vld [vmem:[%s4620 + $0x28] sm:$0xf]
        %v4632 = vld [vmem:[%s4620 + $0x2c] sm:$0xf]
        %v4633 = vld [vmem:[%s4620 + $0x30] sm:$0xf]
        %v4634 = vld [vmem:[%s4620 + $0x34] sm:$0xf]
        %v4635 = vld [vmem:[%s4620 + $0x38] sm:$0xf]
        %v4636 = vld [vmem:[%s4620 + $0x3c] sm:$0xf]
        %v4637 = vunpack.c.l.b16 %v4610
        %v4638 = vunpack.c.l.b16 %v4619
        %v4639 = vpack.c.b16 %v4638, %v4637
        %v4657 = vunpack.c.l.b16 %v4621
        %v4658 = vunpack.c.l.b16 %v4622
        %v4659 = vunpack.c.l.b16 %v4623
        %v4660 = vunpack.c.l.b16 %v4624
        %v4661 = vunpack.c.l.b16 %v4625
        %v4662 = vunpack.c.l.b16 %v4626
        %v4663 = vunpack.c.l.b16 %v4627
        %v4664 = vunpack.c.l.b16 %v4628
        %v4665 = vunpack.c.l.b16 %v4629
        %v4666 = vunpack.c.l.b16 %v4630
        %v4667 = vunpack.c.l.b16 %v4631
        %v4668 = vunpack.c.l.b16 %v4632
        %v4669 = vunpack.c.l.b16 %v4633
        %v4670 = vunpack.c.l.b16 %v4634
        %v4671 = vunpack.c.l.b16 %v4635
        %v4672 = vunpack.c.l.b16 %v4636
        %v4673 = vpack.c.b16 %v4658, %v4657
        %v4674 = vpack.c.b16 %v4660, %v4659
        %v4675 = vpack.c.b16 %v4662, %v4661
        %v4676 = vpack.c.b16 %v4664, %v4663
        %v4677 = vpack.c.b16 %v4666, %v4665
        %v4678 = vpack.c.b16 %v4668, %v4667
        %v4679 = vpack.c.b16 %v4670, %v4669
        %v4680 = vpack.c.b16 %v4672, %v4671
        %4689 = vmatpush.bf16.msra.mxu0 %v4680
        %4690 = vmatpush.bf16.msra.mxu0 %v4679
        %4691 = vmatpush.bf16.msra.mxu0 %v4678
        %4692 = vmatpush.bf16.msra.mxu0 %v4677
        %4693 = vmatpush.bf16.msra.mxu0 %v4676
        %4694 = vmatpush.bf16.msra.mxu0 %v4675
        %4695 = vmatpush.bf16.msra.mxu0 %v4674
        %4696 = vmatpush.bf16.msra.mxu0 %v4673
        %4697 = vmatmul.bf16.gmra.mxu0 %v3956
        %v4698 = vpop.f32.mrf.mxu0
        %v4699 = vadd.f32 0.0, %v4698
        %v4700 = vpop.f32.mrf.mxu0
        %v4701 = vadd.f32 0.0, %v4700
        %4702 = vmatmul.bf16.gmra.mxu0 %v3957
        %v4703 = vpop.f32.mrf.mxu0
        %v4704 = vadd.f32 0.0, %v4703
        %v4705 = vpop.f32.mrf.mxu0
        %v4706 = vadd.f32 0.0, %v4705
        %4707 = vmatmul.bf16.gmra.mxu0 %v3958
        %v4708 = vpop.f32.mrf.mxu0
        %v4709 = vadd.f32 0.0, %v4708
        %v4710 = vpop.f32.mrf.mxu0
        %v4711 = vadd.f32 0.0, %v4710
        %4712 = vmatmul.bf16.gmra.mxu0 %v3959
        %v4713 = vpop.f32.mrf.mxu0
        %v4714 = vadd.f32 0.0, %v4713
        %v4715 = vpop.f32.mrf.mxu0
        %v4716 = vadd.f32 0.0, %v4715
        %4717 = vmatmul.bf16.gmra.mxu0 %v3960
        %v4718 = vpop.f32.mrf.mxu0
        %v4719 = vadd.f32 0.0, %v4718
        %v4720 = vpop.f32.mrf.mxu0
        %v4721 = vadd.f32 0.0, %v4720
        %4722 = vmatmul.bf16.gmra.mxu0 %v3961
        %v4723 = vpop.f32.mrf.mxu0
        %v4724 = vadd.f32 0.0, %v4723
        %v4725 = vpop.f32.mrf.mxu0
        %v4726 = vadd.f32 0.0, %v4725
        %4727 = vmatmul.bf16.gmra.mxu0 %v3962
        %v4728 = vpop.f32.mrf.mxu0
        %v4729 = vadd.f32 0.0, %v4728
        %v4730 = vpop.f32.mrf.mxu0
        %v4731 = vadd.f32 0.0, %v4730
        %4732 = vmatmul.bf16.gmra.mxu0 %v3963
        %v4733 = vpop.f32.mrf.mxu0
        %v4734 = vadd.f32 0.0, %v4733
        %v4735 = vpop.f32.mrf.mxu0
        %v4736 = vadd.f32 0.0, %v4735
        %4737 = vmatmul.bf16.gmra.mxu0 %v3964
        %v4738 = vpop.f32.mrf.mxu0
        %v4739 = vadd.f32 0.0, %v4738
        %v4740 = vpop.f32.mrf.mxu0
        %v4741 = vadd.f32 0.0, %v4740
        %4742 = vmatmul.bf16.gmra.mxu0 %v3965
        %v4743 = vpop.f32.mrf.mxu0
        %v4744 = vadd.f32 0.0, %v4743
        %v4745 = vpop.f32.mrf.mxu0
        %v4746 = vadd.f32 0.0, %v4745
        %4747 = vmatmul.bf16.gmra.mxu0 %v3966
        %v4748 = vpop.f32.mrf.mxu0
        %v4749 = vadd.f32 0.0, %v4748
        %v4750 = vpop.f32.mrf.mxu0
        %v4751 = vadd.f32 0.0, %v4750
        %4752 = vmatmul.bf16.gmra.mxu0 %v3967
        %v4753 = vpop.f32.mrf.mxu0
        %v4754 = vadd.f32 0.0, %v4753
        %v4755 = vpop.f32.mrf.mxu0
        %v4756 = vadd.f32 0.0, %v4755
        %4757 = vmatmul.bf16.gmra.mxu0 %v3968
        %v4758 = vpop.f32.mrf.mxu0
        %v4759 = vadd.f32 0.0, %v4758
        %v4760 = vpop.f32.mrf.mxu0
        %v4761 = vadd.f32 0.0, %v4760
        %4762 = vmatmul.bf16.gmra.mxu0 %v3969
        %v4763 = vpop.f32.mrf.mxu0
        %v4764 = vadd.f32 0.0, %v4763
        %v4765 = vpop.f32.mrf.mxu0
        %v4766 = vadd.f32 0.0, %v4765
        %4767 = vmatmul.bf16.gmra.mxu0 %v3970
        %v4768 = vpop.f32.mrf.mxu0
        %v4769 = vadd.f32 0.0, %v4768
        %v4770 = vpop.f32.mrf.mxu0
        %v4771 = vadd.f32 0.0, %v4770
        %4772 = vmatmul.bf16.gmra.mxu0 %v4639
        %v4773 = vpop.f32.mrf.mxu0
        %v4774 = vadd.f32 0.0, %v4773
        %v4775 = vpop.f32.mrf.mxu0
        %v4776 = vadd.f32 0.0, %v4775
        %4777 = vdwg.mxu0
        %v4778 = vadd.f32 %v4566, %v4699
        %v4779 = vadd.f32 %v4567, %v4701
        %v4780 = vadd.f32 %v4568, %v4704
        %v4781 = vadd.f32 %v4569, %v4706
        %v4782 = vadd.f32 %v4570, %v4709
        %v4783 = vadd.f32 %v4571, %v4711
        %v4784 = vadd.f32 %v4572, %v4714
        %v4785 = vadd.f32 %v4573, %v4716
        %v4786 = vadd.f32 %v4574, %v4719
        %v4787 = vadd.f32 %v4575, %v4721
        %v4788 = vadd.f32 %v4576, %v4724
        %v4789 = vadd.f32 %v4577, %v4726
        %v4790 = vadd.f32 %v4578, %v4729
        %v4791 = vadd.f32 %v4579, %v4731
        %v4792 = vadd.f32 %v4580, %v4734
        %v4793 = vadd.f32 %v4581, %v4736
        %v4794 = vadd.f32 %v4582, %v4739
        %v4795 = vadd.f32 %v4583, %v4741
        %v4796 = vadd.f32 %v4584, %v4744
        %v4797 = vadd.f32 %v4585, %v4746
        %v4798 = vadd.f32 %v4586, %v4749
        %v4799 = vadd.f32 %v4587, %v4751
        %v4800 = vadd.f32 %v4588, %v4754
        %v4801 = vadd.f32 %v4589, %v4756
        %v4802 = vadd.f32 %v4590, %v4759
        %v4803 = vadd.f32 %v4591, %v4761
        %v4804 = vadd.f32 %v4592, %v4764
        %v4805 = vadd.f32 %v4593, %v4766
        %v4806 = vadd.f32 %v4594, %v4769
        %v4807 = vadd.f32 %v4595, %v4771
        %v4808 = vadd.f32 %v4596, %v4774
        %v4809 = vadd.f32 %v4597, %v4776
        %s4810 = scalar_lea.vmem [#allocation4], 256
        %v4811 = vld [vmem:[%s4810] sm:$0xf]
        %v4812 = vld [vmem:[%s4810 + $0x4] sm:$0xf]
        %v4813 = vld [vmem:[%s4810 + $0x8] sm:$0xf]
        %v4814 = vld [vmem:[%s4810 + $0xc] sm:$0xf]
        %v4815 = vld [vmem:[%s4810 + $0x10] sm:$0xf]
        %v4816 = vld [vmem:[%s4810 + $0x14] sm:$0xf]
        %v4817 = vld [vmem:[%s4810 + $0x18] sm:$0xf]
        %v4818 = vld [vmem:[%s4810 + $0x1c] sm:$0xf]
        %v4819 = vld [vmem:[%s4810 + $0x20] sm:$0xf]
        %v4820 = vld [vmem:[%s4810 + $0x24] sm:$0xf]
        %v4821 = vld [vmem:[%s4810 + $0x28] sm:$0xf]
        %v4822 = vld [vmem:[%s4810 + $0x2c] sm:$0xf]
        %v4823 = vld [vmem:[%s4810 + $0x30] sm:$0xf]
        %v4824 = vld [vmem:[%s4810 + $0x34] sm:$0xf]
        %v4825 = vld [vmem:[%s4810 + $0x38] sm:$0xf]
        %v4826 = vld [vmem:[%s4810 + $0x3c] sm:$0xf]
        %v4829 = vunpack.c.l.b16 %v3298
        %v4830 = vunpack.c.l.b16 %v3299
        %v4831 = vpack.c.b16 %v4830, %v4829
        %v4849 = vunpack.c.l.b16 %v4811
        %v4850 = vunpack.c.l.b16 %v4812
        %v4851 = vunpack.c.l.b16 %v4813
        %v4852 = vunpack.c.l.b16 %v4814
        %v4853 = vunpack.c.l.b16 %v4815
        %v4854 = vunpack.c.l.b16 %v4816
        %v4855 = vunpack.c.l.b16 %v4817
        %v4856 = vunpack.c.l.b16 %v4818
        %v4857 = vunpack.c.l.b16 %v4819
        %v4858 = vunpack.c.l.b16 %v4820
        %v4859 = vunpack.c.l.b16 %v4821
        %v4860 = vunpack.c.l.b16 %v4822
        %v4861 = vunpack.c.l.b16 %v4823
        %v4862 = vunpack.c.l.b16 %v4824
        %v4863 = vunpack.c.l.b16 %v4825
        %v4864 = vunpack.c.l.b16 %v4826
        %v4865 = vpack.c.b16 %v4850, %v4849
        %v4866 = vpack.c.b16 %v4852, %v4851
        %v4867 = vpack.c.b16 %v4854, %v4853
        %v4868 = vpack.c.b16 %v4856, %v4855
        %v4869 = vpack.c.b16 %v4858, %v4857
        %v4870 = vpack.c.b16 %v4860, %v4859
        %v4871 = vpack.c.b16 %v4862, %v4861
        %v4872 = vpack.c.b16 %v4864, %v4863
        %4881 = vmatpush.bf16.msra.mxu0 %v4872
        %4882 = vmatpush.bf16.msra.mxu0 %v4871
        %4883 = vmatpush.bf16.msra.mxu0 %v4870
        %4884 = vmatpush.bf16.msra.mxu0 %v4869
        %4885 = vmatpush.bf16.msra.mxu0 %v4868
        %4886 = vmatpush.bf16.msra.mxu0 %v4867
        %4887 = vmatpush.bf16.msra.mxu0 %v4866
        %4888 = vmatpush.bf16.msra.mxu0 %v4865
        %4889 = vmatmul.bf16.gmra.mxu0 %v3755
        %v4890 = vpop.f32.mrf.mxu0
        %v4891 = vadd.f32 0.0, %v4890
        %v4892 = vpop.f32.mrf.mxu0
        %v4893 = vadd.f32 0.0, %v4892
        %4894 = vmatmul.bf16.gmra.mxu0 %v3756
        %v4895 = vpop.f32.mrf.mxu0
        %v4896 = vadd.f32 0.0, %v4895
        %v4897 = vpop.f32.mrf.mxu0
        %v4898 = vadd.f32 0.0, %v4897
        %4899 = vmatmul.bf16.gmra.mxu0 %v3757
        %v4900 = vpop.f32.mrf.mxu0
        %v4901 = vadd.f32 0.0, %v4900
        %v4902 = vpop.f32.mrf.mxu0
        %v4903 = vadd.f32 0.0, %v4902
        %4904 = vmatmul.bf16.gmra.mxu0 %v3758
        %v4905 = vpop.f32.mrf.mxu0
        %v4906 = vadd.f32 0.0, %v4905
        %v4907 = vpop.f32.mrf.mxu0
        %v4908 = vadd.f32 0.0, %v4907
        %4909 = vmatmul.bf16.gmra.mxu0 %v3759
        %v4910 = vpop.f32.mrf.mxu0
        %v4911 = vadd.f32 0.0, %v4910
        %v4912 = vpop.f32.mrf.mxu0
        %v4913 = vadd.f32 0.0, %v4912
        %4914 = vmatmul.bf16.gmra.mxu0 %v3760
        %v4915 = vpop.f32.mrf.mxu0
        %v4916 = vadd.f32 0.0, %v4915
        %v4917 = vpop.f32.mrf.mxu0
        %v4918 = vadd.f32 0.0, %v4917
        %4919 = vmatmul.bf16.gmra.mxu0 %v3761
        %v4920 = vpop.f32.mrf.mxu0
        %v4921 = vadd.f32 0.0, %v4920
        %v4922 = vpop.f32.mrf.mxu0
        %v4923 = vadd.f32 0.0, %v4922
        %4924 = vmatmul.bf16.gmra.mxu0 %v3762
        %v4925 = vpop.f32.mrf.mxu0
        %v4926 = vadd.f32 0.0, %v4925
        %v4927 = vpop.f32.mrf.mxu0
        %v4928 = vadd.f32 0.0, %v4927
        %4929 = vmatmul.bf16.gmra.mxu0 %v3763
        %v4930 = vpop.f32.mrf.mxu0
        %v4931 = vadd.f32 0.0, %v4930
        %v4932 = vpop.f32.mrf.mxu0
        %v4933 = vadd.f32 0.0, %v4932
        %4934 = vmatmul.bf16.gmra.mxu0 %v3764
        %v4935 = vpop.f32.mrf.mxu0
        %v4936 = vadd.f32 0.0, %v4935
        %v4937 = vpop.f32.mrf.mxu0
        %v4938 = vadd.f32 0.0, %v4937
        %4939 = vmatmul.bf16.gmra.mxu0 %v3765
        %v4940 = vpop.f32.mrf.mxu0
        %v4941 = vadd.f32 0.0, %v4940
        %v4942 = vpop.f32.mrf.mxu0
        %v4943 = vadd.f32 0.0, %v4942
        %4944 = vmatmul.bf16.gmra.mxu0 %v3766
        %v4945 = vpop.f32.mrf.mxu0
        %v4946 = vadd.f32 0.0, %v4945
        %v4947 = vpop.f32.mrf.mxu0
        %v4948 = vadd.f32 0.0, %v4947
        %4949 = vmatmul.bf16.gmra.mxu0 %v3767
        %v4950 = vpop.f32.mrf.mxu0
        %v4951 = vadd.f32 0.0, %v4950
        %v4952 = vpop.f32.mrf.mxu0
        %v4953 = vadd.f32 0.0, %v4952
        %4954 = vmatmul.bf16.gmra.mxu0 %v3768
        %v4955 = vpop.f32.mrf.mxu0
        %v4956 = vadd.f32 0.0, %v4955
        %v4957 = vpop.f32.mrf.mxu0
        %v4958 = vadd.f32 0.0, %v4957
        %4959 = vmatmul.bf16.gmra.mxu0 %v3769
        %v4960 = vpop.f32.mrf.mxu0
        %v4961 = vadd.f32 0.0, %v4960
        %v4962 = vpop.f32.mrf.mxu0
        %v4963 = vadd.f32 0.0, %v4962
        %4964 = vmatmul.bf16.gmra.mxu0 %v4831
        %v4965 = vpop.f32.mrf.mxu0
        %v4966 = vadd.f32 0.0, %v4965
        %v4967 = vpop.f32.mrf.mxu0
        %v4968 = vadd.f32 0.0, %v4967
        %4969 = vdwg.mxu0
        %v4970 = vadd.f32 %v4778, %v4891
        %v4971 = vadd.f32 %v4779, %v4893
        %v4972 = vadd.f32 %v4780, %v4896
        %v4973 = vadd.f32 %v4781, %v4898
        %v4974 = vadd.f32 %v4782, %v4901
        %v4975 = vadd.f32 %v4783, %v4903
        %v4976 = vadd.f32 %v4784, %v4906
        %v4977 = vadd.f32 %v4785, %v4908
        %v4978 = vadd.f32 %v4786, %v4911
        %v4979 = vadd.f32 %v4787, %v4913
        %v4980 = vadd.f32 %v4788, %v4916
        %v4981 = vadd.f32 %v4789, %v4918
        %v4982 = vadd.f32 %v4790, %v4921
        %v4983 = vadd.f32 %v4791, %v4923
        %v4984 = vadd.f32 %v4792, %v4926
        %v4985 = vadd.f32 %v4793, %v4928
        %v4986 = vadd.f32 %v4794, %v4931
        %v4987 = vadd.f32 %v4795, %v4933
        %v4988 = vadd.f32 %v4796, %v4936
        %v4989 = vadd.f32 %v4797, %v4938
        %v4990 = vadd.f32 %v4798, %v4941
        %v4991 = vadd.f32 %v4799, %v4943
        %v4992 = vadd.f32 %v4800, %v4946
        %v4993 = vadd.f32 %v4801, %v4948
        %v4994 = vadd.f32 %v4802, %v4951
        %v4995 = vadd.f32 %v4803, %v4953
        %v4996 = vadd.f32 %v4804, %v4956
        %v4997 = vadd.f32 %v4805, %v4958
        %v4998 = vadd.f32 %v4806, %v4961
        %v4999 = vadd.f32 %v4807, %v4963
        %v5000 = vadd.f32 %v4808, %v4966
        %v5001 = vadd.f32 %v4809, %v4968
        %v5002 = vrot.slane %v4604, 4
        %v5003 = vrot.slane %v4607, 5
        %v5004 = vor.u32 %v5002, %v5003
        %v5005 = vrot.slane %v5004, 4
        %v5006 = vrot.slane %v4616, 5
        %v5007 = vsel %vm1409, %v5005, %v5006
        %v5008 = vrot.slane %v4613, 4
        %v5009 = vor.u32 %v5008, %v5006
        %v5010 = vrot.slane %v5009, 4
        %v5012 = vshll.u32 %v3300, 16
        %v5014 = vrot.slane %v5012, 5
        %v5015 = vsel %vm1409, %v5010, %v5014
        %s5016 = scalar_lea.vmem [#allocation4], 320
        %v5017 = vld [vmem:[%s5016] sm:$0xf]
        %v5018 = vld [vmem:[%s5016 + $0x4] sm:$0xf]
        %v5019 = vld [vmem:[%s5016 + $0x8] sm:$0xf]
        %v5020 = vld [vmem:[%s5016 + $0xc] sm:$0xf]
        %v5021 = vld [vmem:[%s5016 + $0x10] sm:$0xf]
        %v5022 = vld [vmem:[%s5016 + $0x14] sm:$0xf]
        %v5023 = vld [vmem:[%s5016 + $0x18] sm:$0xf]
        %v5024 = vld [vmem:[%s5016 + $0x1c] sm:$0xf]
        %v5025 = vld [vmem:[%s5016 + $0x20] sm:$0xf]
        %v5026 = vld [vmem:[%s5016 + $0x24] sm:$0xf]
        %v5027 = vld [vmem:[%s5016 + $0x28] sm:$0xf]
        %v5028 = vld [vmem:[%s5016 + $0x2c] sm:$0xf]
        %v5029 = vld [vmem:[%s5016 + $0x30] sm:$0xf]
        %v5030 = vld [vmem:[%s5016 + $0x34] sm:$0xf]
        %v5031 = vld [vmem:[%s5016 + $0x38] sm:$0xf]
        %v5032 = vld [vmem:[%s5016 + $0x3c] sm:$0xf]
        %v5033 = vunpack.c.l.b16 %v5007
        %v5034 = vunpack.c.l.b16 %v5015
        %v5035 = vpack.c.b16 %v5034, %v5033
        %v5053 = vunpack.c.l.b16 %v5017
        %v5054 = vunpack.c.l.b16 %v5018
        %v5055 = vunpack.c.l.b16 %v5019
        %v5056 = vunpack.c.l.b16 %v5020
        %v5057 = vunpack.c.l.b16 %v5021
        %v5058 = vunpack.c.l.b16 %v5022
        %v5059 = vunpack.c.l.b16 %v5023
        %v5060 = vunpack.c.l.b16 %v5024
        %v5061 = vunpack.c.l.b16 %v5025
        %v5062 = vunpack.c.l.b16 %v5026
        %v5063 = vunpack.c.l.b16 %v5027
        %v5064 = vunpack.c.l.b16 %v5028
        %v5065 = vunpack.c.l.b16 %v5029
        %v5066 = vunpack.c.l.b16 %v5030
        %v5067 = vunpack.c.l.b16 %v5031
        %v5068 = vunpack.c.l.b16 %v5032
        %v5069 = vpack.c.b16 %v5054, %v5053
        %v5070 = vpack.c.b16 %v5056, %v5055
        %v5071 = vpack.c.b16 %v5058, %v5057
        %v5072 = vpack.c.b16 %v5060, %v5059
        %v5073 = vpack.c.b16 %v5062, %v5061
        %v5074 = vpack.c.b16 %v5064, %v5063
        %v5075 = vpack.c.b16 %v5066, %v5065
        %v5076 = vpack.c.b16 %v5068, %v5067
        %5085 = vmatpush.bf16.msra.mxu0 %v5076
        %5086 = vmatpush.bf16.msra.mxu0 %v5075
        %5087 = vmatpush.bf16.msra.mxu0 %v5074
        %5088 = vmatpush.bf16.msra.mxu0 %v5073
        %5089 = vmatpush.bf16.msra.mxu0 %v5072
        %5090 = vmatpush.bf16.msra.mxu0 %v5071
        %5091 = vmatpush.bf16.msra.mxu0 %v5070
        %5092 = vmatpush.bf16.msra.mxu0 %v5069
        %5093 = vmatmul.bf16.gmra.mxu0 %v4398
        %v5094 = vpop.f32.mrf.mxu0
        %v5095 = vadd.f32 0.0, %v5094
        %v5096 = vpop.f32.mrf.mxu0
        %v5097 = vadd.f32 0.0, %v5096
        %5098 = vmatmul.bf16.gmra.mxu0 %v4399
        %v5099 = vpop.f32.mrf.mxu0
        %v5100 = vadd.f32 0.0, %v5099
        %v5101 = vpop.f32.mrf.mxu0
        %v5102 = vadd.f32 0.0, %v5101
        %5103 = vmatmul.bf16.gmra.mxu0 %v4400
        %v5104 = vpop.f32.mrf.mxu0
        %v5105 = vadd.f32 0.0, %v5104
        %v5106 = vpop.f32.mrf.mxu0
        %v5107 = vadd.f32 0.0, %v5106
        %5108 = vmatmul.bf16.gmra.mxu0 %v4401
        %v5109 = vpop.f32.mrf.mxu0
        %v5110 = vadd.f32 0.0, %v5109
        %v5111 = vpop.f32.mrf.mxu0
        %v5112 = vadd.f32 0.0, %v5111
        %5113 = vmatmul.bf16.gmra.mxu0 %v4402
        %v5114 = vpop.f32.mrf.mxu0
        %v5115 = vadd.f32 0.0, %v5114
        %v5116 = vpop.f32.mrf.mxu0
        %v5117 = vadd.f32 0.0, %v5116
        %5118 = vmatmul.bf16.gmra.mxu0 %v4403
        %v5119 = vpop.f32.mrf.mxu0
        %v5120 = vadd.f32 0.0, %v5119
        %v5121 = vpop.f32.mrf.mxu0
        %v5122 = vadd.f32 0.0, %v5121
        %5123 = vmatmul.bf16.gmra.mxu0 %v4404
        %v5124 = vpop.f32.mrf.mxu0
        %v5125 = vadd.f32 0.0, %v5124
        %v5126 = vpop.f32.mrf.mxu0
        %v5127 = vadd.f32 0.0, %v5126
        %5128 = vmatmul.bf16.gmra.mxu0 %v4405
        %v5129 = vpop.f32.mrf.mxu0
        %v5130 = vadd.f32 0.0, %v5129
        %v5131 = vpop.f32.mrf.mxu0
        %v5132 = vadd.f32 0.0, %v5131
        %5133 = vmatmul.bf16.gmra.mxu0 %v4406
        %v5134 = vpop.f32.mrf.mxu0
        %v5135 = vadd.f32 0.0, %v5134
        %v5136 = vpop.f32.mrf.mxu0
        %v5137 = vadd.f32 0.0, %v5136
        %5138 = vmatmul.bf16.gmra.mxu0 %v4407
        %v5139 = vpop.f32.mrf.mxu0
        %v5140 = vadd.f32 0.0, %v5139
        %v5141 = vpop.f32.mrf.mxu0
        %v5142 = vadd.f32 0.0, %v5141
        %5143 = vmatmul.bf16.gmra.mxu0 %v4408
        %v5144 = vpop.f32.mrf.mxu0
        %v5145 = vadd.f32 0.0, %v5144
        %v5146 = vpop.f32.mrf.mxu0
        %v5147 = vadd.f32 0.0, %v5146
        %5148 = vmatmul.bf16.gmra.mxu0 %v4409
        %v5149 = vpop.f32.mrf.mxu0
        %v5150 = vadd.f32 0.0, %v5149
        %v5151 = vpop.f32.mrf.mxu0
        %v5152 = vadd.f32 0.0, %v5151
        %5153 = vmatmul.bf16.gmra.mxu0 %v4410
        %v5154 = vpop.f32.mrf.mxu0
        %v5155 = vadd.f32 0.0, %v5154
        %v5156 = vpop.f32.mrf.mxu0
        %v5157 = vadd.f32 0.0, %v5156
        %5158 = vmatmul.bf16.gmra.mxu0 %v4411
        %v5159 = vpop.f32.mrf.mxu0
        %v5160 = vadd.f32 0.0, %v5159
        %v5161 = vpop.f32.mrf.mxu0
        %v5162 = vadd.f32 0.0, %v5161
        %5163 = vmatmul.bf16.gmra.mxu0 %v4412
        %v5164 = vpop.f32.mrf.mxu0
        %v5165 = vadd.f32 0.0, %v5164
        %v5166 = vpop.f32.mrf.mxu0
        %v5167 = vadd.f32 0.0, %v5166
        %5168 = vmatmul.bf16.gmra.mxu0 %v5035
        %v5169 = vpop.f32.mrf.mxu0
        %v5170 = vadd.f32 0.0, %v5169
        %v5171 = vpop.f32.mrf.mxu0
        %v5172 = vadd.f32 0.0, %v5171
        %5173 = vdwg.mxu0
        %v5174 = vadd.f32 %v4970, %v5095
        %v5175 = vadd.f32 %v4971, %v5097
        %v5176 = vadd.f32 %v4972, %v5100
        %v5177 = vadd.f32 %v4973, %v5102
        %v5178 = vadd.f32 %v4974, %v5105
        %v5179 = vadd.f32 %v4975, %v5107
        %v5180 = vadd.f32 %v4976, %v5110
        %v5181 = vadd.f32 %v4977, %v5112
        %v5182 = vadd.f32 %v4978, %v5115
        %v5183 = vadd.f32 %v4979, %v5117
        %v5184 = vadd.f32 %v4980, %v5120
        %v5185 = vadd.f32 %v4981, %v5122
        %v5186 = vadd.f32 %v4982, %v5125
        %v5187 = vadd.f32 %v4983, %v5127
        %v5188 = vadd.f32 %v4984, %v5130
        %v5189 = vadd.f32 %v4985, %v5132
        %v5190 = vadd.f32 %v4986, %v5135
        %v5191 = vadd.f32 %v4987, %v5137
        %v5192 = vadd.f32 %v4988, %v5140
        %v5193 = vadd.f32 %v4989, %v5142
        %v5194 = vadd.f32 %v4990, %v5145
        %v5195 = vadd.f32 %v4991, %v5147
        %v5196 = vadd.f32 %v4992, %v5150
        %v5197 = vadd.f32 %v4993, %v5152
        %v5198 = vadd.f32 %v4994, %v5155
        %v5199 = vadd.f32 %v4995, %v5157
        %v5200 = vadd.f32 %v4996, %v5160
        %v5201 = vadd.f32 %v4997, %v5162
        %v5202 = vadd.f32 %v4998, %v5165
        %v5203 = vadd.f32 %v4999, %v5167
        %v5204 = vadd.f32 %v5000, %v5170
        %v5205 = vadd.f32 %v5001, %v5172
        %v5207 = vshrl.u32 %v3301, 16
        %v5209 = vrot.slane %v5207, 7
        %v5210 = vrot.slane %v5209, 4
        %v5212 = vshrl.u32 %v3302, 16
        %v5214 = vrot.slane %v5212, 7
        %v5215 = vshll.u32 %v3302, 16
        %v5217 = vor.u32 %v5214, %v5215
        %v5218 = vsel %vm587, %v5210, %v5217
        %v5219 = vrot.slane %v5214, 4
        %v5221 = vshrl.u32 %v3303, 16
        %v5223 = vrot.slane %v5221, 7
        %v5224 = vshll.u32 %v3303, 16
        %v5226 = vor.u32 %v5223, %v5224
        %v5227 = vsel %vm587, %v5219, %v5226
        %s5228 = scalar_lea.vmem [#allocation4], 384
        %v5229 = vld [vmem:[%s5228] sm:$0xf]
        %v5230 = vld [vmem:[%s5228 + $0x4] sm:$0xf]
        %v5231 = vld [vmem:[%s5228 + $0x8] sm:$0xf]
        %v5232 = vld [vmem:[%s5228 + $0xc] sm:$0xf]
        %v5233 = vld [vmem:[%s5228 + $0x10] sm:$0xf]
        %v5234 = vld [vmem:[%s5228 + $0x14] sm:$0xf]
        %v5235 = vld [vmem:[%s5228 + $0x18] sm:$0xf]
        %v5236 = vld [vmem:[%s5228 + $0x1c] sm:$0xf]
        %v5237 = vld [vmem:[%s5228 + $0x20] sm:$0xf]
        %v5238 = vld [vmem:[%s5228 + $0x24] sm:$0xf]
        %v5239 = vld [vmem:[%s5228 + $0x28] sm:$0xf]
        %v5240 = vld [vmem:[%s5228 + $0x2c] sm:$0xf]
        %v5241 = vld [vmem:[%s5228 + $0x30] sm:$0xf]
        %v5242 = vld [vmem:[%s5228 + $0x34] sm:$0xf]
        %v5243 = vld [vmem:[%s5228 + $0x38] sm:$0xf]
        %v5244 = vld [vmem:[%s5228 + $0x3c] sm:$0xf]
        %v5245 = vunpack.c.l.b16 %v5218
        %v5246 = vunpack.c.l.b16 %v5227
        %v5247 = vpack.c.b16 %v5246, %v5245
        %v5265 = vunpack.c.l.b16 %v5229
        %v5266 = vunpack.c.l.b16 %v5230
        %v5267 = vunpack.c.l.b16 %v5231
        %v5268 = vunpack.c.l.b16 %v5232
        %v5269 = vunpack.c.l.b16 %v5233
        %v5270 = vunpack.c.l.b16 %v5234
        %v5271 = vunpack.c.l.b16 %v5235
        %v5272 = vunpack.c.l.b16 %v5236
        %v5273 = vunpack.c.l.b16 %v5237
        %v5274 = vunpack.c.l.b16 %v5238
        %v5275 = vunpack.c.l.b16 %v5239
        %v5276 = vunpack.c.l.b16 %v5240
        %v5277 = vunpack.c.l.b16 %v5241
        %v5278 = vunpack.c.l.b16 %v5242
        %v5279 = vunpack.c.l.b16 %v5243
        %v5280 = vunpack.c.l.b16 %v5244
        %v5281 = vpack.c.b16 %v5266, %v5265
        %v5282 = vpack.c.b16 %v5268, %v5267
        %v5283 = vpack.c.b16 %v5270, %v5269
        %v5284 = vpack.c.b16 %v5272, %v5271
        %v5285 = vpack.c.b16 %v5274, %v5273
        %v5286 = vpack.c.b16 %v5276, %v5275
        %v5287 = vpack.c.b16 %v5278, %v5277
        %v5288 = vpack.c.b16 %v5280, %v5279
        %5297 = vmatpush.bf16.msra.mxu0 %v5288
        %5298 = vmatpush.bf16.msra.mxu0 %v5287
        %5299 = vmatpush.bf16.msra.mxu0 %v5286
        %5300 = vmatpush.bf16.msra.mxu0 %v5285
        %5301 = vmatpush.bf16.msra.mxu0 %v5284
        %5302 = vmatpush.bf16.msra.mxu0 %v5283
        %5303 = vmatpush.bf16.msra.mxu0 %v5282
        %5304 = vmatpush.bf16.msra.mxu0 %v5281
        %5305 = vmatmul.bf16.gmra.mxu0 %v3957
        %v5306 = vpop.f32.mrf.mxu0
        %v5307 = vadd.f32 0.0, %v5306
        %v5308 = vpop.f32.mrf.mxu0
        %v5309 = vadd.f32 0.0, %v5308
        %5310 = vmatmul.bf16.gmra.mxu0 %v3958
        %v5311 = vpop.f32.mrf.mxu0
        %v5312 = vadd.f32 0.0, %v5311
        %v5313 = vpop.f32.mrf.mxu0
        %v5314 = vadd.f32 0.0, %v5313
        %5315 = vmatmul.bf16.gmra.mxu0 %v3959
        %v5316 = vpop.f32.mrf.mxu0
        %v5317 = vadd.f32 0.0, %v5316
        %v5318 = vpop.f32.mrf.mxu0
        %v5319 = vadd.f32 0.0, %v5318
        %5320 = vmatmul.bf16.gmra.mxu0 %v3960
        %v5321 = vpop.f32.mrf.mxu0
        %v5322 = vadd.f32 0.0, %v5321
        %v5323 = vpop.f32.mrf.mxu0
        %v5324 = vadd.f32 0.0, %v5323
        %5325 = vmatmul.bf16.gmra.mxu0 %v3961
        %v5326 = vpop.f32.mrf.mxu0
        %v5327 = vadd.f32 0.0, %v5326
        %v5328 = vpop.f32.mrf.mxu0
        %v5329 = vadd.f32 0.0, %v5328
        %5330 = vmatmul.bf16.gmra.mxu0 %v3962
        %v5331 = vpop.f32.mrf.mxu0
        %v5332 = vadd.f32 0.0, %v5331
        %v5333 = vpop.f32.mrf.mxu0
        %v5334 = vadd.f32 0.0, %v5333
        %5335 = vmatmul.bf16.gmra.mxu0 %v3963
        %v5336 = vpop.f32.mrf.mxu0
        %v5337 = vadd.f32 0.0, %v5336
        %v5338 = vpop.f32.mrf.mxu0
        %v5339 = vadd.f32 0.0, %v5338
        %5340 = vmatmul.bf16.gmra.mxu0 %v3964
        %v5341 = vpop.f32.mrf.mxu0
        %v5342 = vadd.f32 0.0, %v5341
        %v5343 = vpop.f32.mrf.mxu0
        %v5344 = vadd.f32 0.0, %v5343
        %5345 = vmatmul.bf16.gmra.mxu0 %v3965
        %v5346 = vpop.f32.mrf.mxu0
        %v5347 = vadd.f32 0.0, %v5346
        %v5348 = vpop.f32.mrf.mxu0
        %v5349 = vadd.f32 0.0, %v5348
        %5350 = vmatmul.bf16.gmra.mxu0 %v3966
        %v5351 = vpop.f32.mrf.mxu0
        %v5352 = vadd.f32 0.0, %v5351
        %v5353 = vpop.f32.mrf.mxu0
        %v5354 = vadd.f32 0.0, %v5353
        %5355 = vmatmul.bf16.gmra.mxu0 %v3967
        %v5356 = vpop.f32.mrf.mxu0
        %v5357 = vadd.f32 0.0, %v5356
        %v5358 = vpop.f32.mrf.mxu0
        %v5359 = vadd.f32 0.0, %v5358
        %5360 = vmatmul.bf16.gmra.mxu0 %v3968
        %v5361 = vpop.f32.mrf.mxu0
        %v5362 = vadd.f32 0.0, %v5361
        %v5363 = vpop.f32.mrf.mxu0
        %v5364 = vadd.f32 0.0, %v5363
        %5365 = vmatmul.bf16.gmra.mxu0 %v3969
        %v5366 = vpop.f32.mrf.mxu0
        %v5367 = vadd.f32 0.0, %v5366
        %v5368 = vpop.f32.mrf.mxu0
        %v5369 = vadd.f32 0.0, %v5368
        %5370 = vmatmul.bf16.gmra.mxu0 %v3970
        %v5371 = vpop.f32.mrf.mxu0
        %v5372 = vadd.f32 0.0, %v5371
        %v5373 = vpop.f32.mrf.mxu0
        %v5374 = vadd.f32 0.0, %v5373
        %5375 = vmatmul.bf16.gmra.mxu0 %v4639
        %v5376 = vpop.f32.mrf.mxu0
        %v5377 = vadd.f32 0.0, %v5376
        %v5378 = vpop.f32.mrf.mxu0
        %v5379 = vadd.f32 0.0, %v5378
        %5380 = vmatmul.bf16.gmra.mxu0 %v5247
        %v5381 = vpop.f32.mrf.mxu0
        %v5382 = vadd.f32 0.0, %v5381
        %v5383 = vpop.f32.mrf.mxu0
        %v5384 = vadd.f32 0.0, %v5383
        %5385 = vdwg.mxu0
        %v5386 = vadd.f32 %v5174, %v5307
        %v5387 = vadd.f32 %v5175, %v5309
        %v5388 = vadd.f32 %v5176, %v5312
        %v5389 = vadd.f32 %v5177, %v5314
        %v5390 = vadd.f32 %v5178, %v5317
        %v5391 = vadd.f32 %v5179, %v5319
        %v5392 = vadd.f32 %v5180, %v5322
        %v5393 = vadd.f32 %v5181, %v5324
        %v5394 = vadd.f32 %v5182, %v5327
        %v5395 = vadd.f32 %v5183, %v5329
        %v5396 = vadd.f32 %v5184, %v5332
        %v5397 = vadd.f32 %v5185, %v5334
        %v5398 = vadd.f32 %v5186, %v5337
        %v5399 = vadd.f32 %v5187, %v5339
        %v5400 = vadd.f32 %v5188, %v5342
        %v5401 = vadd.f32 %v5189, %v5344
        %v5402 = vadd.f32 %v5190, %v5347
        %v5403 = vadd.f32 %v5191, %v5349
        %v5404 = vadd.f32 %v5192, %v5352
        %v5405 = vadd.f32 %v5193, %v5354
        %v5406 = vadd.f32 %v5194, %v5357
        %v5407 = vadd.f32 %v5195, %v5359
        %v5408 = vadd.f32 %v5196, %v5362
        %v5409 = vadd.f32 %v5197, %v5364
        %v5410 = vadd.f32 %v5198, %v5367
        %v5411 = vadd.f32 %v5199, %v5369
        %v5412 = vadd.f32 %v5200, %v5372
        %v5413 = vadd.f32 %v5201, %v5374
        %v5414 = vadd.f32 %v5202, %v5377
        %v5415 = vadd.f32 %v5203, %v5379
        %v5416 = vadd.f32 %v5204, %v5382
        %v5417 = vadd.f32 %v5205, %v5384
        %s5418 = scalar_lea.vmem [#allocation4], 448
        %v5419 = vld [vmem:[%s5418] sm:$0xf]
        %v5420 = vld [vmem:[%s5418 + $0x4] sm:$0xf]
        %v5421 = vld [vmem:[%s5418 + $0x8] sm:$0xf]
        %v5422 = vld [vmem:[%s5418 + $0xc] sm:$0xf]
        %v5423 = vld [vmem:[%s5418 + $0x10] sm:$0xf]
        %v5424 = vld [vmem:[%s5418 + $0x14] sm:$0xf]
        %v5425 = vld [vmem:[%s5418 + $0x18] sm:$0xf]
        %v5426 = vld [vmem:[%s5418 + $0x1c] sm:$0xf]
        %v5427 = vld [vmem:[%s5418 + $0x20] sm:$0xf]
        %v5428 = vld [vmem:[%s5418 + $0x24] sm:$0xf]
        %v5429 = vld [vmem:[%s5418 + $0x28] sm:$0xf]
        %v5430 = vld [vmem:[%s5418 + $0x2c] sm:$0xf]
        %v5431 = vld [vmem:[%s5418 + $0x30] sm:$0xf]
        %v5432 = vld [vmem:[%s5418 + $0x34] sm:$0xf]
        %v5433 = vld [vmem:[%s5418 + $0x38] sm:$0xf]
        %v5434 = vld [vmem:[%s5418 + $0x3c] sm:$0xf]
        %v5437 = vunpack.c.l.b16 %v3302
        %v5438 = vunpack.c.l.b16 %v3303
        %v5439 = vpack.c.b16 %v5438, %v5437
        %v5457 = vunpack.c.l.b16 %v5419
        %v5458 = vunpack.c.l.b16 %v5420
        %v5459 = vunpack.c.l.b16 %v5421
        %v5460 = vunpack.c.l.b16 %v5422
        %v5461 = vunpack.c.l.b16 %v5423
        %v5462 = vunpack.c.l.b16 %v5424
        %v5463 = vunpack.c.l.b16 %v5425
        %v5464 = vunpack.c.l.b16 %v5426
        %v5465 = vunpack.c.l.b16 %v5427
        %v5466 = vunpack.c.l.b16 %v5428
        %v5467 = vunpack.c.l.b16 %v5429
        %v5468 = vunpack.c.l.b16 %v5430
        %v5469 = vunpack.c.l.b16 %v5431
        %v5470 = vunpack.c.l.b16 %v5432
        %v5471 = vunpack.c.l.b16 %v5433
        %v5472 = vunpack.c.l.b16 %v5434
        %v5473 = vpack.c.b16 %v5458, %v5457
        %v5474 = vpack.c.b16 %v5460, %v5459
        %v5475 = vpack.c.b16 %v5462, %v5461
        %v5476 = vpack.c.b16 %v5464, %v5463
        %v5477 = vpack.c.b16 %v5466, %v5465
        %v5478 = vpack.c.b16 %v5468, %v5467
        %v5479 = vpack.c.b16 %v5470, %v5469
        %v5480 = vpack.c.b16 %v5472, %v5471
        %5489 = vmatpush.bf16.msra.mxu0 %v5480
        %5490 = vmatpush.bf16.msra.mxu0 %v5479
        %5491 = vmatpush.bf16.msra.mxu0 %v5478
        %5492 = vmatpush.bf16.msra.mxu0 %v5477
        %5493 = vmatpush.bf16.msra.mxu0 %v5476
        %5494 = vmatpush.bf16.msra.mxu0 %v5475
        %5495 = vmatpush.bf16.msra.mxu0 %v5474
        %5496 = vmatpush.bf16.msra.mxu0 %v5473
        %5497 = vmatmul.bf16.gmra.mxu0 %v3756
        %v5498 = vpop.f32.mrf.mxu0
        %v5499 = vadd.f32 0.0, %v5498
        %v5500 = vpop.f32.mrf.mxu0
        %v5501 = vadd.f32 0.0, %v5500
        %5502 = vmatmul.bf16.gmra.mxu0 %v3757
        %v5503 = vpop.f32.mrf.mxu0
        %v5504 = vadd.f32 0.0, %v5503
        %v5505 = vpop.f32.mrf.mxu0
        %v5506 = vadd.f32 0.0, %v5505
        %5507 = vmatmul.bf16.gmra.mxu0 %v3758
        %v5508 = vpop.f32.mrf.mxu0
        %v5509 = vadd.f32 0.0, %v5508
        %v5510 = vpop.f32.mrf.mxu0
        %v5511 = vadd.f32 0.0, %v5510
        %5512 = vmatmul.bf16.gmra.mxu0 %v3759
        %v5513 = vpop.f32.mrf.mxu0
        %v5514 = vadd.f32 0.0, %v5513
        %v5515 = vpop.f32.mrf.mxu0
        %v5516 = vadd.f32 0.0, %v5515
        %5517 = vmatmul.bf16.gmra.mxu0 %v3760
        %v5518 = vpop.f32.mrf.mxu0
        %v5519 = vadd.f32 0.0, %v5518
        %v5520 = vpop.f32.mrf.mxu0
        %v5521 = vadd.f32 0.0, %v5520
        %5522 = vmatmul.bf16.gmra.mxu0 %v3761
        %v5523 = vpop.f32.mrf.mxu0
        %v5524 = vadd.f32 0.0, %v5523
        %v5525 = vpop.f32.mrf.mxu0
        %v5526 = vadd.f32 0.0, %v5525
        %5527 = vmatmul.bf16.gmra.mxu0 %v3762
        %v5528 = vpop.f32.mrf.mxu0
        %v5529 = vadd.f32 0.0, %v5528
        %v5530 = vpop.f32.mrf.mxu0
        %v5531 = vadd.f32 0.0, %v5530
        %5532 = vmatmul.bf16.gmra.mxu0 %v3763
        %v5533 = vpop.f32.mrf.mxu0
        %v5534 = vadd.f32 0.0, %v5533
        %v5535 = vpop.f32.mrf.mxu0
        %v5536 = vadd.f32 0.0, %v5535
        %5537 = vmatmul.bf16.gmra.mxu0 %v3764
        %v5538 = vpop.f32.mrf.mxu0
        %v5539 = vadd.f32 0.0, %v5538
        %v5540 = vpop.f32.mrf.mxu0
        %v5541 = vadd.f32 0.0, %v5540
        %5542 = vmatmul.bf16.gmra.mxu0 %v3765
        %v5543 = vpop.f32.mrf.mxu0
        %v5544 = vadd.f32 0.0, %v5543
        %v5545 = vpop.f32.mrf.mxu0
        %v5546 = vadd.f32 0.0, %v5545
        %5547 = vmatmul.bf16.gmra.mxu0 %v3766
        %v5548 = vpop.f32.mrf.mxu0
        %v5549 = vadd.f32 0.0, %v5548
        %v5550 = vpop.f32.mrf.mxu0
        %v5551 = vadd.f32 0.0, %v5550
        %5552 = vmatmul.bf16.gmra.mxu0 %v3767
        %v5553 = vpop.f32.mrf.mxu0
        %v5554 = vadd.f32 0.0, %v5553
        %v5555 = vpop.f32.mrf.mxu0
        %v5556 = vadd.f32 0.0, %v5555
        %5557 = vmatmul.bf16.gmra.mxu0 %v3768
        %v5558 = vpop.f32.mrf.mxu0
        %v5559 = vadd.f32 0.0, %v5558
        %v5560 = vpop.f32.mrf.mxu0
        %v5561 = vadd.f32 0.0, %v5560
        %5562 = vmatmul.bf16.gmra.mxu0 %v3769
        %v5563 = vpop.f32.mrf.mxu0
        %v5564 = vadd.f32 0.0, %v5563
        %v5565 = vpop.f32.mrf.mxu0
        %v5566 = vadd.f32 0.0, %v5565
        %5567 = vmatmul.bf16.gmra.mxu0 %v4831
        %v5568 = vpop.f32.mrf.mxu0
        %v5569 = vadd.f32 0.0, %v5568
        %v5570 = vpop.f32.mrf.mxu0
        %v5571 = vadd.f32 0.0, %v5570
        %5572 = vmatmul.bf16.gmra.mxu0 %v5439
        %v5573 = vpop.f32.mrf.mxu0
        %v5574 = vadd.f32 0.0, %v5573
        %v5575 = vpop.f32.mrf.mxu0
        %v5576 = vadd.f32 0.0, %v5575
        %5577 = vdwg.mxu0
        %v5578 = vadd.f32 %v5386, %v5499
        %v5579 = vadd.f32 %v5387, %v5501
        %v5580 = vadd.f32 %v5388, %v5504
        %v5581 = vadd.f32 %v5389, %v5506
        %v5582 = vadd.f32 %v5390, %v5509
        %v5583 = vadd.f32 %v5391, %v5511
        %v5584 = vadd.f32 %v5392, %v5514
        %v5585 = vadd.f32 %v5393, %v5516
        %v5586 = vadd.f32 %v5394, %v5519
        %v5587 = vadd.f32 %v5395, %v5521
        %v5588 = vadd.f32 %v5396, %v5524
        %v5589 = vadd.f32 %v5397, %v5526
        %v5590 = vadd.f32 %v5398, %v5529
        %v5591 = vadd.f32 %v5399, %v5531
        %v5592 = vadd.f32 %v5400, %v5534
        %v5593 = vadd.f32 %v5401, %v5536
        %v5594 = vadd.f32 %v5402, %v5539
        %v5595 = vadd.f32 %v5403, %v5541
        %v5596 = vadd.f32 %v5404, %v5544
        %v5597 = vadd.f32 %v5405, %v5546
        %v5598 = vadd.f32 %v5406, %v5549
        %v5599 = vadd.f32 %v5407, %v5551
        %v5600 = vadd.f32 %v5408, %v5554
        %v5601 = vadd.f32 %v5409, %v5556
        %v5602 = vadd.f32 %v5410, %v5559
        %v5603 = vadd.f32 %v5411, %v5561
        %v5604 = vadd.f32 %v5412, %v5564
        %v5605 = vadd.f32 %v5413, %v5566
        %v5606 = vadd.f32 %v5414, %v5569
        %v5607 = vadd.f32 %v5415, %v5571
        %v5608 = vadd.f32 %v5416, %v5574
        %v5609 = vadd.f32 %v5417, %v5576
        %v5610 = vrot.slane %v5212, 4
        %v5611 = vrot.slane %v5215, 5
        %v5612 = vor.u32 %v5610, %v5611
        %v5613 = vrot.slane %v5612, 4
        %v5614 = vrot.slane %v5224, 5
        %v5615 = vsel %vm1409, %v5613, %v5614
        %v5616 = vrot.slane %v5221, 4
        %v5617 = vor.u32 %v5616, %v5614
        %v5618 = vrot.slane %v5617, 4
        %v5620 = vshll.u32 %v3304, 16
        %v5622 = vrot.slane %v5620, 5
        %v5623 = vsel %vm1409, %v5618, %v5622
        %s5624 = scalar_lea.vmem [#allocation4], 512
        %v5625 = vld [vmem:[%s5624] sm:$0xf]
        %v5626 = vld [vmem:[%s5624 + $0x4] sm:$0xf]
        %v5627 = vld [vmem:[%s5624 + $0x8] sm:$0xf]
        %v5628 = vld [vmem:[%s5624 + $0xc] sm:$0xf]
        %v5629 = vld [vmem:[%s5624 + $0x10] sm:$0xf]
        %v5630 = vld [vmem:[%s5624 + $0x14] sm:$0xf]
        %v5631 = vld [vmem:[%s5624 + $0x18] sm:$0xf]
        %v5632 = vld [vmem:[%s5624 + $0x1c] sm:$0xf]
        %v5633 = vld [vmem:[%s5624 + $0x20] sm:$0xf]
        %v5634 = vld [vmem:[%s5624 + $0x24] sm:$0xf]
        %v5635 = vld [vmem:[%s5624 + $0x28] sm:$0xf]
        %v5636 = vld [vmem:[%s5624 + $0x2c] sm:$0xf]
        %v5637 = vld [vmem:[%s5624 + $0x30] sm:$0xf]
        %v5638 = vld [vmem:[%s5624 + $0x34] sm:$0xf]
        %v5639 = vld [vmem:[%s5624 + $0x38] sm:$0xf]
        %v5640 = vld [vmem:[%s5624 + $0x3c] sm:$0xf]
        %v5641 = vunpack.c.l.b16 %v5615
        %v5642 = vunpack.c.l.b16 %v5623
        %v5643 = vpack.c.b16 %v5642, %v5641
        %v5661 = vunpack.c.l.b16 %v5625
        %v5662 = vunpack.c.l.b16 %v5626
        %v5663 = vunpack.c.l.b16 %v5627
        %v5664 = vunpack.c.l.b16 %v5628
        %v5665 = vunpack.c.l.b16 %v5629
        %v5666 = vunpack.c.l.b16 %v5630
        %v5667 = vunpack.c.l.b16 %v5631
        %v5668 = vunpack.c.l.b16 %v5632
        %v5669 = vunpack.c.l.b16 %v5633
        %v5670 = vunpack.c.l.b16 %v5634
        %v5671 = vunpack.c.l.b16 %v5635
        %v5672 = vunpack.c.l.b16 %v5636
        %v5673 = vunpack.c.l.b16 %v5637
        %v5674 = vunpack.c.l.b16 %v5638
        %v5675 = vunpack.c.l.b16 %v5639
        %v5676 = vunpack.c.l.b16 %v5640
        %v5677 = vpack.c.b16 %v5662, %v5661
        %v5678 = vpack.c.b16 %v5664, %v5663
        %v5679 = vpack.c.b16 %v5666, %v5665
        %v5680 = vpack.c.b16 %v5668, %v5667
        %v5681 = vpack.c.b16 %v5670, %v5669
        %v5682 = vpack.c.b16 %v5672, %v5671
        %v5683 = vpack.c.b16 %v5674, %v5673
        %v5684 = vpack.c.b16 %v5676, %v5675
        %5693 = vmatpush.bf16.msra.mxu0 %v5684
        %5694 = vmatpush.bf16.msra.mxu0 %v5683
        %5695 = vmatpush.bf16.msra.mxu0 %v5682
        %5696 = vmatpush.bf16.msra.mxu0 %v5681
        %5697 = vmatpush.bf16.msra.mxu0 %v5680
        %5698 = vmatpush.bf16.msra.mxu0 %v5679
        %5699 = vmatpush.bf16.msra.mxu0 %v5678
        %5700 = vmatpush.bf16.msra.mxu0 %v5677
        %5701 = vmatmul.bf16.gmra.mxu0 %v4399
        %v5702 = vpop.f32.mrf.mxu0
        %v5703 = vadd.f32 0.0, %v5702
        %v5704 = vpop.f32.mrf.mxu0
        %v5705 = vadd.f32 0.0, %v5704
        %5706 = vmatmul.bf16.gmra.mxu0 %v4400
        %v5707 = vpop.f32.mrf.mxu0
        %v5708 = vadd.f32 0.0, %v5707
        %v5709 = vpop.f32.mrf.mxu0
        %v5710 = vadd.f32 0.0, %v5709
        %5711 = vmatmul.bf16.gmra.mxu0 %v4401
        %v5712 = vpop.f32.mrf.mxu0
        %v5713 = vadd.f32 0.0, %v5712
        %v5714 = vpop.f32.mrf.mxu0
        %v5715 = vadd.f32 0.0, %v5714
        %5716 = vmatmul.bf16.gmra.mxu0 %v4402
        %v5717 = vpop.f32.mrf.mxu0
        %v5718 = vadd.f32 0.0, %v5717
        %v5719 = vpop.f32.mrf.mxu0
        %v5720 = vadd.f32 0.0, %v5719
        %5721 = vmatmul.bf16.gmra.mxu0 %v4403
        %v5722 = vpop.f32.mrf.mxu0
        %v5723 = vadd.f32 0.0, %v5722
        %v5724 = vpop.f32.mrf.mxu0
        %v5725 = vadd.f32 0.0, %v5724
        %5726 = vmatmul.bf16.gmra.mxu0 %v4404
        %v5727 = vpop.f32.mrf.mxu0
        %v5728 = vadd.f32 0.0, %v5727
        %v5729 = vpop.f32.mrf.mxu0
        %v5730 = vadd.f32 0.0, %v5729
        %5731 = vmatmul.bf16.gmra.mxu0 %v4405
        %v5732 = vpop.f32.mrf.mxu0
        %v5733 = vadd.f32 0.0, %v5732
        %v5734 = vpop.f32.mrf.mxu0
        %v5735 = vadd.f32 0.0, %v5734
        %5736 = vmatmul.bf16.gmra.mxu0 %v4406
        %v5737 = vpop.f32.mrf.mxu0
        %v5738 = vadd.f32 0.0, %v5737
        %v5739 = vpop.f32.mrf.mxu0
        %v5740 = vadd.f32 0.0, %v5739
        %5741 = vmatmul.bf16.gmra.mxu0 %v4407
        %v5742 = vpop.f32.mrf.mxu0
        %v5743 = vadd.f32 0.0, %v5742
        %v5744 = vpop.f32.mrf.mxu0
        %v5745 = vadd.f32 0.0, %v5744
        %5746 = vmatmul.bf16.gmra.mxu0 %v4408
        %v5747 = vpop.f32.mrf.mxu0
        %v5748 = vadd.f32 0.0, %v5747
        %v5749 = vpop.f32.mrf.mxu0
        %v5750 = vadd.f32 0.0, %v5749
        %5751 = vmatmul.bf16.gmra.mxu0 %v4409
        %v5752 = vpop.f32.mrf.mxu0
        %v5753 = vadd.f32 0.0, %v5752
        %v5754 = vpop.f32.mrf.mxu0
        %v5755 = vadd.f32 0.0, %v5754
        %5756 = vmatmul.bf16.gmra.mxu0 %v4410
        %v5757 = vpop.f32.mrf.mxu0
        %v5758 = vadd.f32 0.0, %v5757
        %v5759 = vpop.f32.mrf.mxu0
        %v5760 = vadd.f32 0.0, %v5759
        %5761 = vmatmul.bf16.gmra.mxu0 %v4411
        %v5762 = vpop.f32.mrf.mxu0
        %v5763 = vadd.f32 0.0, %v5762
        %v5764 = vpop.f32.mrf.mxu0
        %v5765 = vadd.f32 0.0, %v5764
        %5766 = vmatmul.bf16.gmra.mxu0 %v4412
        %v5767 = vpop.f32.mrf.mxu0
        %v5768 = vadd.f32 0.0, %v5767
        %v5769 = vpop.f32.mrf.mxu0
        %v5770 = vadd.f32 0.0, %v5769
        %5771 = vmatmul.bf16.gmra.mxu0 %v5035
        %v5772 = vpop.f32.mrf.mxu0
        %v5773 = vadd.f32 0.0, %v5772
        %v5774 = vpop.f32.mrf.mxu0
        %v5775 = vadd.f32 0.0, %v5774
        %5776 = vmatmul.bf16.gmra.mxu0 %v5643
        %v5777 = vpop.f32.mrf.mxu0
        %v5778 = vadd.f32 0.0, %v5777
        %v5779 = vpop.f32.mrf.mxu0
        %v5780 = vadd.f32 0.0, %v5779
        %5781 = vdwg.mxu0
        %v5782 = vadd.f32 %v5578, %v5703
        %v5783 = vadd.f32 %v5579, %v5705
        %v5784 = vadd.f32 %v5580, %v5708
        %v5785 = vadd.f32 %v5581, %v5710
        %v5786 = vadd.f32 %v5582, %v5713
        %v5787 = vadd.f32 %v5583, %v5715
        %v5788 = vadd.f32 %v5584, %v5718
        %v5789 = vadd.f32 %v5585, %v5720
        %v5790 = vadd.f32 %v5586, %v5723
        %v5791 = vadd.f32 %v5587, %v5725
        %v5792 = vadd.f32 %v5588, %v5728
        %v5793 = vadd.f32 %v5589, %v5730
        %v5794 = vadd.f32 %v5590, %v5733
        %v5795 = vadd.f32 %v5591, %v5735
        %v5796 = vadd.f32 %v5592, %v5738
        %v5797 = vadd.f32 %v5593, %v5740
        %v5798 = vadd.f32 %v5594, %v5743
        %v5799 = vadd.f32 %v5595, %v5745
        %v5800 = vadd.f32 %v5596, %v5748
        %v5801 = vadd.f32 %v5597, %v5750
        %v5802 = vadd.f32 %v5598, %v5753
        %v5803 = vadd.f32 %v5599, %v5755
        %v5804 = vadd.f32 %v5600, %v5758
        %v5805 = vadd.f32 %v5601, %v5760
        %v5806 = vadd.f32 %v5602, %v5763
        %v5807 = vadd.f32 %v5603, %v5765
        %v5808 = vadd.f32 %v5604, %v5768
        %v5809 = vadd.f32 %v5605, %v5770
        %v5810 = vadd.f32 %v5606, %v5773
        %v5811 = vadd.f32 %v5607, %v5775
        %v5812 = vadd.f32 %v5608, %v5778
        %v5813 = vadd.f32 %v5609, %v5780
        %v5814 = vld [vmem:[%s5] sm:$0x1]
        %v5816 = vperm.slane %v5814, 0
        %v5818 = vadd.f32 %v5782, %v5816
        %v5819 = vadd.f32 %v5783, %v5816
        %v5820 = vadd.f32 %v5784, %v5816
        %v5821 = vadd.f32 %v5785, %v5816
        %v5822 = vadd.f32 %v5786, %v5816
        %v5823 = vadd.f32 %v5787, %v5816
        %v5824 = vadd.f32 %v5788, %v5816
        %v5825 = vadd.f32 %v5789, %v5816
        %v5826 = vadd.f32 %v5790, %v5816
        %v5827 = vadd.f32 %v5791, %v5816
        %v5828 = vadd.f32 %v5792, %v5816
        %v5829 = vadd.f32 %v5793, %v5816
        %v5830 = vadd.f32 %v5794, %v5816
        %v5831 = vadd.f32 %v5795, %v5816
        %v5832 = vadd.f32 %v5796, %v5816
        %v5833 = vadd.f32 %v5797, %v5816
        %v5834 = vadd.f32 %v5798, %v5816
        %v5835 = vadd.f32 %v5799, %v5816
        %v5836 = vadd.f32 %v5800, %v5816
        %v5837 = vadd.f32 %v5801, %v5816
        %v5838 = vadd.f32 %v5802, %v5816
        %v5839 = vadd.f32 %v5803, %v5816
        %v5840 = vadd.f32 %v5804, %v5816
        %v5841 = vadd.f32 %v5805, %v5816
        %v5842 = vadd.f32 %v5806, %v5816
        %v5843 = vadd.f32 %v5807, %v5816
        %v5844 = vadd.f32 %v5808, %v5816
        %v5845 = vadd.f32 %v5809, %v5816
        %v5846 = vadd.f32 %v5810, %v5816
        %v5847 = vadd.f32 %v5811, %v5816
        %v5848 = vadd.f32 %v5812, %v5816
        %v5849 = vadd.f32 %v5813, %v5816
        %v5850 = vmax.f32 %v5818, 0.0
        %v5851 = vmax.f32 %v5819, 0.0
        %v5852 = vmax.f32 %v5820, 0.0
        %v5853 = vmax.f32 %v5821, 0.0
        %v5854 = vmax.f32 %v5822, 0.0
        %v5855 = vmax.f32 %v5823, 0.0
        %v5856 = vmax.f32 %v5824, 0.0
        %v5857 = vmax.f32 %v5825, 0.0
        %v5858 = vmax.f32 %v5826, 0.0
        %v5859 = vmax.f32 %v5827, 0.0
        %v5860 = vmax.f32 %v5828, 0.0
        %v5861 = vmax.f32 %v5829, 0.0
        %v5862 = vmax.f32 %v5830, 0.0
        %v5863 = vmax.f32 %v5831, 0.0
        %v5864 = vmax.f32 %v5832, 0.0
        %v5865 = vmax.f32 %v5833, 0.0
        %v5866 = vmax.f32 %v5834, 0.0
        %v5867 = vmax.f32 %v5835, 0.0
        %v5868 = vmax.f32 %v5836, 0.0
        %v5869 = vmax.f32 %v5837, 0.0
        %v5870 = vmax.f32 %v5838, 0.0
        %v5871 = vmax.f32 %v5839, 0.0
        %v5872 = vmax.f32 %v5840, 0.0
        %v5873 = vmax.f32 %v5841, 0.0
        %v5874 = vmax.f32 %v5842, 0.0
        %v5875 = vmax.f32 %v5843, 0.0
        %v5876 = vmax.f32 %v5844, 0.0
        %v5877 = vmax.f32 %v5845, 0.0
        %v5878 = vmax.f32 %v5846, 0.0
        %v5879 = vmax.f32 %v5847, 0.0
        %v5880 = vmax.f32 %v5848, 0.0
        %v5881 = vmax.f32 %v5849, 0.0
        %v5882 = vld [vmem:[%s421] sm:$0x1]
        %v5884 = vperm.slane %v5882, 0
        %v5886 = vadd.f32 %v5850, %v5884
        %v5887 = vadd.f32 %v5851, %v5884
        %v5888 = vadd.f32 %v5852, %v5884
        %v5889 = vadd.f32 %v5853, %v5884
        %v5890 = vadd.f32 %v5854, %v5884
        %v5891 = vadd.f32 %v5855, %v5884
        %v5892 = vadd.f32 %v5856, %v5884
        %v5893 = vadd.f32 %v5857, %v5884
        %v5894 = vadd.f32 %v5858, %v5884
        %v5895 = vadd.f32 %v5859, %v5884
        %v5896 = vadd.f32 %v5860, %v5884
        %v5897 = vadd.f32 %v5861, %v5884
        %v5898 = vadd.f32 %v5862, %v5884
        %v5899 = vadd.f32 %v5863, %v5884
        %v5900 = vadd.f32 %v5864, %v5884
        %v5901 = vadd.f32 %v5865, %v5884
        %v5902 = vadd.f32 %v5866, %v5884
        %v5903 = vadd.f32 %v5867, %v5884
        %v5904 = vadd.f32 %v5868, %v5884
        %v5905 = vadd.f32 %v5869, %v5884
        %v5906 = vadd.f32 %v5870, %v5884
        %v5907 = vadd.f32 %v5871, %v5884
        %v5908 = vadd.f32 %v5872, %v5884
        %v5909 = vadd.f32 %v5873, %v5884
        %v5910 = vadd.f32 %v5874, %v5884
        %v5911 = vadd.f32 %v5875, %v5884
        %v5912 = vadd.f32 %v5876, %v5884
        %v5913 = vadd.f32 %v5877, %v5884
        %v5914 = vadd.f32 %v5878, %v5884
        %v5915 = vadd.f32 %v5879, %v5884
        %v5916 = vadd.f32 %v5880, %v5884
        %v5917 = vadd.f32 %v5881, %v5884
        %v5918 = vpack.c.bf16 %v5886, %v5886
        %v5919 = vpack.c.bf16 %v5887, %v5887
        %v5920 = vpack.c.bf16 %v5888, %v5888
        %v5921 = vpack.c.bf16 %v5889, %v5889
        %v5922 = vpack.c.bf16 %v5890, %v5890
        %v5923 = vpack.c.bf16 %v5891, %v5891
        %v5924 = vpack.c.bf16 %v5892, %v5892
        %v5925 = vpack.c.bf16 %v5893, %v5893
        %v5926 = vpack.c.bf16 %v5894, %v5894
        %v5927 = vpack.c.bf16 %v5895, %v5895
        %v5928 = vpack.c.bf16 %v5896, %v5896
        %v5929 = vpack.c.bf16 %v5897, %v5897
        %v5930 = vpack.c.bf16 %v5898, %v5898
        %v5931 = vpack.c.bf16 %v5899, %v5899
        %v5932 = vpack.c.bf16 %v5900, %v5900
        %v5933 = vpack.c.bf16 %v5901, %v5901
        %v5934 = vpack.c.bf16 %v5902, %v5902
        %v5935 = vpack.c.bf16 %v5903, %v5903
        %v5936 = vpack.c.bf16 %v5904, %v5904
        %v5937 = vpack.c.bf16 %v5905, %v5905
        %v5938 = vpack.c.bf16 %v5906, %v5906
        %v5939 = vpack.c.bf16 %v5907, %v5907
        %v5940 = vpack.c.bf16 %v5908, %v5908
        %v5941 = vpack.c.bf16 %v5909, %v5909
        %v5942 = vpack.c.bf16 %v5910, %v5910
        %v5943 = vpack.c.bf16 %v5911, %v5911
        %v5944 = vpack.c.bf16 %v5912, %v5912
        %v5945 = vpack.c.bf16 %v5913, %v5913
        %v5946 = vpack.c.bf16 %v5914, %v5914
        %v5947 = vpack.c.bf16 %v5915, %v5915
        %v5948 = vpack.c.bf16 %v5916, %v5916
        %v5949 = vpack.c.bf16 %v5917, %v5917
        %s5950 = scalar_lea.vmem [#allocation3], 16
        %5951 = vst [vmem:[%s5950 + $0x4] sm:$0xf] %v5918
        %5952 = vst [vmem:[%s5950 + $0x8] sm:$0xf] %v5919
        %5953 = vst [vmem:[%s5950 + $0x14] sm:$0xf] %v5920
        %5954 = vst [vmem:[%s5950 + $0x18] sm:$0xf] %v5921
        %5955 = vst [vmem:[%s5950 + $0x24] sm:$0xf] %v5922
        %5956 = vst [vmem:[%s5950 + $0x28] sm:$0xf] %v5923
        %5957 = vst [vmem:[%s5950 + $0x34] sm:$0xf] %v5924
        %5958 = vst [vmem:[%s5950 + $0x38] sm:$0xf] %v5925
        %5959 = vst [vmem:[%s5950 + $0x44] sm:$0xf] %v5926
        %5960 = vst [vmem:[%s5950 + $0x48] sm:$0xf] %v5927
        %5961 = vst [vmem:[%s5950 + $0x54] sm:$0xf] %v5928
        %5962 = vst [vmem:[%s5950 + $0x58] sm:$0xf] %v5929
        %5963 = vst [vmem:[%s5950 + $0x64] sm:$0xf] %v5930
        %5964 = vst [vmem:[%s5950 + $0x68] sm:$0xf] %v5931
        %5965 = vst [vmem:[%s5950 + $0x74] sm:$0xf] %v5932
        %5966 = vst [vmem:[%s5950 + $0x78] sm:$0xf] %v5933
        %5967 = vst [vmem:[%s5950 + $0x84] sm:$0xf] %v5934
        %5968 = vst [vmem:[%s5950 + $0x88] sm:$0xf] %v5935
        %5969 = vst [vmem:[%s5950 + $0x94] sm:$0xf] %v5936
        %5970 = vst [vmem:[%s5950 + $0x98] sm:$0xf] %v5937
        %5971 = vst [vmem:[%s5950 + $0xa4] sm:$0xf] %v5938
        %5972 = vst [vmem:[%s5950 + $0xa8] sm:$0xf] %v5939
        %5973 = vst [vmem:[%s5950 + $0xb4] sm:$0xf] %v5940
        %5974 = vst [vmem:[%s5950 + $0xb8] sm:$0xf] %v5941
        %5975 = vst [vmem:[%s5950 + $0xc4] sm:$0xf] %v5942
        %5976 = vst [vmem:[%s5950 + $0xc8] sm:$0xf] %v5943
        %5977 = vst [vmem:[%s5950 + $0xd4] sm:$0xf] %v5944
        %5978 = vst [vmem:[%s5950 + $0xd8] sm:$0xf] %v5945
        %5979 = vst [vmem:[%s5950 + $0xe4] sm:$0xf] %v5946
        %5980 = vst [vmem:[%s5950 + $0xe8] sm:$0xf] %v5947
        %5981 = vst [vmem:[%s5950 + $0xf4] sm:$0xf] %v5948
        %5982 = vst [vmem:[%s5950 + $0xf8] sm:$0xf] %v5949
        %v5983 = vld [vmem:[#allocation3] sm:$0xf]
        %v5984 = vld [vmem:[#allocation3 + $0x4] sm:$0xf]
        %v5985 = vld [vmem:[#allocation3 + $0x8] sm:$0xf]
        %v5986 = vld [vmem:[#allocation3 + $0xc] sm:$0x1]
        %v5987 = vld [vmem:[#allocation3 + $0x10] sm:$0xf]
        %v5988 = vld [vmem:[#allocation3 + $0x14] sm:$0xf]
        %v5989 = vld [vmem:[#allocation3 + $0x18] sm:$0xf]
        %v5990 = vld [vmem:[#allocation3 + $0x1c] sm:$0x1]
        %v5991 = vld [vmem:[#allocation3 + $0x20] sm:$0xf]
        %v5992 = vld [vmem:[#allocation3 + $0x24] sm:$0xf]
        %v5993 = vld [vmem:[#allocation3 + $0x28] sm:$0xf]
        %v5994 = vld [vmem:[#allocation3 + $0x2c] sm:$0x1]
        %v5995 = vld [vmem:[#allocation3 + $0x30] sm:$0xf]
        %v5996 = vld [vmem:[#allocation3 + $0x34] sm:$0xf]
        %v5997 = vld [vmem:[#allocation3 + $0x38] sm:$0xf]
        %v5998 = vld [vmem:[#allocation3 + $0x3c] sm:$0x1]
        %v5999 = vld [vmem:[#allocation3 + $0x40] sm:$0xf]
        %v6000 = vld [vmem:[#allocation3 + $0x44] sm:$0xf]
        %v6001 = vld [vmem:[#allocation3 + $0x48] sm:$0xf]
        %v6002 = vld [vmem:[#allocation3 + $0x4c] sm:$0x1]
        %v6003 = vld [vmem:[#allocation3 + $0x50] sm:$0xf]
        %v6004 = vld [vmem:[#allocation3 + $0x54] sm:$0xf]
        %v6005 = vld [vmem:[#allocation3 + $0x58] sm:$0xf]
        %v6006 = vld [vmem:[#allocation3 + $0x5c] sm:$0x1]
        %v6007 = vld [vmem:[#allocation3 + $0x60] sm:$0xf]
        %v6008 = vld [vmem:[#allocation3 + $0x64] sm:$0xf]
        %v6009 = vld [vmem:[#allocation3 + $0x68] sm:$0xf]
        %v6010 = vld [vmem:[#allocation3 + $0x6c] sm:$0x1]
        %v6011 = vld [vmem:[#allocation3 + $0x70] sm:$0xf]
        %v6012 = vld [vmem:[#allocation3 + $0x74] sm:$0xf]
        %v6013 = vld [vmem:[#allocation3 + $0x78] sm:$0xf]
        %v6014 = vld [vmem:[#allocation3 + $0x7c] sm:$0x1]
        %v6015 = vld [vmem:[#allocation3 + $0x80] sm:$0xf]
        %v6016 = vld [vmem:[#allocation3 + $0x84] sm:$0xf]
        %v6017 = vld [vmem:[#allocation3 + $0x88] sm:$0xf]
        %v6018 = vld [vmem:[#allocation3 + $0x8c] sm:$0x1]
        %v6019 = vld [vmem:[#allocation3 + $0x90] sm:$0xf]
        %v6020 = vld [vmem:[#allocation3 + $0x94] sm:$0xf]
        %v6021 = vld [vmem:[#allocation3 + $0x98] sm:$0xf]
        %v6022 = vld [vmem:[#allocation3 + $0x9c] sm:$0x1]
        %v6023 = vld [vmem:[#allocation3 + $0xa0] sm:$0xf]
        %v6024 = vld [vmem:[#allocation3 + $0xa4] sm:$0xf]
        %v6025 = vld [vmem:[#allocation3 + $0xa8] sm:$0xf]
        %v6026 = vld [vmem:[#allocation3 + $0xac] sm:$0x1]
        %v6027 = vld [vmem:[#allocation3 + $0xb0] sm:$0xf]
        %v6028 = vld [vmem:[#allocation3 + $0xb4] sm:$0xf]
        %v6029 = vld [vmem:[#allocation3 + $0xb8] sm:$0xf]
        %v6030 = vld [vmem:[#allocation3 + $0xbc] sm:$0x1]
        %v6031 = vld [vmem:[#allocation3 + $0xc0] sm:$0xf]
        %v6032 = vld [vmem:[#allocation3 + $0xc4] sm:$0xf]
        %v6033 = vld [vmem:[#allocation3 + $0xc8] sm:$0xf]
        %v6034 = vld [vmem:[#allocation3 + $0xcc] sm:$0x1]
        %v6035 = vld [vmem:[#allocation3 + $0xd0] sm:$0xf]
        %v6036 = vld [vmem:[#allocation3 + $0xd4] sm:$0xf]
        %v6037 = vld [vmem:[#allocation3 + $0xd8] sm:$0xf]
        %v6038 = vld [vmem:[#allocation3 + $0xdc] sm:$0x1]
        %v6039 = vld [vmem:[#allocation3 + $0xe0] sm:$0xf]
        %v6040 = vld [vmem:[#allocation3 + $0xe4] sm:$0xf]
        %v6041 = vld [vmem:[#allocation3 + $0xe8] sm:$0xf]
        %v6042 = vld [vmem:[#allocation3 + $0xec] sm:$0x1]
        %v6043 = vld [vmem:[#allocation3 + $0xf0] sm:$0xf]
        %v6044 = vld [vmem:[#allocation3 + $0xf4] sm:$0xf]
        %v6045 = vld [vmem:[#allocation3 + $0xf8] sm:$0xf]
        %v6046 = vld [vmem:[#allocation3 + $0xfc] sm:$0x1]
        %v6047 = vld [vmem:[#allocation3 + $0x100] sm:$0xf]
        %v6048 = vld [vmem:[#allocation3 + $0x104] sm:$0xf]
        %v6049 = vld [vmem:[#allocation3 + $0x108] sm:$0xf]
        %v6050 = vld [vmem:[#allocation3 + $0x10c] sm:$0x1]
        %v6051 = vld [vmem:[#allocation3 + $0x110] sm:$0xf]
        %v6052 = vld [vmem:[#allocation3 + $0x114] sm:$0xf]
        %v6053 = vld [vmem:[#allocation3 + $0x118] sm:$0xf]
        %v6054 = vld [vmem:[#allocation3 + $0x11c] sm:$0x1]
        %v6056 = vshrl.u32 %v5983, 16
        %v6058 = vrot.slane %v6056, 7
        %v6059 = vrot.slane %v6058, 4
        %v6061 = vshrl.u32 %v5984, 16
        %v6063 = vrot.slane %v6061, 7
        %v6064 = vshll.u32 %v5984, 16
        %v6066 = vor.u32 %v6063, %v6064
        %v6067 = vsel %vm587, %v6059, %v6066
        %v6068 = vrot.slane %v6063, 4
        %v6070 = vshrl.u32 %v5985, 16
        %v6072 = vrot.slane %v6070, 7
        %v6073 = vshll.u32 %v5985, 16
        %v6075 = vor.u32 %v6072, %v6073
        %v6076 = vsel %vm587, %v6068, %v6075
        %v6078 = vshrl.u32 %v5987, 16
        %v6080 = vrot.slane %v6078, 7
        %v6081 = vrot.slane %v6080, 4
        %v6083 = vshrl.u32 %v5988, 16
        %v6085 = vrot.slane %v6083, 7
        %v6086 = vshll.u32 %v5988, 16
        %v6088 = vor.u32 %v6085, %v6086
        %v6089 = vsel %vm587, %v6081, %v6088
        %v6090 = vrot.slane %v6085, 4
        %v6092 = vshrl.u32 %v5989, 16
        %v6094 = vrot.slane %v6092, 7
        %v6095 = vshll.u32 %v5989, 16
        %v6097 = vor.u32 %v6094, %v6095
        %v6098 = vsel %vm587, %v6090, %v6097
        %v6100 = vshrl.u32 %v5991, 16
        %v6102 = vrot.slane %v6100, 7
        %v6103 = vrot.slane %v6102, 4
        %v6105 = vshrl.u32 %v5992, 16
        %v6107 = vrot.slane %v6105, 7
        %v6108 = vshll.u32 %v5992, 16
        %v6110 = vor.u32 %v6107, %v6108
        %v6111 = vsel %vm587, %v6103, %v6110
        %v6112 = vrot.slane %v6107, 4
        %v6114 = vshrl.u32 %v5993, 16
        %v6116 = vrot.slane %v6114, 7
        %v6117 = vshll.u32 %v5993, 16
        %v6119 = vor.u32 %v6116, %v6117
        %v6120 = vsel %vm587, %v6112, %v6119
        %v6122 = vshrl.u32 %v5995, 16
        %v6124 = vrot.slane %v6122, 7
        %v6125 = vrot.slane %v6124, 4
        %v6127 = vshrl.u32 %v5996, 16
        %v6129 = vrot.slane %v6127, 7
        %v6130 = vshll.u32 %v5996, 16
        %v6132 = vor.u32 %v6129, %v6130
        %v6133 = vsel %vm587, %v6125, %v6132
        %v6134 = vrot.slane %v6129, 4
        %v6136 = vshrl.u32 %v5997, 16
        %v6138 = vrot.slane %v6136, 7
        %v6139 = vshll.u32 %v5997, 16
        %v6141 = vor.u32 %v6138, %v6139
        %v6142 = vsel %vm587, %v6134, %v6141
        %v6144 = vshrl.u32 %v5999, 16
        %v6146 = vrot.slane %v6144, 7
        %v6147 = vrot.slane %v6146, 4
        %v6149 = vshrl.u32 %v6000, 16
        %v6151 = vrot.slane %v6149, 7
        %v6152 = vshll.u32 %v6000, 16
        %v6154 = vor.u32 %v6151, %v6152
        %v6155 = vsel %vm587, %v6147, %v6154
        %v6156 = vrot.slane %v6151, 4
        %v6158 = vshrl.u32 %v6001, 16
        %v6160 = vrot.slane %v6158, 7
        %v6161 = vshll.u32 %v6001, 16
        %v6163 = vor.u32 %v6160, %v6161
        %v6164 = vsel %vm587, %v6156, %v6163
        %v6166 = vshrl.u32 %v6003, 16
        %v6168 = vrot.slane %v6166, 7
        %v6169 = vrot.slane %v6168, 4
        %v6171 = vshrl.u32 %v6004, 16
        %v6173 = vrot.slane %v6171, 7
        %v6174 = vshll.u32 %v6004, 16
        %v6176 = vor.u32 %v6173, %v6174
        %v6177 = vsel %vm587, %v6169, %v6176
        %v6178 = vrot.slane %v6173, 4
        %v6180 = vshrl.u32 %v6005, 16
        %v6182 = vrot.slane %v6180, 7
        %v6183 = vshll.u32 %v6005, 16
        %v6185 = vor.u32 %v6182, %v6183
        %v6186 = vsel %vm587, %v6178, %v6185
        %v6188 = vshrl.u32 %v6007, 16
        %v6190 = vrot.slane %v6188, 7
        %v6191 = vrot.slane %v6190, 4
        %v6193 = vshrl.u32 %v6008, 16
        %v6195 = vrot.slane %v6193, 7
        %v6196 = vshll.u32 %v6008, 16
        %v6198 = vor.u32 %v6195, %v6196
        %v6199 = vsel %vm587, %v6191, %v6198
        %v6200 = vrot.slane %v6195, 4
        %v6202 = vshrl.u32 %v6009, 16
        %v6204 = vrot.slane %v6202, 7
        %v6205 = vshll.u32 %v6009, 16
        %v6207 = vor.u32 %v6204, %v6205
        %v6208 = vsel %vm587, %v6200, %v6207
        %v6210 = vshrl.u32 %v6011, 16
        %v6212 = vrot.slane %v6210, 7
        %v6213 = vrot.slane %v6212, 4
        %v6215 = vshrl.u32 %v6012, 16
        %v6217 = vrot.slane %v6215, 7
        %v6218 = vshll.u32 %v6012, 16
        %v6220 = vor.u32 %v6217, %v6218
        %v6221 = vsel %vm587, %v6213, %v6220
        %v6222 = vrot.slane %v6217, 4
        %v6224 = vshrl.u32 %v6013, 16
        %v6226 = vrot.slane %v6224, 7
        %v6227 = vshll.u32 %v6013, 16
        %v6229 = vor.u32 %v6226, %v6227
        %v6230 = vsel %vm587, %v6222, %v6229
        %v6232 = vshrl.u32 %v6015, 16
        %v6234 = vrot.slane %v6232, 7
        %v6235 = vrot.slane %v6234, 4
        %v6237 = vshrl.u32 %v6016, 16
        %v6239 = vrot.slane %v6237, 7
        %v6240 = vshll.u32 %v6016, 16
        %v6242 = vor.u32 %v6239, %v6240
        %v6243 = vsel %vm587, %v6235, %v6242
        %v6244 = vrot.slane %v6239, 4
        %v6246 = vshrl.u32 %v6017, 16
        %v6248 = vrot.slane %v6246, 7
        %v6249 = vshll.u32 %v6017, 16
        %v6251 = vor.u32 %v6248, %v6249
        %v6252 = vsel %vm587, %v6244, %v6251
        %v6254 = vshrl.u32 %v6019, 16
        %v6256 = vrot.slane %v6254, 7
        %v6257 = vrot.slane %v6256, 4
        %v6259 = vshrl.u32 %v6020, 16
        %v6261 = vrot.slane %v6259, 7
        %v6262 = vshll.u32 %v6020, 16
        %v6264 = vor.u32 %v6261, %v6262
        %v6265 = vsel %vm587, %v6257, %v6264
        %v6266 = vrot.slane %v6261, 4
        %v6268 = vshrl.u32 %v6021, 16
        %v6270 = vrot.slane %v6268, 7
        %v6271 = vshll.u32 %v6021, 16
        %v6273 = vor.u32 %v6270, %v6271
        %v6274 = vsel %vm587, %v6266, %v6273
        %v6276 = vshrl.u32 %v6023, 16
        %v6278 = vrot.slane %v6276, 7
        %v6279 = vrot.slane %v6278, 4
        %v6281 = vshrl.u32 %v6024, 16
        %v6283 = vrot.slane %v6281, 7
        %v6284 = vshll.u32 %v6024, 16
        %v6286 = vor.u32 %v6283, %v6284
        %v6287 = vsel %vm587, %v6279, %v6286
        %v6288 = vrot.slane %v6283, 4
        %v6290 = vshrl.u32 %v6025, 16
        %v6292 = vrot.slane %v6290, 7
        %v6293 = vshll.u32 %v6025, 16
        %v6295 = vor.u32 %v6292, %v6293
        %v6296 = vsel %vm587, %v6288, %v6295
        %v6298 = vshrl.u32 %v6027, 16
        %v6300 = vrot.slane %v6298, 7
        %v6301 = vrot.slane %v6300, 4
        %v6303 = vshrl.u32 %v6028, 16
        %v6305 = vrot.slane %v6303, 7
        %v6306 = vshll.u32 %v6028, 16
        %v6308 = vor.u32 %v6305, %v6306
        %v6309 = vsel %vm587, %v6301, %v6308
        %v6310 = vrot.slane %v6305, 4
        %v6312 = vshrl.u32 %v6029, 16
        %v6314 = vrot.slane %v6312, 7
        %v6315 = vshll.u32 %v6029, 16
        %v6317 = vor.u32 %v6314, %v6315
        %v6318 = vsel %vm587, %v6310, %v6317
        %v6320 = vshrl.u32 %v6031, 16
        %v6322 = vrot.slane %v6320, 7
        %v6323 = vrot.slane %v6322, 4
        %v6325 = vshrl.u32 %v6032, 16
        %v6327 = vrot.slane %v6325, 7
        %v6328 = vshll.u32 %v6032, 16
        %v6330 = vor.u32 %v6327, %v6328
        %v6331 = vsel %vm587, %v6323, %v6330
        %v6332 = vrot.slane %v6327, 4
        %v6334 = vshrl.u32 %v6033, 16
        %v6336 = vrot.slane %v6334, 7
        %v6337 = vshll.u32 %v6033, 16
        %v6339 = vor.u32 %v6336, %v6337
        %v6340 = vsel %vm587, %v6332, %v6339
        %v6342 = vshrl.u32 %v6035, 16
        %v6344 = vrot.slane %v6342, 7
        %v6345 = vrot.slane %v6344, 4
        %v6347 = vshrl.u32 %v6036, 16
        %v6349 = vrot.slane %v6347, 7
        %v6350 = vshll.u32 %v6036, 16
        %v6352 = vor.u32 %v6349, %v6350
        %v6353 = vsel %vm587, %v6345, %v6352
        %v6354 = vrot.slane %v6349, 4
        %v6356 = vshrl.u32 %v6037, 16
        %v6358 = vrot.slane %v6356, 7
        %v6359 = vshll.u32 %v6037, 16
        %v6361 = vor.u32 %v6358, %v6359
        %v6362 = vsel %vm587, %v6354, %v6361
        %v6364 = vshrl.u32 %v6039, 16
        %v6366 = vrot.slane %v6364, 7
        %v6367 = vrot.slane %v6366, 4
        %v6369 = vshrl.u32 %v6040, 16
        %v6371 = vrot.slane %v6369, 7
        %v6372 = vshll.u32 %v6040, 16
        %v6374 = vor.u32 %v6371, %v6372
        %v6375 = vsel %vm587, %v6367, %v6374
        %v6376 = vrot.slane %v6371, 4
        %v6378 = vshrl.u32 %v6041, 16
        %v6380 = vrot.slane %v6378, 7
        %v6381 = vshll.u32 %v6041, 16
        %v6383 = vor.u32 %v6380, %v6381
        %v6384 = vsel %vm587, %v6376, %v6383
        %v6386 = vshrl.u32 %v6043, 16
        %v6388 = vrot.slane %v6386, 7
        %v6389 = vrot.slane %v6388, 4
        %v6391 = vshrl.u32 %v6044, 16
        %v6393 = vrot.slane %v6391, 7
        %v6394 = vshll.u32 %v6044, 16
        %v6396 = vor.u32 %v6393, %v6394
        %v6397 = vsel %vm587, %v6389, %v6396
        %v6398 = vrot.slane %v6393, 4
        %v6400 = vshrl.u32 %v6045, 16
        %v6402 = vrot.slane %v6400, 7
        %v6403 = vshll.u32 %v6045, 16
        %v6405 = vor.u32 %v6402, %v6403
        %v6406 = vsel %vm587, %v6398, %v6405
        %v6407 = vld [vmem:[#allocation7] sm:$0xf]
        %v6408 = vld [vmem:[#allocation7 + $0x4] sm:$0xf]
        %v6409 = vld [vmem:[#allocation7 + $0x8] sm:$0xf]
        %v6410 = vld [vmem:[#allocation7 + $0xc] sm:$0xf]
        %v6411 = vld [vmem:[#allocation7 + $0x10] sm:$0xf]
        %v6412 = vld [vmem:[#allocation7 + $0x14] sm:$0xf]
        %v6413 = vld [vmem:[#allocation7 + $0x18] sm:$0xf]
        %v6414 = vld [vmem:[#allocation7 + $0x1c] sm:$0xf]
        %v6415 = vld [vmem:[#allocation7 + $0x20] sm:$0xf]
        %v6416 = vld [vmem:[#allocation7 + $0x24] sm:$0xf]
        %v6417 = vld [vmem:[#allocation7 + $0x28] sm:$0xf]
        %v6418 = vld [vmem:[#allocation7 + $0x2c] sm:$0xf]
        %v6419 = vld [vmem:[#allocation7 + $0x30] sm:$0xf]
        %v6420 = vld [vmem:[#allocation7 + $0x34] sm:$0xf]
        %v6421 = vld [vmem:[#allocation7 + $0x38] sm:$0xf]
        %v6422 = vld [vmem:[#allocation7 + $0x3c] sm:$0xf]
        %s6423 = scalar_lea.vmem [#allocation7], 64
        %v6424 = vld [vmem:[%s6423] sm:$0xf]
        %v6425 = vld [vmem:[%s6423 + $0x4] sm:$0xf]
        %v6426 = vld [vmem:[%s6423 + $0x8] sm:$0xf]
        %v6427 = vld [vmem:[%s6423 + $0xc] sm:$0xf]
        %v6428 = vld [vmem:[%s6423 + $0x10] sm:$0xf]
        %v6429 = vld [vmem:[%s6423 + $0x14] sm:$0xf]
        %v6430 = vld [vmem:[%s6423 + $0x18] sm:$0xf]
        %v6431 = vld [vmem:[%s6423 + $0x1c] sm:$0xf]
        %v6432 = vld [vmem:[%s6423 + $0x20] sm:$0xf]
        %v6433 = vld [vmem:[%s6423 + $0x24] sm:$0xf]
        %v6434 = vld [vmem:[%s6423 + $0x28] sm:$0xf]
        %v6435 = vld [vmem:[%s6423 + $0x2c] sm:$0xf]
        %v6436 = vld [vmem:[%s6423 + $0x30] sm:$0xf]
        %v6437 = vld [vmem:[%s6423 + $0x34] sm:$0xf]
        %v6438 = vld [vmem:[%s6423 + $0x38] sm:$0xf]
        %v6439 = vld [vmem:[%s6423 + $0x3c] sm:$0xf]
        %v6472 = vunpack.c.l.b16 %v5984
        %v6473 = vunpack.c.l.b16 %v5985
        %v6474 = vunpack.c.l.b16 %v5988
        %v6475 = vunpack.c.l.b16 %v5989
        %v6476 = vunpack.c.l.b16 %v5992
        %v6477 = vunpack.c.l.b16 %v5993
        %v6478 = vunpack.c.l.b16 %v5996
        %v6479 = vunpack.c.l.b16 %v5997
        %v6480 = vunpack.c.l.b16 %v6000
        %v6481 = vunpack.c.l.b16 %v6001
        %v6482 = vunpack.c.l.b16 %v6004
        %v6483 = vunpack.c.l.b16 %v6005
        %v6484 = vunpack.c.l.b16 %v6008
        %v6485 = vunpack.c.l.b16 %v6009
        %v6486 = vunpack.c.l.b16 %v6012
        %v6487 = vunpack.c.l.b16 %v6013
        %v6488 = vunpack.c.l.b16 %v6016
        %v6489 = vunpack.c.l.b16 %v6017
        %v6490 = vunpack.c.l.b16 %v6020
        %v6491 = vunpack.c.l.b16 %v6021
        %v6492 = vunpack.c.l.b16 %v6024
        %v6493 = vunpack.c.l.b16 %v6025
        %v6494 = vunpack.c.l.b16 %v6028
        %v6495 = vunpack.c.l.b16 %v6029
        %v6496 = vunpack.c.l.b16 %v6032
        %v6497 = vunpack.c.l.b16 %v6033
        %v6498 = vunpack.c.l.b16 %v6036
        %v6499 = vunpack.c.l.b16 %v6037
        %v6500 = vunpack.c.l.b16 %v6040
        %v6501 = vunpack.c.l.b16 %v6041
        %v6502 = vunpack.c.l.b16 %v6044
        %v6503 = vunpack.c.l.b16 %v6045
        %v6504 = vpack.c.b16 %v6473, %v6472
        %v6505 = vpack.c.b16 %v6475, %v6474
        %v6506 = vpack.c.b16 %v6477, %v6476
        %v6507 = vpack.c.b16 %v6479, %v6478
        %v6508 = vpack.c.b16 %v6481, %v6480
        %v6509 = vpack.c.b16 %v6483, %v6482
        %v6510 = vpack.c.b16 %v6485, %v6484
        %v6511 = vpack.c.b16 %v6487, %v6486
        %v6512 = vpack.c.b16 %v6489, %v6488
        %v6513 = vpack.c.b16 %v6491, %v6490
        %v6514 = vpack.c.b16 %v6493, %v6492
        %v6515 = vpack.c.b16 %v6495, %v6494
        %v6516 = vpack.c.b16 %v6497, %v6496
        %v6517 = vpack.c.b16 %v6499, %v6498
        %v6518 = vpack.c.b16 %v6501, %v6500
        %v6519 = vpack.c.b16 %v6503, %v6502
        %v6552 = vunpack.c.l.b16 %v6424
        %v6553 = vunpack.c.l.b16 %v6425
        %v6554 = vunpack.c.l.b16 %v6426
        %v6555 = vunpack.c.l.b16 %v6427
        %v6556 = vunpack.c.l.b16 %v6428
        %v6557 = vunpack.c.l.b16 %v6429
        %v6558 = vunpack.c.l.b16 %v6430
        %v6559 = vunpack.c.l.b16 %v6431
        %v6560 = vunpack.c.l.b16 %v6432
        %v6561 = vunpack.c.l.b16 %v6433
        %v6562 = vunpack.c.l.b16 %v6434
        %v6563 = vunpack.c.l.b16 %v6435
        %v6564 = vunpack.c.l.b16 %v6436
        %v6565 = vunpack.c.l.b16 %v6437
        %v6566 = vunpack.c.l.b16 %v6438
        %v6567 = vunpack.c.l.b16 %v6439
        %v6568 = vpack.c.b16 %v6553, %v6552
        %v6569 = vpack.c.b16 %v6555, %v6554
        %v6570 = vpack.c.b16 %v6557, %v6556
        %v6571 = vpack.c.b16 %v6559, %v6558
        %v6572 = vpack.c.b16 %v6561, %v6560
        %v6573 = vpack.c.b16 %v6563, %v6562
        %v6574 = vpack.c.b16 %v6565, %v6564
        %v6575 = vpack.c.b16 %v6567, %v6566
        %6584 = vmatpush.bf16.msra.mxu0 %v6575
        %6585 = vmatpush.bf16.msra.mxu0 %v6574
        %6586 = vmatpush.bf16.msra.mxu0 %v6573
        %6587 = vmatpush.bf16.msra.mxu0 %v6572
        %6588 = vmatpush.bf16.msra.mxu0 %v6571
        %6589 = vmatpush.bf16.msra.mxu0 %v6570
        %6590 = vmatpush.bf16.msra.mxu0 %v6569
        %6591 = vmatpush.bf16.msra.mxu0 %v6568
        %6592 = vmatmul.bf16.gmra.mxu0 %v6504
        %v6593 = vpop.f32.mrf.mxu0
        %v6594 = vadd.f32 0.0, %v6593
        %v6595 = vpop.f32.mrf.mxu0
        %v6596 = vadd.f32 0.0, %v6595
        %6597 = vmatmul.bf16.gmra.mxu0 %v6505
        %v6598 = vpop.f32.mrf.mxu0
        %v6599 = vadd.f32 0.0, %v6598
        %v6600 = vpop.f32.mrf.mxu0
        %v6601 = vadd.f32 0.0, %v6600
        %6602 = vmatmul.bf16.gmra.mxu0 %v6506
        %v6603 = vpop.f32.mrf.mxu0
        %v6604 = vadd.f32 0.0, %v6603
        %v6605 = vpop.f32.mrf.mxu0
        %v6606 = vadd.f32 0.0, %v6605
        %6607 = vmatmul.bf16.gmra.mxu0 %v6507
        %v6608 = vpop.f32.mrf.mxu0
        %v6609 = vadd.f32 0.0, %v6608
        %v6610 = vpop.f32.mrf.mxu0
        %v6611 = vadd.f32 0.0, %v6610
        %6612 = vmatmul.bf16.gmra.mxu0 %v6508
        %v6613 = vpop.f32.mrf.mxu0
        %v6614 = vadd.f32 0.0, %v6613
        %v6615 = vpop.f32.mrf.mxu0
        %v6616 = vadd.f32 0.0, %v6615
        %6617 = vmatmul.bf16.gmra.mxu0 %v6509
        %v6618 = vpop.f32.mrf.mxu0
        %v6619 = vadd.f32 0.0, %v6618
        %v6620 = vpop.f32.mrf.mxu0
        %v6621 = vadd.f32 0.0, %v6620
        %6622 = vmatmul.bf16.gmra.mxu0 %v6510
        %v6623 = vpop.f32.mrf.mxu0
        %v6624 = vadd.f32 0.0, %v6623
        %v6625 = vpop.f32.mrf.mxu0
        %v6626 = vadd.f32 0.0, %v6625
        %6627 = vmatmul.bf16.gmra.mxu0 %v6511
        %v6628 = vpop.f32.mrf.mxu0
        %v6629 = vadd.f32 0.0, %v6628
        %v6630 = vpop.f32.mrf.mxu0
        %v6631 = vadd.f32 0.0, %v6630
        %6632 = vmatmul.bf16.gmra.mxu0 %v6512
        %v6633 = vpop.f32.mrf.mxu0
        %v6634 = vadd.f32 0.0, %v6633
        %v6635 = vpop.f32.mrf.mxu0
        %v6636 = vadd.f32 0.0, %v6635
        %6637 = vmatmul.bf16.gmra.mxu0 %v6513
        %v6638 = vpop.f32.mrf.mxu0
        %v6639 = vadd.f32 0.0, %v6638
        %v6640 = vpop.f32.mrf.mxu0
        %v6641 = vadd.f32 0.0, %v6640
        %6642 = vmatmul.bf16.gmra.mxu0 %v6514
        %v6643 = vpop.f32.mrf.mxu0
        %v6644 = vadd.f32 0.0, %v6643
        %v6645 = vpop.f32.mrf.mxu0
        %v6646 = vadd.f32 0.0, %v6645
        %6647 = vmatmul.bf16.gmra.mxu0 %v6515
        %v6648 = vpop.f32.mrf.mxu0
        %v6649 = vadd.f32 0.0, %v6648
        %v6650 = vpop.f32.mrf.mxu0
        %v6651 = vadd.f32 0.0, %v6650
        %6652 = vmatmul.bf16.gmra.mxu0 %v6516
        %v6653 = vpop.f32.mrf.mxu0
        %v6654 = vadd.f32 0.0, %v6653
        %v6655 = vpop.f32.mrf.mxu0
        %v6656 = vadd.f32 0.0, %v6655
        %6657 = vmatmul.bf16.gmra.mxu0 %v6517
        %v6658 = vpop.f32.mrf.mxu0
        %v6659 = vadd.f32 0.0, %v6658
        %v6660 = vpop.f32.mrf.mxu0
        %v6661 = vadd.f32 0.0, %v6660
        %6662 = vmatmul.bf16.gmra.mxu0 %v6518
        %v6663 = vpop.f32.mrf.mxu0
        %v6664 = vadd.f32 0.0, %v6663
        %v6665 = vpop.f32.mrf.mxu0
        %v6666 = vadd.f32 0.0, %v6665
        %6667 = vmatmul.bf16.gmra.mxu0 %v6519
        %v6668 = vpop.f32.mrf.mxu0
        %v6669 = vadd.f32 0.0, %v6668
        %v6670 = vpop.f32.mrf.mxu0
        %v6671 = vadd.f32 0.0, %v6670
        %6672 = vdwg.mxu0
        %v6673 = vunpack.c.l.b16 %v6067
        %v6674 = vunpack.c.l.b16 %v6076
        %v6675 = vunpack.c.l.b16 %v6089
        %v6676 = vunpack.c.l.b16 %v6098
        %v6677 = vunpack.c.l.b16 %v6111
        %v6678 = vunpack.c.l.b16 %v6120
        %v6679 = vunpack.c.l.b16 %v6133
        %v6680 = vunpack.c.l.b16 %v6142
        %v6681 = vunpack.c.l.b16 %v6155
        %v6682 = vunpack.c.l.b16 %v6164
        %v6683 = vunpack.c.l.b16 %v6177
        %v6684 = vunpack.c.l.b16 %v6186
        %v6685 = vunpack.c.l.b16 %v6199
        %v6686 = vunpack.c.l.b16 %v6208
        %v6687 = vunpack.c.l.b16 %v6221
        %v6688 = vunpack.c.l.b16 %v6230
        %v6689 = vunpack.c.l.b16 %v6243
        %v6690 = vunpack.c.l.b16 %v6252
        %v6691 = vunpack.c.l.b16 %v6265
        %v6692 = vunpack.c.l.b16 %v6274
        %v6693 = vunpack.c.l.b16 %v6287
        %v6694 = vunpack.c.l.b16 %v6296
        %v6695 = vunpack.c.l.b16 %v6309
        %v6696 = vunpack.c.l.b16 %v6318
        %v6697 = vunpack.c.l.b16 %v6331
        %v6698 = vunpack.c.l.b16 %v6340
        %v6699 = vunpack.c.l.b16 %v6353
        %v6700 = vunpack.c.l.b16 %v6362
        %v6701 = vunpack.c.l.b16 %v6375
        %v6702 = vunpack.c.l.b16 %v6384
        %v6703 = vunpack.c.l.b16 %v6397
        %v6704 = vunpack.c.l.b16 %v6406
        %v6705 = vpack.c.b16 %v6674, %v6673
        %v6706 = vpack.c.b16 %v6676, %v6675
        %v6707 = vpack.c.b16 %v6678, %v6677
        %v6708 = vpack.c.b16 %v6680, %v6679
        %v6709 = vpack.c.b16 %v6682, %v6681
        %v6710 = vpack.c.b16 %v6684, %v6683
        %v6711 = vpack.c.b16 %v6686, %v6685
        %v6712 = vpack.c.b16 %v6688, %v6687
        %v6713 = vpack.c.b16 %v6690, %v6689
        %v6714 = vpack.c.b16 %v6692, %v6691
        %v6715 = vpack.c.b16 %v6694, %v6693
        %v6716 = vpack.c.b16 %v6696, %v6695
        %v6717 = vpack.c.b16 %v6698, %v6697
        %v6718 = vpack.c.b16 %v6700, %v6699
        %v6719 = vpack.c.b16 %v6702, %v6701
        %v6720 = vpack.c.b16 %v6704, %v6703
        %v6753 = vunpack.c.l.b16 %v6407
        %v6754 = vunpack.c.l.b16 %v6408
        %v6755 = vunpack.c.l.b16 %v6409
        %v6756 = vunpack.c.l.b16 %v6410
        %v6757 = vunpack.c.l.b16 %v6411
        %v6758 = vunpack.c.l.b16 %v6412
        %v6759 = vunpack.c.l.b16 %v6413
        %v6760 = vunpack.c.l.b16 %v6414
        %v6761 = vunpack.c.l.b16 %v6415
        %v6762 = vunpack.c.l.b16 %v6416
        %v6763 = vunpack.c.l.b16 %v6417
        %v6764 = vunpack.c.l.b16 %v6418
        %v6765 = vunpack.c.l.b16 %v6419
        %v6766 = vunpack.c.l.b16 %v6420
        %v6767 = vunpack.c.l.b16 %v6421
        %v6768 = vunpack.c.l.b16 %v6422
        %v6769 = vpack.c.b16 %v6754, %v6753
        %v6770 = vpack.c.b16 %v6756, %v6755
        %v6771 = vpack.c.b16 %v6758, %v6757
        %v6772 = vpack.c.b16 %v6760, %v6759
        %v6773 = vpack.c.b16 %v6762, %v6761
        %v6774 = vpack.c.b16 %v6764, %v6763
        %v6775 = vpack.c.b16 %v6766, %v6765
        %v6776 = vpack.c.b16 %v6768, %v6767
        %6785 = vmatpush.bf16.msra.mxu0 %v6776
        %6786 = vmatpush.bf16.msra.mxu0 %v6775
        %6787 = vmatpush.bf16.msra.mxu0 %v6774
        %6788 = vmatpush.bf16.msra.mxu0 %v6773
        %6789 = vmatpush.bf16.msra.mxu0 %v6772
        %6790 = vmatpush.bf16.msra.mxu0 %v6771
        %6791 = vmatpush.bf16.msra.mxu0 %v6770
        %6792 = vmatpush.bf16.msra.mxu0 %v6769
        %6793 = vmatmul.bf16.gmra.mxu0 %v6705
        %v6794 = vpop.f32.mrf.mxu0
        %v6795 = vadd.f32 %v6594, %v6794
        %v6796 = vpop.f32.mrf.mxu0
        %v6797 = vadd.f32 %v6596, %v6796
        %6798 = vmatmul.bf16.gmra.mxu0 %v6706
        %v6799 = vpop.f32.mrf.mxu0
        %v6800 = vadd.f32 %v6599, %v6799
        %v6801 = vpop.f32.mrf.mxu0
        %v6802 = vadd.f32 %v6601, %v6801
        %6803 = vmatmul.bf16.gmra.mxu0 %v6707
        %v6804 = vpop.f32.mrf.mxu0
        %v6805 = vadd.f32 %v6604, %v6804
        %v6806 = vpop.f32.mrf.mxu0
        %v6807 = vadd.f32 %v6606, %v6806
        %6808 = vmatmul.bf16.gmra.mxu0 %v6708
        %v6809 = vpop.f32.mrf.mxu0
        %v6810 = vadd.f32 %v6609, %v6809
        %v6811 = vpop.f32.mrf.mxu0
        %v6812 = vadd.f32 %v6611, %v6811
        %6813 = vmatmul.bf16.gmra.mxu0 %v6709
        %v6814 = vpop.f32.mrf.mxu0
        %v6815 = vadd.f32 %v6614, %v6814
        %v6816 = vpop.f32.mrf.mxu0
        %v6817 = vadd.f32 %v6616, %v6816
        %6818 = vmatmul.bf16.gmra.mxu0 %v6710
        %v6819 = vpop.f32.mrf.mxu0
        %v6820 = vadd.f32 %v6619, %v6819
        %v6821 = vpop.f32.mrf.mxu0
        %v6822 = vadd.f32 %v6621, %v6821
        %6823 = vmatmul.bf16.gmra.mxu0 %v6711
        %v6824 = vpop.f32.mrf.mxu0
        %v6825 = vadd.f32 %v6624, %v6824
        %v6826 = vpop.f32.mrf.mxu0
        %v6827 = vadd.f32 %v6626, %v6826
        %6828 = vmatmul.bf16.gmra.mxu0 %v6712
        %v6829 = vpop.f32.mrf.mxu0
        %v6830 = vadd.f32 %v6629, %v6829
        %v6831 = vpop.f32.mrf.mxu0
        %v6832 = vadd.f32 %v6631, %v6831
        %6833 = vmatmul.bf16.gmra.mxu0 %v6713
        %v6834 = vpop.f32.mrf.mxu0
        %v6835 = vadd.f32 %v6634, %v6834
        %v6836 = vpop.f32.mrf.mxu0
        %v6837 = vadd.f32 %v6636, %v6836
        %6838 = vmatmul.bf16.gmra.mxu0 %v6714
        %v6839 = vpop.f32.mrf.mxu0
        %v6840 = vadd.f32 %v6639, %v6839
        %v6841 = vpop.f32.mrf.mxu0
        %v6842 = vadd.f32 %v6641, %v6841
        %6843 = vmatmul.bf16.gmra.mxu0 %v6715
        %v6844 = vpop.f32.mrf.mxu0
        %v6845 = vadd.f32 %v6644, %v6844
        %v6846 = vpop.f32.mrf.mxu0
        %v6847 = vadd.f32 %v6646, %v6846
        %6848 = vmatmul.bf16.gmra.mxu0 %v6716
        %v6849 = vpop.f32.mrf.mxu0
        %v6850 = vadd.f32 %v6649, %v6849
        %v6851 = vpop.f32.mrf.mxu0
        %v6852 = vadd.f32 %v6651, %v6851
        %6853 = vmatmul.bf16.gmra.mxu0 %v6717
        %v6854 = vpop.f32.mrf.mxu0
        %v6855 = vadd.f32 %v6654, %v6854
        %v6856 = vpop.f32.mrf.mxu0
        %v6857 = vadd.f32 %v6656, %v6856
        %6858 = vmatmul.bf16.gmra.mxu0 %v6718
        %v6859 = vpop.f32.mrf.mxu0
        %v6860 = vadd.f32 %v6659, %v6859
        %v6861 = vpop.f32.mrf.mxu0
        %v6862 = vadd.f32 %v6661, %v6861
        %6863 = vmatmul.bf16.gmra.mxu0 %v6719
        %v6864 = vpop.f32.mrf.mxu0
        %v6865 = vadd.f32 %v6664, %v6864
        %v6866 = vpop.f32.mrf.mxu0
        %v6867 = vadd.f32 %v6666, %v6866
        %6868 = vmatmul.bf16.gmra.mxu0 %v6720
        %v6869 = vpop.f32.mrf.mxu0
        %v6870 = vadd.f32 %v6669, %v6869
        %v6871 = vpop.f32.mrf.mxu0
        %v6872 = vadd.f32 %v6671, %v6871
        %6873 = vdwg.mxu0
        %v6874 = vrot.slane %v6061, 4
        %v6875 = vrot.slane %v6064, 5
        %v6876 = vor.u32 %v6874, %v6875
        %v6877 = vrot.slane %v6876, 4
        %v6878 = vrot.slane %v6073, 5
        %v6879 = vsel %vm1409, %v6877, %v6878
        %v6880 = vrot.slane %v6070, 4
        %v6881 = vor.u32 %v6880, %v6878
        %v6882 = vrot.slane %v6881, 4
        %v6884 = vshll.u32 %v5986, 16
        %v6886 = vrot.slane %v6884, 5
        %v6887 = vsel %vm1409, %v6882, %v6886
        %v6888 = vrot.slane %v6083, 4
        %v6889 = vrot.slane %v6086, 5
        %v6890 = vor.u32 %v6888, %v6889
        %v6891 = vrot.slane %v6890, 4
        %v6892 = vrot.slane %v6095, 5
        %v6893 = vsel %vm1409, %v6891, %v6892
        %v6894 = vrot.slane %v6092, 4
        %v6895 = vor.u32 %v6894, %v6892
        %v6896 = vrot.slane %v6895, 4
        %v6898 = vshll.u32 %v5990, 16
        %v6900 = vrot.slane %v6898, 5
        %v6901 = vsel %vm1409, %v6896, %v6900
        %v6902 = vrot.slane %v6105, 4
        %v6903 = vrot.slane %v6108, 5
        %v6904 = vor.u32 %v6902, %v6903
        %v6905 = vrot.slane %v6904, 4
        %v6906 = vrot.slane %v6117, 5
        %v6907 = vsel %vm1409, %v6905, %v6906
        %v6908 = vrot.slane %v6114, 4
        %v6909 = vor.u32 %v6908, %v6906
        %v6910 = vrot.slane %v6909, 4
        %v6912 = vshll.u32 %v5994, 16
        %v6914 = vrot.slane %v6912, 5
        %v6915 = vsel %vm1409, %v6910, %v6914
        %v6916 = vrot.slane %v6127, 4
        %v6917 = vrot.slane %v6130, 5
        %v6918 = vor.u32 %v6916, %v6917
        %v6919 = vrot.slane %v6918, 4
        %v6920 = vrot.slane %v6139, 5
        %v6921 = vsel %vm1409, %v6919, %v6920
        %v6922 = vrot.slane %v6136, 4
        %v6923 = vor.u32 %v6922, %v6920
        %v6924 = vrot.slane %v6923, 4
        %v6926 = vshll.u32 %v5998, 16
        %v6928 = vrot.slane %v6926, 5
        %v6929 = vsel %vm1409, %v6924, %v6928
        %v6930 = vrot.slane %v6149, 4
        %v6931 = vrot.slane %v6152, 5
        %v6932 = vor.u32 %v6930, %v6931
        %v6933 = vrot.slane %v6932, 4
        %v6934 = vrot.slane %v6161, 5
        %v6935 = vsel %vm1409, %v6933, %v6934
        %v6936 = vrot.slane %v6158, 4
        %v6937 = vor.u32 %v6936, %v6934
        %v6938 = vrot.slane %v6937, 4
        %v6940 = vshll.u32 %v6002, 16
        %v6942 = vrot.slane %v6940, 5
        %v6943 = vsel %vm1409, %v6938, %v6942
        %v6944 = vrot.slane %v6171, 4
        %v6945 = vrot.slane %v6174, 5
        %v6946 = vor.u32 %v6944, %v6945
        %v6947 = vrot.slane %v6946, 4
        %v6948 = vrot.slane %v6183, 5
        %v6949 = vsel %vm1409, %v6947, %v6948
        %v6950 = vrot.slane %v6180, 4
        %v6951 = vor.u32 %v6950, %v6948
        %v6952 = vrot.slane %v6951, 4
        %v6954 = vshll.u32 %v6006, 16
        %v6956 = vrot.slane %v6954, 5
        %v6957 = vsel %vm1409, %v6952, %v6956
        %v6958 = vrot.slane %v6193, 4
        %v6959 = vrot.slane %v6196, 5
        %v6960 = vor.u32 %v6958, %v6959
        %v6961 = vrot.slane %v6960, 4
        %v6962 = vrot.slane %v6205, 5
        %v6963 = vsel %vm1409, %v6961, %v6962
        %v6964 = vrot.slane %v6202, 4
        %v6965 = vor.u32 %v6964, %v6962
        %v6966 = vrot.slane %v6965, 4
        %v6968 = vshll.u32 %v6010, 16
        %v6970 = vrot.slane %v6968, 5
        %v6971 = vsel %vm1409, %v6966, %v6970
        %v6972 = vrot.slane %v6215, 4
        %v6973 = vrot.slane %v6218, 5
        %v6974 = vor.u32 %v6972, %v6973
        %v6975 = vrot.slane %v6974, 4
        %v6976 = vrot.slane %v6227, 5
        %v6977 = vsel %vm1409, %v6975, %v6976
        %v6978 = vrot.slane %v6224, 4
        %v6979 = vor.u32 %v6978, %v6976
        %v6980 = vrot.slane %v6979, 4
        %v6982 = vshll.u32 %v6014, 16
        %v6984 = vrot.slane %v6982, 5
        %v6985 = vsel %vm1409, %v6980, %v6984
        %v6986 = vrot.slane %v6237, 4
        %v6987 = vrot.slane %v6240, 5
        %v6988 = vor.u32 %v6986, %v6987
        %v6989 = vrot.slane %v6988, 4
        %v6990 = vrot.slane %v6249, 5
        %v6991 = vsel %vm1409, %v6989, %v6990
        %v6992 = vrot.slane %v6246, 4
        %v6993 = vor.u32 %v6992, %v6990
        %v6994 = vrot.slane %v6993, 4
        %v6996 = vshll.u32 %v6018, 16
        %v6998 = vrot.slane %v6996, 5
        %v6999 = vsel %vm1409, %v6994, %v6998
        %v7000 = vrot.slane %v6259, 4
        %v7001 = vrot.slane %v6262, 5
        %v7002 = vor.u32 %v7000, %v7001
        %v7003 = vrot.slane %v7002, 4
        %v7004 = vrot.slane %v6271, 5
        %v7005 = vsel %vm1409, %v7003, %v7004
        %v7006 = vrot.slane %v6268, 4
        %v7007 = vor.u32 %v7006, %v7004
        %v7008 = vrot.slane %v7007, 4
        %v7010 = vshll.u32 %v6022, 16
        %v7012 = vrot.slane %v7010, 5
        %v7013 = vsel %vm1409, %v7008, %v7012
        %v7014 = vrot.slane %v6281, 4
        %v7015 = vrot.slane %v6284, 5
        %v7016 = vor.u32 %v7014, %v7015
        %v7017 = vrot.slane %v7016, 4
        %v7018 = vrot.slane %v6293, 5
        %v7019 = vsel %vm1409, %v7017, %v7018
        %v7020 = vrot.slane %v6290, 4
        %v7021 = vor.u32 %v7020, %v7018
        %v7022 = vrot.slane %v7021, 4
        %v7024 = vshll.u32 %v6026, 16
        %v7026 = vrot.slane %v7024, 5
        %v7027 = vsel %vm1409, %v7022, %v7026
        %v7028 = vrot.slane %v6303, 4
        %v7029 = vrot.slane %v6306, 5
        %v7030 = vor.u32 %v7028, %v7029
        %v7031 = vrot.slane %v7030, 4
        %v7032 = vrot.slane %v6315, 5
        %v7033 = vsel %vm1409, %v7031, %v7032
        %v7034 = vrot.slane %v6312, 4
        %v7035 = vor.u32 %v7034, %v7032
        %v7036 = vrot.slane %v7035, 4
        %v7038 = vshll.u32 %v6030, 16
        %v7040 = vrot.slane %v7038, 5
        %v7041 = vsel %vm1409, %v7036, %v7040
        %v7042 = vrot.slane %v6325, 4
        %v7043 = vrot.slane %v6328, 5
        %v7044 = vor.u32 %v7042, %v7043
        %v7045 = vrot.slane %v7044, 4
        %v7046 = vrot.slane %v6337, 5
        %v7047 = vsel %vm1409, %v7045, %v7046
        %v7048 = vrot.slane %v6334, 4
        %v7049 = vor.u32 %v7048, %v7046
        %v7050 = vrot.slane %v7049, 4
        %v7052 = vshll.u32 %v6034, 16
        %v7054 = vrot.slane %v7052, 5
        %v7055 = vsel %vm1409, %v7050, %v7054
        %v7056 = vrot.slane %v6347, 4
        %v7057 = vrot.slane %v6350, 5
        %v7058 = vor.u32 %v7056, %v7057
        %v7059 = vrot.slane %v7058, 4
        %v7060 = vrot.slane %v6359, 5
        %v7061 = vsel %vm1409, %v7059, %v7060
        %v7062 = vrot.slane %v6356, 4
        %v7063 = vor.u32 %v7062, %v7060
        %v7064 = vrot.slane %v7063, 4
        %v7066 = vshll.u32 %v6038, 16
        %v7068 = vrot.slane %v7066, 5
        %v7069 = vsel %vm1409, %v7064, %v7068
        %v7070 = vrot.slane %v6369, 4
        %v7071 = vrot.slane %v6372, 5
        %v7072 = vor.u32 %v7070, %v7071
        %v7073 = vrot.slane %v7072, 4
        %v7074 = vrot.slane %v6381, 5
        %v7075 = vsel %vm1409, %v7073, %v7074
        %v7076 = vrot.slane %v6378, 4
        %v7077 = vor.u32 %v7076, %v7074
        %v7078 = vrot.slane %v7077, 4
        %v7080 = vshll.u32 %v6042, 16
        %v7082 = vrot.slane %v7080, 5
        %v7083 = vsel %vm1409, %v7078, %v7082
        %v7084 = vrot.slane %v6391, 4
        %v7085 = vrot.slane %v6394, 5
        %v7086 = vor.u32 %v7084, %v7085
        %v7087 = vrot.slane %v7086, 4
        %v7088 = vrot.slane %v6403, 5
        %v7089 = vsel %vm1409, %v7087, %v7088
        %v7090 = vrot.slane %v6400, 4
        %v7091 = vor.u32 %v7090, %v7088
        %v7092 = vrot.slane %v7091, 4
        %v7094 = vshll.u32 %v6046, 16
        %v7096 = vrot.slane %v7094, 5
        %v7097 = vsel %vm1409, %v7092, %v7096
        %s7098 = scalar_lea.vmem [#allocation7], 128
        %v7099 = vld [vmem:[%s7098] sm:$0xf]
        %v7100 = vld [vmem:[%s7098 + $0x4] sm:$0xf]
        %v7101 = vld [vmem:[%s7098 + $0x8] sm:$0xf]
        %v7102 = vld [vmem:[%s7098 + $0xc] sm:$0xf]
        %v7103 = vld [vmem:[%s7098 + $0x10] sm:$0xf]
        %v7104 = vld [vmem:[%s7098 + $0x14] sm:$0xf]
        %v7105 = vld [vmem:[%s7098 + $0x18] sm:$0xf]
        %v7106 = vld [vmem:[%s7098 + $0x1c] sm:$0xf]
        %v7107 = vld [vmem:[%s7098 + $0x20] sm:$0xf]
        %v7108 = vld [vmem:[%s7098 + $0x24] sm:$0xf]
        %v7109 = vld [vmem:[%s7098 + $0x28] sm:$0xf]
        %v7110 = vld [vmem:[%s7098 + $0x2c] sm:$0xf]
        %v7111 = vld [vmem:[%s7098 + $0x30] sm:$0xf]
        %v7112 = vld [vmem:[%s7098 + $0x34] sm:$0xf]
        %v7113 = vld [vmem:[%s7098 + $0x38] sm:$0xf]
        %v7114 = vld [vmem:[%s7098 + $0x3c] sm:$0xf]
        %v7115 = vunpack.c.l.b16 %v6879
        %v7116 = vunpack.c.l.b16 %v6887
        %v7117 = vunpack.c.l.b16 %v6893
        %v7118 = vunpack.c.l.b16 %v6901
        %v7119 = vunpack.c.l.b16 %v6907
        %v7120 = vunpack.c.l.b16 %v6915
        %v7121 = vunpack.c.l.b16 %v6921
        %v7122 = vunpack.c.l.b16 %v6929
        %v7123 = vunpack.c.l.b16 %v6935
        %v7124 = vunpack.c.l.b16 %v6943
        %v7125 = vunpack.c.l.b16 %v6949
        %v7126 = vunpack.c.l.b16 %v6957
        %v7127 = vunpack.c.l.b16 %v6963
        %v7128 = vunpack.c.l.b16 %v6971
        %v7129 = vunpack.c.l.b16 %v6977
        %v7130 = vunpack.c.l.b16 %v6985
        %v7131 = vunpack.c.l.b16 %v6991
        %v7132 = vunpack.c.l.b16 %v6999
        %v7133 = vunpack.c.l.b16 %v7005
        %v7134 = vunpack.c.l.b16 %v7013
        %v7135 = vunpack.c.l.b16 %v7019
        %v7136 = vunpack.c.l.b16 %v7027
        %v7137 = vunpack.c.l.b16 %v7033
        %v7138 = vunpack.c.l.b16 %v7041
        %v7139 = vunpack.c.l.b16 %v7047
        %v7140 = vunpack.c.l.b16 %v7055
        %v7141 = vunpack.c.l.b16 %v7061
        %v7142 = vunpack.c.l.b16 %v7069
        %v7143 = vunpack.c.l.b16 %v7075
        %v7144 = vunpack.c.l.b16 %v7083
        %v7145 = vunpack.c.l.b16 %v7089
        %v7146 = vunpack.c.l.b16 %v7097
        %v7147 = vpack.c.b16 %v7116, %v7115
        %v7148 = vpack.c.b16 %v7118, %v7117
        %v7149 = vpack.c.b16 %v7120, %v7119
        %v7150 = vpack.c.b16 %v7122, %v7121
        %v7151 = vpack.c.b16 %v7124, %v7123
        %v7152 = vpack.c.b16 %v7126, %v7125
        %v7153 = vpack.c.b16 %v7128, %v7127
        %v7154 = vpack.c.b16 %v7130, %v7129
        %v7155 = vpack.c.b16 %v7132, %v7131
        %v7156 = vpack.c.b16 %v7134, %v7133
        %v7157 = vpack.c.b16 %v7136, %v7135
        %v7158 = vpack.c.b16 %v7138, %v7137
        %v7159 = vpack.c.b16 %v7140, %v7139
        %v7160 = vpack.c.b16 %v7142, %v7141
        %v7161 = vpack.c.b16 %v7144, %v7143
        %v7162 = vpack.c.b16 %v7146, %v7145
        %v7195 = vunpack.c.l.b16 %v7099
        %v7196 = vunpack.c.l.b16 %v7100
        %v7197 = vunpack.c.l.b16 %v7101
        %v7198 = vunpack.c.l.b16 %v7102
        %v7199 = vunpack.c.l.b16 %v7103
        %v7200 = vunpack.c.l.b16 %v7104
        %v7201 = vunpack.c.l.b16 %v7105
        %v7202 = vunpack.c.l.b16 %v7106
        %v7203 = vunpack.c.l.b16 %v7107
        %v7204 = vunpack.c.l.b16 %v7108
        %v7205 = vunpack.c.l.b16 %v7109
        %v7206 = vunpack.c.l.b16 %v7110
        %v7207 = vunpack.c.l.b16 %v7111
        %v7208 = vunpack.c.l.b16 %v7112
        %v7209 = vunpack.c.l.b16 %v7113
        %v7210 = vunpack.c.l.b16 %v7114
        %v7211 = vpack.c.b16 %v7196, %v7195
        %v7212 = vpack.c.b16 %v7198, %v7197
        %v7213 = vpack.c.b16 %v7200, %v7199
        %v7214 = vpack.c.b16 %v7202, %v7201
        %v7215 = vpack.c.b16 %v7204, %v7203
        %v7216 = vpack.c.b16 %v7206, %v7205
        %v7217 = vpack.c.b16 %v7208, %v7207
        %v7218 = vpack.c.b16 %v7210, %v7209
        %7227 = vmatpush.bf16.msra.mxu0 %v7218
        %7228 = vmatpush.bf16.msra.mxu0 %v7217
        %7229 = vmatpush.bf16.msra.mxu0 %v7216
        %7230 = vmatpush.bf16.msra.mxu0 %v7215
        %7231 = vmatpush.bf16.msra.mxu0 %v7214
        %7232 = vmatpush.bf16.msra.mxu0 %v7213
        %7233 = vmatpush.bf16.msra.mxu0 %v7212
        %7234 = vmatpush.bf16.msra.mxu0 %v7211
        %7235 = vmatmul.bf16.gmra.mxu0 %v7147
        %v7236 = vpop.f32.mrf.mxu0
        %v7237 = vadd.f32 0.0, %v7236
        %v7238 = vpop.f32.mrf.mxu0
        %v7239 = vadd.f32 0.0, %v7238
        %7240 = vmatmul.bf16.gmra.mxu0 %v7148
        %v7241 = vpop.f32.mrf.mxu0
        %v7242 = vadd.f32 0.0, %v7241
        %v7243 = vpop.f32.mrf.mxu0
        %v7244 = vadd.f32 0.0, %v7243
        %7245 = vmatmul.bf16.gmra.mxu0 %v7149
        %v7246 = vpop.f32.mrf.mxu0
        %v7247 = vadd.f32 0.0, %v7246
        %v7248 = vpop.f32.mrf.mxu0
        %v7249 = vadd.f32 0.0, %v7248
        %7250 = vmatmul.bf16.gmra.mxu0 %v7150
        %v7251 = vpop.f32.mrf.mxu0
        %v7252 = vadd.f32 0.0, %v7251
        %v7253 = vpop.f32.mrf.mxu0
        %v7254 = vadd.f32 0.0, %v7253
        %7255 = vmatmul.bf16.gmra.mxu0 %v7151
        %v7256 = vpop.f32.mrf.mxu0
        %v7257 = vadd.f32 0.0, %v7256
        %v7258 = vpop.f32.mrf.mxu0
        %v7259 = vadd.f32 0.0, %v7258
        %7260 = vmatmul.bf16.gmra.mxu0 %v7152
        %v7261 = vpop.f32.mrf.mxu0
        %v7262 = vadd.f32 0.0, %v7261
        %v7263 = vpop.f32.mrf.mxu0
        %v7264 = vadd.f32 0.0, %v7263
        %7265 = vmatmul.bf16.gmra.mxu0 %v7153
        %v7266 = vpop.f32.mrf.mxu0
        %v7267 = vadd.f32 0.0, %v7266
        %v7268 = vpop.f32.mrf.mxu0
        %v7269 = vadd.f32 0.0, %v7268
        %7270 = vmatmul.bf16.gmra.mxu0 %v7154
        %v7271 = vpop.f32.mrf.mxu0
        %v7272 = vadd.f32 0.0, %v7271
        %v7273 = vpop.f32.mrf.mxu0
        %v7274 = vadd.f32 0.0, %v7273
        %7275 = vmatmul.bf16.gmra.mxu0 %v7155
        %v7276 = vpop.f32.mrf.mxu0
        %v7277 = vadd.f32 0.0, %v7276
        %v7278 = vpop.f32.mrf.mxu0
        %v7279 = vadd.f32 0.0, %v7278
        %7280 = vmatmul.bf16.gmra.mxu0 %v7156
        %v7281 = vpop.f32.mrf.mxu0
        %v7282 = vadd.f32 0.0, %v7281
        %v7283 = vpop.f32.mrf.mxu0
        %v7284 = vadd.f32 0.0, %v7283
        %7285 = vmatmul.bf16.gmra.mxu0 %v7157
        %v7286 = vpop.f32.mrf.mxu0
        %v7287 = vadd.f32 0.0, %v7286
        %v7288 = vpop.f32.mrf.mxu0
        %v7289 = vadd.f32 0.0, %v7288
        %7290 = vmatmul.bf16.gmra.mxu0 %v7158
        %v7291 = vpop.f32.mrf.mxu0
        %v7292 = vadd.f32 0.0, %v7291
        %v7293 = vpop.f32.mrf.mxu0
        %v7294 = vadd.f32 0.0, %v7293
        %7295 = vmatmul.bf16.gmra.mxu0 %v7159
        %v7296 = vpop.f32.mrf.mxu0
        %v7297 = vadd.f32 0.0, %v7296
        %v7298 = vpop.f32.mrf.mxu0
        %v7299 = vadd.f32 0.0, %v7298
        %7300 = vmatmul.bf16.gmra.mxu0 %v7160
        %v7301 = vpop.f32.mrf.mxu0
        %v7302 = vadd.f32 0.0, %v7301
        %v7303 = vpop.f32.mrf.mxu0
        %v7304 = vadd.f32 0.0, %v7303
        %7305 = vmatmul.bf16.gmra.mxu0 %v7161
        %v7306 = vpop.f32.mrf.mxu0
        %v7307 = vadd.f32 0.0, %v7306
        %v7308 = vpop.f32.mrf.mxu0
        %v7309 = vadd.f32 0.0, %v7308
        %7310 = vmatmul.bf16.gmra.mxu0 %v7162
        %v7311 = vpop.f32.mrf.mxu0
        %v7312 = vadd.f32 0.0, %v7311
        %v7313 = vpop.f32.mrf.mxu0
        %v7314 = vadd.f32 0.0, %v7313
        %7315 = vdwg.mxu0
        %v7316 = vadd.f32 %v6795, %v7237
        %v7317 = vadd.f32 %v6797, %v7239
        %v7318 = vadd.f32 %v6800, %v7242
        %v7319 = vadd.f32 %v6802, %v7244
        %v7320 = vadd.f32 %v6805, %v7247
        %v7321 = vadd.f32 %v6807, %v7249
        %v7322 = vadd.f32 %v6810, %v7252
        %v7323 = vadd.f32 %v6812, %v7254
        %v7324 = vadd.f32 %v6815, %v7257
        %v7325 = vadd.f32 %v6817, %v7259
        %v7326 = vadd.f32 %v6820, %v7262
        %v7327 = vadd.f32 %v6822, %v7264
        %v7328 = vadd.f32 %v6825, %v7267
        %v7329 = vadd.f32 %v6827, %v7269
        %v7330 = vadd.f32 %v6830, %v7272
        %v7331 = vadd.f32 %v6832, %v7274
        %v7332 = vadd.f32 %v6835, %v7277
        %v7333 = vadd.f32 %v6837, %v7279
        %v7334 = vadd.f32 %v6840, %v7282
        %v7335 = vadd.f32 %v6842, %v7284
        %v7336 = vadd.f32 %v6845, %v7287
        %v7337 = vadd.f32 %v6847, %v7289
        %v7338 = vadd.f32 %v6850, %v7292
        %v7339 = vadd.f32 %v6852, %v7294
        %v7340 = vadd.f32 %v6855, %v7297
        %v7341 = vadd.f32 %v6857, %v7299
        %v7342 = vadd.f32 %v6860, %v7302
        %v7343 = vadd.f32 %v6862, %v7304
        %v7344 = vadd.f32 %v6865, %v7307
        %v7345 = vadd.f32 %v6867, %v7309
        %v7346 = vadd.f32 %v6870, %v7312
        %v7347 = vadd.f32 %v6872, %v7314
        %v7349 = vshrl.u32 %v6047, 16
        %v7351 = vrot.slane %v7349, 7
        %v7352 = vrot.slane %v7351, 4
        %v7354 = vshrl.u32 %v6048, 16
        %v7356 = vrot.slane %v7354, 7
        %v7357 = vshll.u32 %v6048, 16
        %v7359 = vor.u32 %v7356, %v7357
        %v7360 = vsel %vm587, %v7352, %v7359
        %v7361 = vrot.slane %v7356, 4
        %v7363 = vshrl.u32 %v6049, 16
        %v7365 = vrot.slane %v7363, 7
        %v7366 = vshll.u32 %v6049, 16
        %v7368 = vor.u32 %v7365, %v7366
        %v7369 = vsel %vm587, %v7361, %v7368
        %s7370 = scalar_lea.vmem [#allocation7], 192
        %v7371 = vld [vmem:[%s7370] sm:$0xf]
        %v7372 = vld [vmem:[%s7370 + $0x4] sm:$0xf]
        %v7373 = vld [vmem:[%s7370 + $0x8] sm:$0xf]
        %v7374 = vld [vmem:[%s7370 + $0xc] sm:$0xf]
        %v7375 = vld [vmem:[%s7370 + $0x10] sm:$0xf]
        %v7376 = vld [vmem:[%s7370 + $0x14] sm:$0xf]
        %v7377 = vld [vmem:[%s7370 + $0x18] sm:$0xf]
        %v7378 = vld [vmem:[%s7370 + $0x1c] sm:$0xf]
        %v7379 = vld [vmem:[%s7370 + $0x20] sm:$0xf]
        %v7380 = vld [vmem:[%s7370 + $0x24] sm:$0xf]
        %v7381 = vld [vmem:[%s7370 + $0x28] sm:$0xf]
        %v7382 = vld [vmem:[%s7370 + $0x2c] sm:$0xf]
        %v7383 = vld [vmem:[%s7370 + $0x30] sm:$0xf]
        %v7384 = vld [vmem:[%s7370 + $0x34] sm:$0xf]
        %v7385 = vld [vmem:[%s7370 + $0x38] sm:$0xf]
        %v7386 = vld [vmem:[%s7370 + $0x3c] sm:$0xf]
        %v7387 = vunpack.c.l.b16 %v7360
        %v7388 = vunpack.c.l.b16 %v7369
        %v7389 = vpack.c.b16 %v7388, %v7387
        %v7407 = vunpack.c.l.b16 %v7371
        %v7408 = vunpack.c.l.b16 %v7372
        %v7409 = vunpack.c.l.b16 %v7373
        %v7410 = vunpack.c.l.b16 %v7374
        %v7411 = vunpack.c.l.b16 %v7375
        %v7412 = vunpack.c.l.b16 %v7376
        %v7413 = vunpack.c.l.b16 %v7377
        %v7414 = vunpack.c.l.b16 %v7378
        %v7415 = vunpack.c.l.b16 %v7379
        %v7416 = vunpack.c.l.b16 %v7380
        %v7417 = vunpack.c.l.b16 %v7381
        %v7418 = vunpack.c.l.b16 %v7382
        %v7419 = vunpack.c.l.b16 %v7383
        %v7420 = vunpack.c.l.b16 %v7384
        %v7421 = vunpack.c.l.b16 %v7385
        %v7422 = vunpack.c.l.b16 %v7386
        %v7423 = vpack.c.b16 %v7408, %v7407
        %v7424 = vpack.c.b16 %v7410, %v7409
        %v7425 = vpack.c.b16 %v7412, %v7411
        %v7426 = vpack.c.b16 %v7414, %v7413
        %v7427 = vpack.c.b16 %v7416, %v7415
        %v7428 = vpack.c.b16 %v7418, %v7417
        %v7429 = vpack.c.b16 %v7420, %v7419
        %v7430 = vpack.c.b16 %v7422, %v7421
        %7439 = vmatpush.bf16.msra.mxu0 %v7430
        %7440 = vmatpush.bf16.msra.mxu0 %v7429
        %7441 = vmatpush.bf16.msra.mxu0 %v7428
        %7442 = vmatpush.bf16.msra.mxu0 %v7427
        %7443 = vmatpush.bf16.msra.mxu0 %v7426
        %7444 = vmatpush.bf16.msra.mxu0 %v7425
        %7445 = vmatpush.bf16.msra.mxu0 %v7424
        %7446 = vmatpush.bf16.msra.mxu0 %v7423
        %7447 = vmatmul.bf16.gmra.mxu0 %v6706
        %v7448 = vpop.f32.mrf.mxu0
        %v7449 = vadd.f32 0.0, %v7448
        %v7450 = vpop.f32.mrf.mxu0
        %v7451 = vadd.f32 0.0, %v7450
        %7452 = vmatmul.bf16.gmra.mxu0 %v6707
        %v7453 = vpop.f32.mrf.mxu0
        %v7454 = vadd.f32 0.0, %v7453
        %v7455 = vpop.f32.mrf.mxu0
        %v7456 = vadd.f32 0.0, %v7455
        %7457 = vmatmul.bf16.gmra.mxu0 %v6708
        %v7458 = vpop.f32.mrf.mxu0
        %v7459 = vadd.f32 0.0, %v7458
        %v7460 = vpop.f32.mrf.mxu0
        %v7461 = vadd.f32 0.0, %v7460
        %7462 = vmatmul.bf16.gmra.mxu0 %v6709
        %v7463 = vpop.f32.mrf.mxu0
        %v7464 = vadd.f32 0.0, %v7463
        %v7465 = vpop.f32.mrf.mxu0
        %v7466 = vadd.f32 0.0, %v7465
        %7467 = vmatmul.bf16.gmra.mxu0 %v6710
        %v7468 = vpop.f32.mrf.mxu0
        %v7469 = vadd.f32 0.0, %v7468
        %v7470 = vpop.f32.mrf.mxu0
        %v7471 = vadd.f32 0.0, %v7470
        %7472 = vmatmul.bf16.gmra.mxu0 %v6711
        %v7473 = vpop.f32.mrf.mxu0
        %v7474 = vadd.f32 0.0, %v7473
        %v7475 = vpop.f32.mrf.mxu0
        %v7476 = vadd.f32 0.0, %v7475
        %7477 = vmatmul.bf16.gmra.mxu0 %v6712
        %v7478 = vpop.f32.mrf.mxu0
        %v7479 = vadd.f32 0.0, %v7478
        %v7480 = vpop.f32.mrf.mxu0
        %v7481 = vadd.f32 0.0, %v7480
        %7482 = vmatmul.bf16.gmra.mxu0 %v6713
        %v7483 = vpop.f32.mrf.mxu0
        %v7484 = vadd.f32 0.0, %v7483
        %v7485 = vpop.f32.mrf.mxu0
        %v7486 = vadd.f32 0.0, %v7485
        %7487 = vmatmul.bf16.gmra.mxu0 %v6714
        %v7488 = vpop.f32.mrf.mxu0
        %v7489 = vadd.f32 0.0, %v7488
        %v7490 = vpop.f32.mrf.mxu0
        %v7491 = vadd.f32 0.0, %v7490
        %7492 = vmatmul.bf16.gmra.mxu0 %v6715
        %v7493 = vpop.f32.mrf.mxu0
        %v7494 = vadd.f32 0.0, %v7493
        %v7495 = vpop.f32.mrf.mxu0
        %v7496 = vadd.f32 0.0, %v7495
        %7497 = vmatmul.bf16.gmra.mxu0 %v6716
        %v7498 = vpop.f32.mrf.mxu0
        %v7499 = vadd.f32 0.0, %v7498
        %v7500 = vpop.f32.mrf.mxu0
        %v7501 = vadd.f32 0.0, %v7500
        %7502 = vmatmul.bf16.gmra.mxu0 %v6717
        %v7503 = vpop.f32.mrf.mxu0
        %v7504 = vadd.f32 0.0, %v7503
        %v7505 = vpop.f32.mrf.mxu0
        %v7506 = vadd.f32 0.0, %v7505
        %7507 = vmatmul.bf16.gmra.mxu0 %v6718
        %v7508 = vpop.f32.mrf.mxu0
        %v7509 = vadd.f32 0.0, %v7508
        %v7510 = vpop.f32.mrf.mxu0
        %v7511 = vadd.f32 0.0, %v7510
        %7512 = vmatmul.bf16.gmra.mxu0 %v6719
        %v7513 = vpop.f32.mrf.mxu0
        %v7514 = vadd.f32 0.0, %v7513
        %v7515 = vpop.f32.mrf.mxu0
        %v7516 = vadd.f32 0.0, %v7515
        %7517 = vmatmul.bf16.gmra.mxu0 %v6720
        %v7518 = vpop.f32.mrf.mxu0
        %v7519 = vadd.f32 0.0, %v7518
        %v7520 = vpop.f32.mrf.mxu0
        %v7521 = vadd.f32 0.0, %v7520
        %7522 = vmatmul.bf16.gmra.mxu0 %v7389
        %v7523 = vpop.f32.mrf.mxu0
        %v7524 = vadd.f32 0.0, %v7523
        %v7525 = vpop.f32.mrf.mxu0
        %v7526 = vadd.f32 0.0, %v7525
        %7527 = vdwg.mxu0
        %v7528 = vadd.f32 %v7316, %v7449
        %v7529 = vadd.f32 %v7317, %v7451
        %v7530 = vadd.f32 %v7318, %v7454
        %v7531 = vadd.f32 %v7319, %v7456
        %v7532 = vadd.f32 %v7320, %v7459
        %v7533 = vadd.f32 %v7321, %v7461
        %v7534 = vadd.f32 %v7322, %v7464
        %v7535 = vadd.f32 %v7323, %v7466
        %v7536 = vadd.f32 %v7324, %v7469
        %v7537 = vadd.f32 %v7325, %v7471
        %v7538 = vadd.f32 %v7326, %v7474
        %v7539 = vadd.f32 %v7327, %v7476
        %v7540 = vadd.f32 %v7328, %v7479
        %v7541 = vadd.f32 %v7329, %v7481
        %v7542 = vadd.f32 %v7330, %v7484
        %v7543 = vadd.f32 %v7331, %v7486
        %v7544 = vadd.f32 %v7332, %v7489
        %v7545 = vadd.f32 %v7333, %v7491
        %v7546 = vadd.f32 %v7334, %v7494
        %v7547 = vadd.f32 %v7335, %v7496
        %v7548 = vadd.f32 %v7336, %v7499
        %v7549 = vadd.f32 %v7337, %v7501
        %v7550 = vadd.f32 %v7338, %v7504
        %v7551 = vadd.f32 %v7339, %v7506
        %v7552 = vadd.f32 %v7340, %v7509
        %v7553 = vadd.f32 %v7341, %v7511
        %v7554 = vadd.f32 %v7342, %v7514
        %v7555 = vadd.f32 %v7343, %v7516
        %v7556 = vadd.f32 %v7344, %v7519
        %v7557 = vadd.f32 %v7345, %v7521
        %v7558 = vadd.f32 %v7346, %v7524
        %v7559 = vadd.f32 %v7347, %v7526
        %s7560 = scalar_lea.vmem [#allocation7], 256
        %v7561 = vld [vmem:[%s7560] sm:$0xf]
        %v7562 = vld [vmem:[%s7560 + $0x4] sm:$0xf]
        %v7563 = vld [vmem:[%s7560 + $0x8] sm:$0xf]
        %v7564 = vld [vmem:[%s7560 + $0xc] sm:$0xf]
        %v7565 = vld [vmem:[%s7560 + $0x10] sm:$0xf]
        %v7566 = vld [vmem:[%s7560 + $0x14] sm:$0xf]
        %v7567 = vld [vmem:[%s7560 + $0x18] sm:$0xf]
        %v7568 = vld [vmem:[%s7560 + $0x1c] sm:$0xf]
        %v7569 = vld [vmem:[%s7560 + $0x20] sm:$0xf]
        %v7570 = vld [vmem:[%s7560 + $0x24] sm:$0xf]
        %v7571 = vld [vmem:[%s7560 + $0x28] sm:$0xf]
        %v7572 = vld [vmem:[%s7560 + $0x2c] sm:$0xf]
        %v7573 = vld [vmem:[%s7560 + $0x30] sm:$0xf]
        %v7574 = vld [vmem:[%s7560 + $0x34] sm:$0xf]
        %v7575 = vld [vmem:[%s7560 + $0x38] sm:$0xf]
        %v7576 = vld [vmem:[%s7560 + $0x3c] sm:$0xf]
        %v7579 = vunpack.c.l.b16 %v6048
        %v7580 = vunpack.c.l.b16 %v6049
        %v7581 = vpack.c.b16 %v7580, %v7579
        %v7599 = vunpack.c.l.b16 %v7561
        %v7600 = vunpack.c.l.b16 %v7562
        %v7601 = vunpack.c.l.b16 %v7563
        %v7602 = vunpack.c.l.b16 %v7564
        %v7603 = vunpack.c.l.b16 %v7565
        %v7604 = vunpack.c.l.b16 %v7566
        %v7605 = vunpack.c.l.b16 %v7567
        %v7606 = vunpack.c.l.b16 %v7568
        %v7607 = vunpack.c.l.b16 %v7569
        %v7608 = vunpack.c.l.b16 %v7570
        %v7609 = vunpack.c.l.b16 %v7571
        %v7610 = vunpack.c.l.b16 %v7572
        %v7611 = vunpack.c.l.b16 %v7573
        %v7612 = vunpack.c.l.b16 %v7574
        %v7613 = vunpack.c.l.b16 %v7575
        %v7614 = vunpack.c.l.b16 %v7576
        %v7615 = vpack.c.b16 %v7600, %v7599
        %v7616 = vpack.c.b16 %v7602, %v7601
        %v7617 = vpack.c.b16 %v7604, %v7603
        %v7618 = vpack.c.b16 %v7606, %v7605
        %v7619 = vpack.c.b16 %v7608, %v7607
        %v7620 = vpack.c.b16 %v7610, %v7609
        %v7621 = vpack.c.b16 %v7612, %v7611
        %v7622 = vpack.c.b16 %v7614, %v7613
        %7631 = vmatpush.bf16.msra.mxu0 %v7622
        %7632 = vmatpush.bf16.msra.mxu0 %v7621
        %7633 = vmatpush.bf16.msra.mxu0 %v7620
        %7634 = vmatpush.bf16.msra.mxu0 %v7619
        %7635 = vmatpush.bf16.msra.mxu0 %v7618
        %7636 = vmatpush.bf16.msra.mxu0 %v7617
        %7637 = vmatpush.bf16.msra.mxu0 %v7616
        %7638 = vmatpush.bf16.msra.mxu0 %v7615
        %7639 = vmatmul.bf16.gmra.mxu0 %v6505
        %v7640 = vpop.f32.mrf.mxu0
        %v7641 = vadd.f32 0.0, %v7640
        %v7642 = vpop.f32.mrf.mxu0
        %v7643 = vadd.f32 0.0, %v7642
        %7644 = vmatmul.bf16.gmra.mxu0 %v6506
        %v7645 = vpop.f32.mrf.mxu0
        %v7646 = vadd.f32 0.0, %v7645
        %v7647 = vpop.f32.mrf.mxu0
        %v7648 = vadd.f32 0.0, %v7647
        %7649 = vmatmul.bf16.gmra.mxu0 %v6507
        %v7650 = vpop.f32.mrf.mxu0
        %v7651 = vadd.f32 0.0, %v7650
        %v7652 = vpop.f32.mrf.mxu0
        %v7653 = vadd.f32 0.0, %v7652
        %7654 = vmatmul.bf16.gmra.mxu0 %v6508
        %v7655 = vpop.f32.mrf.mxu0
        %v7656 = vadd.f32 0.0, %v7655
        %v7657 = vpop.f32.mrf.mxu0
        %v7658 = vadd.f32 0.0, %v7657
        %7659 = vmatmul.bf16.gmra.mxu0 %v6509
        %v7660 = vpop.f32.mrf.mxu0
        %v7661 = vadd.f32 0.0, %v7660
        %v7662 = vpop.f32.mrf.mxu0
        %v7663 = vadd.f32 0.0, %v7662
        %7664 = vmatmul.bf16.gmra.mxu0 %v6510
        %v7665 = vpop.f32.mrf.mxu0
        %v7666 = vadd.f32 0.0, %v7665
        %v7667 = vpop.f32.mrf.mxu0
        %v7668 = vadd.f32 0.0, %v7667
        %7669 = vmatmul.bf16.gmra.mxu0 %v6511
        %v7670 = vpop.f32.mrf.mxu0
        %v7671 = vadd.f32 0.0, %v7670
        %v7672 = vpop.f32.mrf.mxu0
        %v7673 = vadd.f32 0.0, %v7672
        %7674 = vmatmul.bf16.gmra.mxu0 %v6512
        %v7675 = vpop.f32.mrf.mxu0
        %v7676 = vadd.f32 0.0, %v7675
        %v7677 = vpop.f32.mrf.mxu0
        %v7678 = vadd.f32 0.0, %v7677
        %7679 = vmatmul.bf16.gmra.mxu0 %v6513
        %v7680 = vpop.f32.mrf.mxu0
        %v7681 = vadd.f32 0.0, %v7680
        %v7682 = vpop.f32.mrf.mxu0
        %v7683 = vadd.f32 0.0, %v7682
        %7684 = vmatmul.bf16.gmra.mxu0 %v6514
        %v7685 = vpop.f32.mrf.mxu0
        %v7686 = vadd.f32 0.0, %v7685
        %v7687 = vpop.f32.mrf.mxu0
        %v7688 = vadd.f32 0.0, %v7687
        %7689 = vmatmul.bf16.gmra.mxu0 %v6515
        %v7690 = vpop.f32.mrf.mxu0
        %v7691 = vadd.f32 0.0, %v7690
        %v7692 = vpop.f32.mrf.mxu0
        %v7693 = vadd.f32 0.0, %v7692
        %7694 = vmatmul.bf16.gmra.mxu0 %v6516
        %v7695 = vpop.f32.mrf.mxu0
        %v7696 = vadd.f32 0.0, %v7695
        %v7697 = vpop.f32.mrf.mxu0
        %v7698 = vadd.f32 0.0, %v7697
        %7699 = vmatmul.bf16.gmra.mxu0 %v6517
        %v7700 = vpop.f32.mrf.mxu0
        %v7701 = vadd.f32 0.0, %v7700
        %v7702 = vpop.f32.mrf.mxu0
        %v7703 = vadd.f32 0.0, %v7702
        %7704 = vmatmul.bf16.gmra.mxu0 %v6518
        %v7705 = vpop.f32.mrf.mxu0
        %v7706 = vadd.f32 0.0, %v7705
        %v7707 = vpop.f32.mrf.mxu0
        %v7708 = vadd.f32 0.0, %v7707
        %7709 = vmatmul.bf16.gmra.mxu0 %v6519
        %v7710 = vpop.f32.mrf.mxu0
        %v7711 = vadd.f32 0.0, %v7710
        %v7712 = vpop.f32.mrf.mxu0
        %v7713 = vadd.f32 0.0, %v7712
        %7714 = vmatmul.bf16.gmra.mxu0 %v7581
        %v7715 = vpop.f32.mrf.mxu0
        %v7716 = vadd.f32 0.0, %v7715
        %v7717 = vpop.f32.mrf.mxu0
        %v7718 = vadd.f32 0.0, %v7717
        %7719 = vdwg.mxu0
        %v7720 = vadd.f32 %v7528, %v7641
        %v7721 = vadd.f32 %v7529, %v7643
        %v7722 = vadd.f32 %v7530, %v7646
        %v7723 = vadd.f32 %v7531, %v7648
        %v7724 = vadd.f32 %v7532, %v7651
        %v7725 = vadd.f32 %v7533, %v7653
        %v7726 = vadd.f32 %v7534, %v7656
        %v7727 = vadd.f32 %v7535, %v7658
        %v7728 = vadd.f32 %v7536, %v7661
        %v7729 = vadd.f32 %v7537, %v7663
        %v7730 = vadd.f32 %v7538, %v7666
        %v7731 = vadd.f32 %v7539, %v7668
        %v7732 = vadd.f32 %v7540, %v7671
        %v7733 = vadd.f32 %v7541, %v7673
        %v7734 = vadd.f32 %v7542, %v7676
        %v7735 = vadd.f32 %v7543, %v7678
        %v7736 = vadd.f32 %v7544, %v7681
        %v7737 = vadd.f32 %v7545, %v7683
        %v7738 = vadd.f32 %v7546, %v7686
        %v7739 = vadd.f32 %v7547, %v7688
        %v7740 = vadd.f32 %v7548, %v7691
        %v7741 = vadd.f32 %v7549, %v7693
        %v7742 = vadd.f32 %v7550, %v7696
        %v7743 = vadd.f32 %v7551, %v7698
        %v7744 = vadd.f32 %v7552, %v7701
        %v7745 = vadd.f32 %v7553, %v7703
        %v7746 = vadd.f32 %v7554, %v7706
        %v7747 = vadd.f32 %v7555, %v7708
        %v7748 = vadd.f32 %v7556, %v7711
        %v7749 = vadd.f32 %v7557, %v7713
        %v7750 = vadd.f32 %v7558, %v7716
        %v7751 = vadd.f32 %v7559, %v7718
        %v7752 = vrot.slane %v7354, 4
        %v7753 = vrot.slane %v7357, 5
        %v7754 = vor.u32 %v7752, %v7753
        %v7755 = vrot.slane %v7754, 4
        %v7756 = vrot.slane %v7366, 5
        %v7757 = vsel %vm1409, %v7755, %v7756
        %v7758 = vrot.slane %v7363, 4
        %v7759 = vor.u32 %v7758, %v7756
        %v7760 = vrot.slane %v7759, 4
        %v7762 = vshll.u32 %v6050, 16
        %v7764 = vrot.slane %v7762, 5
        %v7765 = vsel %vm1409, %v7760, %v7764
        %s7766 = scalar_lea.vmem [#allocation7], 320
        %v7767 = vld [vmem:[%s7766] sm:$0xf]
        %v7768 = vld [vmem:[%s7766 + $0x4] sm:$0xf]
        %v7769 = vld [vmem:[%s7766 + $0x8] sm:$0xf]
        %v7770 = vld [vmem:[%s7766 + $0xc] sm:$0xf]
        %v7771 = vld [vmem:[%s7766 + $0x10] sm:$0xf]
        %v7772 = vld [vmem:[%s7766 + $0x14] sm:$0xf]
        %v7773 = vld [vmem:[%s7766 + $0x18] sm:$0xf]
        %v7774 = vld [vmem:[%s7766 + $0x1c] sm:$0xf]
        %v7775 = vld [vmem:[%s7766 + $0x20] sm:$0xf]
        %v7776 = vld [vmem:[%s7766 + $0x24] sm:$0xf]
        %v7777 = vld [vmem:[%s7766 + $0x28] sm:$0xf]
        %v7778 = vld [vmem:[%s7766 + $0x2c] sm:$0xf]
        %v7779 = vld [vmem:[%s7766 + $0x30] sm:$0xf]
        %v7780 = vld [vmem:[%s7766 + $0x34] sm:$0xf]
        %v7781 = vld [vmem:[%s7766 + $0x38] sm:$0xf]
        %v7782 = vld [vmem:[%s7766 + $0x3c] sm:$0xf]
        %v7783 = vunpack.c.l.b16 %v7757
        %v7784 = vunpack.c.l.b16 %v7765
        %v7785 = vpack.c.b16 %v7784, %v7783
        %v7803 = vunpack.c.l.b16 %v7767
        %v7804 = vunpack.c.l.b16 %v7768
        %v7805 = vunpack.c.l.b16 %v7769
        %v7806 = vunpack.c.l.b16 %v7770
        %v7807 = vunpack.c.l.b16 %v7771
        %v7808 = vunpack.c.l.b16 %v7772
        %v7809 = vunpack.c.l.b16 %v7773
        %v7810 = vunpack.c.l.b16 %v7774
        %v7811 = vunpack.c.l.b16 %v7775
        %v7812 = vunpack.c.l.b16 %v7776
        %v7813 = vunpack.c.l.b16 %v7777
        %v7814 = vunpack.c.l.b16 %v7778
        %v7815 = vunpack.c.l.b16 %v7779
        %v7816 = vunpack.c.l.b16 %v7780
        %v7817 = vunpack.c.l.b16 %v7781
        %v7818 = vunpack.c.l.b16 %v7782
        %v7819 = vpack.c.b16 %v7804, %v7803
        %v7820 = vpack.c.b16 %v7806, %v7805
        %v7821 = vpack.c.b16 %v7808, %v7807
        %v7822 = vpack.c.b16 %v7810, %v7809
        %v7823 = vpack.c.b16 %v7812, %v7811
        %v7824 = vpack.c.b16 %v7814, %v7813
        %v7825 = vpack.c.b16 %v7816, %v7815
        %v7826 = vpack.c.b16 %v7818, %v7817
        %7835 = vmatpush.bf16.msra.mxu0 %v7826
        %7836 = vmatpush.bf16.msra.mxu0 %v7825
        %7837 = vmatpush.bf16.msra.mxu0 %v7824
        %7838 = vmatpush.bf16.msra.mxu0 %v7823
        %7839 = vmatpush.bf16.msra.mxu0 %v7822
        %7840 = vmatpush.bf16.msra.mxu0 %v7821
        %7841 = vmatpush.bf16.msra.mxu0 %v7820
        %7842 = vmatpush.bf16.msra.mxu0 %v7819
        %7843 = vmatmul.bf16.gmra.mxu0 %v7148
        %v7844 = vpop.f32.mrf.mxu0
        %v7845 = vadd.f32 0.0, %v7844
        %v7846 = vpop.f32.mrf.mxu0
        %v7847 = vadd.f32 0.0, %v7846
        %7848 = vmatmul.bf16.gmra.mxu0 %v7149
        %v7849 = vpop.f32.mrf.mxu0
        %v7850 = vadd.f32 0.0, %v7849
        %v7851 = vpop.f32.mrf.mxu0
        %v7852 = vadd.f32 0.0, %v7851
        %7853 = vmatmul.bf16.gmra.mxu0 %v7150
        %v7854 = vpop.f32.mrf.mxu0
        %v7855 = vadd.f32 0.0, %v7854
        %v7856 = vpop.f32.mrf.mxu0
        %v7857 = vadd.f32 0.0, %v7856
        %7858 = vmatmul.bf16.gmra.mxu0 %v7151
        %v7859 = vpop.f32.mrf.mxu0
        %v7860 = vadd.f32 0.0, %v7859
        %v7861 = vpop.f32.mrf.mxu0
        %v7862 = vadd.f32 0.0, %v7861
        %7863 = vmatmul.bf16.gmra.mxu0 %v7152
        %v7864 = vpop.f32.mrf.mxu0
        %v7865 = vadd.f32 0.0, %v7864
        %v7866 = vpop.f32.mrf.mxu0
        %v7867 = vadd.f32 0.0, %v7866
        %7868 = vmatmul.bf16.gmra.mxu0 %v7153
        %v7869 = vpop.f32.mrf.mxu0
        %v7870 = vadd.f32 0.0, %v7869
        %v7871 = vpop.f32.mrf.mxu0
        %v7872 = vadd.f32 0.0, %v7871
        %7873 = vmatmul.bf16.gmra.mxu0 %v7154
        %v7874 = vpop.f32.mrf.mxu0
        %v7875 = vadd.f32 0.0, %v7874
        %v7876 = vpop.f32.mrf.mxu0
        %v7877 = vadd.f32 0.0, %v7876
        %7878 = vmatmul.bf16.gmra.mxu0 %v7155
        %v7879 = vpop.f32.mrf.mxu0
        %v7880 = vadd.f32 0.0, %v7879
        %v7881 = vpop.f32.mrf.mxu0
        %v7882 = vadd.f32 0.0, %v7881
        %7883 = vmatmul.bf16.gmra.mxu0 %v7156
        %v7884 = vpop.f32.mrf.mxu0
        %v7885 = vadd.f32 0.0, %v7884
        %v7886 = vpop.f32.mrf.mxu0
        %v7887 = vadd.f32 0.0, %v7886
        %7888 = vmatmul.bf16.gmra.mxu0 %v7157
        %v7889 = vpop.f32.mrf.mxu0
        %v7890 = vadd.f32 0.0, %v7889
        %v7891 = vpop.f32.mrf.mxu0
        %v7892 = vadd.f32 0.0, %v7891
        %7893 = vmatmul.bf16.gmra.mxu0 %v7158
        %v7894 = vpop.f32.mrf.mxu0
        %v7895 = vadd.f32 0.0, %v7894
        %v7896 = vpop.f32.mrf.mxu0
        %v7897 = vadd.f32 0.0, %v7896
        %7898 = vmatmul.bf16.gmra.mxu0 %v7159
        %v7899 = vpop.f32.mrf.mxu0
        %v7900 = vadd.f32 0.0, %v7899
        %v7901 = vpop.f32.mrf.mxu0
        %v7902 = vadd.f32 0.0, %v7901
        %7903 = vmatmul.bf16.gmra.mxu0 %v7160
        %v7904 = vpop.f32.mrf.mxu0
        %v7905 = vadd.f32 0.0, %v7904
        %v7906 = vpop.f32.mrf.mxu0
        %v7907 = vadd.f32 0.0, %v7906
        %7908 = vmatmul.bf16.gmra.mxu0 %v7161
        %v7909 = vpop.f32.mrf.mxu0
        %v7910 = vadd.f32 0.0, %v7909
        %v7911 = vpop.f32.mrf.mxu0
        %v7912 = vadd.f32 0.0, %v7911
        %7913 = vmatmul.bf16.gmra.mxu0 %v7162
        %v7914 = vpop.f32.mrf.mxu0
        %v7915 = vadd.f32 0.0, %v7914
        %v7916 = vpop.f32.mrf.mxu0
        %v7917 = vadd.f32 0.0, %v7916
        %7918 = vmatmul.bf16.gmra.mxu0 %v7785
        %v7919 = vpop.f32.mrf.mxu0
        %v7920 = vadd.f32 0.0, %v7919
        %v7921 = vpop.f32.mrf.mxu0
        %v7922 = vadd.f32 0.0, %v7921
        %7923 = vdwg.mxu0
        %v7924 = vadd.f32 %v7720, %v7845
        %v7925 = vadd.f32 %v7721, %v7847
        %v7926 = vadd.f32 %v7722, %v7850
        %v7927 = vadd.f32 %v7723, %v7852
        %v7928 = vadd.f32 %v7724, %v7855
        %v7929 = vadd.f32 %v7725, %v7857
        %v7930 = vadd.f32 %v7726, %v7860
        %v7931 = vadd.f32 %v7727, %v7862
        %v7932 = vadd.f32 %v7728, %v7865
        %v7933 = vadd.f32 %v7729, %v7867
        %v7934 = vadd.f32 %v7730, %v7870
        %v7935 = vadd.f32 %v7731, %v7872
        %v7936 = vadd.f32 %v7732, %v7875
        %v7937 = vadd.f32 %v7733, %v7877
        %v7938 = vadd.f32 %v7734, %v7880
        %v7939 = vadd.f32 %v7735, %v7882
        %v7940 = vadd.f32 %v7736, %v7885
        %v7941 = vadd.f32 %v7737, %v7887
        %v7942 = vadd.f32 %v7738, %v7890
        %v7943 = vadd.f32 %v7739, %v7892
        %v7944 = vadd.f32 %v7740, %v7895
        %v7945 = vadd.f32 %v7741, %v7897
        %v7946 = vadd.f32 %v7742, %v7900
        %v7947 = vadd.f32 %v7743, %v7902
        %v7948 = vadd.f32 %v7744, %v7905
        %v7949 = vadd.f32 %v7745, %v7907
        %v7950 = vadd.f32 %v7746, %v7910
        %v7951 = vadd.f32 %v7747, %v7912
        %v7952 = vadd.f32 %v7748, %v7915
        %v7953 = vadd.f32 %v7749, %v7917
        %v7954 = vadd.f32 %v7750, %v7920
        %v7955 = vadd.f32 %v7751, %v7922
        %v7957 = vshrl.u32 %v6051, 16
        %v7959 = vrot.slane %v7957, 7
        %v7960 = vrot.slane %v7959, 4
        %v7962 = vshrl.u32 %v6052, 16
        %v7964 = vrot.slane %v7962, 7
        %v7965 = vshll.u32 %v6052, 16
        %v7967 = vor.u32 %v7964, %v7965
        %v7968 = vsel %vm587, %v7960, %v7967
        %v7969 = vrot.slane %v7964, 4
        %v7971 = vshrl.u32 %v6053, 16
        %v7973 = vrot.slane %v7971, 7
        %v7974 = vshll.u32 %v6053, 16
        %v7976 = vor.u32 %v7973, %v7974
        %v7977 = vsel %vm587, %v7969, %v7976
        %s7978 = scalar_lea.vmem [#allocation7], 384
        %v7979 = vld [vmem:[%s7978] sm:$0xf]
        %v7980 = vld [vmem:[%s7978 + $0x4] sm:$0xf]
        %v7981 = vld [vmem:[%s7978 + $0x8] sm:$0xf]
        %v7982 = vld [vmem:[%s7978 + $0xc] sm:$0xf]
        %v7983 = vld [vmem:[%s7978 + $0x10] sm:$0xf]
        %v7984 = vld [vmem:[%s7978 + $0x14] sm:$0xf]
        %v7985 = vld [vmem:[%s7978 + $0x18] sm:$0xf]
        %v7986 = vld [vmem:[%s7978 + $0x1c] sm:$0xf]
        %v7987 = vld [vmem:[%s7978 + $0x20] sm:$0xf]
        %v7988 = vld [vmem:[%s7978 + $0x24] sm:$0xf]
        %v7989 = vld [vmem:[%s7978 + $0x28] sm:$0xf]
        %v7990 = vld [vmem:[%s7978 + $0x2c] sm:$0xf]
        %v7991 = vld [vmem:[%s7978 + $0x30] sm:$0xf]
        %v7992 = vld [vmem:[%s7978 + $0x34] sm:$0xf]
        %v7993 = vld [vmem:[%s7978 + $0x38] sm:$0xf]
        %v7994 = vld [vmem:[%s7978 + $0x3c] sm:$0xf]
        %v7995 = vunpack.c.l.b16 %v7968
        %v7996 = vunpack.c.l.b16 %v7977
        %v7997 = vpack.c.b16 %v7996, %v7995
        %v8015 = vunpack.c.l.b16 %v7979
        %v8016 = vunpack.c.l.b16 %v7980
        %v8017 = vunpack.c.l.b16 %v7981
        %v8018 = vunpack.c.l.b16 %v7982
        %v8019 = vunpack.c.l.b16 %v7983
        %v8020 = vunpack.c.l.b16 %v7984
        %v8021 = vunpack.c.l.b16 %v7985
        %v8022 = vunpack.c.l.b16 %v7986
        %v8023 = vunpack.c.l.b16 %v7987
        %v8024 = vunpack.c.l.b16 %v7988
        %v8025 = vunpack.c.l.b16 %v7989
        %v8026 = vunpack.c.l.b16 %v7990
        %v8027 = vunpack.c.l.b16 %v7991
        %v8028 = vunpack.c.l.b16 %v7992
        %v8029 = vunpack.c.l.b16 %v7993
        %v8030 = vunpack.c.l.b16 %v7994
        %v8031 = vpack.c.b16 %v8016, %v8015
        %v8032 = vpack.c.b16 %v8018, %v8017
        %v8033 = vpack.c.b16 %v8020, %v8019
        %v8034 = vpack.c.b16 %v8022, %v8021
        %v8035 = vpack.c.b16 %v8024, %v8023
        %v8036 = vpack.c.b16 %v8026, %v8025
        %v8037 = vpack.c.b16 %v8028, %v8027
        %v8038 = vpack.c.b16 %v8030, %v8029
        %8047 = vmatpush.bf16.msra.mxu0 %v8038
        %8048 = vmatpush.bf16.msra.mxu0 %v8037
        %8049 = vmatpush.bf16.msra.mxu0 %v8036
        %8050 = vmatpush.bf16.msra.mxu0 %v8035
        %8051 = vmatpush.bf16.msra.mxu0 %v8034
        %8052 = vmatpush.bf16.msra.mxu0 %v8033
        %8053 = vmatpush.bf16.msra.mxu0 %v8032
        %8054 = vmatpush.bf16.msra.mxu0 %v8031
        %8055 = vmatmul.bf16.gmra.mxu0 %v6707
        %v8056 = vpop.f32.mrf.mxu0
        %v8057 = vadd.f32 0.0, %v8056
        %v8058 = vpop.f32.mrf.mxu0
        %v8059 = vadd.f32 0.0, %v8058
        %8060 = vmatmul.bf16.gmra.mxu0 %v6708
        %v8061 = vpop.f32.mrf.mxu0
        %v8062 = vadd.f32 0.0, %v8061
        %v8063 = vpop.f32.mrf.mxu0
        %v8064 = vadd.f32 0.0, %v8063
        %8065 = vmatmul.bf16.gmra.mxu0 %v6709
        %v8066 = vpop.f32.mrf.mxu0
        %v8067 = vadd.f32 0.0, %v8066
        %v8068 = vpop.f32.mrf.mxu0
        %v8069 = vadd.f32 0.0, %v8068
        %8070 = vmatmul.bf16.gmra.mxu0 %v6710
        %v8071 = vpop.f32.mrf.mxu0
        %v8072 = vadd.f32 0.0, %v8071
        %v8073 = vpop.f32.mrf.mxu0
        %v8074 = vadd.f32 0.0, %v8073
        %8075 = vmatmul.bf16.gmra.mxu0 %v6711
        %v8076 = vpop.f32.mrf.mxu0
        %v8077 = vadd.f32 0.0, %v8076
        %v8078 = vpop.f32.mrf.mxu0
        %v8079 = vadd.f32 0.0, %v8078
        %8080 = vmatmul.bf16.gmra.mxu0 %v6712
        %v8081 = vpop.f32.mrf.mxu0
        %v8082 = vadd.f32 0.0, %v8081
        %v8083 = vpop.f32.mrf.mxu0
        %v8084 = vadd.f32 0.0, %v8083
        %8085 = vmatmul.bf16.gmra.mxu0 %v6713
        %v8086 = vpop.f32.mrf.mxu0
        %v8087 = vadd.f32 0.0, %v8086
        %v8088 = vpop.f32.mrf.mxu0
        %v8089 = vadd.f32 0.0, %v8088
        %8090 = vmatmul.bf16.gmra.mxu0 %v6714
        %v8091 = vpop.f32.mrf.mxu0
        %v8092 = vadd.f32 0.0, %v8091
        %v8093 = vpop.f32.mrf.mxu0
        %v8094 = vadd.f32 0.0, %v8093
        %8095 = vmatmul.bf16.gmra.mxu0 %v6715
        %v8096 = vpop.f32.mrf.mxu0
        %v8097 = vadd.f32 0.0, %v8096
        %v8098 = vpop.f32.mrf.mxu0
        %v8099 = vadd.f32 0.0, %v8098
        %8100 = vmatmul.bf16.gmra.mxu0 %v6716
        %v8101 = vpop.f32.mrf.mxu0
        %v8102 = vadd.f32 0.0, %v8101
        %v8103 = vpop.f32.mrf.mxu0
        %v8104 = vadd.f32 0.0, %v8103
        %8105 = vmatmul.bf16.gmra.mxu0 %v6717
        %v8106 = vpop.f32.mrf.mxu0
        %v8107 = vadd.f32 0.0, %v8106
        %v8108 = vpop.f32.mrf.mxu0
        %v8109 = vadd.f32 0.0, %v8108
        %8110 = vmatmul.bf16.gmra.mxu0 %v6718
        %v8111 = vpop.f32.mrf.mxu0
        %v8112 = vadd.f32 0.0, %v8111
        %v8113 = vpop.f32.mrf.mxu0
        %v8114 = vadd.f32 0.0, %v8113
        %8115 = vmatmul.bf16.gmra.mxu0 %v6719
        %v8116 = vpop.f32.mrf.mxu0
        %v8117 = vadd.f32 0.0, %v8116
        %v8118 = vpop.f32.mrf.mxu0
        %v8119 = vadd.f32 0.0, %v8118
        %8120 = vmatmul.bf16.gmra.mxu0 %v6720
        %v8121 = vpop.f32.mrf.mxu0
        %v8122 = vadd.f32 0.0, %v8121
        %v8123 = vpop.f32.mrf.mxu0
        %v8124 = vadd.f32 0.0, %v8123
        %8125 = vmatmul.bf16.gmra.mxu0 %v7389
        %v8126 = vpop.f32.mrf.mxu0
        %v8127 = vadd.f32 0.0, %v8126
        %v8128 = vpop.f32.mrf.mxu0
        %v8129 = vadd.f32 0.0, %v8128
        %8130 = vmatmul.bf16.gmra.mxu0 %v7997
        %v8131 = vpop.f32.mrf.mxu0
        %v8132 = vadd.f32 0.0, %v8131
        %v8133 = vpop.f32.mrf.mxu0
        %v8134 = vadd.f32 0.0, %v8133
        %8135 = vdwg.mxu0
        %v8136 = vadd.f32 %v7924, %v8057
        %v8137 = vadd.f32 %v7925, %v8059
        %v8138 = vadd.f32 %v7926, %v8062
        %v8139 = vadd.f32 %v7927, %v8064
        %v8140 = vadd.f32 %v7928, %v8067
        %v8141 = vadd.f32 %v7929, %v8069
        %v8142 = vadd.f32 %v7930, %v8072
        %v8143 = vadd.f32 %v7931, %v8074
        %v8144 = vadd.f32 %v7932, %v8077
        %v8145 = vadd.f32 %v7933, %v8079
        %v8146 = vadd.f32 %v7934, %v8082
        %v8147 = vadd.f32 %v7935, %v8084
        %v8148 = vadd.f32 %v7936, %v8087
        %v8149 = vadd.f32 %v7937, %v8089
        %v8150 = vadd.f32 %v7938, %v8092
        %v8151 = vadd.f32 %v7939, %v8094
        %v8152 = vadd.f32 %v7940, %v8097
        %v8153 = vadd.f32 %v7941, %v8099
        %v8154 = vadd.f32 %v7942, %v8102
        %v8155 = vadd.f32 %v7943, %v8104
        %v8156 = vadd.f32 %v7944, %v8107
        %v8157 = vadd.f32 %v7945, %v8109
        %v8158 = vadd.f32 %v7946, %v8112
        %v8159 = vadd.f32 %v7947, %v8114
        %v8160 = vadd.f32 %v7948, %v8117
        %v8161 = vadd.f32 %v7949, %v8119
        %v8162 = vadd.f32 %v7950, %v8122
        %v8163 = vadd.f32 %v7951, %v8124
        %v8164 = vadd.f32 %v7952, %v8127
        %v8165 = vadd.f32 %v7953, %v8129
        %v8166 = vadd.f32 %v7954, %v8132
        %v8167 = vadd.f32 %v7955, %v8134
        %s8168 = scalar_lea.vmem [#allocation7], 448
        %v8169 = vld [vmem:[%s8168] sm:$0xf]
        %v8170 = vld [vmem:[%s8168 + $0x4] sm:$0xf]
        %v8171 = vld [vmem:[%s8168 + $0x8] sm:$0xf]
        %v8172 = vld [vmem:[%s8168 + $0xc] sm:$0xf]
        %v8173 = vld [vmem:[%s8168 + $0x10] sm:$0xf]
        %v8174 = vld [vmem:[%s8168 + $0x14] sm:$0xf]
        %v8175 = vld [vmem:[%s8168 + $0x18] sm:$0xf]
        %v8176 = vld [vmem:[%s8168 + $0x1c] sm:$0xf]
        %v8177 = vld [vmem:[%s8168 + $0x20] sm:$0xf]
        %v8178 = vld [vmem:[%s8168 + $0x24] sm:$0xf]
        %v8179 = vld [vmem:[%s8168 + $0x28] sm:$0xf]
        %v8180 = vld [vmem:[%s8168 + $0x2c] sm:$0xf]
        %v8181 = vld [vmem:[%s8168 + $0x30] sm:$0xf]
        %v8182 = vld [vmem:[%s8168 + $0x34] sm:$0xf]
        %v8183 = vld [vmem:[%s8168 + $0x38] sm:$0xf]
        %v8184 = vld [vmem:[%s8168 + $0x3c] sm:$0xf]
        %v8187 = vunpack.c.l.b16 %v6052
        %v8188 = vunpack.c.l.b16 %v6053
        %v8189 = vpack.c.b16 %v8188, %v8187
        %v8207 = vunpack.c.l.b16 %v8169
        %v8208 = vunpack.c.l.b16 %v8170
        %v8209 = vunpack.c.l.b16 %v8171
        %v8210 = vunpack.c.l.b16 %v8172
        %v8211 = vunpack.c.l.b16 %v8173
        %v8212 = vunpack.c.l.b16 %v8174
        %v8213 = vunpack.c.l.b16 %v8175
        %v8214 = vunpack.c.l.b16 %v8176
        %v8215 = vunpack.c.l.b16 %v8177
        %v8216 = vunpack.c.l.b16 %v8178
        %v8217 = vunpack.c.l.b16 %v8179
        %v8218 = vunpack.c.l.b16 %v8180
        %v8219 = vunpack.c.l.b16 %v8181
        %v8220 = vunpack.c.l.b16 %v8182
        %v8221 = vunpack.c.l.b16 %v8183
        %v8222 = vunpack.c.l.b16 %v8184
        %v8223 = vpack.c.b16 %v8208, %v8207
        %v8224 = vpack.c.b16 %v8210, %v8209
        %v8225 = vpack.c.b16 %v8212, %v8211
        %v8226 = vpack.c.b16 %v8214, %v8213
        %v8227 = vpack.c.b16 %v8216, %v8215
        %v8228 = vpack.c.b16 %v8218, %v8217
        %v8229 = vpack.c.b16 %v8220, %v8219
        %v8230 = vpack.c.b16 %v8222, %v8221
        %8239 = vmatpush.bf16.msra.mxu0 %v8230
        %8240 = vmatpush.bf16.msra.mxu0 %v8229
        %8241 = vmatpush.bf16.msra.mxu0 %v8228
        %8242 = vmatpush.bf16.msra.mxu0 %v8227
        %8243 = vmatpush.bf16.msra.mxu0 %v8226
        %8244 = vmatpush.bf16.msra.mxu0 %v8225
        %8245 = vmatpush.bf16.msra.mxu0 %v8224
        %8246 = vmatpush.bf16.msra.mxu0 %v8223
        %8247 = vmatmul.bf16.gmra.mxu0 %v6506
        %v8248 = vpop.f32.mrf.mxu0
        %v8249 = vadd.f32 0.0, %v8248
        %v8250 = vpop.f32.mrf.mxu0
        %v8251 = vadd.f32 0.0, %v8250
        %8252 = vmatmul.bf16.gmra.mxu0 %v6507
        %v8253 = vpop.f32.mrf.mxu0
        %v8254 = vadd.f32 0.0, %v8253
        %v8255 = vpop.f32.mrf.mxu0
        %v8256 = vadd.f32 0.0, %v8255
        %8257 = vmatmul.bf16.gmra.mxu0 %v6508
        %v8258 = vpop.f32.mrf.mxu0
        %v8259 = vadd.f32 0.0, %v8258
        %v8260 = vpop.f32.mrf.mxu0
        %v8261 = vadd.f32 0.0, %v8260
        %8262 = vmatmul.bf16.gmra.mxu0 %v6509
        %v8263 = vpop.f32.mrf.mxu0
        %v8264 = vadd.f32 0.0, %v8263
        %v8265 = vpop.f32.mrf.mxu0
        %v8266 = vadd.f32 0.0, %v8265
        %8267 = vmatmul.bf16.gmra.mxu0 %v6510
        %v8268 = vpop.f32.mrf.mxu0
        %v8269 = vadd.f32 0.0, %v8268
        %v8270 = vpop.f32.mrf.mxu0
        %v8271 = vadd.f32 0.0, %v8270
        %8272 = vmatmul.bf16.gmra.mxu0 %v6511
        %v8273 = vpop.f32.mrf.mxu0
        %v8274 = vadd.f32 0.0, %v8273
        %v8275 = vpop.f32.mrf.mxu0
        %v8276 = vadd.f32 0.0, %v8275
        %8277 = vmatmul.bf16.gmra.mxu0 %v6512
        %v8278 = vpop.f32.mrf.mxu0
        %v8279 = vadd.f32 0.0, %v8278
        %v8280 = vpop.f32.mrf.mxu0
        %v8281 = vadd.f32 0.0, %v8280
        %8282 = vmatmul.bf16.gmra.mxu0 %v6513
        %v8283 = vpop.f32.mrf.mxu0
        %v8284 = vadd.f32 0.0, %v8283
        %v8285 = vpop.f32.mrf.mxu0
        %v8286 = vadd.f32 0.0, %v8285
        %8287 = vmatmul.bf16.gmra.mxu0 %v6514
        %v8288 = vpop.f32.mrf.mxu0
        %v8289 = vadd.f32 0.0, %v8288
        %v8290 = vpop.f32.mrf.mxu0
        %v8291 = vadd.f32 0.0, %v8290
        %8292 = vmatmul.bf16.gmra.mxu0 %v6515
        %v8293 = vpop.f32.mrf.mxu0
        %v8294 = vadd.f32 0.0, %v8293
        %v8295 = vpop.f32.mrf.mxu0
        %v8296 = vadd.f32 0.0, %v8295
        %8297 = vmatmul.bf16.gmra.mxu0 %v6516
        %v8298 = vpop.f32.mrf.mxu0
        %v8299 = vadd.f32 0.0, %v8298
        %v8300 = vpop.f32.mrf.mxu0
        %v8301 = vadd.f32 0.0, %v8300
        %8302 = vmatmul.bf16.gmra.mxu0 %v6517
        %v8303 = vpop.f32.mrf.mxu0
        %v8304 = vadd.f32 0.0, %v8303
        %v8305 = vpop.f32.mrf.mxu0
        %v8306 = vadd.f32 0.0, %v8305
        %8307 = vmatmul.bf16.gmra.mxu0 %v6518
        %v8308 = vpop.f32.mrf.mxu0
        %v8309 = vadd.f32 0.0, %v8308
        %v8310 = vpop.f32.mrf.mxu0
        %v8311 = vadd.f32 0.0, %v8310
        %8312 = vmatmul.bf16.gmra.mxu0 %v6519
        %v8313 = vpop.f32.mrf.mxu0
        %v8314 = vadd.f32 0.0, %v8313
        %v8315 = vpop.f32.mrf.mxu0
        %v8316 = vadd.f32 0.0, %v8315
        %8317 = vmatmul.bf16.gmra.mxu0 %v7581
        %v8318 = vpop.f32.mrf.mxu0
        %v8319 = vadd.f32 0.0, %v8318
        %v8320 = vpop.f32.mrf.mxu0
        %v8321 = vadd.f32 0.0, %v8320
        %8322 = vmatmul.bf16.gmra.mxu0 %v8189
        %v8323 = vpop.f32.mrf.mxu0
        %v8324 = vadd.f32 0.0, %v8323
        %v8325 = vpop.f32.mrf.mxu0
        %v8326 = vadd.f32 0.0, %v8325
        %8327 = vdwg.mxu0
        %v8328 = vadd.f32 %v8136, %v8249
        %v8329 = vadd.f32 %v8137, %v8251
        %v8330 = vadd.f32 %v8138, %v8254
        %v8331 = vadd.f32 %v8139, %v8256
        %v8332 = vadd.f32 %v8140, %v8259
        %v8333 = vadd.f32 %v8141, %v8261
        %v8334 = vadd.f32 %v8142, %v8264
        %v8335 = vadd.f32 %v8143, %v8266
        %v8336 = vadd.f32 %v8144, %v8269
        %v8337 = vadd.f32 %v8145, %v8271
        %v8338 = vadd.f32 %v8146, %v8274
        %v8339 = vadd.f32 %v8147, %v8276
        %v8340 = vadd.f32 %v8148, %v8279
        %v8341 = vadd.f32 %v8149, %v8281
        %v8342 = vadd.f32 %v8150, %v8284
        %v8343 = vadd.f32 %v8151, %v8286
        %v8344 = vadd.f32 %v8152, %v8289
        %v8345 = vadd.f32 %v8153, %v8291
        %v8346 = vadd.f32 %v8154, %v8294
        %v8347 = vadd.f32 %v8155, %v8296
        %v8348 = vadd.f32 %v8156, %v8299
        %v8349 = vadd.f32 %v8157, %v8301
        %v8350 = vadd.f32 %v8158, %v8304
        %v8351 = vadd.f32 %v8159, %v8306
        %v8352 = vadd.f32 %v8160, %v8309
        %v8353 = vadd.f32 %v8161, %v8311
        %v8354 = vadd.f32 %v8162, %v8314
        %v8355 = vadd.f32 %v8163, %v8316
        %v8356 = vadd.f32 %v8164, %v8319
        %v8357 = vadd.f32 %v8165, %v8321
        %v8358 = vadd.f32 %v8166, %v8324
        %v8359 = vadd.f32 %v8167, %v8326
        %v8360 = vrot.slane %v7962, 4
        %v8361 = vrot.slane %v7965, 5
        %v8362 = vor.u32 %v8360, %v8361
        %v8363 = vrot.slane %v8362, 4
        %v8364 = vrot.slane %v7974, 5
        %v8365 = vsel %vm1409, %v8363, %v8364
        %v8366 = vrot.slane %v7971, 4
        %v8367 = vor.u32 %v8366, %v8364
        %v8368 = vrot.slane %v8367, 4
        %v8370 = vshll.u32 %v6054, 16
        %v8372 = vrot.slane %v8370, 5
        %v8373 = vsel %vm1409, %v8368, %v8372
        %s8374 = scalar_lea.vmem [#allocation7], 512
        %v8375 = vld [vmem:[%s8374] sm:$0xf]
        %v8376 = vld [vmem:[%s8374 + $0x4] sm:$0xf]
        %v8377 = vld [vmem:[%s8374 + $0x8] sm:$0xf]
        %v8378 = vld [vmem:[%s8374 + $0xc] sm:$0xf]
        %v8379 = vld [vmem:[%s8374 + $0x10] sm:$0xf]
        %v8380 = vld [vmem:[%s8374 + $0x14] sm:$0xf]
        %v8381 = vld [vmem:[%s8374 + $0x18] sm:$0xf]
        %v8382 = vld [vmem:[%s8374 + $0x1c] sm:$0xf]
        %v8383 = vld [vmem:[%s8374 + $0x20] sm:$0xf]
        %v8384 = vld [vmem:[%s8374 + $0x24] sm:$0xf]
        %v8385 = vld [vmem:[%s8374 + $0x28] sm:$0xf]
        %v8386 = vld [vmem:[%s8374 + $0x2c] sm:$0xf]
        %v8387 = vld [vmem:[%s8374 + $0x30] sm:$0xf]
        %v8388 = vld [vmem:[%s8374 + $0x34] sm:$0xf]
        %v8389 = vld [vmem:[%s8374 + $0x38] sm:$0xf]
        %v8390 = vld [vmem:[%s8374 + $0x3c] sm:$0xf]
        %v8391 = vunpack.c.l.b16 %v8365
        %v8392 = vunpack.c.l.b16 %v8373
        %v8393 = vpack.c.b16 %v8392, %v8391
        %v8411 = vunpack.c.l.b16 %v8375
        %v8412 = vunpack.c.l.b16 %v8376
        %v8413 = vunpack.c.l.b16 %v8377
        %v8414 = vunpack.c.l.b16 %v8378
        %v8415 = vunpack.c.l.b16 %v8379
        %v8416 = vunpack.c.l.b16 %v8380
        %v8417 = vunpack.c.l.b16 %v8381
        %v8418 = vunpack.c.l.b16 %v8382
        %v8419 = vunpack.c.l.b16 %v8383
        %v8420 = vunpack.c.l.b16 %v8384
        %v8421 = vunpack.c.l.b16 %v8385
        %v8422 = vunpack.c.l.b16 %v8386
        %v8423 = vunpack.c.l.b16 %v8387
        %v8424 = vunpack.c.l.b16 %v8388
        %v8425 = vunpack.c.l.b16 %v8389
        %v8426 = vunpack.c.l.b16 %v8390
        %v8427 = vpack.c.b16 %v8412, %v8411
        %v8428 = vpack.c.b16 %v8414, %v8413
        %v8429 = vpack.c.b16 %v8416, %v8415
        %v8430 = vpack.c.b16 %v8418, %v8417
        %v8431 = vpack.c.b16 %v8420, %v8419
        %v8432 = vpack.c.b16 %v8422, %v8421
        %v8433 = vpack.c.b16 %v8424, %v8423
        %v8434 = vpack.c.b16 %v8426, %v8425
        %8443 = vmatpush.bf16.msra.mxu0 %v8434
        %8444 = vmatpush.bf16.msra.mxu0 %v8433
        %8445 = vmatpush.bf16.msra.mxu0 %v8432
        %8446 = vmatpush.bf16.msra.mxu0 %v8431
        %8447 = vmatpush.bf16.msra.mxu0 %v8430
        %8448 = vmatpush.bf16.msra.mxu0 %v8429
        %8449 = vmatpush.bf16.msra.mxu0 %v8428
        %8450 = vmatpush.bf16.msra.mxu0 %v8427
        %8451 = vmatmul.bf16.gmra.mxu0 %v7149
        %v8452 = vpop.f32.mrf.mxu0
        %v8453 = vadd.f32 0.0, %v8452
        %v8454 = vpop.f32.mrf.mxu0
        %v8455 = vadd.f32 0.0, %v8454
        %8456 = vmatmul.bf16.gmra.mxu0 %v7150
        %v8457 = vpop.f32.mrf.mxu0
        %v8458 = vadd.f32 0.0, %v8457
        %v8459 = vpop.f32.mrf.mxu0
        %v8460 = vadd.f32 0.0, %v8459
        %8461 = vmatmul.bf16.gmra.mxu0 %v7151
        %v8462 = vpop.f32.mrf.mxu0
        %v8463 = vadd.f32 0.0, %v8462
        %v8464 = vpop.f32.mrf.mxu0
        %v8465 = vadd.f32 0.0, %v8464
        %8466 = vmatmul.bf16.gmra.mxu0 %v7152
        %v8467 = vpop.f32.mrf.mxu0
        %v8468 = vadd.f32 0.0, %v8467
        %v8469 = vpop.f32.mrf.mxu0
        %v8470 = vadd.f32 0.0, %v8469
        %8471 = vmatmul.bf16.gmra.mxu0 %v7153
        %v8472 = vpop.f32.mrf.mxu0
        %v8473 = vadd.f32 0.0, %v8472
        %v8474 = vpop.f32.mrf.mxu0
        %v8475 = vadd.f32 0.0, %v8474
        %8476 = vmatmul.bf16.gmra.mxu0 %v7154
        %v8477 = vpop.f32.mrf.mxu0
        %v8478 = vadd.f32 0.0, %v8477
        %v8479 = vpop.f32.mrf.mxu0
        %v8480 = vadd.f32 0.0, %v8479
        %8481 = vmatmul.bf16.gmra.mxu0 %v7155
        %v8482 = vpop.f32.mrf.mxu0
        %v8483 = vadd.f32 0.0, %v8482
        %v8484 = vpop.f32.mrf.mxu0
        %v8485 = vadd.f32 0.0, %v8484
        %8486 = vmatmul.bf16.gmra.mxu0 %v7156
        %v8487 = vpop.f32.mrf.mxu0
        %v8488 = vadd.f32 0.0, %v8487
        %v8489 = vpop.f32.mrf.mxu0
        %v8490 = vadd.f32 0.0, %v8489
        %8491 = vmatmul.bf16.gmra.mxu0 %v7157
        %v8492 = vpop.f32.mrf.mxu0
        %v8493 = vadd.f32 0.0, %v8492
        %v8494 = vpop.f32.mrf.mxu0
        %v8495 = vadd.f32 0.0, %v8494
        %8496 = vmatmul.bf16.gmra.mxu0 %v7158
        %v8497 = vpop.f32.mrf.mxu0
        %v8498 = vadd.f32 0.0, %v8497
        %v8499 = vpop.f32.mrf.mxu0
        %v8500 = vadd.f32 0.0, %v8499
        %8501 = vmatmul.bf16.gmra.mxu0 %v7159
        %v8502 = vpop.f32.mrf.mxu0
        %v8503 = vadd.f32 0.0, %v8502
        %v8504 = vpop.f32.mrf.mxu0
        %v8505 = vadd.f32 0.0, %v8504
        %8506 = vmatmul.bf16.gmra.mxu0 %v7160
        %v8507 = vpop.f32.mrf.mxu0
        %v8508 = vadd.f32 0.0, %v8507
        %v8509 = vpop.f32.mrf.mxu0
        %v8510 = vadd.f32 0.0, %v8509
        %8511 = vmatmul.bf16.gmra.mxu0 %v7161
        %v8512 = vpop.f32.mrf.mxu0
        %v8513 = vadd.f32 0.0, %v8512
        %v8514 = vpop.f32.mrf.mxu0
        %v8515 = vadd.f32 0.0, %v8514
        %8516 = vmatmul.bf16.gmra.mxu0 %v7162
        %v8517 = vpop.f32.mrf.mxu0
        %v8518 = vadd.f32 0.0, %v8517
        %v8519 = vpop.f32.mrf.mxu0
        %v8520 = vadd.f32 0.0, %v8519
        %8521 = vmatmul.bf16.gmra.mxu0 %v7785
        %v8522 = vpop.f32.mrf.mxu0
        %v8523 = vadd.f32 0.0, %v8522
        %v8524 = vpop.f32.mrf.mxu0
        %v8525 = vadd.f32 0.0, %v8524
        %8526 = vmatmul.bf16.gmra.mxu0 %v8393
        %v8527 = vpop.f32.mrf.mxu0
        %v8528 = vadd.f32 0.0, %v8527
        %v8529 = vpop.f32.mrf.mxu0
        %v8530 = vadd.f32 0.0, %v8529
        %8531 = vdwg.mxu0
        %v8532 = vadd.f32 %v8328, %v8453
        %v8533 = vadd.f32 %v8329, %v8455
        %v8534 = vadd.f32 %v8330, %v8458
        %v8535 = vadd.f32 %v8331, %v8460
        %v8536 = vadd.f32 %v8332, %v8463
        %v8537 = vadd.f32 %v8333, %v8465
        %v8538 = vadd.f32 %v8334, %v8468
        %v8539 = vadd.f32 %v8335, %v8470
        %v8540 = vadd.f32 %v8336, %v8473
        %v8541 = vadd.f32 %v8337, %v8475
        %v8542 = vadd.f32 %v8338, %v8478
        %v8543 = vadd.f32 %v8339, %v8480
        %v8544 = vadd.f32 %v8340, %v8483
        %v8545 = vadd.f32 %v8341, %v8485
        %v8546 = vadd.f32 %v8342, %v8488
        %v8547 = vadd.f32 %v8343, %v8490
        %v8548 = vadd.f32 %v8344, %v8493
        %v8549 = vadd.f32 %v8345, %v8495
        %v8550 = vadd.f32 %v8346, %v8498
        %v8551 = vadd.f32 %v8347, %v8500
        %v8552 = vadd.f32 %v8348, %v8503
        %v8553 = vadd.f32 %v8349, %v8505
        %v8554 = vadd.f32 %v8350, %v8508
        %v8555 = vadd.f32 %v8351, %v8510
        %v8556 = vadd.f32 %v8352, %v8513
        %v8557 = vadd.f32 %v8353, %v8515
        %v8558 = vadd.f32 %v8354, %v8518
        %v8559 = vadd.f32 %v8355, %v8520
        %v8560 = vadd.f32 %v8356, %v8523
        %v8561 = vadd.f32 %v8357, %v8525
        %v8562 = vadd.f32 %v8358, %v8528
        %v8563 = vadd.f32 %v8359, %v8530
        %v8564 = vld [vmem:[%s7] sm:$0x1]
        %v8566 = vperm.slane %v8564, 0
        %v8568 = vadd.f32 %v8532, %v8566
        %v8569 = vadd.f32 %v8533, %v8566
        %v8570 = vadd.f32 %v8534, %v8566
        %v8571 = vadd.f32 %v8535, %v8566
        %v8572 = vadd.f32 %v8536, %v8566
        %v8573 = vadd.f32 %v8537, %v8566
        %v8574 = vadd.f32 %v8538, %v8566
        %v8575 = vadd.f32 %v8539, %v8566
        %v8576 = vadd.f32 %v8540, %v8566
        %v8577 = vadd.f32 %v8541, %v8566
        %v8578 = vadd.f32 %v8542, %v8566
        %v8579 = vadd.f32 %v8543, %v8566
        %v8580 = vadd.f32 %v8544, %v8566
        %v8581 = vadd.f32 %v8545, %v8566
        %v8582 = vadd.f32 %v8546, %v8566
        %v8583 = vadd.f32 %v8547, %v8566
        %v8584 = vadd.f32 %v8548, %v8566
        %v8585 = vadd.f32 %v8549, %v8566
        %v8586 = vadd.f32 %v8550, %v8566
        %v8587 = vadd.f32 %v8551, %v8566
        %v8588 = vadd.f32 %v8552, %v8566
        %v8589 = vadd.f32 %v8553, %v8566
        %v8590 = vadd.f32 %v8554, %v8566
        %v8591 = vadd.f32 %v8555, %v8566
        %v8592 = vadd.f32 %v8556, %v8566
        %v8593 = vadd.f32 %v8557, %v8566
        %v8594 = vadd.f32 %v8558, %v8566
        %v8595 = vadd.f32 %v8559, %v8566
        %v8596 = vadd.f32 %v8560, %v8566
        %v8597 = vadd.f32 %v8561, %v8566
        %v8598 = vadd.f32 %v8562, %v8566
        %v8599 = vadd.f32 %v8563, %v8566
        %v8600 = vmax.f32 %v8568, 0.0
        %v8601 = vmax.f32 %v8569, 0.0
        %v8602 = vmax.f32 %v8570, 0.0
        %v8603 = vmax.f32 %v8571, 0.0
        %v8604 = vmax.f32 %v8572, 0.0
        %v8605 = vmax.f32 %v8573, 0.0
        %v8606 = vmax.f32 %v8574, 0.0
        %v8607 = vmax.f32 %v8575, 0.0
        %v8608 = vmax.f32 %v8576, 0.0
        %v8609 = vmax.f32 %v8577, 0.0
        %v8610 = vmax.f32 %v8578, 0.0
        %v8611 = vmax.f32 %v8579, 0.0
        %v8612 = vmax.f32 %v8580, 0.0
        %v8613 = vmax.f32 %v8581, 0.0
        %v8614 = vmax.f32 %v8582, 0.0
        %v8615 = vmax.f32 %v8583, 0.0
        %v8616 = vmax.f32 %v8584, 0.0
        %v8617 = vmax.f32 %v8585, 0.0
        %v8618 = vmax.f32 %v8586, 0.0
        %v8619 = vmax.f32 %v8587, 0.0
        %v8620 = vmax.f32 %v8588, 0.0
        %v8621 = vmax.f32 %v8589, 0.0
        %v8622 = vmax.f32 %v8590, 0.0
        %v8623 = vmax.f32 %v8591, 0.0
        %v8624 = vmax.f32 %v8592, 0.0
        %v8625 = vmax.f32 %v8593, 0.0
        %v8626 = vmax.f32 %v8594, 0.0
        %v8627 = vmax.f32 %v8595, 0.0
        %v8628 = vmax.f32 %v8596, 0.0
        %v8629 = vmax.f32 %v8597, 0.0
        %v8630 = vmax.f32 %v8598, 0.0
        %v8631 = vmax.f32 %v8599, 0.0
        %v8632 = vpack.c.bf16 %v8600, %v8600
        %v8633 = vpack.c.bf16 %v8601, %v8601
        %v8634 = vpack.c.bf16 %v8602, %v8602
        %v8635 = vpack.c.bf16 %v8603, %v8603
        %v8636 = vpack.c.bf16 %v8604, %v8604
        %v8637 = vpack.c.bf16 %v8605, %v8605
        %v8638 = vpack.c.bf16 %v8606, %v8606
        %v8639 = vpack.c.bf16 %v8607, %v8607
        %v8640 = vpack.c.bf16 %v8608, %v8608
        %v8641 = vpack.c.bf16 %v8609, %v8609
        %v8642 = vpack.c.bf16 %v8610, %v8610
        %v8643 = vpack.c.bf16 %v8611, %v8611
        %v8644 = vpack.c.bf16 %v8612, %v8612
        %v8645 = vpack.c.bf16 %v8613, %v8613
        %v8646 = vpack.c.bf16 %v8614, %v8614
        %v8647 = vpack.c.bf16 %v8615, %v8615
        %v8648 = vpack.c.bf16 %v8616, %v8616
        %v8649 = vpack.c.bf16 %v8617, %v8617
        %v8650 = vpack.c.bf16 %v8618, %v8618
        %v8651 = vpack.c.bf16 %v8619, %v8619
        %v8652 = vpack.c.bf16 %v8620, %v8620
        %v8653 = vpack.c.bf16 %v8621, %v8621
        %v8654 = vpack.c.bf16 %v8622, %v8622
        %v8655 = vpack.c.bf16 %v8623, %v8623
        %v8656 = vpack.c.bf16 %v8624, %v8624
        %v8657 = vpack.c.bf16 %v8625, %v8625
        %v8658 = vpack.c.bf16 %v8626, %v8626
        %v8659 = vpack.c.bf16 %v8627, %v8627
        %v8660 = vpack.c.bf16 %v8628, %v8628
        %v8661 = vpack.c.bf16 %v8629, %v8629
        %v8662 = vpack.c.bf16 %v8630, %v8630
        %v8663 = vpack.c.bf16 %v8631, %v8631
        %8664 = vst [vmem:[%s3200 + $0x4] sm:$0xf] %v8632
        %8665 = vst [vmem:[%s3200 + $0x8] sm:$0xf] %v8633
        %8666 = vst [vmem:[%s3200 + $0x14] sm:$0xf] %v8634
        %8667 = vst [vmem:[%s3200 + $0x18] sm:$0xf] %v8635
        %8668 = vst [vmem:[%s3200 + $0x24] sm:$0xf] %v8636
        %8669 = vst [vmem:[%s3200 + $0x28] sm:$0xf] %v8637
        %8670 = vst [vmem:[%s3200 + $0x34] sm:$0xf] %v8638
        %8671 = vst [vmem:[%s3200 + $0x38] sm:$0xf] %v8639
        %8672 = vst [vmem:[%s3200 + $0x44] sm:$0xf] %v8640
        %8673 = vst [vmem:[%s3200 + $0x48] sm:$0xf] %v8641
        %8674 = vst [vmem:[%s3200 + $0x54] sm:$0xf] %v8642
        %8675 = vst [vmem:[%s3200 + $0x58] sm:$0xf] %v8643
        %8676 = vst [vmem:[%s3200 + $0x64] sm:$0xf] %v8644
        %8677 = vst [vmem:[%s3200 + $0x68] sm:$0xf] %v8645
        %8678 = vst [vmem:[%s3200 + $0x74] sm:$0xf] %v8646
        %8679 = vst [vmem:[%s3200 + $0x78] sm:$0xf] %v8647
        %8680 = vst [vmem:[%s3200 + $0x84] sm:$0xf] %v8648
        %8681 = vst [vmem:[%s3200 + $0x88] sm:$0xf] %v8649
        %8682 = vst [vmem:[%s3200 + $0x94] sm:$0xf] %v8650
        %8683 = vst [vmem:[%s3200 + $0x98] sm:$0xf] %v8651
        %8684 = vst [vmem:[%s3200 + $0xa4] sm:$0xf] %v8652
        %8685 = vst [vmem:[%s3200 + $0xa8] sm:$0xf] %v8653
        %8686 = vst [vmem:[%s3200 + $0xb4] sm:$0xf] %v8654
        %8687 = vst [vmem:[%s3200 + $0xb8] sm:$0xf] %v8655
        %8688 = vst [vmem:[%s3200 + $0xc4] sm:$0xf] %v8656
        %8689 = vst [vmem:[%s3200 + $0xc8] sm:$0xf] %v8657
        %8690 = vst [vmem:[%s3200 + $0xd4] sm:$0xf] %v8658
        %8691 = vst [vmem:[%s3200 + $0xd8] sm:$0xf] %v8659
        %8692 = vst [vmem:[%s3200 + $0xe4] sm:$0xf] %v8660
        %8693 = vst [vmem:[%s3200 + $0xe8] sm:$0xf] %v8661
        %8694 = vst [vmem:[%s3200 + $0xf4] sm:$0xf] %v8662
        %8695 = vst [vmem:[%s3200 + $0xf8] sm:$0xf] %v8663
        %v8696 = vld [vmem:[#allocation2] sm:$0xf]
        %v8697 = vld [vmem:[#allocation2 + $0x4] sm:$0xf]
        %v8698 = vld [vmem:[#allocation2 + $0x8] sm:$0xf]
        %v8699 = vld [vmem:[#allocation2 + $0xc] sm:$0x1]
        %v8700 = vld [vmem:[#allocation2 + $0x10] sm:$0xf]
        %v8701 = vld [vmem:[#allocation2 + $0x14] sm:$0xf]
        %v8702 = vld [vmem:[#allocation2 + $0x18] sm:$0xf]
        %v8703 = vld [vmem:[#allocation2 + $0x1c] sm:$0x1]
        %v8704 = vld [vmem:[#allocation2 + $0x20] sm:$0xf]
        %v8705 = vld [vmem:[#allocation2 + $0x24] sm:$0xf]
        %v8706 = vld [vmem:[#allocation2 + $0x28] sm:$0xf]
        %v8707 = vld [vmem:[#allocation2 + $0x2c] sm:$0x1]
        %v8708 = vld [vmem:[#allocation2 + $0x30] sm:$0xf]
        %v8709 = vld [vmem:[#allocation2 + $0x34] sm:$0xf]
        %v8710 = vld [vmem:[#allocation2 + $0x38] sm:$0xf]
        %v8711 = vld [vmem:[#allocation2 + $0x3c] sm:$0x1]
        %v8712 = vld [vmem:[#allocation2 + $0x40] sm:$0xf]
        %v8713 = vld [vmem:[#allocation2 + $0x44] sm:$0xf]
        %v8714 = vld [vmem:[#allocation2 + $0x48] sm:$0xf]
        %v8715 = vld [vmem:[#allocation2 + $0x4c] sm:$0x1]
        %v8716 = vld [vmem:[#allocation2 + $0x50] sm:$0xf]
        %v8717 = vld [vmem:[#allocation2 + $0x54] sm:$0xf]
        %v8718 = vld [vmem:[#allocation2 + $0x58] sm:$0xf]
        %v8719 = vld [vmem:[#allocation2 + $0x5c] sm:$0x1]
        %v8720 = vld [vmem:[#allocation2 + $0x60] sm:$0xf]
        %v8721 = vld [vmem:[#allocation2 + $0x64] sm:$0xf]
        %v8722 = vld [vmem:[#allocation2 + $0x68] sm:$0xf]
        %v8723 = vld [vmem:[#allocation2 + $0x6c] sm:$0x1]
        %v8724 = vld [vmem:[#allocation2 + $0x70] sm:$0xf]
        %v8725 = vld [vmem:[#allocation2 + $0x74] sm:$0xf]
        %v8726 = vld [vmem:[#allocation2 + $0x78] sm:$0xf]
        %v8727 = vld [vmem:[#allocation2 + $0x7c] sm:$0x1]
        %v8728 = vld [vmem:[#allocation2 + $0x80] sm:$0xf]
        %v8729 = vld [vmem:[#allocation2 + $0x84] sm:$0xf]
        %v8730 = vld [vmem:[#allocation2 + $0x88] sm:$0xf]
        %v8731 = vld [vmem:[#allocation2 + $0x8c] sm:$0x1]
        %v8732 = vld [vmem:[#allocation2 + $0x90] sm:$0xf]
        %v8733 = vld [vmem:[#allocation2 + $0x94] sm:$0xf]
        %v8734 = vld [vmem:[#allocation2 + $0x98] sm:$0xf]
        %v8735 = vld [vmem:[#allocation2 + $0x9c] sm:$0x1]
        %v8736 = vld [vmem:[#allocation2 + $0xa0] sm:$0xf]
        %v8737 = vld [vmem:[#allocation2 + $0xa4] sm:$0xf]
        %v8738 = vld [vmem:[#allocation2 + $0xa8] sm:$0xf]
        %v8739 = vld [vmem:[#allocation2 + $0xac] sm:$0x1]
        %v8740 = vld [vmem:[#allocation2 + $0xb0] sm:$0xf]
        %v8741 = vld [vmem:[#allocation2 + $0xb4] sm:$0xf]
        %v8742 = vld [vmem:[#allocation2 + $0xb8] sm:$0xf]
        %v8743 = vld [vmem:[#allocation2 + $0xbc] sm:$0x1]
        %v8744 = vld [vmem:[#allocation2 + $0xc0] sm:$0xf]
        %v8745 = vld [vmem:[#allocation2 + $0xc4] sm:$0xf]
        %v8746 = vld [vmem:[#allocation2 + $0xc8] sm:$0xf]
        %v8747 = vld [vmem:[#allocation2 + $0xcc] sm:$0x1]
        %v8748 = vld [vmem:[#allocation2 + $0xd0] sm:$0xf]
        %v8749 = vld [vmem:[#allocation2 + $0xd4] sm:$0xf]
        %v8750 = vld [vmem:[#allocation2 + $0xd8] sm:$0xf]
        %v8751 = vld [vmem:[#allocation2 + $0xdc] sm:$0x1]
        %v8752 = vld [vmem:[#allocation2 + $0xe0] sm:$0xf]
        %v8753 = vld [vmem:[#allocation2 + $0xe4] sm:$0xf]
        %v8754 = vld [vmem:[#allocation2 + $0xe8] sm:$0xf]
        %v8755 = vld [vmem:[#allocation2 + $0xec] sm:$0x1]
        %v8756 = vld [vmem:[#allocation2 + $0xf0] sm:$0xf]
        %v8757 = vld [vmem:[#allocation2 + $0xf4] sm:$0xf]
        %v8758 = vld [vmem:[#allocation2 + $0xf8] sm:$0xf]
        %v8759 = vld [vmem:[#allocation2 + $0xfc] sm:$0x1]
        %v8760 = vld [vmem:[#allocation2 + $0x100] sm:$0xf]
        %v8761 = vld [vmem:[#allocation2 + $0x104] sm:$0xf]
        %v8762 = vld [vmem:[#allocation2 + $0x108] sm:$0xf]
        %v8763 = vld [vmem:[#allocation2 + $0x10c] sm:$0x1]
        %v8764 = vld [vmem:[#allocation2 + $0x110] sm:$0xf]
        %v8765 = vld [vmem:[#allocation2 + $0x114] sm:$0xf]
        %v8766 = vld [vmem:[#allocation2 + $0x118] sm:$0xf]
        %v8767 = vld [vmem:[#allocation2 + $0x11c] sm:$0x1]
        %v8769 = vshrl.u32 %v8696, 16
        %v8771 = vrot.slane %v8769, 7
        %v8772 = vrot.slane %v8771, 4
        %v8774 = vshrl.u32 %v8697, 16
        %v8776 = vrot.slane %v8774, 7
        %v8777 = vshll.u32 %v8697, 16
        %v8779 = vor.u32 %v8776, %v8777
        %v8780 = vsel %vm587, %v8772, %v8779
        %v8781 = vrot.slane %v8776, 4
        %v8783 = vshrl.u32 %v8698, 16
        %v8785 = vrot.slane %v8783, 7
        %v8786 = vshll.u32 %v8698, 16
        %v8788 = vor.u32 %v8785, %v8786
        %v8789 = vsel %vm587, %v8781, %v8788
        %v8791 = vshrl.u32 %v8700, 16
        %v8793 = vrot.slane %v8791, 7
        %v8794 = vrot.slane %v8793, 4
        %v8796 = vshrl.u32 %v8701, 16
        %v8798 = vrot.slane %v8796, 7
        %v8799 = vshll.u32 %v8701, 16
        %v8801 = vor.u32 %v8798, %v8799
        %v8802 = vsel %vm587, %v8794, %v8801
        %v8803 = vrot.slane %v8798, 4
        %v8805 = vshrl.u32 %v8702, 16
        %v8807 = vrot.slane %v8805, 7
        %v8808 = vshll.u32 %v8702, 16
        %v8810 = vor.u32 %v8807, %v8808
        %v8811 = vsel %vm587, %v8803, %v8810
        %v8813 = vshrl.u32 %v8704, 16
        %v8815 = vrot.slane %v8813, 7
        %v8816 = vrot.slane %v8815, 4
        %v8818 = vshrl.u32 %v8705, 16
        %v8820 = vrot.slane %v8818, 7
        %v8821 = vshll.u32 %v8705, 16
        %v8823 = vor.u32 %v8820, %v8821
        %v8824 = vsel %vm587, %v8816, %v8823
        %v8825 = vrot.slane %v8820, 4
        %v8827 = vshrl.u32 %v8706, 16
        %v8829 = vrot.slane %v8827, 7
        %v8830 = vshll.u32 %v8706, 16
        %v8832 = vor.u32 %v8829, %v8830
        %v8833 = vsel %vm587, %v8825, %v8832
        %v8835 = vshrl.u32 %v8708, 16
        %v8837 = vrot.slane %v8835, 7
        %v8838 = vrot.slane %v8837, 4
        %v8840 = vshrl.u32 %v8709, 16
        %v8842 = vrot.slane %v8840, 7
        %v8843 = vshll.u32 %v8709, 16
        %v8845 = vor.u32 %v8842, %v8843
        %v8846 = vsel %vm587, %v8838, %v8845
        %v8847 = vrot.slane %v8842, 4
        %v8849 = vshrl.u32 %v8710, 16
        %v8851 = vrot.slane %v8849, 7
        %v8852 = vshll.u32 %v8710, 16
        %v8854 = vor.u32 %v8851, %v8852
        %v8855 = vsel %vm587, %v8847, %v8854
        %v8857 = vshrl.u32 %v8712, 16
        %v8859 = vrot.slane %v8857, 7
        %v8860 = vrot.slane %v8859, 4
        %v8862 = vshrl.u32 %v8713, 16
        %v8864 = vrot.slane %v8862, 7
        %v8865 = vshll.u32 %v8713, 16
        %v8867 = vor.u32 %v8864, %v8865
        %v8868 = vsel %vm587, %v8860, %v8867
        %v8869 = vrot.slane %v8864, 4
        %v8871 = vshrl.u32 %v8714, 16
        %v8873 = vrot.slane %v8871, 7
        %v8874 = vshll.u32 %v8714, 16
        %v8876 = vor.u32 %v8873, %v8874
        %v8877 = vsel %vm587, %v8869, %v8876
        %v8879 = vshrl.u32 %v8716, 16
        %v8881 = vrot.slane %v8879, 7
        %v8882 = vrot.slane %v8881, 4
        %v8884 = vshrl.u32 %v8717, 16
        %v8886 = vrot.slane %v8884, 7
        %v8887 = vshll.u32 %v8717, 16
        %v8889 = vor.u32 %v8886, %v8887
        %v8890 = vsel %vm587, %v8882, %v8889
        %v8891 = vrot.slane %v8886, 4
        %v8893 = vshrl.u32 %v8718, 16
        %v8895 = vrot.slane %v8893, 7
        %v8896 = vshll.u32 %v8718, 16
        %v8898 = vor.u32 %v8895, %v8896
        %v8899 = vsel %vm587, %v8891, %v8898
        %v8901 = vshrl.u32 %v8720, 16
        %v8903 = vrot.slane %v8901, 7
        %v8904 = vrot.slane %v8903, 4
        %v8906 = vshrl.u32 %v8721, 16
        %v8908 = vrot.slane %v8906, 7
        %v8909 = vshll.u32 %v8721, 16
        %v8911 = vor.u32 %v8908, %v8909
        %v8912 = vsel %vm587, %v8904, %v8911
        %v8913 = vrot.slane %v8908, 4
        %v8915 = vshrl.u32 %v8722, 16
        %v8917 = vrot.slane %v8915, 7
        %v8918 = vshll.u32 %v8722, 16
        %v8920 = vor.u32 %v8917, %v8918
        %v8921 = vsel %vm587, %v8913, %v8920
        %v8923 = vshrl.u32 %v8724, 16
        %v8925 = vrot.slane %v8923, 7
        %v8926 = vrot.slane %v8925, 4
        %v8928 = vshrl.u32 %v8725, 16
        %v8930 = vrot.slane %v8928, 7
        %v8931 = vshll.u32 %v8725, 16
        %v8933 = vor.u32 %v8930, %v8931
        %v8934 = vsel %vm587, %v8926, %v8933
        %v8935 = vrot.slane %v8930, 4
        %v8937 = vshrl.u32 %v8726, 16
        %v8939 = vrot.slane %v8937, 7
        %v8940 = vshll.u32 %v8726, 16
        %v8942 = vor.u32 %v8939, %v8940
        %v8943 = vsel %vm587, %v8935, %v8942
        %v8945 = vshrl.u32 %v8728, 16
        %v8947 = vrot.slane %v8945, 7
        %v8948 = vrot.slane %v8947, 4
        %v8950 = vshrl.u32 %v8729, 16
        %v8952 = vrot.slane %v8950, 7
        %v8953 = vshll.u32 %v8729, 16
        %v8955 = vor.u32 %v8952, %v8953
        %v8956 = vsel %vm587, %v8948, %v8955
        %v8957 = vrot.slane %v8952, 4
        %v8959 = vshrl.u32 %v8730, 16
        %v8961 = vrot.slane %v8959, 7
        %v8962 = vshll.u32 %v8730, 16
        %v8964 = vor.u32 %v8961, %v8962
        %v8965 = vsel %vm587, %v8957, %v8964
        %v8967 = vshrl.u32 %v8732, 16
        %v8969 = vrot.slane %v8967, 7
        %v8970 = vrot.slane %v8969, 4
        %v8972 = vshrl.u32 %v8733, 16
        %v8974 = vrot.slane %v8972, 7
        %v8975 = vshll.u32 %v8733, 16
        %v8977 = vor.u32 %v8974, %v8975
        %v8978 = vsel %vm587, %v8970, %v8977
        %v8979 = vrot.slane %v8974, 4
        %v8981 = vshrl.u32 %v8734, 16
        %v8983 = vrot.slane %v8981, 7
        %v8984 = vshll.u32 %v8734, 16
        %v8986 = vor.u32 %v8983, %v8984
        %v8987 = vsel %vm587, %v8979, %v8986
        %v8989 = vshrl.u32 %v8736, 16
        %v8991 = vrot.slane %v8989, 7
        %v8992 = vrot.slane %v8991, 4
        %v8994 = vshrl.u32 %v8737, 16
        %v8996 = vrot.slane %v8994, 7
        %v8997 = vshll.u32 %v8737, 16
        %v8999 = vor.u32 %v8996, %v8997
        %v9000 = vsel %vm587, %v8992, %v8999
        %v9001 = vrot.slane %v8996, 4
        %v9003 = vshrl.u32 %v8738, 16
        %v9005 = vrot.slane %v9003, 7
        %v9006 = vshll.u32 %v8738, 16
        %v9008 = vor.u32 %v9005, %v9006
        %v9009 = vsel %vm587, %v9001, %v9008
        %v9011 = vshrl.u32 %v8740, 16
        %v9013 = vrot.slane %v9011, 7
        %v9014 = vrot.slane %v9013, 4
        %v9016 = vshrl.u32 %v8741, 16
        %v9018 = vrot.slane %v9016, 7
        %v9019 = vshll.u32 %v8741, 16
        %v9021 = vor.u32 %v9018, %v9019
        %v9022 = vsel %vm587, %v9014, %v9021
        %v9023 = vrot.slane %v9018, 4
        %v9025 = vshrl.u32 %v8742, 16
        %v9027 = vrot.slane %v9025, 7
        %v9028 = vshll.u32 %v8742, 16
        %v9030 = vor.u32 %v9027, %v9028
        %v9031 = vsel %vm587, %v9023, %v9030
        %v9033 = vshrl.u32 %v8744, 16
        %v9035 = vrot.slane %v9033, 7
        %v9036 = vrot.slane %v9035, 4
        %v9038 = vshrl.u32 %v8745, 16
        %v9040 = vrot.slane %v9038, 7
        %v9041 = vshll.u32 %v8745, 16
        %v9043 = vor.u32 %v9040, %v9041
        %v9044 = vsel %vm587, %v9036, %v9043
        %v9045 = vrot.slane %v9040, 4
        %v9047 = vshrl.u32 %v8746, 16
        %v9049 = vrot.slane %v9047, 7
        %v9050 = vshll.u32 %v8746, 16
        %v9052 = vor.u32 %v9049, %v9050
        %v9053 = vsel %vm587, %v9045, %v9052
        %v9055 = vshrl.u32 %v8748, 16
        %v9057 = vrot.slane %v9055, 7
        %v9058 = vrot.slane %v9057, 4
        %v9060 = vshrl.u32 %v8749, 16
        %v9062 = vrot.slane %v9060, 7
        %v9063 = vshll.u32 %v8749, 16
        %v9065 = vor.u32 %v9062, %v9063
        %v9066 = vsel %vm587, %v9058, %v9065
        %v9067 = vrot.slane %v9062, 4
        %v9069 = vshrl.u32 %v8750, 16
        %v9071 = vrot.slane %v9069, 7
        %v9072 = vshll.u32 %v8750, 16
        %v9074 = vor.u32 %v9071, %v9072
        %v9075 = vsel %vm587, %v9067, %v9074
        %v9077 = vshrl.u32 %v8752, 16
        %v9079 = vrot.slane %v9077, 7
        %v9080 = vrot.slane %v9079, 4
        %v9082 = vshrl.u32 %v8753, 16
        %v9084 = vrot.slane %v9082, 7
        %v9085 = vshll.u32 %v8753, 16
        %v9087 = vor.u32 %v9084, %v9085
        %v9088 = vsel %vm587, %v9080, %v9087
        %v9089 = vrot.slane %v9084, 4
        %v9091 = vshrl.u32 %v8754, 16
        %v9093 = vrot.slane %v9091, 7
        %v9094 = vshll.u32 %v8754, 16
        %v9096 = vor.u32 %v9093, %v9094
        %v9097 = vsel %vm587, %v9089, %v9096
        %v9099 = vshrl.u32 %v8756, 16
        %v9101 = vrot.slane %v9099, 7
        %v9102 = vrot.slane %v9101, 4
        %v9104 = vshrl.u32 %v8757, 16
        %v9106 = vrot.slane %v9104, 7
        %v9107 = vshll.u32 %v8757, 16
        %v9109 = vor.u32 %v9106, %v9107
        %v9110 = vsel %vm587, %v9102, %v9109
        %v9111 = vrot.slane %v9106, 4
        %v9113 = vshrl.u32 %v8758, 16
        %v9115 = vrot.slane %v9113, 7
        %v9116 = vshll.u32 %v8758, 16
        %v9118 = vor.u32 %v9115, %v9116
        %v9119 = vsel %vm587, %v9111, %v9118
        %v9120 = vld [vmem:[#allocation9] sm:$0xf]
        %v9121 = vld [vmem:[#allocation9 + $0x4] sm:$0xf]
        %v9122 = vld [vmem:[#allocation9 + $0x8] sm:$0xf]
        %v9123 = vld [vmem:[#allocation9 + $0xc] sm:$0xf]
        %v9124 = vld [vmem:[#allocation9 + $0x10] sm:$0xf]
        %v9125 = vld [vmem:[#allocation9 + $0x14] sm:$0xf]
        %v9126 = vld [vmem:[#allocation9 + $0x18] sm:$0xf]
        %v9127 = vld [vmem:[#allocation9 + $0x1c] sm:$0xf]
        %v9128 = vld [vmem:[#allocation9 + $0x20] sm:$0xf]
        %v9129 = vld [vmem:[#allocation9 + $0x24] sm:$0xf]
        %v9130 = vld [vmem:[#allocation9 + $0x28] sm:$0xf]
        %v9131 = vld [vmem:[#allocation9 + $0x2c] sm:$0xf]
        %v9132 = vld [vmem:[#allocation9 + $0x30] sm:$0xf]
        %v9133 = vld [vmem:[#allocation9 + $0x34] sm:$0xf]
        %v9134 = vld [vmem:[#allocation9 + $0x38] sm:$0xf]
        %v9135 = vld [vmem:[#allocation9 + $0x3c] sm:$0xf]
        %s9136 = scalar_lea.vmem [#allocation9], 64
        %v9137 = vld [vmem:[%s9136] sm:$0xf]
        %v9138 = vld [vmem:[%s9136 + $0x4] sm:$0xf]
        %v9139 = vld [vmem:[%s9136 + $0x8] sm:$0xf]
        %v9140 = vld [vmem:[%s9136 + $0xc] sm:$0xf]
        %v9141 = vld [vmem:[%s9136 + $0x10] sm:$0xf]
        %v9142 = vld [vmem:[%s9136 + $0x14] sm:$0xf]
        %v9143 = vld [vmem:[%s9136 + $0x18] sm:$0xf]
        %v9144 = vld [vmem:[%s9136 + $0x1c] sm:$0xf]
        %v9145 = vld [vmem:[%s9136 + $0x20] sm:$0xf]
        %v9146 = vld [vmem:[%s9136 + $0x24] sm:$0xf]
        %v9147 = vld [vmem:[%s9136 + $0x28] sm:$0xf]
        %v9148 = vld [vmem:[%s9136 + $0x2c] sm:$0xf]
        %v9149 = vld [vmem:[%s9136 + $0x30] sm:$0xf]
        %v9150 = vld [vmem:[%s9136 + $0x34] sm:$0xf]
        %v9151 = vld [vmem:[%s9136 + $0x38] sm:$0xf]
        %v9152 = vld [vmem:[%s9136 + $0x3c] sm:$0xf]
        %v9185 = vunpack.c.l.b16 %v8697
        %v9186 = vunpack.c.l.b16 %v8698
        %v9187 = vunpack.c.l.b16 %v8701
        %v9188 = vunpack.c.l.b16 %v8702
        %v9189 = vunpack.c.l.b16 %v8705
        %v9190 = vunpack.c.l.b16 %v8706
        %v9191 = vunpack.c.l.b16 %v8709
        %v9192 = vunpack.c.l.b16 %v8710
        %v9193 = vunpack.c.l.b16 %v8713
        %v9194 = vunpack.c.l.b16 %v8714
        %v9195 = vunpack.c.l.b16 %v8717
        %v9196 = vunpack.c.l.b16 %v8718
        %v9197 = vunpack.c.l.b16 %v8721
        %v9198 = vunpack.c.l.b16 %v8722
        %v9199 = vunpack.c.l.b16 %v8725
        %v9200 = vunpack.c.l.b16 %v8726
        %v9201 = vunpack.c.l.b16 %v8729
        %v9202 = vunpack.c.l.b16 %v8730
        %v9203 = vunpack.c.l.b16 %v8733
        %v9204 = vunpack.c.l.b16 %v8734
        %v9205 = vunpack.c.l.b16 %v8737
        %v9206 = vunpack.c.l.b16 %v8738
        %v9207 = vunpack.c.l.b16 %v8741
        %v9208 = vunpack.c.l.b16 %v8742
        %v9209 = vunpack.c.l.b16 %v8745
        %v9210 = vunpack.c.l.b16 %v8746
        %v9211 = vunpack.c.l.b16 %v8749
        %v9212 = vunpack.c.l.b16 %v8750
        %v9213 = vunpack.c.l.b16 %v8753
        %v9214 = vunpack.c.l.b16 %v8754
        %v9215 = vunpack.c.l.b16 %v8757
        %v9216 = vunpack.c.l.b16 %v8758
        %v9217 = vpack.c.b16 %v9186, %v9185
        %v9218 = vpack.c.b16 %v9188, %v9187
        %v9219 = vpack.c.b16 %v9190, %v9189
        %v9220 = vpack.c.b16 %v9192, %v9191
        %v9221 = vpack.c.b16 %v9194, %v9193
        %v9222 = vpack.c.b16 %v9196, %v9195
        %v9223 = vpack.c.b16 %v9198, %v9197
        %v9224 = vpack.c.b16 %v9200, %v9199
        %v9225 = vpack.c.b16 %v9202, %v9201
        %v9226 = vpack.c.b16 %v9204, %v9203
        %v9227 = vpack.c.b16 %v9206, %v9205
        %v9228 = vpack.c.b16 %v9208, %v9207
        %v9229 = vpack.c.b16 %v9210, %v9209
        %v9230 = vpack.c.b16 %v9212, %v9211
        %v9231 = vpack.c.b16 %v9214, %v9213
        %v9232 = vpack.c.b16 %v9216, %v9215
        %v9265 = vunpack.c.l.b16 %v9137
        %v9266 = vunpack.c.l.b16 %v9138
        %v9267 = vunpack.c.l.b16 %v9139
        %v9268 = vunpack.c.l.b16 %v9140
        %v9269 = vunpack.c.l.b16 %v9141
        %v9270 = vunpack.c.l.b16 %v9142
        %v9271 = vunpack.c.l.b16 %v9143
        %v9272 = vunpack.c.l.b16 %v9144
        %v9273 = vunpack.c.l.b16 %v9145
        %v9274 = vunpack.c.l.b16 %v9146
        %v9275 = vunpack.c.l.b16 %v9147
        %v9276 = vunpack.c.l.b16 %v9148
        %v9277 = vunpack.c.l.b16 %v9149
        %v9278 = vunpack.c.l.b16 %v9150
        %v9279 = vunpack.c.l.b16 %v9151
        %v9280 = vunpack.c.l.b16 %v9152
        %v9281 = vpack.c.b16 %v9266, %v9265
        %v9282 = vpack.c.b16 %v9268, %v9267
        %v9283 = vpack.c.b16 %v9270, %v9269
        %v9284 = vpack.c.b16 %v9272, %v9271
        %v9285 = vpack.c.b16 %v9274, %v9273
        %v9286 = vpack.c.b16 %v9276, %v9275
        %v9287 = vpack.c.b16 %v9278, %v9277
        %v9288 = vpack.c.b16 %v9280, %v9279
        %9297 = vmatpush.bf16.msra.mxu0 %v9288
        %9298 = vmatpush.bf16.msra.mxu0 %v9287
        %9299 = vmatpush.bf16.msra.mxu0 %v9286
        %9300 = vmatpush.bf16.msra.mxu0 %v9285
        %9301 = vmatpush.bf16.msra.mxu0 %v9284
        %9302 = vmatpush.bf16.msra.mxu0 %v9283
        %9303 = vmatpush.bf16.msra.mxu0 %v9282
        %9304 = vmatpush.bf16.msra.mxu0 %v9281
        %9305 = vmatmul.bf16.gmra.mxu0 %v9217
        %v9306 = vpop.f32.mrf.mxu0
        %v9307 = vadd.f32 0.0, %v9306
        %v9308 = vpop.f32.mrf.mxu0
        %v9309 = vadd.f32 0.0, %v9308
        %9310 = vmatmul.bf16.gmra.mxu0 %v9218
        %v9311 = vpop.f32.mrf.mxu0
        %v9312 = vadd.f32 0.0, %v9311
        %v9313 = vpop.f32.mrf.mxu0
        %v9314 = vadd.f32 0.0, %v9313
        %9315 = vmatmul.bf16.gmra.mxu0 %v9219
        %v9316 = vpop.f32.mrf.mxu0
        %v9317 = vadd.f32 0.0, %v9316
        %v9318 = vpop.f32.mrf.mxu0
        %v9319 = vadd.f32 0.0, %v9318
        %9320 = vmatmul.bf16.gmra.mxu0 %v9220
        %v9321 = vpop.f32.mrf.mxu0
        %v9322 = vadd.f32 0.0, %v9321
        %v9323 = vpop.f32.mrf.mxu0
        %v9324 = vadd.f32 0.0, %v9323
        %9325 = vmatmul.bf16.gmra.mxu0 %v9221
        %v9326 = vpop.f32.mrf.mxu0
        %v9327 = vadd.f32 0.0, %v9326
        %v9328 = vpop.f32.mrf.mxu0
        %v9329 = vadd.f32 0.0, %v9328
        %9330 = vmatmul.bf16.gmra.mxu0 %v9222
        %v9331 = vpop.f32.mrf.mxu0
        %v9332 = vadd.f32 0.0, %v9331
        %v9333 = vpop.f32.mrf.mxu0
        %v9334 = vadd.f32 0.0, %v9333
        %9335 = vmatmul.bf16.gmra.mxu0 %v9223
        %v9336 = vpop.f32.mrf.mxu0
        %v9337 = vadd.f32 0.0, %v9336
        %v9338 = vpop.f32.mrf.mxu0
        %v9339 = vadd.f32 0.0, %v9338
        %9340 = vmatmul.bf16.gmra.mxu0 %v9224
        %v9341 = vpop.f32.mrf.mxu0
        %v9342 = vadd.f32 0.0, %v9341
        %v9343 = vpop.f32.mrf.mxu0
        %v9344 = vadd.f32 0.0, %v9343
        %9345 = vmatmul.bf16.gmra.mxu0 %v9225
        %v9346 = vpop.f32.mrf.mxu0
        %v9347 = vadd.f32 0.0, %v9346
        %v9348 = vpop.f32.mrf.mxu0
        %v9349 = vadd.f32 0.0, %v9348
        %9350 = vmatmul.bf16.gmra.mxu0 %v9226
        %v9351 = vpop.f32.mrf.mxu0
        %v9352 = vadd.f32 0.0, %v9351
        %v9353 = vpop.f32.mrf.mxu0
        %v9354 = vadd.f32 0.0, %v9353
        %9355 = vmatmul.bf16.gmra.mxu0 %v9227
        %v9356 = vpop.f32.mrf.mxu0
        %v9357 = vadd.f32 0.0, %v9356
        %v9358 = vpop.f32.mrf.mxu0
        %v9359 = vadd.f32 0.0, %v9358
        %9360 = vmatmul.bf16.gmra.mxu0 %v9228
        %v9361 = vpop.f32.mrf.mxu0
        %v9362 = vadd.f32 0.0, %v9361
        %v9363 = vpop.f32.mrf.mxu0
        %v9364 = vadd.f32 0.0, %v9363
        %9365 = vmatmul.bf16.gmra.mxu0 %v9229
        %v9366 = vpop.f32.mrf.mxu0
        %v9367 = vadd.f32 0.0, %v9366
        %v9368 = vpop.f32.mrf.mxu0
        %v9369 = vadd.f32 0.0, %v9368
        %9370 = vmatmul.bf16.gmra.mxu0 %v9230
        %v9371 = vpop.f32.mrf.mxu0
        %v9372 = vadd.f32 0.0, %v9371
        %v9373 = vpop.f32.mrf.mxu0
        %v9374 = vadd.f32 0.0, %v9373
        %9375 = vmatmul.bf16.gmra.mxu0 %v9231
        %v9376 = vpop.f32.mrf.mxu0
        %v9377 = vadd.f32 0.0, %v9376
        %v9378 = vpop.f32.mrf.mxu0
        %v9379 = vadd.f32 0.0, %v9378
        %9380 = vmatmul.bf16.gmra.mxu0 %v9232
        %v9381 = vpop.f32.mrf.mxu0
        %v9382 = vadd.f32 0.0, %v9381
        %v9383 = vpop.f32.mrf.mxu0
        %v9384 = vadd.f32 0.0, %v9383
        %9385 = vdwg.mxu0
        %v9386 = vunpack.c.l.b16 %v8780
        %v9387 = vunpack.c.l.b16 %v8789
        %v9388 = vunpack.c.l.b16 %v8802
        %v9389 = vunpack.c.l.b16 %v8811
        %v9390 = vunpack.c.l.b16 %v8824
        %v9391 = vunpack.c.l.b16 %v8833
        %v9392 = vunpack.c.l.b16 %v8846
        %v9393 = vunpack.c.l.b16 %v8855
        %v9394 = vunpack.c.l.b16 %v8868
        %v9395 = vunpack.c.l.b16 %v8877
        %v9396 = vunpack.c.l.b16 %v8890
        %v9397 = vunpack.c.l.b16 %v8899
        %v9398 = vunpack.c.l.b16 %v8912
        %v9399 = vunpack.c.l.b16 %v8921
        %v9400 = vunpack.c.l.b16 %v8934
        %v9401 = vunpack.c.l.b16 %v8943
        %v9402 = vunpack.c.l.b16 %v8956
        %v9403 = vunpack.c.l.b16 %v8965
        %v9404 = vunpack.c.l.b16 %v8978
        %v9405 = vunpack.c.l.b16 %v8987
        %v9406 = vunpack.c.l.b16 %v9000
        %v9407 = vunpack.c.l.b16 %v9009
        %v9408 = vunpack.c.l.b16 %v9022
        %v9409 = vunpack.c.l.b16 %v9031
        %v9410 = vunpack.c.l.b16 %v9044
        %v9411 = vunpack.c.l.b16 %v9053
        %v9412 = vunpack.c.l.b16 %v9066
        %v9413 = vunpack.c.l.b16 %v9075
        %v9414 = vunpack.c.l.b16 %v9088
        %v9415 = vunpack.c.l.b16 %v9097
        %v9416 = vunpack.c.l.b16 %v9110
        %v9417 = vunpack.c.l.b16 %v9119
        %v9418 = vpack.c.b16 %v9387, %v9386
        %v9419 = vpack.c.b16 %v9389, %v9388
        %v9420 = vpack.c.b16 %v9391, %v9390
        %v9421 = vpack.c.b16 %v9393, %v9392
        %v9422 = vpack.c.b16 %v9395, %v9394
        %v9423 = vpack.c.b16 %v9397, %v9396
        %v9424 = vpack.c.b16 %v9399, %v9398
        %v9425 = vpack.c.b16 %v9401, %v9400
        %v9426 = vpack.c.b16 %v9403, %v9402
        %v9427 = vpack.c.b16 %v9405, %v9404
        %v9428 = vpack.c.b16 %v9407, %v9406
        %v9429 = vpack.c.b16 %v9409, %v9408
        %v9430 = vpack.c.b16 %v9411, %v9410
        %v9431 = vpack.c.b16 %v9413, %v9412
        %v9432 = vpack.c.b16 %v9415, %v9414
        %v9433 = vpack.c.b16 %v9417, %v9416
        %v9466 = vunpack.c.l.b16 %v9120
        %v9467 = vunpack.c.l.b16 %v9121
        %v9468 = vunpack.c.l.b16 %v9122
        %v9469 = vunpack.c.l.b16 %v9123
        %v9470 = vunpack.c.l.b16 %v9124
        %v9471 = vunpack.c.l.b16 %v9125
        %v9472 = vunpack.c.l.b16 %v9126
        %v9473 = vunpack.c.l.b16 %v9127
        %v9474 = vunpack.c.l.b16 %v9128
        %v9475 = vunpack.c.l.b16 %v9129
        %v9476 = vunpack.c.l.b16 %v9130
        %v9477 = vunpack.c.l.b16 %v9131
        %v9478 = vunpack.c.l.b16 %v9132
        %v9479 = vunpack.c.l.b16 %v9133
        %v9480 = vunpack.c.l.b16 %v9134
        %v9481 = vunpack.c.l.b16 %v9135
        %v9482 = vpack.c.b16 %v9467, %v9466
        %v9483 = vpack.c.b16 %v9469, %v9468
        %v9484 = vpack.c.b16 %v9471, %v9470
        %v9485 = vpack.c.b16 %v9473, %v9472
        %v9486 = vpack.c.b16 %v9475, %v9474
        %v9487 = vpack.c.b16 %v9477, %v9476
        %v9488 = vpack.c.b16 %v9479, %v9478
        %v9489 = vpack.c.b16 %v9481, %v9480
        %9498 = vmatpush.bf16.msra.mxu0 %v9489
        %9499 = vmatpush.bf16.msra.mxu0 %v9488
        %9500 = vmatpush.bf16.msra.mxu0 %v9487
        %9501 = vmatpush.bf16.msra.mxu0 %v9486
        %9502 = vmatpush.bf16.msra.mxu0 %v9485
        %9503 = vmatpush.bf16.msra.mxu0 %v9484
        %9504 = vmatpush.bf16.msra.mxu0 %v9483
        %9505 = vmatpush.bf16.msra.mxu0 %v9482
        %9506 = vmatmul.bf16.gmra.mxu0 %v9418
        %v9507 = vpop.f32.mrf.mxu0
        %v9508 = vadd.f32 %v9307, %v9507
        %v9509 = vpop.f32.mrf.mxu0
        %v9510 = vadd.f32 %v9309, %v9509
        %9511 = vmatmul.bf16.gmra.mxu0 %v9419
        %v9512 = vpop.f32.mrf.mxu0
        %v9513 = vadd.f32 %v9312, %v9512
        %v9514 = vpop.f32.mrf.mxu0
        %v9515 = vadd.f32 %v9314, %v9514
        %9516 = vmatmul.bf16.gmra.mxu0 %v9420
        %v9517 = vpop.f32.mrf.mxu0
        %v9518 = vadd.f32 %v9317, %v9517
        %v9519 = vpop.f32.mrf.mxu0
        %v9520 = vadd.f32 %v9319, %v9519
        %9521 = vmatmul.bf16.gmra.mxu0 %v9421
        %v9522 = vpop.f32.mrf.mxu0
        %v9523 = vadd.f32 %v9322, %v9522
        %v9524 = vpop.f32.mrf.mxu0
        %v9525 = vadd.f32 %v9324, %v9524
        %9526 = vmatmul.bf16.gmra.mxu0 %v9422
        %v9527 = vpop.f32.mrf.mxu0
        %v9528 = vadd.f32 %v9327, %v9527
        %v9529 = vpop.f32.mrf.mxu0
        %v9530 = vadd.f32 %v9329, %v9529
        %9531 = vmatmul.bf16.gmra.mxu0 %v9423
        %v9532 = vpop.f32.mrf.mxu0
        %v9533 = vadd.f32 %v9332, %v9532
        %v9534 = vpop.f32.mrf.mxu0
        %v9535 = vadd.f32 %v9334, %v9534
        %9536 = vmatmul.bf16.gmra.mxu0 %v9424
        %v9537 = vpop.f32.mrf.mxu0
        %v9538 = vadd.f32 %v9337, %v9537
        %v9539 = vpop.f32.mrf.mxu0
        %v9540 = vadd.f32 %v9339, %v9539
        %9541 = vmatmul.bf16.gmra.mxu0 %v9425
        %v9542 = vpop.f32.mrf.mxu0
        %v9543 = vadd.f32 %v9342, %v9542
        %v9544 = vpop.f32.mrf.mxu0
        %v9545 = vadd.f32 %v9344, %v9544
        %9546 = vmatmul.bf16.gmra.mxu0 %v9426
        %v9547 = vpop.f32.mrf.mxu0
        %v9548 = vadd.f32 %v9347, %v9547
        %v9549 = vpop.f32.mrf.mxu0
        %v9550 = vadd.f32 %v9349, %v9549
        %9551 = vmatmul.bf16.gmra.mxu0 %v9427
        %v9552 = vpop.f32.mrf.mxu0
        %v9553 = vadd.f32 %v9352, %v9552
        %v9554 = vpop.f32.mrf.mxu0
        %v9555 = vadd.f32 %v9354, %v9554
        %9556 = vmatmul.bf16.gmra.mxu0 %v9428
        %v9557 = vpop.f32.mrf.mxu0
        %v9558 = vadd.f32 %v9357, %v9557
        %v9559 = vpop.f32.mrf.mxu0
        %v9560 = vadd.f32 %v9359, %v9559
        %9561 = vmatmul.bf16.gmra.mxu0 %v9429
        %v9562 = vpop.f32.mrf.mxu0
        %v9563 = vadd.f32 %v9362, %v9562
        %v9564 = vpop.f32.mrf.mxu0
        %v9565 = vadd.f32 %v9364, %v9564
        %9566 = vmatmul.bf16.gmra.mxu0 %v9430
        %v9567 = vpop.f32.mrf.mxu0
        %v9568 = vadd.f32 %v9367, %v9567
        %v9569 = vpop.f32.mrf.mxu0
        %v9570 = vadd.f32 %v9369, %v9569
        %9571 = vmatmul.bf16.gmra.mxu0 %v9431
        %v9572 = vpop.f32.mrf.mxu0
        %v9573 = vadd.f32 %v9372, %v9572
        %v9574 = vpop.f32.mrf.mxu0
        %v9575 = vadd.f32 %v9374, %v9574
        %9576 = vmatmul.bf16.gmra.mxu0 %v9432
        %v9577 = vpop.f32.mrf.mxu0
        %v9578 = vadd.f32 %v9377, %v9577
        %v9579 = vpop.f32.mrf.mxu0
        %v9580 = vadd.f32 %v9379, %v9579
        %9581 = vmatmul.bf16.gmra.mxu0 %v9433
        %v9582 = vpop.f32.mrf.mxu0
        %v9583 = vadd.f32 %v9382, %v9582
        %v9584 = vpop.f32.mrf.mxu0
        %v9585 = vadd.f32 %v9384, %v9584
        %9586 = vdwg.mxu0
        %v9587 = vrot.slane %v8774, 4
        %v9588 = vrot.slane %v8777, 5
        %v9589 = vor.u32 %v9587, %v9588
        %v9590 = vrot.slane %v9589, 4
        %v9591 = vrot.slane %v8786, 5
        %v9592 = vsel %vm1409, %v9590, %v9591
        %v9593 = vrot.slane %v8783, 4
        %v9594 = vor.u32 %v9593, %v9591
        %v9595 = vrot.slane %v9594, 4
        %v9597 = vshll.u32 %v8699, 16
        %v9599 = vrot.slane %v9597, 5
        %v9600 = vsel %vm1409, %v9595, %v9599
        %v9601 = vrot.slane %v8796, 4
        %v9602 = vrot.slane %v8799, 5
        %v9603 = vor.u32 %v9601, %v9602
        %v9604 = vrot.slane %v9603, 4
        %v9605 = vrot.slane %v8808, 5
        %v9606 = vsel %vm1409, %v9604, %v9605
        %v9607 = vrot.slane %v8805, 4
        %v9608 = vor.u32 %v9607, %v9605
        %v9609 = vrot.slane %v9608, 4
        %v9611 = vshll.u32 %v8703, 16
        %v9613 = vrot.slane %v9611, 5
        %v9614 = vsel %vm1409, %v9609, %v9613
        %v9615 = vrot.slane %v8818, 4
        %v9616 = vrot.slane %v8821, 5
        %v9617 = vor.u32 %v9615, %v9616
        %v9618 = vrot.slane %v9617, 4
        %v9619 = vrot.slane %v8830, 5
        %v9620 = vsel %vm1409, %v9618, %v9619
        %v9621 = vrot.slane %v8827, 4
        %v9622 = vor.u32 %v9621, %v9619
        %v9623 = vrot.slane %v9622, 4
        %v9625 = vshll.u32 %v8707, 16
        %v9627 = vrot.slane %v9625, 5
        %v9628 = vsel %vm1409, %v9623, %v9627
        %v9629 = vrot.slane %v8840, 4
        %v9630 = vrot.slane %v8843, 5
        %v9631 = vor.u32 %v9629, %v9630
        %v9632 = vrot.slane %v9631, 4
        %v9633 = vrot.slane %v8852, 5
        %v9634 = vsel %vm1409, %v9632, %v9633
        %v9635 = vrot.slane %v8849, 4
        %v9636 = vor.u32 %v9635, %v9633
        %v9637 = vrot.slane %v9636, 4
        %v9639 = vshll.u32 %v8711, 16
        %v9641 = vrot.slane %v9639, 5
        %v9642 = vsel %vm1409, %v9637, %v9641
        %v9643 = vrot.slane %v8862, 4
        %v9644 = vrot.slane %v8865, 5
        %v9645 = vor.u32 %v9643, %v9644
        %v9646 = vrot.slane %v9645, 4
        %v9647 = vrot.slane %v8874, 5
        %v9648 = vsel %vm1409, %v9646, %v9647
        %v9649 = vrot.slane %v8871, 4
        %v9650 = vor.u32 %v9649, %v9647
        %v9651 = vrot.slane %v9650, 4
        %v9653 = vshll.u32 %v8715, 16
        %v9655 = vrot.slane %v9653, 5
        %v9656 = vsel %vm1409, %v9651, %v9655
        %v9657 = vrot.slane %v8884, 4
        %v9658 = vrot.slane %v8887, 5
        %v9659 = vor.u32 %v9657, %v9658
        %v9660 = vrot.slane %v9659, 4
        %v9661 = vrot.slane %v8896, 5
        %v9662 = vsel %vm1409, %v9660, %v9661
        %v9663 = vrot.slane %v8893, 4
        %v9664 = vor.u32 %v9663, %v9661
        %v9665 = vrot.slane %v9664, 4
        %v9667 = vshll.u32 %v8719, 16
        %v9669 = vrot.slane %v9667, 5
        %v9670 = vsel %vm1409, %v9665, %v9669
        %v9671 = vrot.slane %v8906, 4
        %v9672 = vrot.slane %v8909, 5
        %v9673 = vor.u32 %v9671, %v9672
        %v9674 = vrot.slane %v9673, 4
        %v9675 = vrot.slane %v8918, 5
        %v9676 = vsel %vm1409, %v9674, %v9675
        %v9677 = vrot.slane %v8915, 4
        %v9678 = vor.u32 %v9677, %v9675
        %v9679 = vrot.slane %v9678, 4
        %v9681 = vshll.u32 %v8723, 16
        %v9683 = vrot.slane %v9681, 5
        %v9684 = vsel %vm1409, %v9679, %v9683
        %v9685 = vrot.slane %v8928, 4
        %v9686 = vrot.slane %v8931, 5
        %v9687 = vor.u32 %v9685, %v9686
        %v9688 = vrot.slane %v9687, 4
        %v9689 = vrot.slane %v8940, 5
        %v9690 = vsel %vm1409, %v9688, %v9689
        %v9691 = vrot.slane %v8937, 4
        %v9692 = vor.u32 %v9691, %v9689
        %v9693 = vrot.slane %v9692, 4
        %v9695 = vshll.u32 %v8727, 16
        %v9697 = vrot.slane %v9695, 5
        %v9698 = vsel %vm1409, %v9693, %v9697
        %v9699 = vrot.slane %v8950, 4
        %v9700 = vrot.slane %v8953, 5
        %v9701 = vor.u32 %v9699, %v9700
        %v9702 = vrot.slane %v9701, 4
        %v9703 = vrot.slane %v8962, 5
        %v9704 = vsel %vm1409, %v9702, %v9703
        %v9705 = vrot.slane %v8959, 4
        %v9706 = vor.u32 %v9705, %v9703
        %v9707 = vrot.slane %v9706, 4
        %v9709 = vshll.u32 %v8731, 16
        %v9711 = vrot.slane %v9709, 5
        %v9712 = vsel %vm1409, %v9707, %v9711
        %v9713 = vrot.slane %v8972, 4
        %v9714 = vrot.slane %v8975, 5
        %v9715 = vor.u32 %v9713, %v9714
        %v9716 = vrot.slane %v9715, 4
        %v9717 = vrot.slane %v8984, 5
        %v9718 = vsel %vm1409, %v9716, %v9717
        %v9719 = vrot.slane %v8981, 4
        %v9720 = vor.u32 %v9719, %v9717
        %v9721 = vrot.slane %v9720, 4
        %v9723 = vshll.u32 %v8735, 16
        %v9725 = vrot.slane %v9723, 5
        %v9726 = vsel %vm1409, %v9721, %v9725
        %v9727 = vrot.slane %v8994, 4
        %v9728 = vrot.slane %v8997, 5
        %v9729 = vor.u32 %v9727, %v9728
        %v9730 = vrot.slane %v9729, 4
        %v9731 = vrot.slane %v9006, 5
        %v9732 = vsel %vm1409, %v9730, %v9731
        %v9733 = vrot.slane %v9003, 4
        %v9734 = vor.u32 %v9733, %v9731
        %v9735 = vrot.slane %v9734, 4
        %v9737 = vshll.u32 %v8739, 16
        %v9739 = vrot.slane %v9737, 5
        %v9740 = vsel %vm1409, %v9735, %v9739
        %v9741 = vrot.slane %v9016, 4
        %v9742 = vrot.slane %v9019, 5
        %v9743 = vor.u32 %v9741, %v9742
        %v9744 = vrot.slane %v9743, 4
        %v9745 = vrot.slane %v9028, 5
        %v9746 = vsel %vm1409, %v9744, %v9745
        %v9747 = vrot.slane %v9025, 4
        %v9748 = vor.u32 %v9747, %v9745
        %v9749 = vrot.slane %v9748, 4
        %v9751 = vshll.u32 %v8743, 16
        %v9753 = vrot.slane %v9751, 5
        %v9754 = vsel %vm1409, %v9749, %v9753
        %v9755 = vrot.slane %v9038, 4
        %v9756 = vrot.slane %v9041, 5
        %v9757 = vor.u32 %v9755, %v9756
        %v9758 = vrot.slane %v9757, 4
        %v9759 = vrot.slane %v9050, 5
        %v9760 = vsel %vm1409, %v9758, %v9759
        %v9761 = vrot.slane %v9047, 4
        %v9762 = vor.u32 %v9761, %v9759
        %v9763 = vrot.slane %v9762, 4
        %v9765 = vshll.u32 %v8747, 16
        %v9767 = vrot.slane %v9765, 5
        %v9768 = vsel %vm1409, %v9763, %v9767
        %v9769 = vrot.slane %v9060, 4
        %v9770 = vrot.slane %v9063, 5
        %v9771 = vor.u32 %v9769, %v9770
        %v9772 = vrot.slane %v9771, 4
        %v9773 = vrot.slane %v9072, 5
        %v9774 = vsel %vm1409, %v9772, %v9773
        %v9775 = vrot.slane %v9069, 4
        %v9776 = vor.u32 %v9775, %v9773
        %v9777 = vrot.slane %v9776, 4
        %v9779 = vshll.u32 %v8751, 16
        %v9781 = vrot.slane %v9779, 5
        %v9782 = vsel %vm1409, %v9777, %v9781
        %v9783 = vrot.slane %v9082, 4
        %v9784 = vrot.slane %v9085, 5
        %v9785 = vor.u32 %v9783, %v9784
        %v9786 = vrot.slane %v9785, 4
        %v9787 = vrot.slane %v9094, 5
        %v9788 = vsel %vm1409, %v9786, %v9787
        %v9789 = vrot.slane %v9091, 4
        %v9790 = vor.u32 %v9789, %v9787
        %v9791 = vrot.slane %v9790, 4
        %v9793 = vshll.u32 %v8755, 16
        %v9795 = vrot.slane %v9793, 5
        %v9796 = vsel %vm1409, %v9791, %v9795
        %v9797 = vrot.slane %v9104, 4
        %v9798 = vrot.slane %v9107, 5
        %v9799 = vor.u32 %v9797, %v9798
        %v9800 = vrot.slane %v9799, 4
        %v9801 = vrot.slane %v9116, 5
        %v9802 = vsel %vm1409, %v9800, %v9801
        %v9803 = vrot.slane %v9113, 4
        %v9804 = vor.u32 %v9803, %v9801
        %v9805 = vrot.slane %v9804, 4
        %v9807 = vshll.u32 %v8759, 16
        %v9809 = vrot.slane %v9807, 5
        %v9810 = vsel %vm1409, %v9805, %v9809
        %s9811 = scalar_lea.vmem [#allocation9], 128
        %v9812 = vld [vmem:[%s9811] sm:$0xf]
        %v9813 = vld [vmem:[%s9811 + $0x4] sm:$0xf]
        %v9814 = vld [vmem:[%s9811 + $0x8] sm:$0xf]
        %v9815 = vld [vmem:[%s9811 + $0xc] sm:$0xf]
        %v9816 = vld [vmem:[%s9811 + $0x10] sm:$0xf]
        %v9817 = vld [vmem:[%s9811 + $0x14] sm:$0xf]
        %v9818 = vld [vmem:[%s9811 + $0x18] sm:$0xf]
        %v9819 = vld [vmem:[%s9811 + $0x1c] sm:$0xf]
        %v9820 = vld [vmem:[%s9811 + $0x20] sm:$0xf]
        %v9821 = vld [vmem:[%s9811 + $0x24] sm:$0xf]
        %v9822 = vld [vmem:[%s9811 + $0x28] sm:$0xf]
        %v9823 = vld [vmem:[%s9811 + $0x2c] sm:$0xf]
        %v9824 = vld [vmem:[%s9811 + $0x30] sm:$0xf]
        %v9825 = vld [vmem:[%s9811 + $0x34] sm:$0xf]
        %v9826 = vld [vmem:[%s9811 + $0x38] sm:$0xf]
        %v9827 = vld [vmem:[%s9811 + $0x3c] sm:$0xf]
        %v9828 = vunpack.c.l.b16 %v9592
        %v9829 = vunpack.c.l.b16 %v9600
        %v9830 = vunpack.c.l.b16 %v9606
        %v9831 = vunpack.c.l.b16 %v9614
        %v9832 = vunpack.c.l.b16 %v9620
        %v9833 = vunpack.c.l.b16 %v9628
        %v9834 = vunpack.c.l.b16 %v9634
        %v9835 = vunpack.c.l.b16 %v9642
        %v9836 = vunpack.c.l.b16 %v9648
        %v9837 = vunpack.c.l.b16 %v9656
        %v9838 = vunpack.c.l.b16 %v9662
        %v9839 = vunpack.c.l.b16 %v9670
        %v9840 = vunpack.c.l.b16 %v9676
        %v9841 = vunpack.c.l.b16 %v9684
        %v9842 = vunpack.c.l.b16 %v9690
        %v9843 = vunpack.c.l.b16 %v9698
        %v9844 = vunpack.c.l.b16 %v9704
        %v9845 = vunpack.c.l.b16 %v9712
        %v9846 = vunpack.c.l.b16 %v9718
        %v9847 = vunpack.c.l.b16 %v9726
        %v9848 = vunpack.c.l.b16 %v9732
        %v9849 = vunpack.c.l.b16 %v9740
        %v9850 = vunpack.c.l.b16 %v9746
        %v9851 = vunpack.c.l.b16 %v9754
        %v9852 = vunpack.c.l.b16 %v9760
        %v9853 = vunpack.c.l.b16 %v9768
        %v9854 = vunpack.c.l.b16 %v9774
        %v9855 = vunpack.c.l.b16 %v9782
        %v9856 = vunpack.c.l.b16 %v9788
        %v9857 = vunpack.c.l.b16 %v9796
        %v9858 = vunpack.c.l.b16 %v9802
        %v9859 = vunpack.c.l.b16 %v9810
        %v9860 = vpack.c.b16 %v9829, %v9828
        %v9861 = vpack.c.b16 %v9831, %v9830
        %v9862 = vpack.c.b16 %v9833, %v9832
        %v9863 = vpack.c.b16 %v9835, %v9834
        %v9864 = vpack.c.b16 %v9837, %v9836
        %v9865 = vpack.c.b16 %v9839, %v9838
        %v9866 = vpack.c.b16 %v9841, %v9840
        %v9867 = vpack.c.b16 %v9843, %v9842
        %v9868 = vpack.c.b16 %v9845, %v9844
        %v9869 = vpack.c.b16 %v9847, %v9846
        %v9870 = vpack.c.b16 %v9849, %v9848
        %v9871 = vpack.c.b16 %v9851, %v9850
        %v9872 = vpack.c.b16 %v9853, %v9852
        %v9873 = vpack.c.b16 %v9855, %v9854
        %v9874 = vpack.c.b16 %v9857, %v9856
        %v9875 = vpack.c.b16 %v9859, %v9858
        %v9908 = vunpack.c.l.b16 %v9812
        %v9909 = vunpack.c.l.b16 %v9813
        %v9910 = vunpack.c.l.b16 %v9814
        %v9911 = vunpack.c.l.b16 %v9815
        %v9912 = vunpack.c.l.b16 %v9816
        %v9913 = vunpack.c.l.b16 %v9817
        %v9914 = vunpack.c.l.b16 %v9818
        %v9915 = vunpack.c.l.b16 %v9819
        %v9916 = vunpack.c.l.b16 %v9820
        %v9917 = vunpack.c.l.b16 %v9821
        %v9918 = vunpack.c.l.b16 %v9822
        %v9919 = vunpack.c.l.b16 %v9823
        %v9920 = vunpack.c.l.b16 %v9824
        %v9921 = vunpack.c.l.b16 %v9825
        %v9922 = vunpack.c.l.b16 %v9826
        %v9923 = vunpack.c.l.b16 %v9827
        %v9924 = vpack.c.b16 %v9909, %v9908
        %v9925 = vpack.c.b16 %v9911, %v9910
        %v9926 = vpack.c.b16 %v9913, %v9912
        %v9927 = vpack.c.b16 %v9915, %v9914
        %v9928 = vpack.c.b16 %v9917, %v9916
        %v9929 = vpack.c.b16 %v9919, %v9918
        %v9930 = vpack.c.b16 %v9921, %v9920
        %v9931 = vpack.c.b16 %v9923, %v9922
        %9940 = vmatpush.bf16.msra.mxu0 %v9931
        %9941 = vmatpush.bf16.msra.mxu0 %v9930
        %9942 = vmatpush.bf16.msra.mxu0 %v9929
        %9943 = vmatpush.bf16.msra.mxu0 %v9928
        %9944 = vmatpush.bf16.msra.mxu0 %v9927
        %9945 = vmatpush.bf16.msra.mxu0 %v9926
        %9946 = vmatpush.bf16.msra.mxu0 %v9925
        %9947 = vmatpush.bf16.msra.mxu0 %v9924
        %9948 = vmatmul.bf16.gmra.mxu0 %v9860
        %v9949 = vpop.f32.mrf.mxu0
        %v9950 = vadd.f32 0.0, %v9949
        %v9951 = vpop.f32.mrf.mxu0
        %v9952 = vadd.f32 0.0, %v9951
        %9953 = vmatmul.bf16.gmra.mxu0 %v9861
        %v9954 = vpop.f32.mrf.mxu0
        %v9955 = vadd.f32 0.0, %v9954
        %v9956 = vpop.f32.mrf.mxu0
        %v9957 = vadd.f32 0.0, %v9956
        %9958 = vmatmul.bf16.gmra.mxu0 %v9862
        %v9959 = vpop.f32.mrf.mxu0
        %v9960 = vadd.f32 0.0, %v9959
        %v9961 = vpop.f32.mrf.mxu0
        %v9962 = vadd.f32 0.0, %v9961
        %9963 = vmatmul.bf16.gmra.mxu0 %v9863
        %v9964 = vpop.f32.mrf.mxu0
        %v9965 = vadd.f32 0.0, %v9964
        %v9966 = vpop.f32.mrf.mxu0
        %v9967 = vadd.f32 0.0, %v9966
        %9968 = vmatmul.bf16.gmra.mxu0 %v9864
        %v9969 = vpop.f32.mrf.mxu0
        %v9970 = vadd.f32 0.0, %v9969
        %v9971 = vpop.f32.mrf.mxu0
        %v9972 = vadd.f32 0.0, %v9971
        %9973 = vmatmul.bf16.gmra.mxu0 %v9865
        %v9974 = vpop.f32.mrf.mxu0
        %v9975 = vadd.f32 0.0, %v9974
        %v9976 = vpop.f32.mrf.mxu0
        %v9977 = vadd.f32 0.0, %v9976
        %9978 = vmatmul.bf16.gmra.mxu0 %v9866
        %v9979 = vpop.f32.mrf.mxu0
        %v9980 = vadd.f32 0.0, %v9979
        %v9981 = vpop.f32.mrf.mxu0
        %v9982 = vadd.f32 0.0, %v9981
        %9983 = vmatmul.bf16.gmra.mxu0 %v9867
        %v9984 = vpop.f32.mrf.mxu0
        %v9985 = vadd.f32 0.0, %v9984
        %v9986 = vpop.f32.mrf.mxu0
        %v9987 = vadd.f32 0.0, %v9986
        %9988 = vmatmul.bf16.gmra.mxu0 %v9868
        %v9989 = vpop.f32.mrf.mxu0
        %v9990 = vadd.f32 0.0, %v9989
        %v9991 = vpop.f32.mrf.mxu0
        %v9992 = vadd.f32 0.0, %v9991
        %9993 = vmatmul.bf16.gmra.mxu0 %v9869
        %v9994 = vpop.f32.mrf.mxu0
        %v9995 = vadd.f32 0.0, %v9994
        %v9996 = vpop.f32.mrf.mxu0
        %v9997 = vadd.f32 0.0, %v9996
        %9998 = vmatmul.bf16.gmra.mxu0 %v9870
        %v9999 = vpop.f32.mrf.mxu0
        %v10000 = vadd.f32 0.0, %v9999
        %v10001 = vpop.f32.mrf.mxu0
        %v10002 = vadd.f32 0.0, %v10001
        %10003 = vmatmul.bf16.gmra.mxu0 %v9871
        %v10004 = vpop.f32.mrf.mxu0
        %v10005 = vadd.f32 0.0, %v10004
        %v10006 = vpop.f32.mrf.mxu0
        %v10007 = vadd.f32 0.0, %v10006
        %10008 = vmatmul.bf16.gmra.mxu0 %v9872
        %v10009 = vpop.f32.mrf.mxu0
        %v10010 = vadd.f32 0.0, %v10009
        %v10011 = vpop.f32.mrf.mxu0
        %v10012 = vadd.f32 0.0, %v10011
        %10013 = vmatmul.bf16.gmra.mxu0 %v9873
        %v10014 = vpop.f32.mrf.mxu0
        %v10015 = vadd.f32 0.0, %v10014
        %v10016 = vpop.f32.mrf.mxu0
        %v10017 = vadd.f32 0.0, %v10016
        %10018 = vmatmul.bf16.gmra.mxu0 %v9874
        %v10019 = vpop.f32.mrf.mxu0
        %v10020 = vadd.f32 0.0, %v10019
        %v10021 = vpop.f32.mrf.mxu0
        %v10022 = vadd.f32 0.0, %v10021
        %10023 = vmatmul.bf16.gmra.mxu0 %v9875
        %v10024 = vpop.f32.mrf.mxu0
        %v10025 = vadd.f32 0.0, %v10024
        %v10026 = vpop.f32.mrf.mxu0
        %v10027 = vadd.f32 0.0, %v10026
        %10028 = vdwg.mxu0
        %v10029 = vadd.f32 %v9508, %v9950
        %v10030 = vadd.f32 %v9510, %v9952
        %v10031 = vadd.f32 %v9513, %v9955
        %v10032 = vadd.f32 %v9515, %v9957
        %v10033 = vadd.f32 %v9518, %v9960
        %v10034 = vadd.f32 %v9520, %v9962
        %v10035 = vadd.f32 %v9523, %v9965
        %v10036 = vadd.f32 %v9525, %v9967
        %v10037 = vadd.f32 %v9528, %v9970
        %v10038 = vadd.f32 %v9530, %v9972
        %v10039 = vadd.f32 %v9533, %v9975
        %v10040 = vadd.f32 %v9535, %v9977
        %v10041 = vadd.f32 %v9538, %v9980
        %v10042 = vadd.f32 %v9540, %v9982
        %v10043 = vadd.f32 %v9543, %v9985
        %v10044 = vadd.f32 %v9545, %v9987
        %v10045 = vadd.f32 %v9548, %v9990
        %v10046 = vadd.f32 %v9550, %v9992
        %v10047 = vadd.f32 %v9553, %v9995
        %v10048 = vadd.f32 %v9555, %v9997
        %v10049 = vadd.f32 %v9558, %v10000
        %v10050 = vadd.f32 %v9560, %v10002
        %v10051 = vadd.f32 %v9563, %v10005
        %v10052 = vadd.f32 %v9565, %v10007
        %v10053 = vadd.f32 %v9568, %v10010
        %v10054 = vadd.f32 %v9570, %v10012
        %v10055 = vadd.f32 %v9573, %v10015
        %v10056 = vadd.f32 %v9575, %v10017
        %v10057 = vadd.f32 %v9578, %v10020
        %v10058 = vadd.f32 %v9580, %v10022
        %v10059 = vadd.f32 %v9583, %v10025
        %v10060 = vadd.f32 %v9585, %v10027
        %v10062 = vshrl.u32 %v8760, 16
        %v10064 = vrot.slane %v10062, 7
        %v10065 = vrot.slane %v10064, 4
        %v10067 = vshrl.u32 %v8761, 16
        %v10069 = vrot.slane %v10067, 7
        %v10070 = vshll.u32 %v8761, 16
        %v10072 = vor.u32 %v10069, %v10070
        %v10073 = vsel %vm587, %v10065, %v10072
        %v10074 = vrot.slane %v10069, 4
        %v10076 = vshrl.u32 %v8762, 16
        %v10078 = vrot.slane %v10076, 7
        %v10079 = vshll.u32 %v8762, 16
        %v10081 = vor.u32 %v10078, %v10079
        %v10082 = vsel %vm587, %v10074, %v10081
        %s10083 = scalar_lea.vmem [#allocation9], 192
        %v10084 = vld [vmem:[%s10083] sm:$0xf]
        %v10085 = vld [vmem:[%s10083 + $0x4] sm:$0xf]
        %v10086 = vld [vmem:[%s10083 + $0x8] sm:$0xf]
        %v10087 = vld [vmem:[%s10083 + $0xc] sm:$0xf]
        %v10088 = vld [vmem:[%s10083 + $0x10] sm:$0xf]
        %v10089 = vld [vmem:[%s10083 + $0x14] sm:$0xf]
        %v10090 = vld [vmem:[%s10083 + $0x18] sm:$0xf]
        %v10091 = vld [vmem:[%s10083 + $0x1c] sm:$0xf]
        %v10092 = vld [vmem:[%s10083 + $0x20] sm:$0xf]
        %v10093 = vld [vmem:[%s10083 + $0x24] sm:$0xf]
        %v10094 = vld [vmem:[%s10083 + $0x28] sm:$0xf]
        %v10095 = vld [vmem:[%s10083 + $0x2c] sm:$0xf]
        %v10096 = vld [vmem:[%s10083 + $0x30] sm:$0xf]
        %v10097 = vld [vmem:[%s10083 + $0x34] sm:$0xf]
        %v10098 = vld [vmem:[%s10083 + $0x38] sm:$0xf]
        %v10099 = vld [vmem:[%s10083 + $0x3c] sm:$0xf]
        %v10100 = vunpack.c.l.b16 %v10073
        %v10101 = vunpack.c.l.b16 %v10082
        %v10102 = vpack.c.b16 %v10101, %v10100
        %v10120 = vunpack.c.l.b16 %v10084
        %v10121 = vunpack.c.l.b16 %v10085
        %v10122 = vunpack.c.l.b16 %v10086
        %v10123 = vunpack.c.l.b16 %v10087
        %v10124 = vunpack.c.l.b16 %v10088
        %v10125 = vunpack.c.l.b16 %v10089
        %v10126 = vunpack.c.l.b16 %v10090
        %v10127 = vunpack.c.l.b16 %v10091
        %v10128 = vunpack.c.l.b16 %v10092
        %v10129 = vunpack.c.l.b16 %v10093
        %v10130 = vunpack.c.l.b16 %v10094
        %v10131 = vunpack.c.l.b16 %v10095
        %v10132 = vunpack.c.l.b16 %v10096
        %v10133 = vunpack.c.l.b16 %v10097
        %v10134 = vunpack.c.l.b16 %v10098
        %v10135 = vunpack.c.l.b16 %v10099
        %v10136 = vpack.c.b16 %v10121, %v10120
        %v10137 = vpack.c.b16 %v10123, %v10122
        %v10138 = vpack.c.b16 %v10125, %v10124
        %v10139 = vpack.c.b16 %v10127, %v10126
        %v10140 = vpack.c.b16 %v10129, %v10128
        %v10141 = vpack.c.b16 %v10131, %v10130
        %v10142 = vpack.c.b16 %v10133, %v10132
        %v10143 = vpack.c.b16 %v10135, %v10134
        %10152 = vmatpush.bf16.msra.mxu0 %v10143
        %10153 = vmatpush.bf16.msra.mxu0 %v10142
        %10154 = vmatpush.bf16.msra.mxu0 %v10141
        %10155 = vmatpush.bf16.msra.mxu0 %v10140
        %10156 = vmatpush.bf16.msra.mxu0 %v10139
        %10157 = vmatpush.bf16.msra.mxu0 %v10138
        %10158 = vmatpush.bf16.msra.mxu0 %v10137
        %10159 = vmatpush.bf16.msra.mxu0 %v10136
        %10160 = vmatmul.bf16.gmra.mxu0 %v9419
        %v10161 = vpop.f32.mrf.mxu0
        %v10162 = vadd.f32 0.0, %v10161
        %v10163 = vpop.f32.mrf.mxu0
        %v10164 = vadd.f32 0.0, %v10163
        %10165 = vmatmul.bf16.gmra.mxu0 %v9420
        %v10166 = vpop.f32.mrf.mxu0
        %v10167 = vadd.f32 0.0, %v10166
        %v10168 = vpop.f32.mrf.mxu0
        %v10169 = vadd.f32 0.0, %v10168
        %10170 = vmatmul.bf16.gmra.mxu0 %v9421
        %v10171 = vpop.f32.mrf.mxu0
        %v10172 = vadd.f32 0.0, %v10171
        %v10173 = vpop.f32.mrf.mxu0
        %v10174 = vadd.f32 0.0, %v10173
        %10175 = vmatmul.bf16.gmra.mxu0 %v9422
        %v10176 = vpop.f32.mrf.mxu0
        %v10177 = vadd.f32 0.0, %v10176
        %v10178 = vpop.f32.mrf.mxu0
        %v10179 = vadd.f32 0.0, %v10178
        %10180 = vmatmul.bf16.gmra.mxu0 %v9423
        %v10181 = vpop.f32.mrf.mxu0
        %v10182 = vadd.f32 0.0, %v10181
        %v10183 = vpop.f32.mrf.mxu0
        %v10184 = vadd.f32 0.0, %v10183
        %10185 = vmatmul.bf16.gmra.mxu0 %v9424
        %v10186 = vpop.f32.mrf.mxu0
        %v10187 = vadd.f32 0.0, %v10186
        %v10188 = vpop.f32.mrf.mxu0
        %v10189 = vadd.f32 0.0, %v10188
        %10190 = vmatmul.bf16.gmra.mxu0 %v9425
        %v10191 = vpop.f32.mrf.mxu0
        %v10192 = vadd.f32 0.0, %v10191
        %v10193 = vpop.f32.mrf.mxu0
        %v10194 = vadd.f32 0.0, %v10193
        %10195 = vmatmul.bf16.gmra.mxu0 %v9426
        %v10196 = vpop.f32.mrf.mxu0
        %v10197 = vadd.f32 0.0, %v10196
        %v10198 = vpop.f32.mrf.mxu0
        %v10199 = vadd.f32 0.0, %v10198
        %10200 = vmatmul.bf16.gmra.mxu0 %v9427
        %v10201 = vpop.f32.mrf.mxu0
        %v10202 = vadd.f32 0.0, %v10201
        %v10203 = vpop.f32.mrf.mxu0
        %v10204 = vadd.f32 0.0, %v10203
        %10205 = vmatmul.bf16.gmra.mxu0 %v9428
        %v10206 = vpop.f32.mrf.mxu0
        %v10207 = vadd.f32 0.0, %v10206
        %v10208 = vpop.f32.mrf.mxu0
        %v10209 = vadd.f32 0.0, %v10208
        %10210 = vmatmul.bf16.gmra.mxu0 %v9429
        %v10211 = vpop.f32.mrf.mxu0
        %v10212 = vadd.f32 0.0, %v10211
        %v10213 = vpop.f32.mrf.mxu0
        %v10214 = vadd.f32 0.0, %v10213
        %10215 = vmatmul.bf16.gmra.mxu0 %v9430
        %v10216 = vpop.f32.mrf.mxu0
        %v10217 = vadd.f32 0.0, %v10216
        %v10218 = vpop.f32.mrf.mxu0
        %v10219 = vadd.f32 0.0, %v10218
        %10220 = vmatmul.bf16.gmra.mxu0 %v9431
        %v10221 = vpop.f32.mrf.mxu0
        %v10222 = vadd.f32 0.0, %v10221
        %v10223 = vpop.f32.mrf.mxu0
        %v10224 = vadd.f32 0.0, %v10223
        %10225 = vmatmul.bf16.gmra.mxu0 %v9432
        %v10226 = vpop.f32.mrf.mxu0
        %v10227 = vadd.f32 0.0, %v10226
        %v10228 = vpop.f32.mrf.mxu0
        %v10229 = vadd.f32 0.0, %v10228
        %10230 = vmatmul.bf16.gmra.mxu0 %v9433
        %v10231 = vpop.f32.mrf.mxu0
        %v10232 = vadd.f32 0.0, %v10231
        %v10233 = vpop.f32.mrf.mxu0
        %v10234 = vadd.f32 0.0, %v10233
        %10235 = vmatmul.bf16.gmra.mxu0 %v10102
        %v10236 = vpop.f32.mrf.mxu0
        %v10237 = vadd.f32 0.0, %v10236
        %v10238 = vpop.f32.mrf.mxu0
        %v10239 = vadd.f32 0.0, %v10238
        %10240 = vdwg.mxu0
        %v10241 = vadd.f32 %v10029, %v10162
        %v10242 = vadd.f32 %v10030, %v10164
        %v10243 = vadd.f32 %v10031, %v10167
        %v10244 = vadd.f32 %v10032, %v10169
        %v10245 = vadd.f32 %v10033, %v10172
        %v10246 = vadd.f32 %v10034, %v10174
        %v10247 = vadd.f32 %v10035, %v10177
        %v10248 = vadd.f32 %v10036, %v10179
        %v10249 = vadd.f32 %v10037, %v10182
        %v10250 = vadd.f32 %v10038, %v10184
        %v10251 = vadd.f32 %v10039, %v10187
        %v10252 = vadd.f32 %v10040, %v10189
        %v10253 = vadd.f32 %v10041, %v10192
        %v10254 = vadd.f32 %v10042, %v10194
        %v10255 = vadd.f32 %v10043, %v10197
        %v10256 = vadd.f32 %v10044, %v10199
        %v10257 = vadd.f32 %v10045, %v10202
        %v10258 = vadd.f32 %v10046, %v10204
        %v10259 = vadd.f32 %v10047, %v10207
        %v10260 = vadd.f32 %v10048, %v10209
        %v10261 = vadd.f32 %v10049, %v10212
        %v10262 = vadd.f32 %v10050, %v10214
        %v10263 = vadd.f32 %v10051, %v10217
        %v10264 = vadd.f32 %v10052, %v10219
        %v10265 = vadd.f32 %v10053, %v10222
        %v10266 = vadd.f32 %v10054, %v10224
        %v10267 = vadd.f32 %v10055, %v10227
        %v10268 = vadd.f32 %v10056, %v10229
        %v10269 = vadd.f32 %v10057, %v10232
        %v10270 = vadd.f32 %v10058, %v10234
        %v10271 = vadd.f32 %v10059, %v10237
        %v10272 = vadd.f32 %v10060, %v10239
        %s10273 = scalar_lea.vmem [#allocation9], 256
        %v10274 = vld [vmem:[%s10273] sm:$0xf]
        %v10275 = vld [vmem:[%s10273 + $0x4] sm:$0xf]
        %v10276 = vld [vmem:[%s10273 + $0x8] sm:$0xf]
        %v10277 = vld [vmem:[%s10273 + $0xc] sm:$0xf]
        %v10278 = vld [vmem:[%s10273 + $0x10] sm:$0xf]
        %v10279 = vld [vmem:[%s10273 + $0x14] sm:$0xf]
        %v10280 = vld [vmem:[%s10273 + $0x18] sm:$0xf]
        %v10281 = vld [vmem:[%s10273 + $0x1c] sm:$0xf]
        %v10282 = vld [vmem:[%s10273 + $0x20] sm:$0xf]
        %v10283 = vld [vmem:[%s10273 + $0x24] sm:$0xf]
        %v10284 = vld [vmem:[%s10273 + $0x28] sm:$0xf]
        %v10285 = vld [vmem:[%s10273 + $0x2c] sm:$0xf]
        %v10286 = vld [vmem:[%s10273 + $0x30] sm:$0xf]
        %v10287 = vld [vmem:[%s10273 + $0x34] sm:$0xf]
        %v10288 = vld [vmem:[%s10273 + $0x38] sm:$0xf]
        %v10289 = vld [vmem:[%s10273 + $0x3c] sm:$0xf]
        %v10292 = vunpack.c.l.b16 %v8761
        %v10293 = vunpack.c.l.b16 %v8762
        %v10294 = vpack.c.b16 %v10293, %v10292
        %v10312 = vunpack.c.l.b16 %v10274
        %v10313 = vunpack.c.l.b16 %v10275
        %v10314 = vunpack.c.l.b16 %v10276
        %v10315 = vunpack.c.l.b16 %v10277
        %v10316 = vunpack.c.l.b16 %v10278
        %v10317 = vunpack.c.l.b16 %v10279
        %v10318 = vunpack.c.l.b16 %v10280
        %v10319 = vunpack.c.l.b16 %v10281
        %v10320 = vunpack.c.l.b16 %v10282
        %v10321 = vunpack.c.l.b16 %v10283
        %v10322 = vunpack.c.l.b16 %v10284
        %v10323 = vunpack.c.l.b16 %v10285
        %v10324 = vunpack.c.l.b16 %v10286
        %v10325 = vunpack.c.l.b16 %v10287
        %v10326 = vunpack.c.l.b16 %v10288
        %v10327 = vunpack.c.l.b16 %v10289
        %v10328 = vpack.c.b16 %v10313, %v10312
        %v10329 = vpack.c.b16 %v10315, %v10314
        %v10330 = vpack.c.b16 %v10317, %v10316
        %v10331 = vpack.c.b16 %v10319, %v10318
        %v10332 = vpack.c.b16 %v10321, %v10320
        %v10333 = vpack.c.b16 %v10323, %v10322
        %v10334 = vpack.c.b16 %v10325, %v10324
        %v10335 = vpack.c.b16 %v10327, %v10326
        %10344 = vmatpush.bf16.msra.mxu0 %v10335
        %10345 = vmatpush.bf16.msra.mxu0 %v10334
        %10346 = vmatpush.bf16.msra.mxu0 %v10333
        %10347 = vmatpush.bf16.msra.mxu0 %v10332
        %10348 = vmatpush.bf16.msra.mxu0 %v10331
        %10349 = vmatpush.bf16.msra.mxu0 %v10330
        %10350 = vmatpush.bf16.msra.mxu0 %v10329
        %10351 = vmatpush.bf16.msra.mxu0 %v10328
        %10352 = vmatmul.bf16.gmra.mxu0 %v9218
        %v10353 = vpop.f32.mrf.mxu0
        %v10354 = vadd.f32 0.0, %v10353
        %v10355 = vpop.f32.mrf.mxu0
        %v10356 = vadd.f32 0.0, %v10355
        %10357 = vmatmul.bf16.gmra.mxu0 %v9219
        %v10358 = vpop.f32.mrf.mxu0
        %v10359 = vadd.f32 0.0, %v10358
        %v10360 = vpop.f32.mrf.mxu0
        %v10361 = vadd.f32 0.0, %v10360
        %10362 = vmatmul.bf16.gmra.mxu0 %v9220
        %v10363 = vpop.f32.mrf.mxu0
        %v10364 = vadd.f32 0.0, %v10363
        %v10365 = vpop.f32.mrf.mxu0
        %v10366 = vadd.f32 0.0, %v10365
        %10367 = vmatmul.bf16.gmra.mxu0 %v9221
        %v10368 = vpop.f32.mrf.mxu0
        %v10369 = vadd.f32 0.0, %v10368
        %v10370 = vpop.f32.mrf.mxu0
        %v10371 = vadd.f32 0.0, %v10370
        %10372 = vmatmul.bf16.gmra.mxu0 %v9222
        %v10373 = vpop.f32.mrf.mxu0
        %v10374 = vadd.f32 0.0, %v10373
        %v10375 = vpop.f32.mrf.mxu0
        %v10376 = vadd.f32 0.0, %v10375
        %10377 = vmatmul.bf16.gmra.mxu0 %v9223
        %v10378 = vpop.f32.mrf.mxu0
        %v10379 = vadd.f32 0.0, %v10378
        %v10380 = vpop.f32.mrf.mxu0
        %v10381 = vadd.f32 0.0, %v10380
        %10382 = vmatmul.bf16.gmra.mxu0 %v9224
        %v10383 = vpop.f32.mrf.mxu0
        %v10384 = vadd.f32 0.0, %v10383
        %v10385 = vpop.f32.mrf.mxu0
        %v10386 = vadd.f32 0.0, %v10385
        %10387 = vmatmul.bf16.gmra.mxu0 %v9225
        %v10388 = vpop.f32.mrf.mxu0
        %v10389 = vadd.f32 0.0, %v10388
        %v10390 = vpop.f32.mrf.mxu0
        %v10391 = vadd.f32 0.0, %v10390
        %10392 = vmatmul.bf16.gmra.mxu0 %v9226
        %v10393 = vpop.f32.mrf.mxu0
        %v10394 = vadd.f32 0.0, %v10393
        %v10395 = vpop.f32.mrf.mxu0
        %v10396 = vadd.f32 0.0, %v10395
        %10397 = vmatmul.bf16.gmra.mxu0 %v9227
        %v10398 = vpop.f32.mrf.mxu0
        %v10399 = vadd.f32 0.0, %v10398
        %v10400 = vpop.f32.mrf.mxu0
        %v10401 = vadd.f32 0.0, %v10400
        %10402 = vmatmul.bf16.gmra.mxu0 %v9228
        %v10403 = vpop.f32.mrf.mxu0
        %v10404 = vadd.f32 0.0, %v10403
        %v10405 = vpop.f32.mrf.mxu0
        %v10406 = vadd.f32 0.0, %v10405
        %10407 = vmatmul.bf16.gmra.mxu0 %v9229
        %v10408 = vpop.f32.mrf.mxu0
        %v10409 = vadd.f32 0.0, %v10408
        %v10410 = vpop.f32.mrf.mxu0
        %v10411 = vadd.f32 0.0, %v10410
        %10412 = vmatmul.bf16.gmra.mxu0 %v9230
        %v10413 = vpop.f32.mrf.mxu0
        %v10414 = vadd.f32 0.0, %v10413
        %v10415 = vpop.f32.mrf.mxu0
        %v10416 = vadd.f32 0.0, %v10415
        %10417 = vmatmul.bf16.gmra.mxu0 %v9231
        %v10418 = vpop.f32.mrf.mxu0
        %v10419 = vadd.f32 0.0, %v10418
        %v10420 = vpop.f32.mrf.mxu0
        %v10421 = vadd.f32 0.0, %v10420
        %10422 = vmatmul.bf16.gmra.mxu0 %v9232
        %v10423 = vpop.f32.mrf.mxu0
        %v10424 = vadd.f32 0.0, %v10423
        %v10425 = vpop.f32.mrf.mxu0
        %v10426 = vadd.f32 0.0, %v10425
        %10427 = vmatmul.bf16.gmra.mxu0 %v10294
        %v10428 = vpop.f32.mrf.mxu0
        %v10429 = vadd.f32 0.0, %v10428
        %v10430 = vpop.f32.mrf.mxu0
        %v10431 = vadd.f32 0.0, %v10430
        %10432 = vdwg.mxu0
        %v10433 = vadd.f32 %v10241, %v10354
        %v10434 = vadd.f32 %v10242, %v10356
        %v10435 = vadd.f32 %v10243, %v10359
        %v10436 = vadd.f32 %v10244, %v10361
        %v10437 = vadd.f32 %v10245, %v10364
        %v10438 = vadd.f32 %v10246, %v10366
        %v10439 = vadd.f32 %v10247, %v10369
        %v10440 = vadd.f32 %v10248, %v10371
        %v10441 = vadd.f32 %v10249, %v10374
        %v10442 = vadd.f32 %v10250, %v10376
        %v10443 = vadd.f32 %v10251, %v10379
        %v10444 = vadd.f32 %v10252, %v10381
        %v10445 = vadd.f32 %v10253, %v10384
        %v10446 = vadd.f32 %v10254, %v10386
        %v10447 = vadd.f32 %v10255, %v10389
        %v10448 = vadd.f32 %v10256, %v10391
        %v10449 = vadd.f32 %v10257, %v10394
        %v10450 = vadd.f32 %v10258, %v10396
        %v10451 = vadd.f32 %v10259, %v10399
        %v10452 = vadd.f32 %v10260, %v10401
        %v10453 = vadd.f32 %v10261, %v10404
        %v10454 = vadd.f32 %v10262, %v10406
        %v10455 = vadd.f32 %v10263, %v10409
        %v10456 = vadd.f32 %v10264, %v10411
        %v10457 = vadd.f32 %v10265, %v10414
        %v10458 = vadd.f32 %v10266, %v10416
        %v10459 = vadd.f32 %v10267, %v10419
        %v10460 = vadd.f32 %v10268, %v10421
        %v10461 = vadd.f32 %v10269, %v10424
        %v10462 = vadd.f32 %v10270, %v10426
        %v10463 = vadd.f32 %v10271, %v10429
        %v10464 = vadd.f32 %v10272, %v10431
        %v10465 = vrot.slane %v10067, 4
        %v10466 = vrot.slane %v10070, 5
        %v10467 = vor.u32 %v10465, %v10466
        %v10468 = vrot.slane %v10467, 4
        %v10469 = vrot.slane %v10079, 5
        %v10470 = vsel %vm1409, %v10468, %v10469
        %v10471 = vrot.slane %v10076, 4
        %v10472 = vor.u32 %v10471, %v10469
        %v10473 = vrot.slane %v10472, 4
        %v10475 = vshll.u32 %v8763, 16
        %v10477 = vrot.slane %v10475, 5
        %v10478 = vsel %vm1409, %v10473, %v10477
        %s10479 = scalar_lea.vmem [#allocation9], 320
        %v10480 = vld [vmem:[%s10479] sm:$0xf]
        %v10481 = vld [vmem:[%s10479 + $0x4] sm:$0xf]
        %v10482 = vld [vmem:[%s10479 + $0x8] sm:$0xf]
        %v10483 = vld [vmem:[%s10479 + $0xc] sm:$0xf]
        %v10484 = vld [vmem:[%s10479 + $0x10] sm:$0xf]
        %v10485 = vld [vmem:[%s10479 + $0x14] sm:$0xf]
        %v10486 = vld [vmem:[%s10479 + $0x18] sm:$0xf]
        %v10487 = vld [vmem:[%s10479 + $0x1c] sm:$0xf]
        %v10488 = vld [vmem:[%s10479 + $0x20] sm:$0xf]
        %v10489 = vld [vmem:[%s10479 + $0x24] sm:$0xf]
        %v10490 = vld [vmem:[%s10479 + $0x28] sm:$0xf]
        %v10491 = vld [vmem:[%s10479 + $0x2c] sm:$0xf]
        %v10492 = vld [vmem:[%s10479 + $0x30] sm:$0xf]
        %v10493 = vld [vmem:[%s10479 + $0x34] sm:$0xf]
        %v10494 = vld [vmem:[%s10479 + $0x38] sm:$0xf]
        %v10495 = vld [vmem:[%s10479 + $0x3c] sm:$0xf]
        %v10496 = vunpack.c.l.b16 %v10470
        %v10497 = vunpack.c.l.b16 %v10478
        %v10498 = vpack.c.b16 %v10497, %v10496
        %v10516 = vunpack.c.l.b16 %v10480
        %v10517 = vunpack.c.l.b16 %v10481
        %v10518 = vunpack.c.l.b16 %v10482
        %v10519 = vunpack.c.l.b16 %v10483
        %v10520 = vunpack.c.l.b16 %v10484
        %v10521 = vunpack.c.l.b16 %v10485
        %v10522 = vunpack.c.l.b16 %v10486
        %v10523 = vunpack.c.l.b16 %v10487
        %v10524 = vunpack.c.l.b16 %v10488
        %v10525 = vunpack.c.l.b16 %v10489
        %v10526 = vunpack.c.l.b16 %v10490
        %v10527 = vunpack.c.l.b16 %v10491
        %v10528 = vunpack.c.l.b16 %v10492
        %v10529 = vunpack.c.l.b16 %v10493
        %v10530 = vunpack.c.l.b16 %v10494
        %v10531 = vunpack.c.l.b16 %v10495
        %v10532 = vpack.c.b16 %v10517, %v10516
        %v10533 = vpack.c.b16 %v10519, %v10518
        %v10534 = vpack.c.b16 %v10521, %v10520
        %v10535 = vpack.c.b16 %v10523, %v10522
        %v10536 = vpack.c.b16 %v10525, %v10524
        %v10537 = vpack.c.b16 %v10527, %v10526
        %v10538 = vpack.c.b16 %v10529, %v10528
        %v10539 = vpack.c.b16 %v10531, %v10530
        %10548 = vmatpush.bf16.msra.mxu0 %v10539
        %10549 = vmatpush.bf16.msra.mxu0 %v10538
        %10550 = vmatpush.bf16.msra.mxu0 %v10537
        %10551 = vmatpush.bf16.msra.mxu0 %v10536
        %10552 = vmatpush.bf16.msra.mxu0 %v10535
        %10553 = vmatpush.bf16.msra.mxu0 %v10534
        %10554 = vmatpush.bf16.msra.mxu0 %v10533
        %10555 = vmatpush.bf16.msra.mxu0 %v10532
        %10556 = vmatmul.bf16.gmra.mxu0 %v9861
        %v10557 = vpop.f32.mrf.mxu0
        %v10558 = vadd.f32 0.0, %v10557
        %v10559 = vpop.f32.mrf.mxu0
        %v10560 = vadd.f32 0.0, %v10559
        %10561 = vmatmul.bf16.gmra.mxu0 %v9862
        %v10562 = vpop.f32.mrf.mxu0
        %v10563 = vadd.f32 0.0, %v10562
        %v10564 = vpop.f32.mrf.mxu0
        %v10565 = vadd.f32 0.0, %v10564
        %10566 = vmatmul.bf16.gmra.mxu0 %v9863
        %v10567 = vpop.f32.mrf.mxu0
        %v10568 = vadd.f32 0.0, %v10567
        %v10569 = vpop.f32.mrf.mxu0
        %v10570 = vadd.f32 0.0, %v10569
        %10571 = vmatmul.bf16.gmra.mxu0 %v9864
        %v10572 = vpop.f32.mrf.mxu0
        %v10573 = vadd.f32 0.0, %v10572
        %v10574 = vpop.f32.mrf.mxu0
        %v10575 = vadd.f32 0.0, %v10574
        %10576 = vmatmul.bf16.gmra.mxu0 %v9865
        %v10577 = vpop.f32.mrf.mxu0
        %v10578 = vadd.f32 0.0, %v10577
        %v10579 = vpop.f32.mrf.mxu0
        %v10580 = vadd.f32 0.0, %v10579
        %10581 = vmatmul.bf16.gmra.mxu0 %v9866
        %v10582 = vpop.f32.mrf.mxu0
        %v10583 = vadd.f32 0.0, %v10582
        %v10584 = vpop.f32.mrf.mxu0
        %v10585 = vadd.f32 0.0, %v10584
        %10586 = vmatmul.bf16.gmra.mxu0 %v9867
        %v10587 = vpop.f32.mrf.mxu0
        %v10588 = vadd.f32 0.0, %v10587
        %v10589 = vpop.f32.mrf.mxu0
        %v10590 = vadd.f32 0.0, %v10589
        %10591 = vmatmul.bf16.gmra.mxu0 %v9868
        %v10592 = vpop.f32.mrf.mxu0
        %v10593 = vadd.f32 0.0, %v10592
        %v10594 = vpop.f32.mrf.mxu0
        %v10595 = vadd.f32 0.0, %v10594
        %10596 = vmatmul.bf16.gmra.mxu0 %v9869
        %v10597 = vpop.f32.mrf.mxu0
        %v10598 = vadd.f32 0.0, %v10597
        %v10599 = vpop.f32.mrf.mxu0
        %v10600 = vadd.f32 0.0, %v10599
        %10601 = vmatmul.bf16.gmra.mxu0 %v9870
        %v10602 = vpop.f32.mrf.mxu0
        %v10603 = vadd.f32 0.0, %v10602
        %v10604 = vpop.f32.mrf.mxu0
        %v10605 = vadd.f32 0.0, %v10604
        %10606 = vmatmul.bf16.gmra.mxu0 %v9871
        %v10607 = vpop.f32.mrf.mxu0
        %v10608 = vadd.f32 0.0, %v10607
        %v10609 = vpop.f32.mrf.mxu0
        %v10610 = vadd.f32 0.0, %v10609
        %10611 = vmatmul.bf16.gmra.mxu0 %v9872
        %v10612 = vpop.f32.mrf.mxu0
        %v10613 = vadd.f32 0.0, %v10612
        %v10614 = vpop.f32.mrf.mxu0
        %v10615 = vadd.f32 0.0, %v10614
        %10616 = vmatmul.bf16.gmra.mxu0 %v9873
        %v10617 = vpop.f32.mrf.mxu0
        %v10618 = vadd.f32 0.0, %v10617
        %v10619 = vpop.f32.mrf.mxu0
        %v10620 = vadd.f32 0.0, %v10619
        %10621 = vmatmul.bf16.gmra.mxu0 %v9874
        %v10622 = vpop.f32.mrf.mxu0
        %v10623 = vadd.f32 0.0, %v10622
        %v10624 = vpop.f32.mrf.mxu0
        %v10625 = vadd.f32 0.0, %v10624
        %10626 = vmatmul.bf16.gmra.mxu0 %v9875
        %v10627 = vpop.f32.mrf.mxu0
        %v10628 = vadd.f32 0.0, %v10627
        %v10629 = vpop.f32.mrf.mxu0
        %v10630 = vadd.f32 0.0, %v10629
        %10631 = vmatmul.bf16.gmra.mxu0 %v10498
        %v10632 = vpop.f32.mrf.mxu0
        %v10633 = vadd.f32 0.0, %v10632
        %v10634 = vpop.f32.mrf.mxu0
        %v10635 = vadd.f32 0.0, %v10634
        %10636 = vdwg.mxu0
        %v10637 = vadd.f32 %v10433, %v10558
        %v10638 = vadd.f32 %v10434, %v10560
        %v10639 = vadd.f32 %v10435, %v10563
        %v10640 = vadd.f32 %v10436, %v10565
        %v10641 = vadd.f32 %v10437, %v10568
        %v10642 = vadd.f32 %v10438, %v10570
        %v10643 = vadd.f32 %v10439, %v10573
        %v10644 = vadd.f32 %v10440, %v10575
        %v10645 = vadd.f32 %v10441, %v10578
        %v10646 = vadd.f32 %v10442, %v10580
        %v10647 = vadd.f32 %v10443, %v10583
        %v10648 = vadd.f32 %v10444, %v10585
        %v10649 = vadd.f32 %v10445, %v10588
        %v10650 = vadd.f32 %v10446, %v10590
        %v10651 = vadd.f32 %v10447, %v10593
        %v10652 = vadd.f32 %v10448, %v10595
        %v10653 = vadd.f32 %v10449, %v10598
        %v10654 = vadd.f32 %v10450, %v10600
        %v10655 = vadd.f32 %v10451, %v10603
        %v10656 = vadd.f32 %v10452, %v10605
        %v10657 = vadd.f32 %v10453, %v10608
        %v10658 = vadd.f32 %v10454, %v10610
        %v10659 = vadd.f32 %v10455, %v10613
        %v10660 = vadd.f32 %v10456, %v10615
        %v10661 = vadd.f32 %v10457, %v10618
        %v10662 = vadd.f32 %v10458, %v10620
        %v10663 = vadd.f32 %v10459, %v10623
        %v10664 = vadd.f32 %v10460, %v10625
        %v10665 = vadd.f32 %v10461, %v10628
        %v10666 = vadd.f32 %v10462, %v10630
        %v10667 = vadd.f32 %v10463, %v10633
        %v10668 = vadd.f32 %v10464, %v10635
        %v10670 = vshrl.u32 %v8764, 16
        %v10672 = vrot.slane %v10670, 7
        %v10673 = vrot.slane %v10672, 4
        %v10675 = vshrl.u32 %v8765, 16
        %v10677 = vrot.slane %v10675, 7
        %v10678 = vshll.u32 %v8765, 16
        %v10680 = vor.u32 %v10677, %v10678
        %v10681 = vsel %vm587, %v10673, %v10680
        %v10682 = vrot.slane %v10677, 4
        %v10684 = vshrl.u32 %v8766, 16
        %v10686 = vrot.slane %v10684, 7
        %v10687 = vshll.u32 %v8766, 16
        %v10689 = vor.u32 %v10686, %v10687
        %v10690 = vsel %vm587, %v10682, %v10689
        %s10691 = scalar_lea.vmem [#allocation9], 384
        %v10692 = vld [vmem:[%s10691] sm:$0xf]
        %v10693 = vld [vmem:[%s10691 + $0x4] sm:$0xf]
        %v10694 = vld [vmem:[%s10691 + $0x8] sm:$0xf]
        %v10695 = vld [vmem:[%s10691 + $0xc] sm:$0xf]
        %v10696 = vld [vmem:[%s10691 + $0x10] sm:$0xf]
        %v10697 = vld [vmem:[%s10691 + $0x14] sm:$0xf]
        %v10698 = vld [vmem:[%s10691 + $0x18] sm:$0xf]
        %v10699 = vld [vmem:[%s10691 + $0x1c] sm:$0xf]
        %v10700 = vld [vmem:[%s10691 + $0x20] sm:$0xf]
        %v10701 = vld [vmem:[%s10691 + $0x24] sm:$0xf]
        %v10702 = vld [vmem:[%s10691 + $0x28] sm:$0xf]
        %v10703 = vld [vmem:[%s10691 + $0x2c] sm:$0xf]
        %v10704 = vld [vmem:[%s10691 + $0x30] sm:$0xf]
        %v10705 = vld [vmem:[%s10691 + $0x34] sm:$0xf]
        %v10706 = vld [vmem:[%s10691 + $0x38] sm:$0xf]
        %v10707 = vld [vmem:[%s10691 + $0x3c] sm:$0xf]
        %v10708 = vunpack.c.l.b16 %v10681
        %v10709 = vunpack.c.l.b16 %v10690
        %v10710 = vpack.c.b16 %v10709, %v10708
        %v10728 = vunpack.c.l.b16 %v10692
        %v10729 = vunpack.c.l.b16 %v10693
        %v10730 = vunpack.c.l.b16 %v10694
        %v10731 = vunpack.c.l.b16 %v10695
        %v10732 = vunpack.c.l.b16 %v10696
        %v10733 = vunpack.c.l.b16 %v10697
        %v10734 = vunpack.c.l.b16 %v10698
        %v10735 = vunpack.c.l.b16 %v10699
        %v10736 = vunpack.c.l.b16 %v10700
        %v10737 = vunpack.c.l.b16 %v10701
        %v10738 = vunpack.c.l.b16 %v10702
        %v10739 = vunpack.c.l.b16 %v10703
        %v10740 = vunpack.c.l.b16 %v10704
        %v10741 = vunpack.c.l.b16 %v10705
        %v10742 = vunpack.c.l.b16 %v10706
        %v10743 = vunpack.c.l.b16 %v10707
        %v10744 = vpack.c.b16 %v10729, %v10728
        %v10745 = vpack.c.b16 %v10731, %v10730
        %v10746 = vpack.c.b16 %v10733, %v10732
        %v10747 = vpack.c.b16 %v10735, %v10734
        %v10748 = vpack.c.b16 %v10737, %v10736
        %v10749 = vpack.c.b16 %v10739, %v10738
        %v10750 = vpack.c.b16 %v10741, %v10740
        %v10751 = vpack.c.b16 %v10743, %v10742
        %10760 = vmatpush.bf16.msra.mxu0 %v10751
        %10761 = vmatpush.bf16.msra.mxu0 %v10750
        %10762 = vmatpush.bf16.msra.mxu0 %v10749
        %10763 = vmatpush.bf16.msra.mxu0 %v10748
        %10764 = vmatpush.bf16.msra.mxu0 %v10747
        %10765 = vmatpush.bf16.msra.mxu0 %v10746
        %10766 = vmatpush.bf16.msra.mxu0 %v10745
        %10767 = vmatpush.bf16.msra.mxu0 %v10744
        %10768 = vmatmul.bf16.gmra.mxu0 %v9420
        %v10769 = vpop.f32.mrf.mxu0
        %v10770 = vadd.f32 0.0, %v10769
        %v10771 = vpop.f32.mrf.mxu0
        %v10772 = vadd.f32 0.0, %v10771
        %10773 = vmatmul.bf16.gmra.mxu0 %v9421
        %v10774 = vpop.f32.mrf.mxu0
        %v10775 = vadd.f32 0.0, %v10774
        %v10776 = vpop.f32.mrf.mxu0
        %v10777 = vadd.f32 0.0, %v10776
        %10778 = vmatmul.bf16.gmra.mxu0 %v9422
        %v10779 = vpop.f32.mrf.mxu0
        %v10780 = vadd.f32 0.0, %v10779
        %v10781 = vpop.f32.mrf.mxu0
        %v10782 = vadd.f32 0.0, %v10781
        %10783 = vmatmul.bf16.gmra.mxu0 %v9423
        %v10784 = vpop.f32.mrf.mxu0
        %v10785 = vadd.f32 0.0, %v10784
        %v10786 = vpop.f32.mrf.mxu0
        %v10787 = vadd.f32 0.0, %v10786
        %10788 = vmatmul.bf16.gmra.mxu0 %v9424
        %v10789 = vpop.f32.mrf.mxu0
        %v10790 = vadd.f32 0.0, %v10789
        %v10791 = vpop.f32.mrf.mxu0
        %v10792 = vadd.f32 0.0, %v10791
        %10793 = vmatmul.bf16.gmra.mxu0 %v9425
        %v10794 = vpop.f32.mrf.mxu0
        %v10795 = vadd.f32 0.0, %v10794
        %v10796 = vpop.f32.mrf.mxu0
        %v10797 = vadd.f32 0.0, %v10796
        %10798 = vmatmul.bf16.gmra.mxu0 %v9426
        %v10799 = vpop.f32.mrf.mxu0
        %v10800 = vadd.f32 0.0, %v10799
        %v10801 = vpop.f32.mrf.mxu0
        %v10802 = vadd.f32 0.0, %v10801
        %10803 = vmatmul.bf16.gmra.mxu0 %v9427
        %v10804 = vpop.f32.mrf.mxu0
        %v10805 = vadd.f32 0.0, %v10804
        %v10806 = vpop.f32.mrf.mxu0
        %v10807 = vadd.f32 0.0, %v10806
        %10808 = vmatmul.bf16.gmra.mxu0 %v9428
        %v10809 = vpop.f32.mrf.mxu0
        %v10810 = vadd.f32 0.0, %v10809
        %v10811 = vpop.f32.mrf.mxu0
        %v10812 = vadd.f32 0.0, %v10811
        %10813 = vmatmul.bf16.gmra.mxu0 %v9429
        %v10814 = vpop.f32.mrf.mxu0
        %v10815 = vadd.f32 0.0, %v10814
        %v10816 = vpop.f32.mrf.mxu0
        %v10817 = vadd.f32 0.0, %v10816
        %10818 = vmatmul.bf16.gmra.mxu0 %v9430
        %v10819 = vpop.f32.mrf.mxu0
        %v10820 = vadd.f32 0.0, %v10819
        %v10821 = vpop.f32.mrf.mxu0
        %v10822 = vadd.f32 0.0, %v10821
        %10823 = vmatmul.bf16.gmra.mxu0 %v9431
        %v10824 = vpop.f32.mrf.mxu0
        %v10825 = vadd.f32 0.0, %v10824
        %v10826 = vpop.f32.mrf.mxu0
        %v10827 = vadd.f32 0.0, %v10826
        %10828 = vmatmul.bf16.gmra.mxu0 %v9432
        %v10829 = vpop.f32.mrf.mxu0
        %v10830 = vadd.f32 0.0, %v10829
        %v10831 = vpop.f32.mrf.mxu0
        %v10832 = vadd.f32 0.0, %v10831
        %10833 = vmatmul.bf16.gmra.mxu0 %v9433
        %v10834 = vpop.f32.mrf.mxu0
        %v10835 = vadd.f32 0.0, %v10834
        %v10836 = vpop.f32.mrf.mxu0
        %v10837 = vadd.f32 0.0, %v10836
        %10838 = vmatmul.bf16.gmra.mxu0 %v10102
        %v10839 = vpop.f32.mrf.mxu0
        %v10840 = vadd.f32 0.0, %v10839
        %v10841 = vpop.f32.mrf.mxu0
        %v10842 = vadd.f32 0.0, %v10841
        %10843 = vmatmul.bf16.gmra.mxu0 %v10710
        %v10844 = vpop.f32.mrf.mxu0
        %v10845 = vadd.f32 0.0, %v10844
        %v10846 = vpop.f32.mrf.mxu0
        %v10847 = vadd.f32 0.0, %v10846
        %10848 = vdwg.mxu0
        %v10849 = vadd.f32 %v10637, %v10770
        %v10850 = vadd.f32 %v10638, %v10772
        %v10851 = vadd.f32 %v10639, %v10775
        %v10852 = vadd.f32 %v10640, %v10777
        %v10853 = vadd.f32 %v10641, %v10780
        %v10854 = vadd.f32 %v10642, %v10782
        %v10855 = vadd.f32 %v10643, %v10785
        %v10856 = vadd.f32 %v10644, %v10787
        %v10857 = vadd.f32 %v10645, %v10790
        %v10858 = vadd.f32 %v10646, %v10792
        %v10859 = vadd.f32 %v10647, %v10795
        %v10860 = vadd.f32 %v10648, %v10797
        %v10861 = vadd.f32 %v10649, %v10800
        %v10862 = vadd.f32 %v10650, %v10802
        %v10863 = vadd.f32 %v10651, %v10805
        %v10864 = vadd.f32 %v10652, %v10807
        %v10865 = vadd.f32 %v10653, %v10810
        %v10866 = vadd.f32 %v10654, %v10812
        %v10867 = vadd.f32 %v10655, %v10815
        %v10868 = vadd.f32 %v10656, %v10817
        %v10869 = vadd.f32 %v10657, %v10820
        %v10870 = vadd.f32 %v10658, %v10822
        %v10871 = vadd.f32 %v10659, %v10825
        %v10872 = vadd.f32 %v10660, %v10827
        %v10873 = vadd.f32 %v10661, %v10830
        %v10874 = vadd.f32 %v10662, %v10832
        %v10875 = vadd.f32 %v10663, %v10835
        %v10876 = vadd.f32 %v10664, %v10837
        %v10877 = vadd.f32 %v10665, %v10840
        %v10878 = vadd.f32 %v10666, %v10842
        %v10879 = vadd.f32 %v10667, %v10845
        %v10880 = vadd.f32 %v10668, %v10847
        %s10881 = scalar_lea.vmem [#allocation9], 448
        %v10882 = vld [vmem:[%s10881] sm:$0xf]
        %v10883 = vld [vmem:[%s10881 + $0x4] sm:$0xf]
        %v10884 = vld [vmem:[%s10881 + $0x8] sm:$0xf]
        %v10885 = vld [vmem:[%s10881 + $0xc] sm:$0xf]
        %v10886 = vld [vmem:[%s10881 + $0x10] sm:$0xf]
        %v10887 = vld [vmem:[%s10881 + $0x14] sm:$0xf]
        %v10888 = vld [vmem:[%s10881 + $0x18] sm:$0xf]
        %v10889 = vld [vmem:[%s10881 + $0x1c] sm:$0xf]
        %v10890 = vld [vmem:[%s10881 + $0x20] sm:$0xf]
        %v10891 = vld [vmem:[%s10881 + $0x24] sm:$0xf]
        %v10892 = vld [vmem:[%s10881 + $0x28] sm:$0xf]
        %v10893 = vld [vmem:[%s10881 + $0x2c] sm:$0xf]
        %v10894 = vld [vmem:[%s10881 + $0x30] sm:$0xf]
        %v10895 = vld [vmem:[%s10881 + $0x34] sm:$0xf]
        %v10896 = vld [vmem:[%s10881 + $0x38] sm:$0xf]
        %v10897 = vld [vmem:[%s10881 + $0x3c] sm:$0xf]
        %v10900 = vunpack.c.l.b16 %v8765
        %v10901 = vunpack.c.l.b16 %v8766
        %v10902 = vpack.c.b16 %v10901, %v10900
        %v10920 = vunpack.c.l.b16 %v10882
        %v10921 = vunpack.c.l.b16 %v10883
        %v10922 = vunpack.c.l.b16 %v10884
        %v10923 = vunpack.c.l.b16 %v10885
        %v10924 = vunpack.c.l.b16 %v10886
        %v10925 = vunpack.c.l.b16 %v10887
        %v10926 = vunpack.c.l.b16 %v10888
        %v10927 = vunpack.c.l.b16 %v10889
        %v10928 = vunpack.c.l.b16 %v10890
        %v10929 = vunpack.c.l.b16 %v10891
        %v10930 = vunpack.c.l.b16 %v10892
        %v10931 = vunpack.c.l.b16 %v10893
        %v10932 = vunpack.c.l.b16 %v10894
        %v10933 = vunpack.c.l.b16 %v10895
        %v10934 = vunpack.c.l.b16 %v10896
        %v10935 = vunpack.c.l.b16 %v10897
        %v10936 = vpack.c.b16 %v10921, %v10920
        %v10937 = vpack.c.b16 %v10923, %v10922
        %v10938 = vpack.c.b16 %v10925, %v10924
        %v10939 = vpack.c.b16 %v10927, %v10926
        %v10940 = vpack.c.b16 %v10929, %v10928
        %v10941 = vpack.c.b16 %v10931, %v10930
        %v10942 = vpack.c.b16 %v10933, %v10932
        %v10943 = vpack.c.b16 %v10935, %v10934
        %10952 = vmatpush.bf16.msra.mxu0 %v10943
        %10953 = vmatpush.bf16.msra.mxu0 %v10942
        %10954 = vmatpush.bf16.msra.mxu0 %v10941
        %10955 = vmatpush.bf16.msra.mxu0 %v10940
        %10956 = vmatpush.bf16.msra.mxu0 %v10939
        %10957 = vmatpush.bf16.msra.mxu0 %v10938
        %10958 = vmatpush.bf16.msra.mxu0 %v10937
        %10959 = vmatpush.bf16.msra.mxu0 %v10936
        %10960 = vmatmul.bf16.gmra.mxu0 %v9219
        %v10961 = vpop.f32.mrf.mxu0
        %v10962 = vadd.f32 0.0, %v10961
        %v10963 = vpop.f32.mrf.mxu0
        %v10964 = vadd.f32 0.0, %v10963
        %10965 = vmatmul.bf16.gmra.mxu0 %v9220
        %v10966 = vpop.f32.mrf.mxu0
        %v10967 = vadd.f32 0.0, %v10966
        %v10968 = vpop.f32.mrf.mxu0
        %v10969 = vadd.f32 0.0, %v10968
        %10970 = vmatmul.bf16.gmra.mxu0 %v9221
        %v10971 = vpop.f32.mrf.mxu0
        %v10972 = vadd.f32 0.0, %v10971
        %v10973 = vpop.f32.mrf.mxu0
        %v10974 = vadd.f32 0.0, %v10973
        %10975 = vmatmul.bf16.gmra.mxu0 %v9222
        %v10976 = vpop.f32.mrf.mxu0
        %v10977 = vadd.f32 0.0, %v10976
        %v10978 = vpop.f32.mrf.mxu0
        %v10979 = vadd.f32 0.0, %v10978
        %10980 = vmatmul.bf16.gmra.mxu0 %v9223
        %v10981 = vpop.f32.mrf.mxu0
        %v10982 = vadd.f32 0.0, %v10981
        %v10983 = vpop.f32.mrf.mxu0
        %v10984 = vadd.f32 0.0, %v10983
        %10985 = vmatmul.bf16.gmra.mxu0 %v9224
        %v10986 = vpop.f32.mrf.mxu0
        %v10987 = vadd.f32 0.0, %v10986
        %v10988 = vpop.f32.mrf.mxu0
        %v10989 = vadd.f32 0.0, %v10988
        %10990 = vmatmul.bf16.gmra.mxu0 %v9225
        %v10991 = vpop.f32.mrf.mxu0
        %v10992 = vadd.f32 0.0, %v10991
        %v10993 = vpop.f32.mrf.mxu0
        %v10994 = vadd.f32 0.0, %v10993
        %10995 = vmatmul.bf16.gmra.mxu0 %v9226
        %v10996 = vpop.f32.mrf.mxu0
        %v10997 = vadd.f32 0.0, %v10996
        %v10998 = vpop.f32.mrf.mxu0
        %v10999 = vadd.f32 0.0, %v10998
        %11000 = vmatmul.bf16.gmra.mxu0 %v9227
        %v11001 = vpop.f32.mrf.mxu0
        %v11002 = vadd.f32 0.0, %v11001
        %v11003 = vpop.f32.mrf.mxu0
        %v11004 = vadd.f32 0.0, %v11003
        %11005 = vmatmul.bf16.gmra.mxu0 %v9228
        %v11006 = vpop.f32.mrf.mxu0
        %v11007 = vadd.f32 0.0, %v11006
        %v11008 = vpop.f32.mrf.mxu0
        %v11009 = vadd.f32 0.0, %v11008
        %11010 = vmatmul.bf16.gmra.mxu0 %v9229
        %v11011 = vpop.f32.mrf.mxu0
        %v11012 = vadd.f32 0.0, %v11011
        %v11013 = vpop.f32.mrf.mxu0
        %v11014 = vadd.f32 0.0, %v11013
        %11015 = vmatmul.bf16.gmra.mxu0 %v9230
        %v11016 = vpop.f32.mrf.mxu0
        %v11017 = vadd.f32 0.0, %v11016
        %v11018 = vpop.f32.mrf.mxu0
        %v11019 = vadd.f32 0.0, %v11018
        %11020 = vmatmul.bf16.gmra.mxu0 %v9231
        %v11021 = vpop.f32.mrf.mxu0
        %v11022 = vadd.f32 0.0, %v11021
        %v11023 = vpop.f32.mrf.mxu0
        %v11024 = vadd.f32 0.0, %v11023
        %11025 = vmatmul.bf16.gmra.mxu0 %v9232
        %v11026 = vpop.f32.mrf.mxu0
        %v11027 = vadd.f32 0.0, %v11026
        %v11028 = vpop.f32.mrf.mxu0
        %v11029 = vadd.f32 0.0, %v11028
        %11030 = vmatmul.bf16.gmra.mxu0 %v10294
        %v11031 = vpop.f32.mrf.mxu0
        %v11032 = vadd.f32 0.0, %v11031
        %v11033 = vpop.f32.mrf.mxu0
        %v11034 = vadd.f32 0.0, %v11033
        %11035 = vmatmul.bf16.gmra.mxu0 %v10902
        %v11036 = vpop.f32.mrf.mxu0
        %v11037 = vadd.f32 0.0, %v11036
        %v11038 = vpop.f32.mrf.mxu0
        %v11039 = vadd.f32 0.0, %v11038
        %11040 = vdwg.mxu0
        %v11041 = vadd.f32 %v10849, %v10962
        %v11042 = vadd.f32 %v10850, %v10964
        %v11043 = vadd.f32 %v10851, %v10967
        %v11044 = vadd.f32 %v10852, %v10969
        %v11045 = vadd.f32 %v10853, %v10972
        %v11046 = vadd.f32 %v10854, %v10974
        %v11047 = vadd.f32 %v10855, %v10977
        %v11048 = vadd.f32 %v10856, %v10979
        %v11049 = vadd.f32 %v10857, %v10982
        %v11050 = vadd.f32 %v10858, %v10984
        %v11051 = vadd.f32 %v10859, %v10987
        %v11052 = vadd.f32 %v10860, %v10989
        %v11053 = vadd.f32 %v10861, %v10992
        %v11054 = vadd.f32 %v10862, %v10994
        %v11055 = vadd.f32 %v10863, %v10997
        %v11056 = vadd.f32 %v10864, %v10999
        %v11057 = vadd.f32 %v10865, %v11002
        %v11058 = vadd.f32 %v10866, %v11004
        %v11059 = vadd.f32 %v10867, %v11007
        %v11060 = vadd.f32 %v10868, %v11009
        %v11061 = vadd.f32 %v10869, %v11012
        %v11062 = vadd.f32 %v10870, %v11014
        %v11063 = vadd.f32 %v10871, %v11017
        %v11064 = vadd.f32 %v10872, %v11019
        %v11065 = vadd.f32 %v10873, %v11022
        %v11066 = vadd.f32 %v10874, %v11024
        %v11067 = vadd.f32 %v10875, %v11027
        %v11068 = vadd.f32 %v10876, %v11029
        %v11069 = vadd.f32 %v10877, %v11032
        %v11070 = vadd.f32 %v10878, %v11034
        %v11071 = vadd.f32 %v10879, %v11037
        %v11072 = vadd.f32 %v10880, %v11039
        %v11073 = vrot.slane %v10675, 4
        %v11074 = vrot.slane %v10678, 5
        %v11075 = vor.u32 %v11073, %v11074
        %v11076 = vrot.slane %v11075, 4
        %v11077 = vrot.slane %v10687, 5
        %v11078 = vsel %vm1409, %v11076, %v11077
        %v11079 = vrot.slane %v10684, 4
        %v11080 = vor.u32 %v11079, %v11077
        %v11081 = vrot.slane %v11080, 4
        %v11083 = vshll.u32 %v8767, 16
        %v11085 = vrot.slane %v11083, 5
        %v11086 = vsel %vm1409, %v11081, %v11085
        %s11087 = scalar_lea.vmem [#allocation9], 512
        %v11088 = vld [vmem:[%s11087] sm:$0xf]
        %v11089 = vld [vmem:[%s11087 + $0x4] sm:$0xf]
        %v11090 = vld [vmem:[%s11087 + $0x8] sm:$0xf]
        %v11091 = vld [vmem:[%s11087 + $0xc] sm:$0xf]
        %v11092 = vld [vmem:[%s11087 + $0x10] sm:$0xf]
        %v11093 = vld [vmem:[%s11087 + $0x14] sm:$0xf]
        %v11094 = vld [vmem:[%s11087 + $0x18] sm:$0xf]
        %v11095 = vld [vmem:[%s11087 + $0x1c] sm:$0xf]
        %v11096 = vld [vmem:[%s11087 + $0x20] sm:$0xf]
        %v11097 = vld [vmem:[%s11087 + $0x24] sm:$0xf]
        %v11098 = vld [vmem:[%s11087 + $0x28] sm:$0xf]
        %v11099 = vld [vmem:[%s11087 + $0x2c] sm:$0xf]
        %v11100 = vld [vmem:[%s11087 + $0x30] sm:$0xf]
        %v11101 = vld [vmem:[%s11087 + $0x34] sm:$0xf]
        %v11102 = vld [vmem:[%s11087 + $0x38] sm:$0xf]
        %v11103 = vld [vmem:[%s11087 + $0x3c] sm:$0xf]
        %v11104 = vunpack.c.l.b16 %v11078
        %v11105 = vunpack.c.l.b16 %v11086
        %v11106 = vpack.c.b16 %v11105, %v11104
        %v11124 = vunpack.c.l.b16 %v11088
        %v11125 = vunpack.c.l.b16 %v11089
        %v11126 = vunpack.c.l.b16 %v11090
        %v11127 = vunpack.c.l.b16 %v11091
        %v11128 = vunpack.c.l.b16 %v11092
        %v11129 = vunpack.c.l.b16 %v11093
        %v11130 = vunpack.c.l.b16 %v11094
        %v11131 = vunpack.c.l.b16 %v11095
        %v11132 = vunpack.c.l.b16 %v11096
        %v11133 = vunpack.c.l.b16 %v11097
        %v11134 = vunpack.c.l.b16 %v11098
        %v11135 = vunpack.c.l.b16 %v11099
        %v11136 = vunpack.c.l.b16 %v11100
        %v11137 = vunpack.c.l.b16 %v11101
        %v11138 = vunpack.c.l.b16 %v11102
        %v11139 = vunpack.c.l.b16 %v11103
        %v11140 = vpack.c.b16 %v11125, %v11124
        %v11141 = vpack.c.b16 %v11127, %v11126
        %v11142 = vpack.c.b16 %v11129, %v11128
        %v11143 = vpack.c.b16 %v11131, %v11130
        %v11144 = vpack.c.b16 %v11133, %v11132
        %v11145 = vpack.c.b16 %v11135, %v11134
        %v11146 = vpack.c.b16 %v11137, %v11136
        %v11147 = vpack.c.b16 %v11139, %v11138
        %11156 = vmatpush.bf16.msra.mxu0 %v11147
        %11157 = vmatpush.bf16.msra.mxu0 %v11146
        %11158 = vmatpush.bf16.msra.mxu0 %v11145
        %11159 = vmatpush.bf16.msra.mxu0 %v11144
        %11160 = vmatpush.bf16.msra.mxu0 %v11143
        %11161 = vmatpush.bf16.msra.mxu0 %v11142
        %11162 = vmatpush.bf16.msra.mxu0 %v11141
        %11163 = vmatpush.bf16.msra.mxu0 %v11140
        %11164 = vmatmul.bf16.gmra.mxu0 %v9862
        %v11165 = vpop.f32.mrf.mxu0
        %v11166 = vadd.f32 0.0, %v11165
        %v11167 = vpop.f32.mrf.mxu0
        %v11168 = vadd.f32 0.0, %v11167
        %11169 = vmatmul.bf16.gmra.mxu0 %v9863
        %v11170 = vpop.f32.mrf.mxu0
        %v11171 = vadd.f32 0.0, %v11170
        %v11172 = vpop.f32.mrf.mxu0
        %v11173 = vadd.f32 0.0, %v11172
        %11174 = vmatmul.bf16.gmra.mxu0 %v9864
        %v11175 = vpop.f32.mrf.mxu0
        %v11176 = vadd.f32 0.0, %v11175
        %v11177 = vpop.f32.mrf.mxu0
        %v11178 = vadd.f32 0.0, %v11177
        %11179 = vmatmul.bf16.gmra.mxu0 %v9865
        %v11180 = vpop.f32.mrf.mxu0
        %v11181 = vadd.f32 0.0, %v11180
        %v11182 = vpop.f32.mrf.mxu0
        %v11183 = vadd.f32 0.0, %v11182
        %11184 = vmatmul.bf16.gmra.mxu0 %v9866
        %v11185 = vpop.f32.mrf.mxu0
        %v11186 = vadd.f32 0.0, %v11185
        %v11187 = vpop.f32.mrf.mxu0
        %v11188 = vadd.f32 0.0, %v11187
        %11189 = vmatmul.bf16.gmra.mxu0 %v9867
        %v11190 = vpop.f32.mrf.mxu0
        %v11191 = vadd.f32 0.0, %v11190
        %v11192 = vpop.f32.mrf.mxu0
        %v11193 = vadd.f32 0.0, %v11192
        %11194 = vmatmul.bf16.gmra.mxu0 %v9868
        %v11195 = vpop.f32.mrf.mxu0
        %v11196 = vadd.f32 0.0, %v11195
        %v11197 = vpop.f32.mrf.mxu0
        %v11198 = vadd.f32 0.0, %v11197
        %11199 = vmatmul.bf16.gmra.mxu0 %v9869
        %v11200 = vpop.f32.mrf.mxu0
        %v11201 = vadd.f32 0.0, %v11200
        %v11202 = vpop.f32.mrf.mxu0
        %v11203 = vadd.f32 0.0, %v11202
        %11204 = vmatmul.bf16.gmra.mxu0 %v9870
        %v11205 = vpop.f32.mrf.mxu0
        %v11206 = vadd.f32 0.0, %v11205
        %v11207 = vpop.f32.mrf.mxu0
        %v11208 = vadd.f32 0.0, %v11207
        %11209 = vmatmul.bf16.gmra.mxu0 %v9871
        %v11210 = vpop.f32.mrf.mxu0
        %v11211 = vadd.f32 0.0, %v11210
        %v11212 = vpop.f32.mrf.mxu0
        %v11213 = vadd.f32 0.0, %v11212
        %11214 = vmatmul.bf16.gmra.mxu0 %v9872
        %v11215 = vpop.f32.mrf.mxu0
        %v11216 = vadd.f32 0.0, %v11215
        %v11217 = vpop.f32.mrf.mxu0
        %v11218 = vadd.f32 0.0, %v11217
        %11219 = vmatmul.bf16.gmra.mxu0 %v9873
        %v11220 = vpop.f32.mrf.mxu0
        %v11221 = vadd.f32 0.0, %v11220
        %v11222 = vpop.f32.mrf.mxu0
        %v11223 = vadd.f32 0.0, %v11222
        %11224 = vmatmul.bf16.gmra.mxu0 %v9874
        %v11225 = vpop.f32.mrf.mxu0
        %v11226 = vadd.f32 0.0, %v11225
        %v11227 = vpop.f32.mrf.mxu0
        %v11228 = vadd.f32 0.0, %v11227
        %11229 = vmatmul.bf16.gmra.mxu0 %v9875
        %v11230 = vpop.f32.mrf.mxu0
        %v11231 = vadd.f32 0.0, %v11230
        %v11232 = vpop.f32.mrf.mxu0
        %v11233 = vadd.f32 0.0, %v11232
        %11234 = vmatmul.bf16.gmra.mxu0 %v10498
        %v11235 = vpop.f32.mrf.mxu0
        %v11236 = vadd.f32 0.0, %v11235
        %v11237 = vpop.f32.mrf.mxu0
        %v11238 = vadd.f32 0.0, %v11237
        %11239 = vmatmul.bf16.gmra.mxu0 %v11106
        %v11240 = vpop.f32.mrf.mxu0
        %v11241 = vadd.f32 0.0, %v11240
        %v11242 = vpop.f32.mrf.mxu0
        %v11243 = vadd.f32 0.0, %v11242
        %11244 = vdwg.mxu0
        %v11245 = vadd.f32 %v11041, %v11166
        %v11246 = vadd.f32 %v11042, %v11168
        %v11247 = vadd.f32 %v11043, %v11171
        %v11248 = vadd.f32 %v11044, %v11173
        %v11249 = vadd.f32 %v11045, %v11176
        %v11250 = vadd.f32 %v11046, %v11178
        %v11251 = vadd.f32 %v11047, %v11181
        %v11252 = vadd.f32 %v11048, %v11183
        %v11253 = vadd.f32 %v11049, %v11186
        %v11254 = vadd.f32 %v11050, %v11188
        %v11255 = vadd.f32 %v11051, %v11191
        %v11256 = vadd.f32 %v11052, %v11193
        %v11257 = vadd.f32 %v11053, %v11196
        %v11258 = vadd.f32 %v11054, %v11198
        %v11259 = vadd.f32 %v11055, %v11201
        %v11260 = vadd.f32 %v11056, %v11203
        %v11261 = vadd.f32 %v11057, %v11206
        %v11262 = vadd.f32 %v11058, %v11208
        %v11263 = vadd.f32 %v11059, %v11211
        %v11264 = vadd.f32 %v11060, %v11213
        %v11265 = vadd.f32 %v11061, %v11216
        %v11266 = vadd.f32 %v11062, %v11218
        %v11267 = vadd.f32 %v11063, %v11221
        %v11268 = vadd.f32 %v11064, %v11223
        %v11269 = vadd.f32 %v11065, %v11226
        %v11270 = vadd.f32 %v11066, %v11228
        %v11271 = vadd.f32 %v11067, %v11231
        %v11272 = vadd.f32 %v11068, %v11233
        %v11273 = vadd.f32 %v11069, %v11236
        %v11274 = vadd.f32 %v11070, %v11238
        %v11275 = vadd.f32 %v11071, %v11241
        %v11276 = vadd.f32 %v11072, %v11243
        %v11277 = vld [vmem:[%s9] sm:$0x1]
        %v11279 = vperm.slane %v11277, 0
        %v11281 = vadd.f32 %v11245, %v11279
        %v11282 = vadd.f32 %v11246, %v11279
        %v11283 = vadd.f32 %v11247, %v11279
        %v11284 = vadd.f32 %v11248, %v11279
        %v11285 = vadd.f32 %v11249, %v11279
        %v11286 = vadd.f32 %v11250, %v11279
        %v11287 = vadd.f32 %v11251, %v11279
        %v11288 = vadd.f32 %v11252, %v11279
        %v11289 = vadd.f32 %v11253, %v11279
        %v11290 = vadd.f32 %v11254, %v11279
        %v11291 = vadd.f32 %v11255, %v11279
        %v11292 = vadd.f32 %v11256, %v11279
        %v11293 = vadd.f32 %v11257, %v11279
        %v11294 = vadd.f32 %v11258, %v11279
        %v11295 = vadd.f32 %v11259, %v11279
        %v11296 = vadd.f32 %v11260, %v11279
        %v11297 = vadd.f32 %v11261, %v11279
        %v11298 = vadd.f32 %v11262, %v11279
        %v11299 = vadd.f32 %v11263, %v11279
        %v11300 = vadd.f32 %v11264, %v11279
        %v11301 = vadd.f32 %v11265, %v11279
        %v11302 = vadd.f32 %v11266, %v11279
        %v11303 = vadd.f32 %v11267, %v11279
        %v11304 = vadd.f32 %v11268, %v11279
        %v11305 = vadd.f32 %v11269, %v11279
        %v11306 = vadd.f32 %v11270, %v11279
        %v11307 = vadd.f32 %v11271, %v11279
        %v11308 = vadd.f32 %v11272, %v11279
        %v11309 = vadd.f32 %v11273, %v11279
        %v11310 = vadd.f32 %v11274, %v11279
        %v11311 = vadd.f32 %v11275, %v11279
        %v11312 = vadd.f32 %v11276, %v11279
        %11313 = vst [vmem:[%s413] sm:$0xff] %v11281
        %11314 = vst [vmem:[%s413 + $0x8] sm:$0xff] %v11282
        %11315 = vst [vmem:[%s413 + $0x10] sm:$0xff] %v11283
        %11316 = vst [vmem:[%s413 + $0x18] sm:$0xff] %v11284
        %11317 = vst [vmem:[%s413 + $0x20] sm:$0xff] %v11285
        %11318 = vst [vmem:[%s413 + $0x28] sm:$0xff] %v11286
        %11319 = vst [vmem:[%s413 + $0x30] sm:$0xff] %v11287
        %11320 = vst [vmem:[%s413 + $0x38] sm:$0xff] %v11288
        %11321 = vst [vmem:[%s413 + $0x40] sm:$0xff] %v11289
        %11322 = vst [vmem:[%s413 + $0x48] sm:$0xff] %v11290
        %11323 = vst [vmem:[%s413 + $0x50] sm:$0xff] %v11291
        %11324 = vst [vmem:[%s413 + $0x58] sm:$0xff] %v11292
        %11325 = vst [vmem:[%s413 + $0x60] sm:$0xff] %v11293
        %11326 = vst [vmem:[%s413 + $0x68] sm:$0xff] %v11294
        %11327 = vst [vmem:[%s413 + $0x70] sm:$0xff] %v11295
        %11328 = vst [vmem:[%s413 + $0x78] sm:$0xff] %v11296
        %11329 = vst [vmem:[%s413 + $0x80] sm:$0xff] %v11297
        %11330 = vst [vmem:[%s413 + $0x88] sm:$0xff] %v11298
        %11331 = vst [vmem:[%s413 + $0x90] sm:$0xff] %v11299
        %11332 = vst [vmem:[%s413 + $0x98] sm:$0xff] %v11300
        %11333 = vst [vmem:[%s413 + $0xa0] sm:$0xff] %v11301
        %11334 = vst [vmem:[%s413 + $0xa8] sm:$0xff] %v11302
        %11335 = vst [vmem:[%s413 + $0xb0] sm:$0xff] %v11303
        %11336 = vst [vmem:[%s413 + $0xb8] sm:$0xff] %v11304
        %11337 = vst [vmem:[%s413 + $0xc0] sm:$0xff] %v11305
        %11338 = vst [vmem:[%s413 + $0xc8] sm:$0xff] %v11306
        %11339 = vst [vmem:[%s413 + $0xd0] sm:$0xff] %v11307
        %11340 = vst [vmem:[%s413 + $0xd8] sm:$0xff] %v11308
        %11341 = vst [vmem:[%s413 + $0xe0] sm:$0xff] %v11309
        %11342 = vst [vmem:[%s413 + $0xe8] sm:$0xff] %v11310
        %11343 = vst [vmem:[%s413 + $0xf0] sm:$0xff] %v11311
        %11344 = vst [vmem:[%s413 + $0xf8] sm:$0xff] %v11312
        %s11345 = sand.u32 %s254, 1
        %s11346 = scalar_lea.sflag [#allocation6], %s11345
        %s11347 = sand.u32 %s254, 1
        %s11348 = smul.addr %s11347, 256
        %s11349 = scalar_lea.vmem [#allocation10], %s11348
        // Predicated region
        $region73: #{tpu_custom_call.1} parent=59 // pred_check
          %p11350 = pneg %p264
        $region74: #{tpu_custom_call.1} parent=59 // pred_check_branch
          %11352 = sbr.rel (%p11350) target = $region76
        $region75: #{tpu_custom_call.1} parent=59 // pred_region
          %11354 = vsyncadd %s11346, 0
          %s11355 = smul.addr %s26, 32
          %s11356 = smul.addr %s11355, 8
          %s11357 = scalar_lea.hbm %s10, %s11356
          %s11358 = sshll.u32 %s11349, 4
          %s11359 = int_to_ptr.vmem [resolvable:$true] %s11358
          %s11360 = sshll.u32 %s11357, 4
          %s11361 = int_to_ptr.hbm [resolvable:$true] %s11360
          %11366 = dma.vmem_to_hbm [thread:$0]  %s11359, 4096, %s11361, %s11346, 128, 128, 8
        $region76: #{tpu_custom_call.1} parent=59 // pred_fallthru
          _
      $region60: #{tpu_custom_call.1} parent=5 // pred_fallthru
        _
      %p11367 = scmp.le.s32.totalorder 2, %s21
      // Predicated region
      $region77: #{tpu_custom_call.1} parent=5 // pred_check
        %p11368 = pneg %p11367
      $region78: #{tpu_custom_call.1} parent=5 // pred_check_branch
        %11370 = sbr.rel (%p11368) target = $region80
      $region79: #{tpu_custom_call.1} parent=5 // pred_region
        %s11371 = ssub.s32 %s21, 2
        // Predicated region
        $region81: #{tpu_custom_call.1} parent=79 // pred_check
          %p11372 = pneg %p270
        $region82: #{tpu_custom_call.1} parent=79 // pred_check_branch
          %11374 = sbr.rel (%p11372) target = $region84
        $region83: #{tpu_custom_call.1} parent=79 // pred_region
          %s11375 = sand.u32 %s255, 1
          %s11376 = scalar_lea.sflag [#allocation6], %s11375
          %s11377 = sand.u32 %s255, 1
          %s11378 = smul.addr %s11377, 256
          %s11379 = scalar_lea.vmem [#allocation10], %s11378
          %11381 = dma.done %s11376, 4096
        $region84: #{tpu_custom_call.1} parent=79 // pred_fallthru
          _
      $region80: #{tpu_custom_call.1} parent=5 // pred_fallthru
        _
    $region6: #{tpu_custom_call.1} parent=1 // loop_footer
      %s25 = sadd.s32 1, %s21
    $region7: #{tpu_custom_call.1} parent=1 // loop_footer_branch
      %20 = sbr.rel target = $region3
    $region8: #{tpu_custom_call.1} parent=1 // loop_exit
      _
    %11382 = vsyncpa [#allocation5], 1
    %s11383 = scalar_lea.sflag [#allocation5], 1
    %11384 = vsyncpa %s11383, 1
    %11385 = vsyncpa [#allocation8], 1
    %11386 = vsyncpa [#allocation6], 1
    %s11387 = scalar_lea.sflag [#allocation6], 1
    %11388 = vsyncpa %s11387, 1

</llo_original>
